<compile_context>
chip_gen: v7x
topology: tpu7x:2x2x1
jax: 0.10.0
libtpu: 0.0.40
codegen_flags: <defaults>
</compile_context>

<pallas_src>
import numpy as np
import jax
import jax.numpy as jnp
from jax.experimental import pallas as pl
from jax.experimental.pallas import tpu as pltpu

# Make the pure-JAX reference matmuls bit-comparable to the in-kernel f32 dots.
jax.config.update("jax_default_matmul_precision", "highest")

# ----------------------------- hyper-parameters ------------------------------
IN_SIZE = 4          # args.in_size
HIDDEN = 32          # cfg_fc[0]
OUT_SIZE = 6         # args.out_size
BRANCH = 4
BH = BRANCH * HIDDEN # 128 lanes (branch-major columns)
VTH = 0.5            # args.thresh
DT = 1.0
SEQ = 8              # sequence length used for the test (== T for the rhythm mask)
BATCH = 2

CYCLE_MIN, CYCLE_MAX = 2.0, 8.0          # cycle_min[0], cycle_max[0]
DUTY_MIN, DUTY_MAX = 0.5, 1.0            # duty_cycle_min[0], duty_cycle_max[0]
PHASE_MAX = 4.0                          # phase_max[0]

# ------------------------ packed-parameter slab layout -----------------------
# "vector slab" (V_ROWS, 128): small per-neuron vectors, initial state, rhythm mask.
ROW_B1 = 0                               # (1, BH)   dense_1 bias (branch-major)
ROW_TAUN = 1                             # (1, BH)   tau_n  (branch-major)
ROW_TAUM1 = 2                            # (1, H)    tau_m layer 1
ROW_B2 = 3                               # (1, OUT)  dense_2 bias
ROW_TAUM2 = 4                            # (1, OUT)  tau_m layer 2
ROW_MEM1 = 5                             # (B, H)    mem1 init
ROW_MEM2 = ROW_MEM1 + BATCH              # (B, OUT)  mem2 init
ROW_MASK = ROW_MEM2 + BATCH              # (T, H)    rhythm mask
V_ROWS = ((ROW_MASK + SEQ + 7) // 8) * 8

# "weight slab" (W_ROWS, W_COLS):
#   lanes [0 : T*BH)          block-diagonal feed-forward weight (T*IN rows)
#   lanes [T*BH : T*BH+256)   [ W1h (H,128) | W2 lane-padded to (H,128) ]
KX = SEQ * IN_SIZE
W_ROWS = max(KX, HIDDEN)
W_COLS = SEQ * BH + 2 * 128


# ------------------------------ parameter setup ------------------------------
def create_rhythm_mask(dim, c_min, c_max, dc_min, dc_max, phase_max, T):
    """Per-neuron periodic on/off mask, shape [T, dim] (time-major)."""
    mask = np.zeros((dim, T), dtype=np.float32)
    cycles = np.linspace(c_min, c_max, dim)
    dcs = np.linspace(dc_min, dc_max, dim)
    phases = np.linspace(0.0, phase_max, dim)
    for i in range(dim):
        cycle = int(np.ceil(cycles[i]))
        on = int(np.ceil(dcs[i] * cycle))
        pattern = [1.0] * on + [0.0] * (cycle - on)
        shift = int(round(phases[i])) % cycle
        if shift:
            pattern = pattern[-shift:] + pattern[:-shift]
        full = (pattern * (T // cycle + 1))[:T]
        mask[i] = np.asarray(full, dtype=np.float32)
    return mask.T.copy()  # [T, dim]


def create_dendrite_mask(rng, in_total, out_dim, branch):
    """Sparse branch-connectivity mask, shape [out_dim, branch, in_total]."""
    pad = (branch - in_total % branch) % branch
    padded = in_total + pad
    per = padded // branch
    mask = np.zeros((out_dim, branch, padded), dtype=np.float32)
    for h in range(out_dim):
        perm = rng.permutation(padded)
        for b in range(branch):
            mask[h, b, perm[b * per:(b + 1) * per]] = 1.0
    return mask[:, :, :in_total]


def make_params(key):
    ks = jax.random.split(key, 8)
    k_tot = IN_SIZE + HIDDEN
    lim1 = 1.0 / np.sqrt(k_tot)
    # dense1 weight in PyTorch layout [H*branch, IN+H]; build as [H, BRANCH, K]
    w1 = jax.random.uniform(ks[0], (HIDDEN, BRANCH, k_tot), jnp.float32, -lim1, lim1)
    b1_raw = jax.random.uniform(ks[1], (HIDDEN, BRANCH), jnp.float32, -lim1, lim1)
    # sparse dendritic mask (applied to the weights, as in DH-SNN apply_mask)
    dmask = jnp.asarray(create_dendrite_mask(np.random.RandomState(0), k_tot, HIDDEN, BRANCH))
    w1 = w1 * dmask
    # branch-major column layout: W[k, b*H + h] = w1[h, b, k]
    w1_full = jnp.transpose(w1, (2, 1, 0)).reshape(k_tot, BH)
    w1x = w1_full[:IN_SIZE, :]                      # (IN, BRANCH*H)
    w1h = w1_full[IN_SIZE:, :]                      # (H,  BRANCH*H)
    b1 = jnp.transpose(b1_raw, (1, 0)).reshape(1, BH)

    # tau_m ~ U(0,0) -> 0 ; tau_n ~ U(0,0) -> 0 (branch-major like the columns)
    tau_m1 = jnp.zeros((1, HIDDEN), jnp.float32)
    tau_n = jnp.zeros((1, BH), jnp.float32)

    lim2 = 1.0 / np.sqrt(HIDDEN)
    w2 = jax.random.uniform(ks[2], (HIDDEN, OUT_SIZE), jnp.float32, -lim2, lim2)
    b2 = jax.random.uniform(ks[3], (1, OUT_SIZE), jnp.float32, -lim2, lim2)
    tau_m2 = jax.random.uniform(ks[4], (1, OUT_SIZE), jnp.float32, 0.0, 4.0)

    # set_neuron_state: mem initialised to rand * vth
    mem1_init = jax.random.uniform(ks[5], (BATCH, HIDDEN), jnp.float32) * VTH
    mem2_init = jax.random.uniform(ks[6], (BATCH, OUT_SIZE), jnp.float32) * 0.5

    rmask_td = jnp.asarray(
        create_rhythm_mask(HIDDEN, CYCLE_MIN, CYCLE_MAX, DUTY_MIN, DUTY_MAX, PHASE_MAX, SEQ)
    )                                               # (T, H)

    # ---------------- pack everything into 2 slabs (3 DMAs incl. x) ----------
    # block-diagonal feed-forward weight: XW_all = x.reshape(B, T*IN) @ w1x_blk
    w1x_blk = jnp.zeros((KX, SEQ * BH), jnp.float32)
    for t in range(SEQ):
        w1x_blk = w1x_blk.at[t * IN_SIZE:(t + 1) * IN_SIZE, t * BH:(t + 1) * BH].set(w1x)
    # concat recurrent + readout weights: spike @ [w1h | pad(w2)] -> (B, 256)
    w2_pad = jnp.zeros((HIDDEN, 128), jnp.float32).at[:, :OUT_SIZE].set(w2)
    w_cat = jnp.concatenate([w1h, w2_pad], axis=1)  # (H, 256)

    w_slab = jnp.zeros((W_ROWS, W_COLS), jnp.float32)
    w_slab = w_slab.at[:KX, :SEQ * BH].set(w1x_blk)
    w_slab = w_slab.at[:HIDDEN, SEQ * BH:].set(w_cat)

    v = jnp.zeros((V_ROWS, 128), jnp.float32)
    v = v.at[ROW_B1, :BH].set(b1[0])
    v = v.at[ROW_TAUN, :BH].set(tau_n[0])
    v = v.at[ROW_TAUM1, :HIDDEN].set(tau_m1[0])
    v = v.at[ROW_B2, :OUT_SIZE].set(b2[0])
    v = v.at[ROW_TAUM2, :OUT_SIZE].set(tau_m2[0])
    v = v.at[ROW_MEM1:ROW_MEM1 + BATCH, :HIDDEN].set(mem1_init)
    v = v.at[ROW_MEM2:ROW_MEM2 + BATCH, :OUT_SIZE].set(mem2_init)
    v = v.at[ROW_MASK:ROW_MASK + SEQ, :HIDDEN].set(rmask_td)

    return dict(w_slab=w_slab, v_slab=v,
                # raw pieces kept only for the pure-JAX reference check below
                w1x=w1x, w1h=w1h, b1=b1, tau_n=tau_n, tau_m1=tau_m1,
                w2=w2, b2=b2, tau_m2=tau_m2,
                mem1_init=mem1_init, mem2_init=mem2_init, rmask=rmask_td)


# --------------------------------- kernel ------------------------------------
def rnn_kernel(x_ref, w_ref, v_ref, out_ref):
    B = x_ref.shape[0]

    # ---- time-invariant values: loaded / computed once, kept in vregs -------
    b1 = v_ref[ROW_B1:ROW_B1 + 1, :BH]                          # (1, BH)
    beta = jax.nn.sigmoid(v_ref[ROW_TAUN:ROW_TAUN + 1, :BH])    # (1, BH)
    one_m_beta = 1.0 - beta
    alpha1 = jax.nn.sigmoid(v_ref[ROW_TAUM1:ROW_TAUM1 + 1, :HIDDEN])
    one_m_alpha1_dt = (1.0 - alpha1) * DT
    b2 = v_ref[ROW_B2:ROW_B2 + 1, :OUT_SIZE]
    alpha2 = jax.nn.sigmoid(v_ref[ROW_TAUM2:ROW_TAUM2 + 1, :OUT_SIZE])
    one_m_alpha2 = 1.0 - alpha2

    mem1 = v_ref[ROW_MEM1:ROW_MEM1 + B, :HIDDEN]                # (B, H)
    mem2 = v_ref[ROW_MEM2:ROW_MEM2 + B, :OUT_SIZE]              # (B, OUT)
    # 0/1 rhythm masks, precomputed as bools before the recurrent loop
    masks = [v_ref[ROW_MASK + t:ROW_MASK + t + 1, :HIDDEN] != 0.0 for t in range(SEQ)]

    w1x_blk = w_ref[:KX, :SEQ * BH]                             # (T*IN, T*BH) block-diag
    w_cat = w_ref[:HIDDEN, SEQ * BH:SEQ * BH + 2 * 128]         # (H, 256) = [w1h | pad(w2)]

    # ---- hoisted feed-forward projection: ONE matmul for all timesteps ------
    xw_all = jnp.dot(x_ref[...], w1x_blk, preferred_element_type=jnp.float32)  # (B, T*BH)
    # per-step 128-lane-aligned slices (+bias) off the critical path
    xwb = [xw_all[:, t * BH:(t + 1) * BH] + b1 for t in range(SEQ)]

    # ---- recurrent state lives in registers across the unrolled time loop ---
    rec = jnp.zeros((B, BH), jnp.float32)        # spike_{t-1} @ w1h (zero at t=0)
    spike_prev = jnp.zeros((B, HIDDEN), jnp.float32)
    d = jnp.zeros((B, BH), jnp.float32)          # dendritic currents, branch-major
    mem2_steps = []

    for t in range(SEQ):                         # static unroll (T == SEQ == 8)
        # dense_1(cat(x, spike)): hoisted x-part + carried recurrent part
        cur = xwb[t] + rec                       # (B, BH)

        # dendritic low-pass filter: single full-128-lane VPU update
        d = beta * d + one_m_beta * cur

        # branch sum: four aligned lane-slice adds (lanes b*H + h, b = 0..3)
        l_in = (d[:, 0 * HIDDEN:1 * HIDDEN] + d[:, 1 * HIDDEN:2 * HIDDEN]
                + d[:, 2 * HIDDEN:3 * HIDDEN] + d[:, 3 * HIDDEN:4 * HIDDEN])  # (B, H)

        # membrane update; rhythmic gating via selects (mask is strictly 0/1);
        # soft reset uses the PREVIOUS step's spike.
        cand = alpha1 * mem1 + one_m_alpha1_dt * l_in - VTH * spike_prev
        mem1 = jnp.where(masks[t], cand, mem1)
        spike = ((mem1 > VTH) & masks[t]).astype(jnp.float32)

        # ONE combined matmul: [recurrent drive for t+1 | readout drive for t]
        comb = jnp.dot(spike, w_cat, preferred_element_type=jnp.float32)   # (B, 256)
        rec = comb[:, :BH]
        den = comb[:, BH:BH + OUT_SIZE] + b2

        # readout LIF layer (no spike reset on the readout membrane)
        mem2 = alpha2 * mem2 + one_m_alpha2 * den
        mem2_steps.append(mem2)
        spike_prev = spike

    # ---- batched log_softmax + single output store (off the serial chain) ---
    slab = jnp.concatenate(mem2_steps, axis=0)          # (T*B, OUT), time-major rows
    z = slab - jnp.max(slab, axis=1, keepdims=True)
    lse = jnp.log(jnp.sum(jnp.exp(z), axis=1, keepdims=True))
    out_ref[...] = (z - lse).astype(out_ref.dtype)


# --------------------------------- wrapper ------------------------------------
def _full_spec(shape):
    return pl.BlockSpec(shape, lambda i, _s=shape: (0,) * len(_s))


@jax.jit
def rnn_test_forward(x_bti, w_slab, v_slab):
    """x_bti: [batch, seq, in]  ->  [batch, out, seq] of per-step log_softmax."""
    B, T, IN = x_bti.shape
    x2 = x_bti.reshape(B, T * IN)                # contiguous reshape, no transpose

    out_flat = pl.pallas_call(
        rnn_kernel,
        out_shape=jax.ShapeDtypeStruct((T * B, OUT_SIZE), jnp.float32),
        grid=(1,),                               # single invocation; T loop is in-kernel
        in_specs=[
            _full_spec((B, T * IN)),             # x (whole sequence, one DMA)
            _full_spec((W_ROWS, W_COLS)),        # packed weight slab (one DMA)
            _full_spec((V_ROWS, 128)),           # packed vectors/state/mask slab (one DMA)
        ],
        out_specs=_full_spec((T * B, OUT_SIZE)),
        compiler_params=pltpu.CompilerParams(
            dimension_semantics=("arbitrary",)),
    )(x2, w_slab, v_slab)

    # torch.stack(outputs).permute(1, 2, 0) -> [batch, out, seq]
    # (tiny fused reshape+permute of 768 bytes inside the same jit)
    return jnp.transpose(out_flat.reshape(T, B, OUT_SIZE), (1, 2, 0))


# ---------------------------- pure-JAX reference ------------------------------
def reference_forward(x, p):
    B, T, _ = x.shape
    beta = jax.nn.sigmoid(p["tau_n"])
    alpha1 = jax.nn.sigmoid(p["tau_m1"])
    alpha2 = jax.nn.sigmoid(p["tau_m2"])
    mem1 = p["mem1_init"]
    mem2 = p["mem2_init"]
    spike = jnp.zeros((B, HIDDEN), jnp.float32)
    d = jnp.zeros((B, BH), jnp.float32)
    outs = []
    for t in range(T):
        x_t = x[:, t, :]
        cur = x_t @ p["w1x"] + spike @ p["w1h"] + p["b1"]
        d = beta * d + (1.0 - beta) * cur
        l_in = d.reshape(B, BRANCH, HIDDEN).sum(axis=1)
        m = p["rmask"][t][None, :]
        cand = alpha1 * mem1 + (1.0 - alpha1) * DT * l_in - VTH * spike
        mem1 = m * cand + (1.0 - m) * mem1
        spike = (mem1 > VTH).astype(jnp.float32) * m
        den = spike @ p["w2"] + p["b2"]
        mem2 = alpha2 * mem2 + (1.0 - alpha2) * den
        outs.append(jax.nn.log_softmax(mem2, axis=1))
    return jnp.stack(outs).transpose(1, 2, 0)


# ----------------------------------- main -------------------------------------
if __name__ == "__main__":
    key = jax.random.PRNGKey(0)
    k_x, k_p = jax.random.split(key)
    params = make_params(k_p)
    x = jax.random.normal(k_x, (BATCH, SEQ, IN_SIZE), jnp.float32)

    out = jax.block_until_ready(rnn_test_forward(x, params["w_slab"], params["v_slab"]))

    assert out.shape == (BATCH, OUT_SIZE, SEQ)
    assert bool(jnp.all(jnp.isfinite(out)))
    # each time slice is a log_softmax over classes -> exp sums to 1
    sums = jnp.sum(jnp.exp(out), axis=1)
    assert bool(jnp.all(jnp.abs(sums - 1.0) < 1e-4))
    # match the straightforward pure-JAX forward pass
    ref = reference_forward(x, params)
    assert bool(jnp.max(jnp.abs(out - ref)) < 1e-4)
    print("KERNEL_OK")
</pallas_src>

<mosaic_0001>
module attributes {stable_mosaic.version = 11 : i64} {
  func.func @rnn_kernel(%arg0: i32, %arg1: memref<2x32xf32, #tpu.memory_space<vmem>>, %arg2: memref<32x1280xf32, #tpu.memory_space<vmem>>, %arg3: memref<24x128xf32, #tpu.memory_space<vmem>>, %arg4: memref<16x6xf32, #tpu.memory_space<vmem>>) attributes {dimension_semantics = [#tpu.dimension_semantics<arbitrary>], iteration_bounds = array<i64: 1>, scalar_prefetch = 0 : i64, scratch_operands = 0 : i64, tpu.core_type = #tpu.core_type<tc>, window_params = [{pipeline_mode = #tpu.pipeline_mode<synchronous>, transform_indices = @transform_0, window_bounds = array<i64: 2, 32>}, {pipeline_mode = #tpu.pipeline_mode<synchronous>, transform_indices = @transform_1, window_bounds = array<i64: 32, 1280>}, {pipeline_mode = #tpu.pipeline_mode<synchronous>, transform_indices = @transform_2, window_bounds = array<i64: 24, 128>}, {pipeline_mode = #tpu.pipeline_mode<synchronous>, transform_indices = @transform_3, window_bounds = array<i64: 16, 6>}]} {
    %c0 = arith.constant 0 : index
    %c0_0 = arith.constant 0 : index
    %0 = vector.load %arg3[%c0, %c0_0] : memref<24x128xf32, #tpu.memory_space<vmem>>, vector<1x128xf32>
    %c1 = arith.constant 1 : index
    %c0_1 = arith.constant 0 : index
    %1 = vector.load %arg3[%c1, %c0_1] : memref<24x128xf32, #tpu.memory_space<vmem>>, vector<1x128xf32>
    %2 = arith.negf %1 : vector<1x128xf32>
    %3 = math.exp %2 : vector<1x128xf32>
    %cst = arith.constant 1.000000e+00 : f32
    %4 = vector.broadcast %cst : f32 to vector<1x128xf32>
    %5 = arith.addf %4, %3 : vector<1x128xf32>
    %6 = arith.divf %4, %5 : vector<1x128xf32>
    %cst_2 = arith.constant 1.000000e+00 : f32
    %7 = vector.broadcast %cst_2 : f32 to vector<1x128xf32>
    %8 = arith.subf %7, %6 : vector<1x128xf32>
    %c2 = arith.constant 2 : index
    %c0_3 = arith.constant 0 : index
    %9 = vector.load %arg3[%c2, %c0_3] : memref<24x128xf32, #tpu.memory_space<vmem>>, vector<1x32xf32>
    %10 = arith.negf %9 : vector<1x32xf32>
    %11 = math.exp %10 : vector<1x32xf32>
    %cst_4 = arith.constant 1.000000e+00 : f32
    %12 = vector.broadcast %cst_4 : f32 to vector<1x32xf32>
    %13 = arith.addf %12, %11 : vector<1x32xf32>
    %14 = arith.divf %12, %13 : vector<1x32xf32>
    %cst_5 = arith.constant 1.000000e+00 : f32
    %15 = vector.broadcast %cst_5 : f32 to vector<1x32xf32>
    %16 = arith.subf %15, %14 : vector<1x32xf32>
    %cst_6 = arith.constant 1.000000e+00 : f32
    %17 = vector.broadcast %cst_6 : f32 to vector<1x32xf32>
    %18 = arith.mulf %16, %17 : vector<1x32xf32>
    %c3 = arith.constant 3 : index
    %c0_7 = arith.constant 0 : index
    %19 = vector.load %arg3[%c3, %c0_7] : memref<24x128xf32, #tpu.memory_space<vmem>>, vector<1x6xf32>
    %c4 = arith.constant 4 : index
    %c0_8 = arith.constant 0 : index
    %20 = vector.load %arg3[%c4, %c0_8] : memref<24x128xf32, #tpu.memory_space<vmem>>, vector<1x6xf32>
    %21 = arith.negf %20 : vector<1x6xf32>
    %22 = math.exp %21 : vector<1x6xf32>
    %cst_9 = arith.constant 1.000000e+00 : f32
    %23 = vector.broadcast %cst_9 : f32 to vector<1x6xf32>
    %24 = arith.addf %23, %22 : vector<1x6xf32>
    %25 = arith.divf %23, %24 : vector<1x6xf32>
    %cst_10 = arith.constant 1.000000e+00 : f32
    %26 = vector.broadcast %cst_10 : f32 to vector<1x6xf32>
    %27 = arith.subf %26, %25 : vector<1x6xf32>
    %c5 = arith.constant 5 : index
    %c0_11 = arith.constant 0 : index
    %28 = vector.load %arg3[%c5, %c0_11] : memref<24x128xf32, #tpu.memory_space<vmem>>, vector<2x32xf32>
    %c7 = arith.constant 7 : index
    %c0_12 = arith.constant 0 : index
    %29 = vector.load %arg3[%c7, %c0_12] : memref<24x128xf32, #tpu.memory_space<vmem>>, vector<2x6xf32>
    %c9 = arith.constant 9 : index
    %c0_13 = arith.constant 0 : index
    %30 = vector.load %arg3[%c9, %c0_13] : memref<24x128xf32, #tpu.memory_space<vmem>>, vector<1x32xf32>
    %cst_14 = arith.constant 0.000000e+00 : f32
    %31 = vector.broadcast %cst_14 : f32 to vector<1x32xf32>
    %32 = arith.cmpf one, %30, %31 : vector<1x32xf32>
    %c10 = arith.constant 10 : index
    %c0_15 = arith.constant 0 : index
    %33 = vector.load %arg3[%c10, %c0_15] : memref<24x128xf32, #tpu.memory_space<vmem>>, vector<1x32xf32>
    %cst_16 = arith.constant 0.000000e+00 : f32
    %34 = vector.broadcast %cst_16 : f32 to vector<1x32xf32>
    %35 = arith.cmpf one, %33, %34 : vector<1x32xf32>
    %c11 = arith.constant 11 : index
    %c0_17 = arith.constant 0 : index
    %36 = vector.load %arg3[%c11, %c0_17] : memref<24x128xf32, #tpu.memory_space<vmem>>, vector<1x32xf32>
    %cst_18 = arith.constant 0.000000e+00 : f32
    %37 = vector.broadcast %cst_18 : f32 to vector<1x32xf32>
    %38 = arith.cmpf one, %36, %37 : vector<1x32xf32>
    %c12 = arith.constant 12 : index
    %c0_19 = arith.constant 0 : index
    %39 = vector.load %arg3[%c12, %c0_19] : memref<24x128xf32, #tpu.memory_space<vmem>>, vector<1x32xf32>
    %cst_20 = arith.constant 0.000000e+00 : f32
    %40 = vector.broadcast %cst_20 : f32 to vector<1x32xf32>
    %41 = arith.cmpf one, %39, %40 : vector<1x32xf32>
    %c13 = arith.constant 13 : index
    %c0_21 = arith.constant 0 : index
    %42 = vector.load %arg3[%c13, %c0_21] : memref<24x128xf32, #tpu.memory_space<vmem>>, vector<1x32xf32>
    %cst_22 = arith.constant 0.000000e+00 : f32
    %43 = vector.broadcast %cst_22 : f32 to vector<1x32xf32>
    %44 = arith.cmpf one, %42, %43 : vector<1x32xf32>
    %c14 = arith.constant 14 : index
    %c0_23 = arith.constant 0 : index
    %45 = vector.load %arg3[%c14, %c0_23] : memref<24x128xf32, #tpu.memory_space<vmem>>, vector<1x32xf32>
    %cst_24 = arith.constant 0.000000e+00 : f32
    %46 = vector.broadcast %cst_24 : f32 to vector<1x32xf32>
    %47 = arith.cmpf one, %45, %46 : vector<1x32xf32>
    %c15 = arith.constant 15 : index
    %c0_25 = arith.constant 0 : index
    %48 = vector.load %arg3[%c15, %c0_25] : memref<24x128xf32, #tpu.memory_space<vmem>>, vector<1x32xf32>
    %cst_26 = arith.constant 0.000000e+00 : f32
    %49 = vector.broadcast %cst_26 : f32 to vector<1x32xf32>
    %50 = arith.cmpf one, %48, %49 : vector<1x32xf32>
    %c16 = arith.constant 16 : index
    %c0_27 = arith.constant 0 : index
    %51 = vector.load %arg3[%c16, %c0_27] : memref<24x128xf32, #tpu.memory_space<vmem>>, vector<1x32xf32>
    %cst_28 = arith.constant 0.000000e+00 : f32
    %52 = vector.broadcast %cst_28 : f32 to vector<1x32xf32>
    %53 = arith.cmpf one, %51, %52 : vector<1x32xf32>
    %c0_29 = arith.constant 0 : index
    %c0_30 = arith.constant 0 : index
    %54 = vector.load %arg2[%c0_29, %c0_30] : memref<32x1280xf32, #tpu.memory_space<vmem>>, vector<32x1024xf32>
    %c0_31 = arith.constant 0 : index
    %c1024 = arith.constant 1024 : index
    %55 = vector.load %arg2[%c0_31, %c1024] : memref<32x1280xf32, #tpu.memory_space<vmem>>, vector<32x256xf32>
    %c0_32 = arith.constant 0 : index
    %c0_33 = arith.constant 0 : index
    %56 = vector.load %arg1[%c0_32, %c0_33] : memref<2x32xf32, #tpu.memory_space<vmem>>, vector<2x32xf32>
    %cst_34 = arith.constant dense<0.000000e+00> : vector<2x1024xf32>
    %57 = tpu.matmul %56, %54, %cst_34 {dimension_numbers = #tpu.dot_dimension_numbers<[1], [0], [0], [1], [0, 0, 1, 1], [], []>, precision = #tpu.contract_precision<fp32>} : vector<2x32xf32>, vector<32x1024xf32>, vector<2x1024xf32> -> vector<2x1024xf32>
    %58 = vector.extract_strided_slice %57 {offsets = [0, 0], sizes = [2, 128], strides = [1, 1]} : vector<2x1024xf32> to vector<2x128xf32>
    %59 = vector.broadcast %0 : vector<1x128xf32> to vector<2x128xf32>
    %60 = arith.addf %58, %59 : vector<2x128xf32>
    %61 = vector.extract_strided_slice %57 {offsets = [0, 128], sizes = [2, 128], strides = [1, 1]} : vector<2x1024xf32> to vector<2x128xf32>
    %62 = vector.broadcast %0 : vector<1x128xf32> to vector<2x128xf32>
    %63 = arith.addf %61, %62 : vector<2x128xf32>
    %64 = vector.extract_strided_slice %57 {offsets = [0, 256], sizes = [2, 128], strides = [1, 1]} : vector<2x1024xf32> to vector<2x128xf32>
    %65 = vector.broadcast %0 : vector<1x128xf32> to vector<2x128xf32>
    %66 = arith.addf %64, %65 : vector<2x128xf32>
    %67 = vector.extract_strided_slice %57 {offsets = [0, 384], sizes = [2, 128], strides = [1, 1]} : vector<2x1024xf32> to vector<2x128xf32>
    %68 = vector.broadcast %0 : vector<1x128xf32> to vector<2x128xf32>
    %69 = arith.addf %67, %68 : vector<2x128xf32>
    %70 = vector.extract_strided_slice %57 {offsets = [0, 512], sizes = [2, 128], strides = [1, 1]} : vector<2x1024xf32> to vector<2x128xf32>
    %71 = vector.broadcast %0 : vector<1x128xf32> to vector<2x128xf32>
    %72 = arith.addf %70, %71 : vector<2x128xf32>
    %73 = vector.extract_strided_slice %57 {offsets = [0, 640], sizes = [2, 128], strides = [1, 1]} : vector<2x1024xf32> to vector<2x128xf32>
    %74 = vector.broadcast %0 : vector<1x128xf32> to vector<2x128xf32>
    %75 = arith.addf %73, %74 : vector<2x128xf32>
    %76 = vector.extract_strided_slice %57 {offsets = [0, 768], sizes = [2, 128], strides = [1, 1]} : vector<2x1024xf32> to vector<2x128xf32>
    %77 = vector.broadcast %0 : vector<1x128xf32> to vector<2x128xf32>
    %78 = arith.addf %76, %77 : vector<2x128xf32>
    %79 = vector.extract_strided_slice %57 {offsets = [0, 896], sizes = [2, 128], strides = [1, 1]} : vector<2x1024xf32> to vector<2x128xf32>
    %80 = vector.broadcast %0 : vector<1x128xf32> to vector<2x128xf32>
    %81 = arith.addf %79, %80 : vector<2x128xf32>
    %cst_35 = arith.constant 0.000000e+00 : f32
    %82 = vector.broadcast %cst_35 : f32 to vector<2x128xf32>
    %cst_36 = arith.constant 0.000000e+00 : f32
    %83 = vector.broadcast %cst_36 : f32 to vector<2x32xf32>
    %cst_37 = arith.constant 0.000000e+00 : f32
    %84 = vector.broadcast %cst_37 : f32 to vector<2x128xf32>
    %85 = arith.addf %60, %82 : vector<2x128xf32>
    %86 = vector.broadcast %6 : vector<1x128xf32> to vector<2x128xf32>
    %87 = arith.mulf %86, %84 : vector<2x128xf32>
    %88 = vector.broadcast %8 : vector<1x128xf32> to vector<2x128xf32>
    %89 = arith.mulf %88, %85 : vector<2x128xf32>
    %90 = arith.addf %87, %89 : vector<2x128xf32>
    %91 = vector.extract_strided_slice %90 {offsets = [0, 0], sizes = [2, 32], strides = [1, 1]} : vector<2x128xf32> to vector<2x32xf32>
    %92 = vector.extract_strided_slice %90 {offsets = [0, 32], sizes = [2, 32], strides = [1, 1]} : vector<2x128xf32> to vector<2x32xf32>
    %93 = arith.addf %91, %92 : vector<2x32xf32>
    %94 = vector.extract_strided_slice %90 {offsets = [0, 64], sizes = [2, 32], strides = [1, 1]} : vector<2x128xf32> to vector<2x32xf32>
    %95 = arith.addf %93, %94 : vector<2x32xf32>
    %96 = vector.extract_strided_slice %90 {offsets = [0, 96], sizes = [2, 32], strides = [1, 1]} : vector<2x128xf32> to vector<2x32xf32>
    %97 = arith.addf %95, %96 : vector<2x32xf32>
    %98 = vector.broadcast %14 : vector<1x32xf32> to vector<2x32xf32>
    %99 = arith.mulf %98, %28 : vector<2x32xf32>
    %100 = vector.broadcast %18 : vector<1x32xf32> to vector<2x32xf32>
    %101 = arith.mulf %100, %97 : vector<2x32xf32>
    %102 = arith.addf %99, %101 : vector<2x32xf32>
    %cst_38 = arith.constant 5.000000e-01 : f32
    %103 = vector.broadcast %cst_38 : f32 to vector<2x32xf32>
    %104 = arith.mulf %103, %83 : vector<2x32xf32>
    %105 = arith.subf %102, %104 : vector<2x32xf32>
    %106 = vector.shape_cast %32 : vector<1x32xi1> to vector<1x32xi1>
    %107 = vector.broadcast %106 : vector<1x32xi1> to vector<2x32xi1>
    %108 = arith.select %107, %105, %28 : vector<2x32xi1>, vector<2x32xf32>
    %cst_39 = arith.constant 5.000000e-01 : f32
    %109 = vector.broadcast %cst_39 : f32 to vector<2x32xf32>
    %110 = arith.cmpf ogt, %108, %109 : vector<2x32xf32>
    %111 = vector.broadcast %32 : vector<1x32xi1> to vector<2x32xi1>
    %112 = arith.andi %110, %111 : vector<2x32xi1>
    %113 = arith.extui %112 : vector<2x32xi1> to vector<2x32xi32>
    %114 = arith.sitofp %113 : vector<2x32xi32> to vector<2x32xf32>
    %cst_40 = arith.constant dense<0.000000e+00> : vector<2x256xf32>
    %115 = tpu.matmul %114, %55, %cst_40 {dimension_numbers = #tpu.dot_dimension_numbers<[1], [0], [0], [1], [0, 0, 1, 1], [], []>, precision = #tpu.contract_precision<fp32>} : vector<2x32xf32>, vector<32x256xf32>, vector<2x256xf32> -> vector<2x256xf32>
    %116 = vector.extract_strided_slice %115 {offsets = [0, 0], sizes = [2, 128], strides = [1, 1]} : vector<2x256xf32> to vector<2x128xf32>
    %117 = vector.extract_strided_slice %115 {offsets = [0, 128], sizes = [2, 6], strides = [1, 1]} : vector<2x256xf32> to vector<2x6xf32>
    %118 = vector.broadcast %19 : vector<1x6xf32> to vector<2x6xf32>
    %119 = arith.addf %117, %118 : vector<2x6xf32>
    %120 = vector.broadcast %25 : vector<1x6xf32> to vector<2x6xf32>
    %121 = arith.mulf %120, %29 : vector<2x6xf32>
    %122 = vector.broadcast %27 : vector<1x6xf32> to vector<2x6xf32>
    %123 = arith.mulf %122, %119 : vector<2x6xf32>
    %124 = arith.addf %121, %123 : vector<2x6xf32>
    %125 = arith.addf %63, %116 : vector<2x128xf32>
    %126 = vector.broadcast %6 : vector<1x128xf32> to vector<2x128xf32>
    %127 = arith.mulf %126, %90 : vector<2x128xf32>
    %128 = vector.broadcast %8 : vector<1x128xf32> to vector<2x128xf32>
    %129 = arith.mulf %128, %125 : vector<2x128xf32>
    %130 = arith.addf %127, %129 : vector<2x128xf32>
    %131 = vector.extract_strided_slice %130 {offsets = [0, 0], sizes = [2, 32], strides = [1, 1]} : vector<2x128xf32> to vector<2x32xf32>
    %132 = vector.extract_strided_slice %130 {offsets = [0, 32], sizes = [2, 32], strides = [1, 1]} : vector<2x128xf32> to vector<2x32xf32>
    %133 = arith.addf %131, %132 : vector<2x32xf32>
    %134 = vector.extract_strided_slice %130 {offsets = [0, 64], sizes = [2, 32], strides = [1, 1]} : vector<2x128xf32> to vector<2x32xf32>
    %135 = arith.addf %133, %134 : vector<2x32xf32>
    %136 = vector.extract_strided_slice %130 {offsets = [0, 96], sizes = [2, 32], strides = [1, 1]} : vector<2x128xf32> to vector<2x32xf32>
    %137 = arith.addf %135, %136 : vector<2x32xf32>
    %138 = vector.broadcast %14 : vector<1x32xf32> to vector<2x32xf32>
    %139 = arith.mulf %138, %108 : vector<2x32xf32>
    %140 = vector.broadcast %18 : vector<1x32xf32> to vector<2x32xf32>
    %141 = arith.mulf %140, %137 : vector<2x32xf32>
    %142 = arith.addf %139, %141 : vector<2x32xf32>
    %cst_41 = arith.constant 5.000000e-01 : f32
    %143 = vector.broadcast %cst_41 : f32 to vector<2x32xf32>
    %144 = arith.mulf %143, %114 : vector<2x32xf32>
    %145 = arith.subf %142, %144 : vector<2x32xf32>
    %146 = vector.shape_cast %35 : vector<1x32xi1> to vector<1x32xi1>
    %147 = vector.broadcast %146 : vector<1x32xi1> to vector<2x32xi1>
    %148 = arith.select %147, %145, %108 : vector<2x32xi1>, vector<2x32xf32>
    %cst_42 = arith.constant 5.000000e-01 : f32
    %149 = vector.broadcast %cst_42 : f32 to vector<2x32xf32>
    %150 = arith.cmpf ogt, %148, %149 : vector<2x32xf32>
    %151 = vector.broadcast %35 : vector<1x32xi1> to vector<2x32xi1>
    %152 = arith.andi %150, %151 : vector<2x32xi1>
    %153 = arith.extui %152 : vector<2x32xi1> to vector<2x32xi32>
    %154 = arith.sitofp %153 : vector<2x32xi32> to vector<2x32xf32>
    %cst_43 = arith.constant dense<0.000000e+00> : vector<2x256xf32>
    %155 = tpu.matmul %154, %55, %cst_43 {dimension_numbers = #tpu.dot_dimension_numbers<[1], [0], [0], [1], [0, 0, 1, 1], [], []>, precision = #tpu.contract_precision<fp32>} : vector<2x32xf32>, vector<32x256xf32>, vector<2x256xf32> -> vector<2x256xf32>
    %156 = vector.extract_strided_slice %155 {offsets = [0, 0], sizes = [2, 128], strides = [1, 1]} : vector<2x256xf32> to vector<2x128xf32>
    %157 = vector.extract_strided_slice %155 {offsets = [0, 128], sizes = [2, 6], strides = [1, 1]} : vector<2x256xf32> to vector<2x6xf32>
    %158 = vector.broadcast %19 : vector<1x6xf32> to vector<2x6xf32>
    %159 = arith.addf %157, %158 : vector<2x6xf32>
    %160 = vector.broadcast %25 : vector<1x6xf32> to vector<2x6xf32>
    %161 = arith.mulf %160, %124 : vector<2x6xf32>
    %162 = vector.broadcast %27 : vector<1x6xf32> to vector<2x6xf32>
    %163 = arith.mulf %162, %159 : vector<2x6xf32>
    %164 = arith.addf %161, %163 : vector<2x6xf32>
    %165 = arith.addf %66, %156 : vector<2x128xf32>
    %166 = vector.broadcast %6 : vector<1x128xf32> to vector<2x128xf32>
    %167 = arith.mulf %166, %130 : vector<2x128xf32>
    %168 = vector.broadcast %8 : vector<1x128xf32> to vector<2x128xf32>
    %169 = arith.mulf %168, %165 : vector<2x128xf32>
    %170 = arith.addf %167, %169 : vector<2x128xf32>
    %171 = vector.extract_strided_slice %170 {offsets = [0, 0], sizes = [2, 32], strides = [1, 1]} : vector<2x128xf32> to vector<2x32xf32>
    %172 = vector.extract_strided_slice %170 {offsets = [0, 32], sizes = [2, 32], strides = [1, 1]} : vector<2x128xf32> to vector<2x32xf32>
    %173 = arith.addf %171, %172 : vector<2x32xf32>
    %174 = vector.extract_strided_slice %170 {offsets = [0, 64], sizes = [2, 32], strides = [1, 1]} : vector<2x128xf32> to vector<2x32xf32>
    %175 = arith.addf %173, %174 : vector<2x32xf32>
    %176 = vector.extract_strided_slice %170 {offsets = [0, 96], sizes = [2, 32], strides = [1, 1]} : vector<2x128xf32> to vector<2x32xf32>
    %177 = arith.addf %175, %176 : vector<2x32xf32>
    %178 = vector.broadcast %14 : vector<1x32xf32> to vector<2x32xf32>
    %179 = arith.mulf %178, %148 : vector<2x32xf32>
    %180 = vector.broadcast %18 : vector<1x32xf32> to vector<2x32xf32>
    %181 = arith.mulf %180, %177 : vector<2x32xf32>
    %182 = arith.addf %179, %181 : vector<2x32xf32>
    %cst_44 = arith.constant 5.000000e-01 : f32
    %183 = vector.broadcast %cst_44 : f32 to vector<2x32xf32>
    %184 = arith.mulf %183, %154 : vector<2x32xf32>
    %185 = arith.subf %182, %184 : vector<2x32xf32>
    %186 = vector.shape_cast %38 : vector<1x32xi1> to vector<1x32xi1>
    %187 = vector.broadcast %186 : vector<1x32xi1> to vector<2x32xi1>
    %188 = arith.select %187, %185, %148 : vector<2x32xi1>, vector<2x32xf32>
    %cst_45 = arith.constant 5.000000e-01 : f32
    %189 = vector.broadcast %cst_45 : f32 to vector<2x32xf32>
    %190 = arith.cmpf ogt, %188, %189 : vector<2x32xf32>
    %191 = vector.broadcast %38 : vector<1x32xi1> to vector<2x32xi1>
    %192 = arith.andi %190, %191 : vector<2x32xi1>
    %193 = arith.extui %192 : vector<2x32xi1> to vector<2x32xi32>
    %194 = arith.sitofp %193 : vector<2x32xi32> to vector<2x32xf32>
    %cst_46 = arith.constant dense<0.000000e+00> : vector<2x256xf32>
    %195 = tpu.matmul %194, %55, %cst_46 {dimension_numbers = #tpu.dot_dimension_numbers<[1], [0], [0], [1], [0, 0, 1, 1], [], []>, precision = #tpu.contract_precision<fp32>} : vector<2x32xf32>, vector<32x256xf32>, vector<2x256xf32> -> vector<2x256xf32>
    %196 = vector.extract_strided_slice %195 {offsets = [0, 0], sizes = [2, 128], strides = [1, 1]} : vector<2x256xf32> to vector<2x128xf32>
    %197 = vector.extract_strided_slice %195 {offsets = [0, 128], sizes = [2, 6], strides = [1, 1]} : vector<2x256xf32> to vector<2x6xf32>
    %198 = vector.broadcast %19 : vector<1x6xf32> to vector<2x6xf32>
    %199 = arith.addf %197, %198 : vector<2x6xf32>
    %200 = vector.broadcast %25 : vector<1x6xf32> to vector<2x6xf32>
    %201 = arith.mulf %200, %164 : vector<2x6xf32>
    %202 = vector.broadcast %27 : vector<1x6xf32> to vector<2x6xf32>
    %203 = arith.mulf %202, %199 : vector<2x6xf32>
    %204 = arith.addf %201, %203 : vector<2x6xf32>
    %205 = arith.addf %69, %196 : vector<2x128xf32>
    %206 = vector.broadcast %6 : vector<1x128xf32> to vector<2x128xf32>
    %207 = arith.mulf %206, %170 : vector<2x128xf32>
    %208 = vector.broadcast %8 : vector<1x128xf32> to vector<2x128xf32>
    %209 = arith.mulf %208, %205 : vector<2x128xf32>
    %210 = arith.addf %207, %209 : vector<2x128xf32>
    %211 = vector.extract_strided_slice %210 {offsets = [0, 0], sizes = [2, 32], strides = [1, 1]} : vector<2x128xf32> to vector<2x32xf32>
    %212 = vector.extract_strided_slice %210 {offsets = [0, 32], sizes = [2, 32], strides = [1, 1]} : vector<2x128xf32> to vector<2x32xf32>
    %213 = arith.addf %211, %212 : vector<2x32xf32>
    %214 = vector.extract_strided_slice %210 {offsets = [0, 64], sizes = [2, 32], strides = [1, 1]} : vector<2x128xf32> to vector<2x32xf32>
    %215 = arith.addf %213, %214 : vector<2x32xf32>
    %216 = vector.extract_strided_slice %210 {offsets = [0, 96], sizes = [2, 32], strides = [1, 1]} : vector<2x128xf32> to vector<2x32xf32>
    %217 = arith.addf %215, %216 : vector<2x32xf32>
    %218 = vector.broadcast %14 : vector<1x32xf32> to vector<2x32xf32>
    %219 = arith.mulf %218, %188 : vector<2x32xf32>
    %220 = vector.broadcast %18 : vector<1x32xf32> to vector<2x32xf32>
    %221 = arith.mulf %220, %217 : vector<2x32xf32>
    %222 = arith.addf %219, %221 : vector<2x32xf32>
    %cst_47 = arith.constant 5.000000e-01 : f32
    %223 = vector.broadcast %cst_47 : f32 to vector<2x32xf32>
    %224 = arith.mulf %223, %194 : vector<2x32xf32>
    %225 = arith.subf %222, %224 : vector<2x32xf32>
    %226 = vector.shape_cast %41 : vector<1x32xi1> to vector<1x32xi1>
    %227 = vector.broadcast %226 : vector<1x32xi1> to vector<2x32xi1>
    %228 = arith.select %227, %225, %188 : vector<2x32xi1>, vector<2x32xf32>
    %cst_48 = arith.constant 5.000000e-01 : f32
    %229 = vector.broadcast %cst_48 : f32 to vector<2x32xf32>
    %230 = arith.cmpf ogt, %228, %229 : vector<2x32xf32>
    %231 = vector.broadcast %41 : vector<1x32xi1> to vector<2x32xi1>
    %232 = arith.andi %230, %231 : vector<2x32xi1>
    %233 = arith.extui %232 : vector<2x32xi1> to vector<2x32xi32>
    %234 = arith.sitofp %233 : vector<2x32xi32> to vector<2x32xf32>
    %cst_49 = arith.constant dense<0.000000e+00> : vector<2x256xf32>
    %235 = tpu.matmul %234, %55, %cst_49 {dimension_numbers = #tpu.dot_dimension_numbers<[1], [0], [0], [1], [0, 0, 1, 1], [], []>, precision = #tpu.contract_precision<fp32>} : vector<2x32xf32>, vector<32x256xf32>, vector<2x256xf32> -> vector<2x256xf32>
    %236 = vector.extract_strided_slice %235 {offsets = [0, 0], sizes = [2, 128], strides = [1, 1]} : vector<2x256xf32> to vector<2x128xf32>
    %237 = vector.extract_strided_slice %235 {offsets = [0, 128], sizes = [2, 6], strides = [1, 1]} : vector<2x256xf32> to vector<2x6xf32>
    %238 = vector.broadcast %19 : vector<1x6xf32> to vector<2x6xf32>
    %239 = arith.addf %237, %238 : vector<2x6xf32>
    %240 = vector.broadcast %25 : vector<1x6xf32> to vector<2x6xf32>
    %241 = arith.mulf %240, %204 : vector<2x6xf32>
    %242 = vector.broadcast %27 : vector<1x6xf32> to vector<2x6xf32>
    %243 = arith.mulf %242, %239 : vector<2x6xf32>
    %244 = arith.addf %241, %243 : vector<2x6xf32>
    %245 = arith.addf %72, %236 : vector<2x128xf32>
    %246 = vector.broadcast %6 : vector<1x128xf32> to vector<2x128xf32>
    %247 = arith.mulf %246, %210 : vector<2x128xf32>
    %248 = vector.broadcast %8 : vector<1x128xf32> to vector<2x128xf32>
    %249 = arith.mulf %248, %245 : vector<2x128xf32>
    %250 = arith.addf %247, %249 : vector<2x128xf32>
    %251 = vector.extract_strided_slice %250 {offsets = [0, 0], sizes = [2, 32], strides = [1, 1]} : vector<2x128xf32> to vector<2x32xf32>
    %252 = vector.extract_strided_slice %250 {offsets = [0, 32], sizes = [2, 32], strides = [1, 1]} : vector<2x128xf32> to vector<2x32xf32>
    %253 = arith.addf %251, %252 : vector<2x32xf32>
    %254 = vector.extract_strided_slice %250 {offsets = [0, 64], sizes = [2, 32], strides = [1, 1]} : vector<2x128xf32> to vector<2x32xf32>
    %255 = arith.addf %253, %254 : vector<2x32xf32>
    %256 = vector.extract_strided_slice %250 {offsets = [0, 96], sizes = [2, 32], strides = [1, 1]} : vector<2x128xf32> to vector<2x32xf32>
    %257 = arith.addf %255, %256 : vector<2x32xf32>
    %258 = vector.broadcast %14 : vector<1x32xf32> to vector<2x32xf32>
    %259 = arith.mulf %258, %228 : vector<2x32xf32>
    %260 = vector.broadcast %18 : vector<1x32xf32> to vector<2x32xf32>
    %261 = arith.mulf %260, %257 : vector<2x32xf32>
    %262 = arith.addf %259, %261 : vector<2x32xf32>
    %cst_50 = arith.constant 5.000000e-01 : f32
    %263 = vector.broadcast %cst_50 : f32 to vector<2x32xf32>
    %264 = arith.mulf %263, %234 : vector<2x32xf32>
    %265 = arith.subf %262, %264 : vector<2x32xf32>
    %266 = vector.shape_cast %44 : vector<1x32xi1> to vector<1x32xi1>
    %267 = vector.broadcast %266 : vector<1x32xi1> to vector<2x32xi1>
    %268 = arith.select %267, %265, %228 : vector<2x32xi1>, vector<2x32xf32>
    %cst_51 = arith.constant 5.000000e-01 : f32
    %269 = vector.broadcast %cst_51 : f32 to vector<2x32xf32>
    %270 = arith.cmpf ogt, %268, %269 : vector<2x32xf32>
    %271 = vector.broadcast %44 : vector<1x32xi1> to vector<2x32xi1>
    %272 = arith.andi %270, %271 : vector<2x32xi1>
    %273 = arith.extui %272 : vector<2x32xi1> to vector<2x32xi32>
    %274 = arith.sitofp %273 : vector<2x32xi32> to vector<2x32xf32>
    %cst_52 = arith.constant dense<0.000000e+00> : vector<2x256xf32>
    %275 = tpu.matmul %274, %55, %cst_52 {dimension_numbers = #tpu.dot_dimension_numbers<[1], [0], [0], [1], [0, 0, 1, 1], [], []>, precision = #tpu.contract_precision<fp32>} : vector<2x32xf32>, vector<32x256xf32>, vector<2x256xf32> -> vector<2x256xf32>
    %276 = vector.extract_strided_slice %275 {offsets = [0, 0], sizes = [2, 128], strides = [1, 1]} : vector<2x256xf32> to vector<2x128xf32>
    %277 = vector.extract_strided_slice %275 {offsets = [0, 128], sizes = [2, 6], strides = [1, 1]} : vector<2x256xf32> to vector<2x6xf32>
    %278 = vector.broadcast %19 : vector<1x6xf32> to vector<2x6xf32>
    %279 = arith.addf %277, %278 : vector<2x6xf32>
    %280 = vector.broadcast %25 : vector<1x6xf32> to vector<2x6xf32>
    %281 = arith.mulf %280, %244 : vector<2x6xf32>
    %282 = vector.broadcast %27 : vector<1x6xf32> to vector<2x6xf32>
    %283 = arith.mulf %282, %279 : vector<2x6xf32>
    %284 = arith.addf %281, %283 : vector<2x6xf32>
    %285 = arith.addf %75, %276 : vector<2x128xf32>
    %286 = vector.broadcast %6 : vector<1x128xf32> to vector<2x128xf32>
    %287 = arith.mulf %286, %250 : vector<2x128xf32>
    %288 = vector.broadcast %8 : vector<1x128xf32> to vector<2x128xf32>
    %289 = arith.mulf %288, %285 : vector<2x128xf32>
    %290 = arith.addf %287, %289 : vector<2x128xf32>
    %291 = vector.extract_strided_slice %290 {offsets = [0, 0], sizes = [2, 32], strides = [1, 1]} : vector<2x128xf32> to vector<2x32xf32>
    %292 = vector.extract_strided_slice %290 {offsets = [0, 32], sizes = [2, 32], strides = [1, 1]} : vector<2x128xf32> to vector<2x32xf32>
    %293 = arith.addf %291, %292 : vector<2x32xf32>
    %294 = vector.extract_strided_slice %290 {offsets = [0, 64], sizes = [2, 32], strides = [1, 1]} : vector<2x128xf32> to vector<2x32xf32>
    %295 = arith.addf %293, %294 : vector<2x32xf32>
    %296 = vector.extract_strided_slice %290 {offsets = [0, 96], sizes = [2, 32], strides = [1, 1]} : vector<2x128xf32> to vector<2x32xf32>
    %297 = arith.addf %295, %296 : vector<2x32xf32>
    %298 = vector.broadcast %14 : vector<1x32xf32> to vector<2x32xf32>
    %299 = arith.mulf %298, %268 : vector<2x32xf32>
    %300 = vector.broadcast %18 : vector<1x32xf32> to vector<2x32xf32>
    %301 = arith.mulf %300, %297 : vector<2x32xf32>
    %302 = arith.addf %299, %301 : vector<2x32xf32>
    %cst_53 = arith.constant 5.000000e-01 : f32
    %303 = vector.broadcast %cst_53 : f32 to vector<2x32xf32>
    %304 = arith.mulf %303, %274 : vector<2x32xf32>
    %305 = arith.subf %302, %304 : vector<2x32xf32>
    %306 = vector.shape_cast %47 : vector<1x32xi1> to vector<1x32xi1>
    %307 = vector.broadcast %306 : vector<1x32xi1> to vector<2x32xi1>
    %308 = arith.select %307, %305, %268 : vector<2x32xi1>, vector<2x32xf32>
    %cst_54 = arith.constant 5.000000e-01 : f32
    %309 = vector.broadcast %cst_54 : f32 to vector<2x32xf32>
    %310 = arith.cmpf ogt, %308, %309 : vector<2x32xf32>
    %311 = vector.broadcast %47 : vector<1x32xi1> to vector<2x32xi1>
    %312 = arith.andi %310, %311 : vector<2x32xi1>
    %313 = arith.extui %312 : vector<2x32xi1> to vector<2x32xi32>
    %314 = arith.sitofp %313 : vector<2x32xi32> to vector<2x32xf32>
    %cst_55 = arith.constant dense<0.000000e+00> : vector<2x256xf32>
    %315 = tpu.matmul %314, %55, %cst_55 {dimension_numbers = #tpu.dot_dimension_numbers<[1], [0], [0], [1], [0, 0, 1, 1], [], []>, precision = #tpu.contract_precision<fp32>} : vector<2x32xf32>, vector<32x256xf32>, vector<2x256xf32> -> vector<2x256xf32>
    %316 = vector.extract_strided_slice %315 {offsets = [0, 0], sizes = [2, 128], strides = [1, 1]} : vector<2x256xf32> to vector<2x128xf32>
    %317 = vector.extract_strided_slice %315 {offsets = [0, 128], sizes = [2, 6], strides = [1, 1]} : vector<2x256xf32> to vector<2x6xf32>
    %318 = vector.broadcast %19 : vector<1x6xf32> to vector<2x6xf32>
    %319 = arith.addf %317, %318 : vector<2x6xf32>
    %320 = vector.broadcast %25 : vector<1x6xf32> to vector<2x6xf32>
    %321 = arith.mulf %320, %284 : vector<2x6xf32>
    %322 = vector.broadcast %27 : vector<1x6xf32> to vector<2x6xf32>
    %323 = arith.mulf %322, %319 : vector<2x6xf32>
    %324 = arith.addf %321, %323 : vector<2x6xf32>
    %325 = arith.addf %78, %316 : vector<2x128xf32>
    %326 = vector.broadcast %6 : vector<1x128xf32> to vector<2x128xf32>
    %327 = arith.mulf %326, %290 : vector<2x128xf32>
    %328 = vector.broadcast %8 : vector<1x128xf32> to vector<2x128xf32>
    %329 = arith.mulf %328, %325 : vector<2x128xf32>
    %330 = arith.addf %327, %329 : vector<2x128xf32>
    %331 = vector.extract_strided_slice %330 {offsets = [0, 0], sizes = [2, 32], strides = [1, 1]} : vector<2x128xf32> to vector<2x32xf32>
    %332 = vector.extract_strided_slice %330 {offsets = [0, 32], sizes = [2, 32], strides = [1, 1]} : vector<2x128xf32> to vector<2x32xf32>
    %333 = arith.addf %331, %332 : vector<2x32xf32>
    %334 = vector.extract_strided_slice %330 {offsets = [0, 64], sizes = [2, 32], strides = [1, 1]} : vector<2x128xf32> to vector<2x32xf32>
    %335 = arith.addf %333, %334 : vector<2x32xf32>
    %336 = vector.extract_strided_slice %330 {offsets = [0, 96], sizes = [2, 32], strides = [1, 1]} : vector<2x128xf32> to vector<2x32xf32>
    %337 = arith.addf %335, %336 : vector<2x32xf32>
    %338 = vector.broadcast %14 : vector<1x32xf32> to vector<2x32xf32>
    %339 = arith.mulf %338, %308 : vector<2x32xf32>
    %340 = vector.broadcast %18 : vector<1x32xf32> to vector<2x32xf32>
    %341 = arith.mulf %340, %337 : vector<2x32xf32>
    %342 = arith.addf %339, %341 : vector<2x32xf32>
    %cst_56 = arith.constant 5.000000e-01 : f32
    %343 = vector.broadcast %cst_56 : f32 to vector<2x32xf32>
    %344 = arith.mulf %343, %314 : vector<2x32xf32>
    %345 = arith.subf %342, %344 : vector<2x32xf32>
    %346 = vector.shape_cast %50 : vector<1x32xi1> to vector<1x32xi1>
    %347 = vector.broadcast %346 : vector<1x32xi1> to vector<2x32xi1>
    %348 = arith.select %347, %345, %308 : vector<2x32xi1>, vector<2x32xf32>
    %cst_57 = arith.constant 5.000000e-01 : f32
    %349 = vector.broadcast %cst_57 : f32 to vector<2x32xf32>
    %350 = arith.cmpf ogt, %348, %349 : vector<2x32xf32>
    %351 = vector.broadcast %50 : vector<1x32xi1> to vector<2x32xi1>
    %352 = arith.andi %350, %351 : vector<2x32xi1>
    %353 = arith.extui %352 : vector<2x32xi1> to vector<2x32xi32>
    %354 = arith.sitofp %353 : vector<2x32xi32> to vector<2x32xf32>
    %cst_58 = arith.constant dense<0.000000e+00> : vector<2x256xf32>
    %355 = tpu.matmul %354, %55, %cst_58 {dimension_numbers = #tpu.dot_dimension_numbers<[1], [0], [0], [1], [0, 0, 1, 1], [], []>, precision = #tpu.contract_precision<fp32>} : vector<2x32xf32>, vector<32x256xf32>, vector<2x256xf32> -> vector<2x256xf32>
    %356 = vector.extract_strided_slice %355 {offsets = [0, 0], sizes = [2, 128], strides = [1, 1]} : vector<2x256xf32> to vector<2x128xf32>
    %357 = vector.extract_strided_slice %355 {offsets = [0, 128], sizes = [2, 6], strides = [1, 1]} : vector<2x256xf32> to vector<2x6xf32>
    %358 = vector.broadcast %19 : vector<1x6xf32> to vector<2x6xf32>
    %359 = arith.addf %357, %358 : vector<2x6xf32>
    %360 = vector.broadcast %25 : vector<1x6xf32> to vector<2x6xf32>
    %361 = arith.mulf %360, %324 : vector<2x6xf32>
    %362 = vector.broadcast %27 : vector<1x6xf32> to vector<2x6xf32>
    %363 = arith.mulf %362, %359 : vector<2x6xf32>
    %364 = arith.addf %361, %363 : vector<2x6xf32>
    %365 = arith.addf %81, %356 : vector<2x128xf32>
    %366 = vector.broadcast %6 : vector<1x128xf32> to vector<2x128xf32>
    %367 = arith.mulf %366, %330 : vector<2x128xf32>
    %368 = vector.broadcast %8 : vector<1x128xf32> to vector<2x128xf32>
    %369 = arith.mulf %368, %365 : vector<2x128xf32>
    %370 = arith.addf %367, %369 : vector<2x128xf32>
    %371 = vector.extract_strided_slice %370 {offsets = [0, 0], sizes = [2, 32], strides = [1, 1]} : vector<2x128xf32> to vector<2x32xf32>
    %372 = vector.extract_strided_slice %370 {offsets = [0, 32], sizes = [2, 32], strides = [1, 1]} : vector<2x128xf32> to vector<2x32xf32>
    %373 = arith.addf %371, %372 : vector<2x32xf32>
    %374 = vector.extract_strided_slice %370 {offsets = [0, 64], sizes = [2, 32], strides = [1, 1]} : vector<2x128xf32> to vector<2x32xf32>
    %375 = arith.addf %373, %374 : vector<2x32xf32>
    %376 = vector.extract_strided_slice %370 {offsets = [0, 96], sizes = [2, 32], strides = [1, 1]} : vector<2x128xf32> to vector<2x32xf32>
    %377 = arith.addf %375, %376 : vector<2x32xf32>
    %378 = vector.broadcast %14 : vector<1x32xf32> to vector<2x32xf32>
    %379 = arith.mulf %378, %348 : vector<2x32xf32>
    %380 = vector.broadcast %18 : vector<1x32xf32> to vector<2x32xf32>
    %381 = arith.mulf %380, %377 : vector<2x32xf32>
    %382 = arith.addf %379, %381 : vector<2x32xf32>
    %cst_59 = arith.constant 5.000000e-01 : f32
    %383 = vector.broadcast %cst_59 : f32 to vector<2x32xf32>
    %384 = arith.mulf %383, %354 : vector<2x32xf32>
    %385 = arith.subf %382, %384 : vector<2x32xf32>
    %386 = vector.shape_cast %53 : vector<1x32xi1> to vector<1x32xi1>
    %387 = vector.broadcast %386 : vector<1x32xi1> to vector<2x32xi1>
    %388 = arith.select %387, %385, %348 : vector<2x32xi1>, vector<2x32xf32>
    %cst_60 = arith.constant 5.000000e-01 : f32
    %389 = vector.broadcast %cst_60 : f32 to vector<2x32xf32>
    %390 = arith.cmpf ogt, %388, %389 : vector<2x32xf32>
    %391 = vector.broadcast %53 : vector<1x32xi1> to vector<2x32xi1>
    %392 = arith.andi %390, %391 : vector<2x32xi1>
    %393 = arith.extui %392 : vector<2x32xi1> to vector<2x32xi32>
    %394 = arith.sitofp %393 : vector<2x32xi32> to vector<2x32xf32>
    %cst_61 = arith.constant dense<0.000000e+00> : vector<2x256xf32>
    %395 = tpu.matmul %394, %55, %cst_61 {dimension_numbers = #tpu.dot_dimension_numbers<[1], [0], [0], [1], [0, 0, 1, 1], [], []>, precision = #tpu.contract_precision<fp32>} : vector<2x32xf32>, vector<32x256xf32>, vector<2x256xf32> -> vector<2x256xf32>
    %396 = vector.extract_strided_slice %395 {offsets = [0, 128], sizes = [2, 6], strides = [1, 1]} : vector<2x256xf32> to vector<2x6xf32>
    %397 = vector.broadcast %19 : vector<1x6xf32> to vector<2x6xf32>
    %398 = arith.addf %396, %397 : vector<2x6xf32>
    %399 = vector.broadcast %25 : vector<1x6xf32> to vector<2x6xf32>
    %400 = arith.mulf %399, %364 : vector<2x6xf32>
    %401 = vector.broadcast %27 : vector<1x6xf32> to vector<2x6xf32>
    %402 = arith.mulf %401, %398 : vector<2x6xf32>
    %403 = arith.addf %400, %402 : vector<2x6xf32>
    %404 = tpu.concatenate %124, %164, %204, %244, %284, %324, %364, %403 in 0 : vector<2x6xf32>, vector<2x6xf32>, vector<2x6xf32>, vector<2x6xf32>, vector<2x6xf32>, vector<2x6xf32>, vector<2x6xf32>, vector<2x6xf32> -> vector<16x6xf32>
    %cst_62 = arith.constant dense<0xFF800000> : vector<16xf32>
    %405 = vector.multi_reduction <maximumf>, %404, %cst_62 [1] : vector<16x6xf32> to vector<16xf32>
    %406 = vector.shape_cast %405 : vector<16xf32> to vector<16x1xf32>
    %407 = vector.broadcast %406 : vector<16x1xf32> to vector<16x6xf32>
    %408 = arith.subf %404, %407 : vector<16x6xf32>
    %409 = math.exp %408 : vector<16x6xf32>
    %cst_63 = arith.constant dense<0.000000e+00> : vector<16xf32>
    %410 = vector.multi_reduction <add>, %409, %cst_63 [1] : vector<16x6xf32> to vector<16xf32>
    %411 = vector.shape_cast %410 : vector<16xf32> to vector<16x1xf32>
    %412 = math.log %411 : vector<16x1xf32>
    %413 = vector.broadcast %412 : vector<16x1xf32> to vector<16x6xf32>
    %414 = arith.subf %408, %413 : vector<16x6xf32>
    %c0_64 = arith.constant 0 : index
    %c0_65 = arith.constant 0 : index
    %415 = vector.load %arg4[%c0_64, %c0_65] : memref<16x6xf32, #tpu.memory_space<vmem>>, vector<16x6xf32>
    tpu.vector_store %arg4[%c0_64, %c0_65], %414 {strides = array<i32>} : memref<16x6xf32, #tpu.memory_space<vmem>>, vector<16x6xf32>,
    return
  }
  func.func @transform_0(%arg0: i32) -> (i32, i32) {
    %c0_i32 = arith.constant 0 : i32
    %c0_i32_0 = arith.constant 0 : i32
    %c0_i32_1 = arith.constant 0 : i32
    return %c0_i32, %c0_i32_0 : i32, i32
  }
  func.func @transform_1(%arg0: i32) -> (i32, i32) {
    %c0_i32 = arith.constant 0 : i32
    %c0_i32_0 = arith.constant 0 : i32
    %c0_i32_1 = arith.constant 0 : i32
    return %c0_i32, %c0_i32_0 : i32, i32
  }
  func.func @transform_2(%arg0: i32) -> (i32, i32) {
    %c0_i32 = arith.constant 0 : i32
    %c0_i32_0 = arith.constant 0 : i32
    %c0_i32_1 = arith.constant 0 : i32
    return %c0_i32, %c0_i32_0 : i32, i32
  }
  func.func @transform_3(%arg0: i32) -> (i32, i32) {
    %c0_i32 = arith.constant 0 : i32
    %c0_i32_0 = arith.constant 0 : i32
    %c0_i32_1 = arith.constant 0 : i32
    return %c0_i32, %c0_i32_0 : i32, i32
  }
}

</mosaic_0001>

<llo_original>
// kernel: rnn_test_forward.1
$region0: #{rnn_test_forward.1}
  #allocation0 [shape = 'u32[]', space=smem, size = 0x4, offset = 0x4, fixed_abs, tag = 'smem constant byte address 0x4 - core index']
  #allocation1 [shape = 'u32[144,128]{1,0:T(1,128)}', space=vmem, size = 0x12000, scoped, tag = 'internal scratch']
  %s0 = inlined_call_operand.vmem [shape: f32[2,32], index: 0, kind: input, shape index: {}]
  %s1 = inlined_call_operand.hbm [shape: f32[32,1280], index: 1, kind: input, shape index: {}]
  %s2 = inlined_call_operand.vmem [shape: f32[24,128], index: 2, kind: input, shape index: {}]
  %s3 = inlined_call_operand.vmem [shape: f32[16,6], index: 3, kind: output, shape index: {}]
  %s4 = sld [smem:[#allocation0]]
  $region26: #{rnn_test_forward.1} parent=0
    _
  %s6 = ssub.s32 1, %s4
  %s7 = scalar_select 0, %s6, %s4
  $region1: #{rnn_test_forward.1} parent=0
    #allocation2 [shape = 'u8[163840]{0}', space=vmem, size = 0x28000, scoped, tag = 'input window, operand 1, single buffered']
    #allocation3 [shape = 's32[1]{0}', space=sflag, size = 0x4, scoped, tag = 'scoped memory for rnn_test_forward.1']
    %8 = vsyncpa [#allocation3], 0
    // Predicated region
    $region2: #{rnn_test_forward.1} parent=1 // pred_check
      _
    $region3: #{rnn_test_forward.1} parent=1 // pred_check_branch
      %10 = sbr.rel (0) target = $region5
    $region4: #{rnn_test_forward.1} parent=1 // pred_region
      _
    $region5: #{rnn_test_forward.1} parent=1 // pred_fallthru
      _
    // Predicated region
    $region6: #{rnn_test_forward.1} parent=1 // pred_check
      _
    $region7: #{rnn_test_forward.1} parent=1 // pred_check_branch
      %12 = sbr.rel (0) target = $region9
    $region8: #{rnn_test_forward.1} parent=1 // pred_region
      %s14 = ssub.s32 5120, 5120
      %15 = vsyncadd [#allocation3], %s14
      %s16 = sshll.u32 [#allocation2], 4
      %s17 = int_to_ptr.vmem [resolvable:$true] %s16
      %22 = dma.hbm_to_vmem [thread:$0]  %s1, 5120, %s17, [#allocation3], 1280, 1280, 80
    $region9: #{rnn_test_forward.1} parent=1 // pred_fallthru
      _
    // Predicated region
    $region10: #{rnn_test_forward.1} parent=1 // pred_check
      _
    $region11: #{rnn_test_forward.1} parent=1 // pred_check_branch
      %24 = sbr.rel (0) target = $region13
    $region12: #{rnn_test_forward.1} parent=1 // pred_region
      _
    $region13: #{rnn_test_forward.1} parent=1 // pred_fallthru
      _
    // Predicated region
    $region14: #{rnn_test_forward.1} parent=1 // pred_check
      _
    $region15: #{rnn_test_forward.1} parent=1 // pred_check_branch
      %26 = sbr.rel (0) target = $region17
    $region16: #{rnn_test_forward.1} parent=1 // pred_region
      %27 = dma.done [#allocation3], 5120
    $region17: #{rnn_test_forward.1} parent=1 // pred_fallthru
      _
    %v28 = vld [vmem:[%s2] sm:$0x1]
    %v29 = vld [vmem:[%s2 + $0x1] sm:$0x1]
    %v30 = vxor.u32 %v29, 2147483648
    %v31 = vmul.f32 %v30, 1.442695
    %v32 = vpow.pop %v31
    %v33 = vadd.f32 %v32, 1.0
    %v34 = vrcp.pop %v33
    %v35 = vmul.f32 1.0, %v34
    %v36 = vsub.f32 1.0, %v35
    %v37 = vld [vmem:[%s2 + $0x2] sm:$0x1]
    %v38 = vxor.u32 %v37, 2147483648
    %v39 = vmul.f32 %v38, 1.442695
    %v40 = vpow.pop %v39
    %v41 = vadd.f32 %v40, 1.0
    %v42 = vrcp.pop %v41
    %v43 = vmul.f32 1.0, %v42
    %v44 = vsub.f32 1.0, %v43
    %v45 = vld [vmem:[%s2 + $0x3] sm:$0x1]
    %v46 = vld [vmem:[%s2 + $0x4] sm:$0x1]
    %v47 = vxor.u32 %v46, 2147483648
    %v48 = vmul.f32 %v47, 1.442695
    %v49 = vpow.pop %v48
    %v50 = vadd.f32 %v49, 1.0
    %v51 = vrcp.pop %v50
    %v52 = vmul.f32 1.0, %v51
    %v53 = vsub.f32 1.0, %v52
    %v54 = vld [vmem:[%s2 + $0x5] sm:$0x3]
    %v55 = vld [vmem:[%s2 + $0x7] sm:$0x3]
    %v56 = vld [vmem:[%s2 + $0x9] sm:$0x1]
    %vm57 = vcmp.ne.f32.partialorder %v56, 0.0
    %v58 = vld [vmem:[%s2 + $0xa] sm:$0x1]
    %vm59 = vcmp.ne.f32.partialorder %v58, 0.0
    %v60 = vld [vmem:[%s2 + $0xb] sm:$0x1]
    %vm61 = vcmp.ne.f32.partialorder %v60, 0.0
    %v62 = vld [vmem:[%s2 + $0xc] sm:$0x1]
    %vm63 = vcmp.ne.f32.partialorder %v62, 0.0
    %v64 = vld [vmem:[%s2 + $0xd] sm:$0x1]
    %vm65 = vcmp.ne.f32.partialorder %v64, 0.0
    %v66 = vld [vmem:[%s2 + $0xe] sm:$0x1]
    %vm67 = vcmp.ne.f32.partialorder %v66, 0.0
    %v68 = vld [vmem:[%s2 + $0xf] sm:$0x1]
    %vm69 = vcmp.ne.f32.partialorder %v68, 0.0
    %v70 = vld [vmem:[%s2 + $0x10] sm:$0x1]
    %vm71 = vcmp.ne.f32.partialorder %v70, 0.0
    %v72 = vld [vmem:[#allocation2] sm:$0xff]
    %v73 = vld [vmem:[#allocation2 + $0x8] sm:$0xff]
    %v74 = vld [vmem:[#allocation2 + $0x10] sm:$0xff]
    %v75 = vld [vmem:[#allocation2 + $0x18] sm:$0xff]
    %v76 = vld [vmem:[#allocation2 + $0x20] sm:$0xff]
    %v77 = vld [vmem:[#allocation2 + $0x28] sm:$0xff]
    %v78 = vld [vmem:[#allocation2 + $0x30] sm:$0xff]
    %v79 = vld [vmem:[#allocation2 + $0x38] sm:$0xff]
    %v80 = vld [vmem:[#allocation2 + $0x50] sm:$0xff]
    %v81 = vld [vmem:[#allocation2 + $0x58] sm:$0xff]
    %v82 = vld [vmem:[#allocation2 + $0x60] sm:$0xff]
    %v83 = vld [vmem:[#allocation2 + $0x68] sm:$0xff]
    %v84 = vld [vmem:[#allocation2 + $0x70] sm:$0xff]
    %v85 = vld [vmem:[#allocation2 + $0x78] sm:$0xff]
    %v86 = vld [vmem:[#allocation2 + $0x80] sm:$0xff]
    %v87 = vld [vmem:[#allocation2 + $0x88] sm:$0xff]
    %v88 = vld [vmem:[#allocation2 + $0xa0] sm:$0xff]
    %v89 = vld [vmem:[#allocation2 + $0xa8] sm:$0xff]
    %v90 = vld [vmem:[#allocation2 + $0xb0] sm:$0xff]
    %v91 = vld [vmem:[#allocation2 + $0xb8] sm:$0xff]
    %v92 = vld [vmem:[#allocation2 + $0xc0] sm:$0xff]
    %v93 = vld [vmem:[#allocation2 + $0xc8] sm:$0xff]
    %v94 = vld [vmem:[#allocation2 + $0xd0] sm:$0xff]
    %v95 = vld [vmem:[#allocation2 + $0xd8] sm:$0xff]
    %v96 = vld [vmem:[#allocation2 + $0xf0] sm:$0xff]
    %v97 = vld [vmem:[#allocation2 + $0xf8] sm:$0xff]
    %v98 = vld [vmem:[#allocation2 + $0x100] sm:$0xff]
    %v99 = vld [vmem:[#allocation2 + $0x108] sm:$0xff]
    %v100 = vld [vmem:[#allocation2 + $0x110] sm:$0xff]
    %v101 = vld [vmem:[#allocation2 + $0x118] sm:$0xff]
    %v102 = vld [vmem:[#allocation2 + $0x120] sm:$0xff]
    %v103 = vld [vmem:[#allocation2 + $0x128] sm:$0xff]
    %v104 = vld [vmem:[#allocation2 + $0x40] sm:$0xff]
    %v105 = vld [vmem:[#allocation2 + $0x48] sm:$0xff]
    %v106 = vld [vmem:[#allocation2 + $0x90] sm:$0xff]
    %v107 = vld [vmem:[#allocation2 + $0x98] sm:$0xff]
    %v108 = vld [vmem:[#allocation2 + $0xe0] sm:$0xff]
    %v109 = vld [vmem:[#allocation2 + $0xe8] sm:$0xff]
    %v110 = vld [vmem:[#allocation2 + $0x130] sm:$0xff]
    %v111 = vld [vmem:[#allocation2 + $0x138] sm:$0xff]
    %v112 = vld [vmem:[%s0] sm:$0x3]
    %vm113 = vcmask 261120
    %v115 = vsel %vm113, %v112, 0
    %v117 = vand.u32 %v73, 4294901760
    %118 = vmatprep.subr.mxu0 %v117
    %v119 = vand.u32 %v72, 4294901760
    %120 = vmatpush1.msra.mxu0 %v119
    %v121 = vand.u32 %v81, 4294901760
    %122 = vmatprep.subr.mxu0 %v121
    %v123 = vand.u32 %v80, 4294901760
    %124 = vmatpush1.msra.mxu0 %v123
    %v125 = vand.u32 %v89, 4294901760
    %126 = vmatprep.subr.mxu0 %v125
    %v127 = vand.u32 %v88, 4294901760
    %128 = vmatpush1.msra.mxu0 %v127
    %v129 = vand.u32 %v97, 4294901760
    %130 = vmatprep.subr.mxu0 %v129
    %v131 = vand.u32 %v96, 4294901760
    %132 = vmatpush1.msra.mxu0 %v131
    %133 = vmatprep.subr.mxu0 0.0
    %134 = vmatpush1.msra.mxu0 0.0
    %135 = vmatprep.subr.mxu0 0.0
    %136 = vmatpush1.msra.mxu0 0.0
    %137 = vmatprep.subr.mxu0 0.0
    %138 = vmatpush1.msra.mxu0 0.0
    %139 = vmatprep.subr.mxu0 0.0
    %140 = vmatpush1.msra.mxu0 0.0
    %141 = vmatprep.subr.mxu0 0.0
    %142 = vmatpush1.msra.mxu0 0.0
    %143 = vmatprep.subr.mxu0 0.0
    %144 = vmatpush1.msra.mxu0 0.0
    %145 = vmatprep.subr.mxu0 0.0
    %146 = vmatpush1.msra.mxu0 0.0
    %147 = vmatprep.subr.mxu0 0.0
    %148 = vmatpush1.msra.mxu0 0.0
    %149 = vmatprep.subr.mxu0 0.0
    %150 = vmatpush1.msra.mxu0 0.0
    %151 = vmatprep.subr.mxu0 0.0
    %152 = vmatpush1.msra.mxu0 0.0
    %153 = vmatprep.subr.mxu0 0.0
    %154 = vmatpush1.msra.mxu0 0.0
    %155 = vmatprep.subr.mxu0 0.0
    %156 = vmatpush1.msra.mxu0 0.0
    %157 = vmatprep.subr.mxu0 0.0
    %158 = vmatpush1.msra.mxu0 0.0
    %159 = vmatprep.subr.mxu0 0.0
    %160 = vmatpush1.msra.mxu0 0.0
    %161 = vmatprep.subr.mxu0 0.0
    %162 = vmatpush1.msra.mxu0 0.0
    %163 = vmatprep.subr.mxu0 0.0
    %164 = vmatpush1.msra.mxu0 0.0
    %165 = vmatprep.subr.mxu0 0.0
    %166 = vmatpush1.msra.mxu0 0.0
    %167 = vmatprep.subr.mxu0 0.0
    %168 = vmatpush1.msra.mxu0 0.0
    %169 = vmatprep.subr.mxu0 0.0
    %170 = vmatpush1.msra.mxu0 0.0
    %171 = vmatprep.subr.mxu0 0.0
    %172 = vmatpush1.msra.mxu0 0.0
    %173 = vmatprep.subr.mxu0 0.0
    %174 = vmatpush1.msra.mxu0 0.0
    %175 = vmatprep.subr.mxu0 0.0
    %176 = vmatpush1.msra.mxu0 0.0
    %177 = vmatprep.subr.mxu0 0.0
    %178 = vmatpush1.msra.mxu0 0.0
    %179 = vmatprep.subr.mxu0 0.0
    %180 = vmatpush1.msra.mxu0 0.0
    %181 = vmatprep.subr.mxu0 0.0
    %182 = vmatpush1.msra.mxu0 0.0
    %183 = vmatprep.subr.mxu0 0.0
    %184 = vmatpush1.msra.mxu0 0.0
    %185 = vmatprep.subr.mxu0 0.0
    %186 = vmatpush1.msra.mxu0 0.0
    %187 = vmatprep.subr.mxu0 0.0
    %188 = vmatpush1.msra.mxu0 0.0
    %189 = vmatprep.mubr.f32.mxu0 0.0
    %v190 = vand.u32 %v115, 4294901760
    %v191 = vsub.f32 %v115, %v190
    %v192 = vand.u32 %v191, 4294901760
    %v193 = vsub.f32 %v191, %v192
    %v194 = vand.u32 %v193, 4294901760
    %195 = vmatmul.mubr.f32.gmra.mrb[0].mxu0 %v194
    %v196 = vpop.f32.mrb[0].mxu0
    %v197 = vadd.f32 0.0, %v196
    %v198 = vpop.f32.mrb[0].mxu0
    %v199 = vadd.f32 0.0, %v198
    %200 = vdwg.mxu0
    %v201 = vand.u32 %v73, 4294901760
    %v202 = vsub.f32 %v73, %v201
    %v203 = vand.u32 %v202, 4294901760
    %v204 = vsub.f32 %v202, %v203
    %v205 = vand.u32 %v204, 4294901760
    %206 = vmatprep.subr.mxu0 %v205
    %v207 = vand.u32 %v72, 4294901760
    %v208 = vsub.f32 %v72, %v207
    %v209 = vand.u32 %v208, 4294901760
    %v210 = vsub.f32 %v208, %v209
    %v211 = vand.u32 %v210, 4294901760
    %212 = vmatpush1.msra.mxu0 %v211
    %v213 = vand.u32 %v81, 4294901760
    %v214 = vsub.f32 %v81, %v213
    %v215 = vand.u32 %v214, 4294901760
    %v216 = vsub.f32 %v214, %v215
    %v217 = vand.u32 %v216, 4294901760
    %218 = vmatprep.subr.mxu0 %v217
    %v219 = vand.u32 %v80, 4294901760
    %v220 = vsub.f32 %v80, %v219
    %v221 = vand.u32 %v220, 4294901760
    %v222 = vsub.f32 %v220, %v221
    %v223 = vand.u32 %v222, 4294901760
    %224 = vmatpush1.msra.mxu0 %v223
    %v225 = vand.u32 %v89, 4294901760
    %v226 = vsub.f32 %v89, %v225
    %v227 = vand.u32 %v226, 4294901760
    %v228 = vsub.f32 %v226, %v227
    %v229 = vand.u32 %v228, 4294901760
    %230 = vmatprep.subr.mxu0 %v229
    %v231 = vand.u32 %v88, 4294901760
    %v232 = vsub.f32 %v88, %v231
    %v233 = vand.u32 %v232, 4294901760
    %v234 = vsub.f32 %v232, %v233
    %v235 = vand.u32 %v234, 4294901760
    %236 = vmatpush1.msra.mxu0 %v235
    %v237 = vand.u32 %v97, 4294901760
    %v238 = vsub.f32 %v97, %v237
    %v239 = vand.u32 %v238, 4294901760
    %v240 = vsub.f32 %v238, %v239
    %v241 = vand.u32 %v240, 4294901760
    %242 = vmatprep.subr.mxu0 %v241
    %v243 = vand.u32 %v96, 4294901760
    %v244 = vsub.f32 %v96, %v243
    %v245 = vand.u32 %v244, 4294901760
    %v246 = vsub.f32 %v244, %v245
    %v247 = vand.u32 %v246, 4294901760
    %248 = vmatpush1.msra.mxu0 %v247
    %249 = vmatprep.subr.mxu0 0.0
    %250 = vmatpush1.msra.mxu0 0.0
    %251 = vmatprep.subr.mxu0 0.0
    %252 = vmatpush1.msra.mxu0 0.0
    %253 = vmatprep.subr.mxu0 0.0
    %254 = vmatpush1.msra.mxu0 0.0
    %255 = vmatprep.subr.mxu0 0.0
    %256 = vmatpush1.msra.mxu0 0.0
    %257 = vmatprep.subr.mxu0 0.0
    %258 = vmatpush1.msra.mxu0 0.0
    %259 = vmatprep.subr.mxu0 0.0
    %260 = vmatpush1.msra.mxu0 0.0
    %261 = vmatprep.subr.mxu0 0.0
    %262 = vmatpush1.msra.mxu0 0.0
    %263 = vmatprep.subr.mxu0 0.0
    %264 = vmatpush1.msra.mxu0 0.0
    %265 = vmatprep.subr.mxu0 0.0
    %266 = vmatpush1.msra.mxu0 0.0
    %267 = vmatprep.subr.mxu0 0.0
    %268 = vmatpush1.msra.mxu0 0.0
    %269 = vmatprep.subr.mxu0 0.0
    %270 = vmatpush1.msra.mxu0 0.0
    %271 = vmatprep.subr.mxu0 0.0
    %272 = vmatpush1.msra.mxu0 0.0
    %273 = vmatprep.subr.mxu0 0.0
    %274 = vmatpush1.msra.mxu0 0.0
    %275 = vmatprep.subr.mxu0 0.0
    %276 = vmatpush1.msra.mxu0 0.0
    %277 = vmatprep.subr.mxu0 0.0
    %278 = vmatpush1.msra.mxu0 0.0
    %279 = vmatprep.subr.mxu0 0.0
    %280 = vmatpush1.msra.mxu0 0.0
    %281 = vmatprep.subr.mxu0 0.0
    %282 = vmatpush1.msra.mxu0 0.0
    %283 = vmatprep.subr.mxu0 0.0
    %284 = vmatpush1.msra.mxu0 0.0
    %285 = vmatprep.subr.mxu0 0.0
    %286 = vmatpush1.msra.mxu0 0.0
    %287 = vmatprep.subr.mxu0 0.0
    %288 = vmatpush1.msra.mxu0 0.0
    %289 = vmatprep.subr.mxu0 0.0
    %290 = vmatpush1.msra.mxu0 0.0
    %291 = vmatprep.subr.mxu0 0.0
    %292 = vmatpush1.msra.mxu0 0.0
    %293 = vmatprep.subr.mxu0 0.0
    %294 = vmatpush1.msra.mxu0 0.0
    %295 = vmatprep.subr.mxu0 0.0
    %296 = vmatpush1.msra.mxu0 0.0
    %297 = vmatprep.subr.mxu0 0.0
    %298 = vmatpush1.msra.mxu0 0.0
    %299 = vmatprep.subr.mxu0 0.0
    %300 = vmatpush1.msra.mxu0 0.0
    %301 = vmatprep.subr.mxu0 0.0
    %302 = vmatpush1.msra.mxu0 0.0
    %303 = vmatprep.subr.mxu0 0.0
    %304 = vmatpush1.msra.mxu0 0.0
    %305 = vmatprep.mubr.f32.mxu0 0.0
    %v306 = vand.u32 %v115, 4294901760
    %307 = vmatmul.mubr.f32.gmra.mrb[0].mxu0 %v306
    %v308 = vpop.f32.mrb[0].mxu0
    %v309 = vadd.f32 %v197, %v308
    %v310 = vpop.f32.mrb[0].mxu0
    %v311 = vadd.f32 %v199, %v310
    %312 = vdwg.mxu0
    %v313 = vand.u32 %v73, 4294901760
    %v314 = vsub.f32 %v73, %v313
    %315 = vmatprep.subr.mxu0 %v314
    %v316 = vand.u32 %v72, 4294901760
    %v317 = vsub.f32 %v72, %v316
    %318 = vmatpush1.msra.mxu0 %v317
    %v319 = vand.u32 %v81, 4294901760
    %v320 = vsub.f32 %v81, %v319
    %321 = vmatprep.subr.mxu0 %v320
    %v322 = vand.u32 %v80, 4294901760
    %v323 = vsub.f32 %v80, %v322
    %324 = vmatpush1.msra.mxu0 %v323
    %v325 = vand.u32 %v89, 4294901760
    %v326 = vsub.f32 %v89, %v325
    %327 = vmatprep.subr.mxu0 %v326
    %v328 = vand.u32 %v88, 4294901760
    %v329 = vsub.f32 %v88, %v328
    %330 = vmatpush1.msra.mxu0 %v329
    %v331 = vand.u32 %v97, 4294901760
    %v332 = vsub.f32 %v97, %v331
    %333 = vmatprep.subr.mxu0 %v332
    %v334 = vand.u32 %v96, 4294901760
    %v335 = vsub.f32 %v96, %v334
    %336 = vmatpush1.msra.mxu0 %v335
    %337 = vmatprep.subr.mxu0 0.0
    %338 = vmatpush1.msra.mxu0 0.0
    %339 = vmatprep.subr.mxu0 0.0
    %340 = vmatpush1.msra.mxu0 0.0
    %341 = vmatprep.subr.mxu0 0.0
    %342 = vmatpush1.msra.mxu0 0.0
    %343 = vmatprep.subr.mxu0 0.0
    %344 = vmatpush1.msra.mxu0 0.0
    %345 = vmatprep.subr.mxu0 0.0
    %346 = vmatpush1.msra.mxu0 0.0
    %347 = vmatprep.subr.mxu0 0.0
    %348 = vmatpush1.msra.mxu0 0.0
    %349 = vmatprep.subr.mxu0 0.0
    %350 = vmatpush1.msra.mxu0 0.0
    %351 = vmatprep.subr.mxu0 0.0
    %352 = vmatpush1.msra.mxu0 0.0
    %353 = vmatprep.subr.mxu0 0.0
    %354 = vmatpush1.msra.mxu0 0.0
    %355 = vmatprep.subr.mxu0 0.0
    %356 = vmatpush1.msra.mxu0 0.0
    %357 = vmatprep.subr.mxu0 0.0
    %358 = vmatpush1.msra.mxu0 0.0
    %359 = vmatprep.subr.mxu0 0.0
    %360 = vmatpush1.msra.mxu0 0.0
    %361 = vmatprep.subr.mxu0 0.0
    %362 = vmatpush1.msra.mxu0 0.0
    %363 = vmatprep.subr.mxu0 0.0
    %364 = vmatpush1.msra.mxu0 0.0
    %365 = vmatprep.subr.mxu0 0.0
    %366 = vmatpush1.msra.mxu0 0.0
    %367 = vmatprep.subr.mxu0 0.0
    %368 = vmatpush1.msra.mxu0 0.0
    %369 = vmatprep.subr.mxu0 0.0
    %370 = vmatpush1.msra.mxu0 0.0
    %371 = vmatprep.subr.mxu0 0.0
    %372 = vmatpush1.msra.mxu0 0.0
    %373 = vmatprep.subr.mxu0 0.0
    %374 = vmatpush1.msra.mxu0 0.0
    %375 = vmatprep.subr.mxu0 0.0
    %376 = vmatpush1.msra.mxu0 0.0
    %377 = vmatprep.subr.mxu0 0.0
    %378 = vmatpush1.msra.mxu0 0.0
    %379 = vmatprep.subr.mxu0 0.0
    %380 = vmatpush1.msra.mxu0 0.0
    %381 = vmatprep.subr.mxu0 0.0
    %382 = vmatpush1.msra.mxu0 0.0
    %383 = vmatprep.subr.mxu0 0.0
    %384 = vmatpush1.msra.mxu0 0.0
    %385 = vmatprep.subr.mxu0 0.0
    %386 = vmatpush1.msra.mxu0 0.0
    %387 = vmatprep.subr.mxu0 0.0
    %388 = vmatpush1.msra.mxu0 0.0
    %389 = vmatprep.subr.mxu0 0.0
    %390 = vmatpush1.msra.mxu0 0.0
    %391 = vmatprep.subr.mxu0 0.0
    %392 = vmatpush1.msra.mxu0 0.0
    %393 = vmatprep.mubr.f32.mxu0 0.0
    %v394 = vand.u32 %v115, 4294901760
    %v395 = vsub.f32 %v115, %v394
    %396 = vmatmul.mubr.f32.gmra.mrb[0].mxu0 %v395
    %v397 = vpop.f32.mrb[0].mxu0
    %v398 = vadd.f32 %v309, %v397
    %v399 = vpop.f32.mrb[0].mxu0
    %v400 = vadd.f32 %v311, %v399
    %401 = vdwg.mxu0
    %v402 = vand.u32 %v73, 4294901760
    %403 = vmatprep.subr.mxu0 %v402
    %v404 = vand.u32 %v72, 4294901760
    %405 = vmatpush1.msra.mxu0 %v404
    %v406 = vand.u32 %v81, 4294901760
    %407 = vmatprep.subr.mxu0 %v406
    %v408 = vand.u32 %v80, 4294901760
    %409 = vmatpush1.msra.mxu0 %v408
    %v410 = vand.u32 %v89, 4294901760
    %411 = vmatprep.subr.mxu0 %v410
    %v412 = vand.u32 %v88, 4294901760
    %413 = vmatpush1.msra.mxu0 %v412
    %v414 = vand.u32 %v97, 4294901760
    %415 = vmatprep.subr.mxu0 %v414
    %v416 = vand.u32 %v96, 4294901760
    %417 = vmatpush1.msra.mxu0 %v416
    %418 = vmatprep.subr.mxu0 0.0
    %419 = vmatpush1.msra.mxu0 0.0
    %420 = vmatprep.subr.mxu0 0.0
    %421 = vmatpush1.msra.mxu0 0.0
    %422 = vmatprep.subr.mxu0 0.0
    %423 = vmatpush1.msra.mxu0 0.0
    %424 = vmatprep.subr.mxu0 0.0
    %425 = vmatpush1.msra.mxu0 0.0
    %426 = vmatprep.subr.mxu0 0.0
    %427 = vmatpush1.msra.mxu0 0.0
    %428 = vmatprep.subr.mxu0 0.0
    %429 = vmatpush1.msra.mxu0 0.0
    %430 = vmatprep.subr.mxu0 0.0
    %431 = vmatpush1.msra.mxu0 0.0
    %432 = vmatprep.subr.mxu0 0.0
    %433 = vmatpush1.msra.mxu0 0.0
    %434 = vmatprep.subr.mxu0 0.0
    %435 = vmatpush1.msra.mxu0 0.0
    %436 = vmatprep.subr.mxu0 0.0
    %437 = vmatpush1.msra.mxu0 0.0
    %438 = vmatprep.subr.mxu0 0.0
    %439 = vmatpush1.msra.mxu0 0.0
    %440 = vmatprep.subr.mxu0 0.0
    %441 = vmatpush1.msra.mxu0 0.0
    %442 = vmatprep.subr.mxu0 0.0
    %443 = vmatpush1.msra.mxu0 0.0
    %444 = vmatprep.subr.mxu0 0.0
    %445 = vmatpush1.msra.mxu0 0.0
    %446 = vmatprep.subr.mxu0 0.0
    %447 = vmatpush1.msra.mxu0 0.0
    %448 = vmatprep.subr.mxu0 0.0
    %449 = vmatpush1.msra.mxu0 0.0
    %450 = vmatprep.subr.mxu0 0.0
    %451 = vmatpush1.msra.mxu0 0.0
    %452 = vmatprep.subr.mxu0 0.0
    %453 = vmatpush1.msra.mxu0 0.0
    %454 = vmatprep.subr.mxu0 0.0
    %455 = vmatpush1.msra.mxu0 0.0
    %456 = vmatprep.subr.mxu0 0.0
    %457 = vmatpush1.msra.mxu0 0.0
    %458 = vmatprep.subr.mxu0 0.0
    %459 = vmatpush1.msra.mxu0 0.0
    %460 = vmatprep.subr.mxu0 0.0
    %461 = vmatpush1.msra.mxu0 0.0
    %462 = vmatprep.subr.mxu0 0.0
    %463 = vmatpush1.msra.mxu0 0.0
    %464 = vmatprep.subr.mxu0 0.0
    %465 = vmatpush1.msra.mxu0 0.0
    %466 = vmatprep.subr.mxu0 0.0
    %467 = vmatpush1.msra.mxu0 0.0
    %468 = vmatprep.subr.mxu0 0.0
    %469 = vmatpush1.msra.mxu0 0.0
    %470 = vmatprep.subr.mxu0 0.0
    %471 = vmatpush1.msra.mxu0 0.0
    %472 = vmatprep.subr.mxu0 0.0
    %473 = vmatpush1.msra.mxu0 0.0
    %474 = vmatprep.mubr.f32.mxu0 0.0
    %v475 = vand.u32 %v115, 4294901760
    %v476 = vsub.f32 %v115, %v475
    %v477 = vand.u32 %v476, 4294901760
    %478 = vmatmul.mubr.f32.gmra.mrb[0].mxu0 %v477
    %v479 = vpop.f32.mrb[0].mxu0
    %v480 = vadd.f32 %v398, %v479
    %v481 = vpop.f32.mrb[0].mxu0
    %v482 = vadd.f32 %v400, %v481
    %483 = vdwg.mxu0
    %v484 = vand.u32 %v73, 4294901760
    %v485 = vsub.f32 %v73, %v484
    %v486 = vand.u32 %v485, 4294901760
    %487 = vmatprep.subr.mxu0 %v486
    %v488 = vand.u32 %v72, 4294901760
    %v489 = vsub.f32 %v72, %v488
    %v490 = vand.u32 %v489, 4294901760
    %491 = vmatpush1.msra.mxu0 %v490
    %v492 = vand.u32 %v81, 4294901760
    %v493 = vsub.f32 %v81, %v492
    %v494 = vand.u32 %v493, 4294901760
    %495 = vmatprep.subr.mxu0 %v494
    %v496 = vand.u32 %v80, 4294901760
    %v497 = vsub.f32 %v80, %v496
    %v498 = vand.u32 %v497, 4294901760
    %499 = vmatpush1.msra.mxu0 %v498
    %v500 = vand.u32 %v89, 4294901760
    %v501 = vsub.f32 %v89, %v500
    %v502 = vand.u32 %v501, 4294901760
    %503 = vmatprep.subr.mxu0 %v502
    %v504 = vand.u32 %v88, 4294901760
    %v505 = vsub.f32 %v88, %v504
    %v506 = vand.u32 %v505, 4294901760
    %507 = vmatpush1.msra.mxu0 %v506
    %v508 = vand.u32 %v97, 4294901760
    %v509 = vsub.f32 %v97, %v508
    %v510 = vand.u32 %v509, 4294901760
    %511 = vmatprep.subr.mxu0 %v510
    %v512 = vand.u32 %v96, 4294901760
    %v513 = vsub.f32 %v96, %v512
    %v514 = vand.u32 %v513, 4294901760
    %515 = vmatpush1.msra.mxu0 %v514
    %516 = vmatprep.subr.mxu0 0.0
    %517 = vmatpush1.msra.mxu0 0.0
    %518 = vmatprep.subr.mxu0 0.0
    %519 = vmatpush1.msra.mxu0 0.0
    %520 = vmatprep.subr.mxu0 0.0
    %521 = vmatpush1.msra.mxu0 0.0
    %522 = vmatprep.subr.mxu0 0.0
    %523 = vmatpush1.msra.mxu0 0.0
    %524 = vmatprep.subr.mxu0 0.0
    %525 = vmatpush1.msra.mxu0 0.0
    %526 = vmatprep.subr.mxu0 0.0
    %527 = vmatpush1.msra.mxu0 0.0
    %528 = vmatprep.subr.mxu0 0.0
    %529 = vmatpush1.msra.mxu0 0.0
    %530 = vmatprep.subr.mxu0 0.0
    %531 = vmatpush1.msra.mxu0 0.0
    %532 = vmatprep.subr.mxu0 0.0
    %533 = vmatpush1.msra.mxu0 0.0
    %534 = vmatprep.subr.mxu0 0.0
    %535 = vmatpush1.msra.mxu0 0.0
    %536 = vmatprep.subr.mxu0 0.0
    %537 = vmatpush1.msra.mxu0 0.0
    %538 = vmatprep.subr.mxu0 0.0
    %539 = vmatpush1.msra.mxu0 0.0
    %540 = vmatprep.subr.mxu0 0.0
    %541 = vmatpush1.msra.mxu0 0.0
    %542 = vmatprep.subr.mxu0 0.0
    %543 = vmatpush1.msra.mxu0 0.0
    %544 = vmatprep.subr.mxu0 0.0
    %545 = vmatpush1.msra.mxu0 0.0
    %546 = vmatprep.subr.mxu0 0.0
    %547 = vmatpush1.msra.mxu0 0.0
    %548 = vmatprep.subr.mxu0 0.0
    %549 = vmatpush1.msra.mxu0 0.0
    %550 = vmatprep.subr.mxu0 0.0
    %551 = vmatpush1.msra.mxu0 0.0
    %552 = vmatprep.subr.mxu0 0.0
    %553 = vmatpush1.msra.mxu0 0.0
    %554 = vmatprep.subr.mxu0 0.0
    %555 = vmatpush1.msra.mxu0 0.0
    %556 = vmatprep.subr.mxu0 0.0
    %557 = vmatpush1.msra.mxu0 0.0
    %558 = vmatprep.subr.mxu0 0.0
    %559 = vmatpush1.msra.mxu0 0.0
    %560 = vmatprep.subr.mxu0 0.0
    %561 = vmatpush1.msra.mxu0 0.0
    %562 = vmatprep.subr.mxu0 0.0
    %563 = vmatpush1.msra.mxu0 0.0
    %564 = vmatprep.subr.mxu0 0.0
    %565 = vmatpush1.msra.mxu0 0.0
    %566 = vmatprep.subr.mxu0 0.0
    %567 = vmatpush1.msra.mxu0 0.0
    %568 = vmatprep.subr.mxu0 0.0
    %569 = vmatpush1.msra.mxu0 0.0
    %570 = vmatprep.subr.mxu0 0.0
    %571 = vmatpush1.msra.mxu0 0.0
    %572 = vmatprep.mubr.f32.mxu0 0.0
    %v573 = vand.u32 %v115, 4294901760
    %574 = vmatmul.mubr.f32.gmra.mrb[0].mxu0 %v573
    %v575 = vpop.f32.mrb[0].mxu0
    %v576 = vadd.f32 %v480, %v575
    %v577 = vpop.f32.mrb[0].mxu0
    %v578 = vadd.f32 %v482, %v577
    %579 = vdwg.mxu0
    %v580 = vand.u32 %v73, 4294901760
    %581 = vmatprep.subr.mxu0 %v580
    %v582 = vand.u32 %v72, 4294901760
    %583 = vmatpush1.msra.mxu0 %v582
    %v584 = vand.u32 %v81, 4294901760
    %585 = vmatprep.subr.mxu0 %v584
    %v586 = vand.u32 %v80, 4294901760
    %587 = vmatpush1.msra.mxu0 %v586
    %v588 = vand.u32 %v89, 4294901760
    %589 = vmatprep.subr.mxu0 %v588
    %v590 = vand.u32 %v88, 4294901760
    %591 = vmatpush1.msra.mxu0 %v590
    %v592 = vand.u32 %v97, 4294901760
    %593 = vmatprep.subr.mxu0 %v592
    %v594 = vand.u32 %v96, 4294901760
    %595 = vmatpush1.msra.mxu0 %v594
    %596 = vmatprep.subr.mxu0 0.0
    %597 = vmatpush1.msra.mxu0 0.0
    %598 = vmatprep.subr.mxu0 0.0
    %599 = vmatpush1.msra.mxu0 0.0
    %600 = vmatprep.subr.mxu0 0.0
    %601 = vmatpush1.msra.mxu0 0.0
    %602 = vmatprep.subr.mxu0 0.0
    %603 = vmatpush1.msra.mxu0 0.0
    %604 = vmatprep.subr.mxu0 0.0
    %605 = vmatpush1.msra.mxu0 0.0
    %606 = vmatprep.subr.mxu0 0.0
    %607 = vmatpush1.msra.mxu0 0.0
    %608 = vmatprep.subr.mxu0 0.0
    %609 = vmatpush1.msra.mxu0 0.0
    %610 = vmatprep.subr.mxu0 0.0
    %611 = vmatpush1.msra.mxu0 0.0
    %612 = vmatprep.subr.mxu0 0.0
    %613 = vmatpush1.msra.mxu0 0.0
    %614 = vmatprep.subr.mxu0 0.0
    %615 = vmatpush1.msra.mxu0 0.0
    %616 = vmatprep.subr.mxu0 0.0
    %617 = vmatpush1.msra.mxu0 0.0
    %618 = vmatprep.subr.mxu0 0.0
    %619 = vmatpush1.msra.mxu0 0.0
    %620 = vmatprep.subr.mxu0 0.0
    %621 = vmatpush1.msra.mxu0 0.0
    %622 = vmatprep.subr.mxu0 0.0
    %623 = vmatpush1.msra.mxu0 0.0
    %624 = vmatprep.subr.mxu0 0.0
    %625 = vmatpush1.msra.mxu0 0.0
    %626 = vmatprep.subr.mxu0 0.0
    %627 = vmatpush1.msra.mxu0 0.0
    %628 = vmatprep.subr.mxu0 0.0
    %629 = vmatpush1.msra.mxu0 0.0
    %630 = vmatprep.subr.mxu0 0.0
    %631 = vmatpush1.msra.mxu0 0.0
    %632 = vmatprep.subr.mxu0 0.0
    %633 = vmatpush1.msra.mxu0 0.0
    %634 = vmatprep.subr.mxu0 0.0
    %635 = vmatpush1.msra.mxu0 0.0
    %636 = vmatprep.subr.mxu0 0.0
    %637 = vmatpush1.msra.mxu0 0.0
    %638 = vmatprep.subr.mxu0 0.0
    %639 = vmatpush1.msra.mxu0 0.0
    %640 = vmatprep.subr.mxu0 0.0
    %641 = vmatpush1.msra.mxu0 0.0
    %642 = vmatprep.subr.mxu0 0.0
    %643 = vmatpush1.msra.mxu0 0.0
    %644 = vmatprep.subr.mxu0 0.0
    %645 = vmatpush1.msra.mxu0 0.0
    %646 = vmatprep.subr.mxu0 0.0
    %647 = vmatpush1.msra.mxu0 0.0
    %648 = vmatprep.subr.mxu0 0.0
    %649 = vmatpush1.msra.mxu0 0.0
    %650 = vmatprep.subr.mxu0 0.0
    %651 = vmatpush1.msra.mxu0 0.0
    %652 = vmatprep.mubr.f32.mxu0 0.0
    %v653 = vand.u32 %v115, 4294901760
    %654 = vmatmul.mubr.f32.gmra.mrb[0].mxu0 %v653
    %v655 = vpop.f32.mrb[0].mxu0
    %v656 = vadd.f32 %v576, %v655
    %v657 = vpop.f32.mrb[0].mxu0
    %v658 = vadd.f32 %v578, %v657
    %659 = vdwg.mxu0
    %v660 = vand.u32 %v75, 4294901760
    %661 = vmatprep.subr.mxu0 %v660
    %v662 = vand.u32 %v74, 4294901760
    %663 = vmatpush1.msra.mxu0 %v662
    %v664 = vand.u32 %v83, 4294901760
    %665 = vmatprep.subr.mxu0 %v664
    %v666 = vand.u32 %v82, 4294901760
    %667 = vmatpush1.msra.mxu0 %v666
    %v668 = vand.u32 %v91, 4294901760
    %669 = vmatprep.subr.mxu0 %v668
    %v670 = vand.u32 %v90, 4294901760
    %671 = vmatpush1.msra.mxu0 %v670
    %v672 = vand.u32 %v99, 4294901760
    %673 = vmatprep.subr.mxu0 %v672
    %v674 = vand.u32 %v98, 4294901760
    %675 = vmatpush1.msra.mxu0 %v674
    %676 = vmatprep.subr.mxu0 0.0
    %677 = vmatpush1.msra.mxu0 0.0
    %678 = vmatprep.subr.mxu0 0.0
    %679 = vmatpush1.msra.mxu0 0.0
    %680 = vmatprep.subr.mxu0 0.0
    %681 = vmatpush1.msra.mxu0 0.0
    %682 = vmatprep.subr.mxu0 0.0
    %683 = vmatpush1.msra.mxu0 0.0
    %684 = vmatprep.subr.mxu0 0.0
    %685 = vmatpush1.msra.mxu0 0.0
    %686 = vmatprep.subr.mxu0 0.0
    %687 = vmatpush1.msra.mxu0 0.0
    %688 = vmatprep.subr.mxu0 0.0
    %689 = vmatpush1.msra.mxu0 0.0
    %690 = vmatprep.subr.mxu0 0.0
    %691 = vmatpush1.msra.mxu0 0.0
    %692 = vmatprep.subr.mxu0 0.0
    %693 = vmatpush1.msra.mxu0 0.0
    %694 = vmatprep.subr.mxu0 0.0
    %695 = vmatpush1.msra.mxu0 0.0
    %696 = vmatprep.subr.mxu0 0.0
    %697 = vmatpush1.msra.mxu0 0.0
    %698 = vmatprep.subr.mxu0 0.0
    %699 = vmatpush1.msra.mxu0 0.0
    %700 = vmatprep.subr.mxu0 0.0
    %701 = vmatpush1.msra.mxu0 0.0
    %702 = vmatprep.subr.mxu0 0.0
    %703 = vmatpush1.msra.mxu0 0.0
    %704 = vmatprep.subr.mxu0 0.0
    %705 = vmatpush1.msra.mxu0 0.0
    %706 = vmatprep.subr.mxu0 0.0
    %707 = vmatpush1.msra.mxu0 0.0
    %708 = vmatprep.subr.mxu0 0.0
    %709 = vmatpush1.msra.mxu0 0.0
    %710 = vmatprep.subr.mxu0 0.0
    %711 = vmatpush1.msra.mxu0 0.0
    %712 = vmatprep.subr.mxu0 0.0
    %713 = vmatpush1.msra.mxu0 0.0
    %714 = vmatprep.subr.mxu0 0.0
    %715 = vmatpush1.msra.mxu0 0.0
    %716 = vmatprep.subr.mxu0 0.0
    %717 = vmatpush1.msra.mxu0 0.0
    %718 = vmatprep.subr.mxu0 0.0
    %719 = vmatpush1.msra.mxu0 0.0
    %720 = vmatprep.subr.mxu0 0.0
    %721 = vmatpush1.msra.mxu0 0.0
    %722 = vmatprep.subr.mxu0 0.0
    %723 = vmatpush1.msra.mxu0 0.0
    %724 = vmatprep.subr.mxu0 0.0
    %725 = vmatpush1.msra.mxu0 0.0
    %726 = vmatprep.subr.mxu0 0.0
    %727 = vmatpush1.msra.mxu0 0.0
    %728 = vmatprep.subr.mxu0 0.0
    %729 = vmatpush1.msra.mxu0 0.0
    %730 = vmatprep.subr.mxu0 0.0
    %731 = vmatpush1.msra.mxu0 0.0
    %732 = vmatprep.mubr.f32.mxu0 0.0
    %v733 = vand.u32 %v115, 4294901760
    %v734 = vsub.f32 %v115, %v733
    %v735 = vand.u32 %v734, 4294901760
    %v736 = vsub.f32 %v734, %v735
    %v737 = vand.u32 %v736, 4294901760
    %738 = vmatmul.mubr.f32.gmra.mrb[0].mxu0 %v737
    %v739 = vpop.f32.mrb[0].mxu0
    %v740 = vadd.f32 0.0, %v739
    %v741 = vpop.f32.mrb[0].mxu0
    %v742 = vadd.f32 0.0, %v741
    %743 = vdwg.mxu0
    %v744 = vand.u32 %v75, 4294901760
    %v745 = vsub.f32 %v75, %v744
    %v746 = vand.u32 %v745, 4294901760
    %v747 = vsub.f32 %v745, %v746
    %v748 = vand.u32 %v747, 4294901760
    %749 = vmatprep.subr.mxu0 %v748
    %v750 = vand.u32 %v74, 4294901760
    %v751 = vsub.f32 %v74, %v750
    %v752 = vand.u32 %v751, 4294901760
    %v753 = vsub.f32 %v751, %v752
    %v754 = vand.u32 %v753, 4294901760
    %755 = vmatpush1.msra.mxu0 %v754
    %v756 = vand.u32 %v83, 4294901760
    %v757 = vsub.f32 %v83, %v756
    %v758 = vand.u32 %v757, 4294901760
    %v759 = vsub.f32 %v757, %v758
    %v760 = vand.u32 %v759, 4294901760
    %761 = vmatprep.subr.mxu0 %v760
    %v762 = vand.u32 %v82, 4294901760
    %v763 = vsub.f32 %v82, %v762
    %v764 = vand.u32 %v763, 4294901760
    %v765 = vsub.f32 %v763, %v764
    %v766 = vand.u32 %v765, 4294901760
    %767 = vmatpush1.msra.mxu0 %v766
    %v768 = vand.u32 %v91, 4294901760
    %v769 = vsub.f32 %v91, %v768
    %v770 = vand.u32 %v769, 4294901760
    %v771 = vsub.f32 %v769, %v770
    %v772 = vand.u32 %v771, 4294901760
    %773 = vmatprep.subr.mxu0 %v772
    %v774 = vand.u32 %v90, 4294901760
    %v775 = vsub.f32 %v90, %v774
    %v776 = vand.u32 %v775, 4294901760
    %v777 = vsub.f32 %v775, %v776
    %v778 = vand.u32 %v777, 4294901760
    %779 = vmatpush1.msra.mxu0 %v778
    %v780 = vand.u32 %v99, 4294901760
    %v781 = vsub.f32 %v99, %v780
    %v782 = vand.u32 %v781, 4294901760
    %v783 = vsub.f32 %v781, %v782
    %v784 = vand.u32 %v783, 4294901760
    %785 = vmatprep.subr.mxu0 %v784
    %v786 = vand.u32 %v98, 4294901760
    %v787 = vsub.f32 %v98, %v786
    %v788 = vand.u32 %v787, 4294901760
    %v789 = vsub.f32 %v787, %v788
    %v790 = vand.u32 %v789, 4294901760
    %791 = vmatpush1.msra.mxu0 %v790
    %792 = vmatprep.subr.mxu0 0.0
    %793 = vmatpush1.msra.mxu0 0.0
    %794 = vmatprep.subr.mxu0 0.0
    %795 = vmatpush1.msra.mxu0 0.0
    %796 = vmatprep.subr.mxu0 0.0
    %797 = vmatpush1.msra.mxu0 0.0
    %798 = vmatprep.subr.mxu0 0.0
    %799 = vmatpush1.msra.mxu0 0.0
    %800 = vmatprep.subr.mxu0 0.0
    %801 = vmatpush1.msra.mxu0 0.0
    %802 = vmatprep.subr.mxu0 0.0
    %803 = vmatpush1.msra.mxu0 0.0
    %804 = vmatprep.subr.mxu0 0.0
    %805 = vmatpush1.msra.mxu0 0.0
    %806 = vmatprep.subr.mxu0 0.0
    %807 = vmatpush1.msra.mxu0 0.0
    %808 = vmatprep.subr.mxu0 0.0
    %809 = vmatpush1.msra.mxu0 0.0
    %810 = vmatprep.subr.mxu0 0.0
    %811 = vmatpush1.msra.mxu0 0.0
    %812 = vmatprep.subr.mxu0 0.0
    %813 = vmatpush1.msra.mxu0 0.0
    %814 = vmatprep.subr.mxu0 0.0
    %815 = vmatpush1.msra.mxu0 0.0
    %816 = vmatprep.subr.mxu0 0.0
    %817 = vmatpush1.msra.mxu0 0.0
    %818 = vmatprep.subr.mxu0 0.0
    %819 = vmatpush1.msra.mxu0 0.0
    %820 = vmatprep.subr.mxu0 0.0
    %821 = vmatpush1.msra.mxu0 0.0
    %822 = vmatprep.subr.mxu0 0.0
    %823 = vmatpush1.msra.mxu0 0.0
    %824 = vmatprep.subr.mxu0 0.0
    %825 = vmatpush1.msra.mxu0 0.0
    %826 = vmatprep.subr.mxu0 0.0
    %827 = vmatpush1.msra.mxu0 0.0
    %828 = vmatprep.subr.mxu0 0.0
    %829 = vmatpush1.msra.mxu0 0.0
    %830 = vmatprep.subr.mxu0 0.0
    %831 = vmatpush1.msra.mxu0 0.0
    %832 = vmatprep.subr.mxu0 0.0
    %833 = vmatpush1.msra.mxu0 0.0
    %834 = vmatprep.subr.mxu0 0.0
    %835 = vmatpush1.msra.mxu0 0.0
    %836 = vmatprep.subr.mxu0 0.0
    %837 = vmatpush1.msra.mxu0 0.0
    %838 = vmatprep.subr.mxu0 0.0
    %839 = vmatpush1.msra.mxu0 0.0
    %840 = vmatprep.subr.mxu0 0.0
    %841 = vmatpush1.msra.mxu0 0.0
    %842 = vmatprep.subr.mxu0 0.0
    %843 = vmatpush1.msra.mxu0 0.0
    %844 = vmatprep.subr.mxu0 0.0
    %845 = vmatpush1.msra.mxu0 0.0
    %846 = vmatprep.subr.mxu0 0.0
    %847 = vmatpush1.msra.mxu0 0.0
    %848 = vmatprep.mubr.f32.mxu0 0.0
    %v849 = vand.u32 %v115, 4294901760
    %850 = vmatmul.mubr.f32.gmra.mrb[0].mxu0 %v849
    %v851 = vpop.f32.mrb[0].mxu0
    %v852 = vadd.f32 %v740, %v851
    %v853 = vpop.f32.mrb[0].mxu0
    %v854 = vadd.f32 %v742, %v853
    %855 = vdwg.mxu0
    %v856 = vand.u32 %v75, 4294901760
    %v857 = vsub.f32 %v75, %v856
    %858 = vmatprep.subr.mxu0 %v857
    %v859 = vand.u32 %v74, 4294901760
    %v860 = vsub.f32 %v74, %v859
    %861 = vmatpush1.msra.mxu0 %v860
    %v862 = vand.u32 %v83, 4294901760
    %v863 = vsub.f32 %v83, %v862
    %864 = vmatprep.subr.mxu0 %v863
    %v865 = vand.u32 %v82, 4294901760
    %v866 = vsub.f32 %v82, %v865
    %867 = vmatpush1.msra.mxu0 %v866
    %v868 = vand.u32 %v91, 4294901760
    %v869 = vsub.f32 %v91, %v868
    %870 = vmatprep.subr.mxu0 %v869
    %v871 = vand.u32 %v90, 4294901760
    %v872 = vsub.f32 %v90, %v871
    %873 = vmatpush1.msra.mxu0 %v872
    %v874 = vand.u32 %v99, 4294901760
    %v875 = vsub.f32 %v99, %v874
    %876 = vmatprep.subr.mxu0 %v875
    %v877 = vand.u32 %v98, 4294901760
    %v878 = vsub.f32 %v98, %v877
    %879 = vmatpush1.msra.mxu0 %v878
    %880 = vmatprep.subr.mxu0 0.0
    %881 = vmatpush1.msra.mxu0 0.0
    %882 = vmatprep.subr.mxu0 0.0
    %883 = vmatpush1.msra.mxu0 0.0
    %884 = vmatprep.subr.mxu0 0.0
    %885 = vmatpush1.msra.mxu0 0.0
    %886 = vmatprep.subr.mxu0 0.0
    %887 = vmatpush1.msra.mxu0 0.0
    %888 = vmatprep.subr.mxu0 0.0
    %889 = vmatpush1.msra.mxu0 0.0
    %890 = vmatprep.subr.mxu0 0.0
    %891 = vmatpush1.msra.mxu0 0.0
    %892 = vmatprep.subr.mxu0 0.0
    %893 = vmatpush1.msra.mxu0 0.0
    %894 = vmatprep.subr.mxu0 0.0
    %895 = vmatpush1.msra.mxu0 0.0
    %896 = vmatprep.subr.mxu0 0.0
    %897 = vmatpush1.msra.mxu0 0.0
    %898 = vmatprep.subr.mxu0 0.0
    %899 = vmatpush1.msra.mxu0 0.0
    %900 = vmatprep.subr.mxu0 0.0
    %901 = vmatpush1.msra.mxu0 0.0
    %902 = vmatprep.subr.mxu0 0.0
    %903 = vmatpush1.msra.mxu0 0.0
    %904 = vmatprep.subr.mxu0 0.0
    %905 = vmatpush1.msra.mxu0 0.0
    %906 = vmatprep.subr.mxu0 0.0
    %907 = vmatpush1.msra.mxu0 0.0
    %908 = vmatprep.subr.mxu0 0.0
    %909 = vmatpush1.msra.mxu0 0.0
    %910 = vmatprep.subr.mxu0 0.0
    %911 = vmatpush1.msra.mxu0 0.0
    %912 = vmatprep.subr.mxu0 0.0
    %913 = vmatpush1.msra.mxu0 0.0
    %914 = vmatprep.subr.mxu0 0.0
    %915 = vmatpush1.msra.mxu0 0.0
    %916 = vmatprep.subr.mxu0 0.0
    %917 = vmatpush1.msra.mxu0 0.0
    %918 = vmatprep.subr.mxu0 0.0
    %919 = vmatpush1.msra.mxu0 0.0
    %920 = vmatprep.subr.mxu0 0.0
    %921 = vmatpush1.msra.mxu0 0.0
    %922 = vmatprep.subr.mxu0 0.0
    %923 = vmatpush1.msra.mxu0 0.0
    %924 = vmatprep.subr.mxu0 0.0
    %925 = vmatpush1.msra.mxu0 0.0
    %926 = vmatprep.subr.mxu0 0.0
    %927 = vmatpush1.msra.mxu0 0.0
    %928 = vmatprep.subr.mxu0 0.0
    %929 = vmatpush1.msra.mxu0 0.0
    %930 = vmatprep.subr.mxu0 0.0
    %931 = vmatpush1.msra.mxu0 0.0
    %932 = vmatprep.subr.mxu0 0.0
    %933 = vmatpush1.msra.mxu0 0.0
    %934 = vmatprep.subr.mxu0 0.0
    %935 = vmatpush1.msra.mxu0 0.0
    %936 = vmatprep.mubr.f32.mxu0 0.0
    %v937 = vand.u32 %v115, 4294901760
    %v938 = vsub.f32 %v115, %v937
    %939 = vmatmul.mubr.f32.gmra.mrb[0].mxu0 %v938
    %v940 = vpop.f32.mrb[0].mxu0
    %v941 = vadd.f32 %v852, %v940
    %v942 = vpop.f32.mrb[0].mxu0
    %v943 = vadd.f32 %v854, %v942
    %944 = vdwg.mxu0
    %v945 = vand.u32 %v75, 4294901760
    %946 = vmatprep.subr.mxu0 %v945
    %v947 = vand.u32 %v74, 4294901760
    %948 = vmatpush1.msra.mxu0 %v947
    %v949 = vand.u32 %v83, 4294901760
    %950 = vmatprep.subr.mxu0 %v949
    %v951 = vand.u32 %v82, 4294901760
    %952 = vmatpush1.msra.mxu0 %v951
    %v953 = vand.u32 %v91, 4294901760
    %954 = vmatprep.subr.mxu0 %v953
    %v955 = vand.u32 %v90, 4294901760
    %956 = vmatpush1.msra.mxu0 %v955
    %v957 = vand.u32 %v99, 4294901760
    %958 = vmatprep.subr.mxu0 %v957
    %v959 = vand.u32 %v98, 4294901760
    %960 = vmatpush1.msra.mxu0 %v959
    %961 = vmatprep.subr.mxu0 0.0
    %962 = vmatpush1.msra.mxu0 0.0
    %963 = vmatprep.subr.mxu0 0.0
    %964 = vmatpush1.msra.mxu0 0.0
    %965 = vmatprep.subr.mxu0 0.0
    %966 = vmatpush1.msra.mxu0 0.0
    %967 = vmatprep.subr.mxu0 0.0
    %968 = vmatpush1.msra.mxu0 0.0
    %969 = vmatprep.subr.mxu0 0.0
    %970 = vmatpush1.msra.mxu0 0.0
    %971 = vmatprep.subr.mxu0 0.0
    %972 = vmatpush1.msra.mxu0 0.0
    %973 = vmatprep.subr.mxu0 0.0
    %974 = vmatpush1.msra.mxu0 0.0
    %975 = vmatprep.subr.mxu0 0.0
    %976 = vmatpush1.msra.mxu0 0.0
    %977 = vmatprep.subr.mxu0 0.0
    %978 = vmatpush1.msra.mxu0 0.0
    %979 = vmatprep.subr.mxu0 0.0
    %980 = vmatpush1.msra.mxu0 0.0
    %981 = vmatprep.subr.mxu0 0.0
    %982 = vmatpush1.msra.mxu0 0.0
    %983 = vmatprep.subr.mxu0 0.0
    %984 = vmatpush1.msra.mxu0 0.0
    %985 = vmatprep.subr.mxu0 0.0
    %986 = vmatpush1.msra.mxu0 0.0
    %987 = vmatprep.subr.mxu0 0.0
    %988 = vmatpush1.msra.mxu0 0.0
    %989 = vmatprep.subr.mxu0 0.0
    %990 = vmatpush1.msra.mxu0 0.0
    %991 = vmatprep.subr.mxu0 0.0
    %992 = vmatpush1.msra.mxu0 0.0
    %993 = vmatprep.subr.mxu0 0.0
    %994 = vmatpush1.msra.mxu0 0.0
    %995 = vmatprep.subr.mxu0 0.0
    %996 = vmatpush1.msra.mxu0 0.0
    %997 = vmatprep.subr.mxu0 0.0
    %998 = vmatpush1.msra.mxu0 0.0
    %999 = vmatprep.subr.mxu0 0.0
    %1000 = vmatpush1.msra.mxu0 0.0
    %1001 = vmatprep.subr.mxu0 0.0
    %1002 = vmatpush1.msra.mxu0 0.0
    %1003 = vmatprep.subr.mxu0 0.0
    %1004 = vmatpush1.msra.mxu0 0.0
    %1005 = vmatprep.subr.mxu0 0.0
    %1006 = vmatpush1.msra.mxu0 0.0
    %1007 = vmatprep.subr.mxu0 0.0
    %1008 = vmatpush1.msra.mxu0 0.0
    %1009 = vmatprep.subr.mxu0 0.0
    %1010 = vmatpush1.msra.mxu0 0.0
    %1011 = vmatprep.subr.mxu0 0.0
    %1012 = vmatpush1.msra.mxu0 0.0
    %1013 = vmatprep.subr.mxu0 0.0
    %1014 = vmatpush1.msra.mxu0 0.0
    %1015 = vmatprep.subr.mxu0 0.0
    %1016 = vmatpush1.msra.mxu0 0.0
    %1017 = vmatprep.mubr.f32.mxu0 0.0
    %v1018 = vand.u32 %v115, 4294901760
    %v1019 = vsub.f32 %v115, %v1018
    %v1020 = vand.u32 %v1019, 4294901760
    %1021 = vmatmul.mubr.f32.gmra.mrb[0].mxu0 %v1020
    %v1022 = vpop.f32.mrb[0].mxu0
    %v1023 = vadd.f32 %v941, %v1022
    %v1024 = vpop.f32.mrb[0].mxu0
    %v1025 = vadd.f32 %v943, %v1024
    %1026 = vdwg.mxu0
    %v1027 = vand.u32 %v75, 4294901760
    %v1028 = vsub.f32 %v75, %v1027
    %v1029 = vand.u32 %v1028, 4294901760
    %1030 = vmatprep.subr.mxu0 %v1029
    %v1031 = vand.u32 %v74, 4294901760
    %v1032 = vsub.f32 %v74, %v1031
    %v1033 = vand.u32 %v1032, 4294901760
    %1034 = vmatpush1.msra.mxu0 %v1033
    %v1035 = vand.u32 %v83, 4294901760
    %v1036 = vsub.f32 %v83, %v1035
    %v1037 = vand.u32 %v1036, 4294901760
    %1038 = vmatprep.subr.mxu0 %v1037
    %v1039 = vand.u32 %v82, 4294901760
    %v1040 = vsub.f32 %v82, %v1039
    %v1041 = vand.u32 %v1040, 4294901760
    %1042 = vmatpush1.msra.mxu0 %v1041
    %v1043 = vand.u32 %v91, 4294901760
    %v1044 = vsub.f32 %v91, %v1043
    %v1045 = vand.u32 %v1044, 4294901760
    %1046 = vmatprep.subr.mxu0 %v1045
    %v1047 = vand.u32 %v90, 4294901760
    %v1048 = vsub.f32 %v90, %v1047
    %v1049 = vand.u32 %v1048, 4294901760
    %1050 = vmatpush1.msra.mxu0 %v1049
    %v1051 = vand.u32 %v99, 4294901760
    %v1052 = vsub.f32 %v99, %v1051
    %v1053 = vand.u32 %v1052, 4294901760
    %1054 = vmatprep.subr.mxu0 %v1053
    %v1055 = vand.u32 %v98, 4294901760
    %v1056 = vsub.f32 %v98, %v1055
    %v1057 = vand.u32 %v1056, 4294901760
    %1058 = vmatpush1.msra.mxu0 %v1057
    %1059 = vmatprep.subr.mxu0 0.0
    %1060 = vmatpush1.msra.mxu0 0.0
    %1061 = vmatprep.subr.mxu0 0.0
    %1062 = vmatpush1.msra.mxu0 0.0
    %1063 = vmatprep.subr.mxu0 0.0
    %1064 = vmatpush1.msra.mxu0 0.0
    %1065 = vmatprep.subr.mxu0 0.0
    %1066 = vmatpush1.msra.mxu0 0.0
    %1067 = vmatprep.subr.mxu0 0.0
    %1068 = vmatpush1.msra.mxu0 0.0
    %1069 = vmatprep.subr.mxu0 0.0
    %1070 = vmatpush1.msra.mxu0 0.0
    %1071 = vmatprep.subr.mxu0 0.0
    %1072 = vmatpush1.msra.mxu0 0.0
    %1073 = vmatprep.subr.mxu0 0.0
    %1074 = vmatpush1.msra.mxu0 0.0
    %1075 = vmatprep.subr.mxu0 0.0
    %1076 = vmatpush1.msra.mxu0 0.0
    %1077 = vmatprep.subr.mxu0 0.0
    %1078 = vmatpush1.msra.mxu0 0.0
    %1079 = vmatprep.subr.mxu0 0.0
    %1080 = vmatpush1.msra.mxu0 0.0
    %1081 = vmatprep.subr.mxu0 0.0
    %1082 = vmatpush1.msra.mxu0 0.0
    %1083 = vmatprep.subr.mxu0 0.0
    %1084 = vmatpush1.msra.mxu0 0.0
    %1085 = vmatprep.subr.mxu0 0.0
    %1086 = vmatpush1.msra.mxu0 0.0
    %1087 = vmatprep.subr.mxu0 0.0
    %1088 = vmatpush1.msra.mxu0 0.0
    %1089 = vmatprep.subr.mxu0 0.0
    %1090 = vmatpush1.msra.mxu0 0.0
    %1091 = vmatprep.subr.mxu0 0.0
    %1092 = vmatpush1.msra.mxu0 0.0
    %1093 = vmatprep.subr.mxu0 0.0
    %1094 = vmatpush1.msra.mxu0 0.0
    %1095 = vmatprep.subr.mxu0 0.0
    %1096 = vmatpush1.msra.mxu0 0.0
    %1097 = vmatprep.subr.mxu0 0.0
    %1098 = vmatpush1.msra.mxu0 0.0
    %1099 = vmatprep.subr.mxu0 0.0
    %1100 = vmatpush1.msra.mxu0 0.0
    %1101 = vmatprep.subr.mxu0 0.0
    %1102 = vmatpush1.msra.mxu0 0.0
    %1103 = vmatprep.subr.mxu0 0.0
    %1104 = vmatpush1.msra.mxu0 0.0
    %1105 = vmatprep.subr.mxu0 0.0
    %1106 = vmatpush1.msra.mxu0 0.0
    %1107 = vmatprep.subr.mxu0 0.0
    %1108 = vmatpush1.msra.mxu0 0.0
    %1109 = vmatprep.subr.mxu0 0.0
    %1110 = vmatpush1.msra.mxu0 0.0
    %1111 = vmatprep.subr.mxu0 0.0
    %1112 = vmatpush1.msra.mxu0 0.0
    %1113 = vmatprep.subr.mxu0 0.0
    %1114 = vmatpush1.msra.mxu0 0.0
    %1115 = vmatprep.mubr.f32.mxu0 0.0
    %v1116 = vand.u32 %v115, 4294901760
    %1117 = vmatmul.mubr.f32.gmra.mrb[0].mxu0 %v1116
    %v1118 = vpop.f32.mrb[0].mxu0
    %v1119 = vadd.f32 %v1023, %v1118
    %v1120 = vpop.f32.mrb[0].mxu0
    %v1121 = vadd.f32 %v1025, %v1120
    %1122 = vdwg.mxu0
    %v1123 = vand.u32 %v75, 4294901760
    %1124 = vmatprep.subr.mxu0 %v1123
    %v1125 = vand.u32 %v74, 4294901760
    %1126 = vmatpush1.msra.mxu0 %v1125
    %v1127 = vand.u32 %v83, 4294901760
    %1128 = vmatprep.subr.mxu0 %v1127
    %v1129 = vand.u32 %v82, 4294901760
    %1130 = vmatpush1.msra.mxu0 %v1129
    %v1131 = vand.u32 %v91, 4294901760
    %1132 = vmatprep.subr.mxu0 %v1131
    %v1133 = vand.u32 %v90, 4294901760
    %1134 = vmatpush1.msra.mxu0 %v1133
    %v1135 = vand.u32 %v99, 4294901760
    %1136 = vmatprep.subr.mxu0 %v1135
    %v1137 = vand.u32 %v98, 4294901760
    %1138 = vmatpush1.msra.mxu0 %v1137
    %1139 = vmatprep.subr.mxu0 0.0
    %1140 = vmatpush1.msra.mxu0 0.0
    %1141 = vmatprep.subr.mxu0 0.0
    %1142 = vmatpush1.msra.mxu0 0.0
    %1143 = vmatprep.subr.mxu0 0.0
    %1144 = vmatpush1.msra.mxu0 0.0
    %1145 = vmatprep.subr.mxu0 0.0
    %1146 = vmatpush1.msra.mxu0 0.0
    %1147 = vmatprep.subr.mxu0 0.0
    %1148 = vmatpush1.msra.mxu0 0.0
    %1149 = vmatprep.subr.mxu0 0.0
    %1150 = vmatpush1.msra.mxu0 0.0
    %1151 = vmatprep.subr.mxu0 0.0
    %1152 = vmatpush1.msra.mxu0 0.0
    %1153 = vmatprep.subr.mxu0 0.0
    %1154 = vmatpush1.msra.mxu0 0.0
    %1155 = vmatprep.subr.mxu0 0.0
    %1156 = vmatpush1.msra.mxu0 0.0
    %1157 = vmatprep.subr.mxu0 0.0
    %1158 = vmatpush1.msra.mxu0 0.0
    %1159 = vmatprep.subr.mxu0 0.0
    %1160 = vmatpush1.msra.mxu0 0.0
    %1161 = vmatprep.subr.mxu0 0.0
    %1162 = vmatpush1.msra.mxu0 0.0
    %1163 = vmatprep.subr.mxu0 0.0
    %1164 = vmatpush1.msra.mxu0 0.0
    %1165 = vmatprep.subr.mxu0 0.0
    %1166 = vmatpush1.msra.mxu0 0.0
    %1167 = vmatprep.subr.mxu0 0.0
    %1168 = vmatpush1.msra.mxu0 0.0
    %1169 = vmatprep.subr.mxu0 0.0
    %1170 = vmatpush1.msra.mxu0 0.0
    %1171 = vmatprep.subr.mxu0 0.0
    %1172 = vmatpush1.msra.mxu0 0.0
    %1173 = vmatprep.subr.mxu0 0.0
    %1174 = vmatpush1.msra.mxu0 0.0
    %1175 = vmatprep.subr.mxu0 0.0
    %1176 = vmatpush1.msra.mxu0 0.0
    %1177 = vmatprep.subr.mxu0 0.0
    %1178 = vmatpush1.msra.mxu0 0.0
    %1179 = vmatprep.subr.mxu0 0.0
    %1180 = vmatpush1.msra.mxu0 0.0
    %1181 = vmatprep.subr.mxu0 0.0
    %1182 = vmatpush1.msra.mxu0 0.0
    %1183 = vmatprep.subr.mxu0 0.0
    %1184 = vmatpush1.msra.mxu0 0.0
    %1185 = vmatprep.subr.mxu0 0.0
    %1186 = vmatpush1.msra.mxu0 0.0
    %1187 = vmatprep.subr.mxu0 0.0
    %1188 = vmatpush1.msra.mxu0 0.0
    %1189 = vmatprep.subr.mxu0 0.0
    %1190 = vmatpush1.msra.mxu0 0.0
    %1191 = vmatprep.subr.mxu0 0.0
    %1192 = vmatpush1.msra.mxu0 0.0
    %1193 = vmatprep.subr.mxu0 0.0
    %1194 = vmatpush1.msra.mxu0 0.0
    %1195 = vmatprep.mubr.f32.mxu0 0.0
    %v1196 = vand.u32 %v115, 4294901760
    %1197 = vmatmul.mubr.f32.gmra.mrb[0].mxu0 %v1196
    %v1198 = vpop.f32.mrb[0].mxu0
    %v1199 = vadd.f32 %v1119, %v1198
    %v1200 = vpop.f32.mrb[0].mxu0
    %v1201 = vadd.f32 %v1121, %v1200
    %1202 = vdwg.mxu0
    %v1203 = vand.u32 %v77, 4294901760
    %1204 = vmatprep.subr.mxu0 %v1203
    %v1205 = vand.u32 %v76, 4294901760
    %1206 = vmatpush1.msra.mxu0 %v1205
    %v1207 = vand.u32 %v85, 4294901760
    %1208 = vmatprep.subr.mxu0 %v1207
    %v1209 = vand.u32 %v84, 4294901760
    %1210 = vmatpush1.msra.mxu0 %v1209
    %v1211 = vand.u32 %v93, 4294901760
    %1212 = vmatprep.subr.mxu0 %v1211
    %v1213 = vand.u32 %v92, 4294901760
    %1214 = vmatpush1.msra.mxu0 %v1213
    %v1215 = vand.u32 %v101, 4294901760
    %1216 = vmatprep.subr.mxu0 %v1215
    %v1217 = vand.u32 %v100, 4294901760
    %1218 = vmatpush1.msra.mxu0 %v1217
    %1219 = vmatprep.subr.mxu0 0.0
    %1220 = vmatpush1.msra.mxu0 0.0
    %1221 = vmatprep.subr.mxu0 0.0
    %1222 = vmatpush1.msra.mxu0 0.0
    %1223 = vmatprep.subr.mxu0 0.0
    %1224 = vmatpush1.msra.mxu0 0.0
    %1225 = vmatprep.subr.mxu0 0.0
    %1226 = vmatpush1.msra.mxu0 0.0
    %1227 = vmatprep.subr.mxu0 0.0
    %1228 = vmatpush1.msra.mxu0 0.0
    %1229 = vmatprep.subr.mxu0 0.0
    %1230 = vmatpush1.msra.mxu0 0.0
    %1231 = vmatprep.subr.mxu0 0.0
    %1232 = vmatpush1.msra.mxu0 0.0
    %1233 = vmatprep.subr.mxu0 0.0
    %1234 = vmatpush1.msra.mxu0 0.0
    %1235 = vmatprep.subr.mxu0 0.0
    %1236 = vmatpush1.msra.mxu0 0.0
    %1237 = vmatprep.subr.mxu0 0.0
    %1238 = vmatpush1.msra.mxu0 0.0
    %1239 = vmatprep.subr.mxu0 0.0
    %1240 = vmatpush1.msra.mxu0 0.0
    %1241 = vmatprep.subr.mxu0 0.0
    %1242 = vmatpush1.msra.mxu0 0.0
    %1243 = vmatprep.subr.mxu0 0.0
    %1244 = vmatpush1.msra.mxu0 0.0
    %1245 = vmatprep.subr.mxu0 0.0
    %1246 = vmatpush1.msra.mxu0 0.0
    %1247 = vmatprep.subr.mxu0 0.0
    %1248 = vmatpush1.msra.mxu0 0.0
    %1249 = vmatprep.subr.mxu0 0.0
    %1250 = vmatpush1.msra.mxu0 0.0
    %1251 = vmatprep.subr.mxu0 0.0
    %1252 = vmatpush1.msra.mxu0 0.0
    %1253 = vmatprep.subr.mxu0 0.0
    %1254 = vmatpush1.msra.mxu0 0.0
    %1255 = vmatprep.subr.mxu0 0.0
    %1256 = vmatpush1.msra.mxu0 0.0
    %1257 = vmatprep.subr.mxu0 0.0
    %1258 = vmatpush1.msra.mxu0 0.0
    %1259 = vmatprep.subr.mxu0 0.0
    %1260 = vmatpush1.msra.mxu0 0.0
    %1261 = vmatprep.subr.mxu0 0.0
    %1262 = vmatpush1.msra.mxu0 0.0
    %1263 = vmatprep.subr.mxu0 0.0
    %1264 = vmatpush1.msra.mxu0 0.0
    %1265 = vmatprep.subr.mxu0 0.0
    %1266 = vmatpush1.msra.mxu0 0.0
    %1267 = vmatprep.subr.mxu0 0.0
    %1268 = vmatpush1.msra.mxu0 0.0
    %1269 = vmatprep.subr.mxu0 0.0
    %1270 = vmatpush1.msra.mxu0 0.0
    %1271 = vmatprep.subr.mxu0 0.0
    %1272 = vmatpush1.msra.mxu0 0.0
    %1273 = vmatprep.subr.mxu0 0.0
    %1274 = vmatpush1.msra.mxu0 0.0
    %1275 = vmatprep.mubr.f32.mxu0 0.0
    %v1276 = vand.u32 %v115, 4294901760
    %v1277 = vsub.f32 %v115, %v1276
    %v1278 = vand.u32 %v1277, 4294901760
    %v1279 = vsub.f32 %v1277, %v1278
    %v1280 = vand.u32 %v1279, 4294901760
    %1281 = vmatmul.mubr.f32.gmra.mrb[0].mxu0 %v1280
    %v1282 = vpop.f32.mrb[0].mxu0
    %v1283 = vadd.f32 0.0, %v1282
    %v1284 = vpop.f32.mrb[0].mxu0
    %v1285 = vadd.f32 0.0, %v1284
    %1286 = vdwg.mxu0
    %v1287 = vand.u32 %v77, 4294901760
    %v1288 = vsub.f32 %v77, %v1287
    %v1289 = vand.u32 %v1288, 4294901760
    %v1290 = vsub.f32 %v1288, %v1289
    %v1291 = vand.u32 %v1290, 4294901760
    %1292 = vmatprep.subr.mxu0 %v1291
    %v1293 = vand.u32 %v76, 4294901760
    %v1294 = vsub.f32 %v76, %v1293
    %v1295 = vand.u32 %v1294, 4294901760
    %v1296 = vsub.f32 %v1294, %v1295
    %v1297 = vand.u32 %v1296, 4294901760
    %1298 = vmatpush1.msra.mxu0 %v1297
    %v1299 = vand.u32 %v85, 4294901760
    %v1300 = vsub.f32 %v85, %v1299
    %v1301 = vand.u32 %v1300, 4294901760
    %v1302 = vsub.f32 %v1300, %v1301
    %v1303 = vand.u32 %v1302, 4294901760
    %1304 = vmatprep.subr.mxu0 %v1303
    %v1305 = vand.u32 %v84, 4294901760
    %v1306 = vsub.f32 %v84, %v1305
    %v1307 = vand.u32 %v1306, 4294901760
    %v1308 = vsub.f32 %v1306, %v1307
    %v1309 = vand.u32 %v1308, 4294901760
    %1310 = vmatpush1.msra.mxu0 %v1309
    %v1311 = vand.u32 %v93, 4294901760
    %v1312 = vsub.f32 %v93, %v1311
    %v1313 = vand.u32 %v1312, 4294901760
    %v1314 = vsub.f32 %v1312, %v1313
    %v1315 = vand.u32 %v1314, 4294901760
    %1316 = vmatprep.subr.mxu0 %v1315
    %v1317 = vand.u32 %v92, 4294901760
    %v1318 = vsub.f32 %v92, %v1317
    %v1319 = vand.u32 %v1318, 4294901760
    %v1320 = vsub.f32 %v1318, %v1319
    %v1321 = vand.u32 %v1320, 4294901760
    %1322 = vmatpush1.msra.mxu0 %v1321
    %v1323 = vand.u32 %v101, 4294901760
    %v1324 = vsub.f32 %v101, %v1323
    %v1325 = vand.u32 %v1324, 4294901760
    %v1326 = vsub.f32 %v1324, %v1325
    %v1327 = vand.u32 %v1326, 4294901760
    %1328 = vmatprep.subr.mxu0 %v1327
    %v1329 = vand.u32 %v100, 4294901760
    %v1330 = vsub.f32 %v100, %v1329
    %v1331 = vand.u32 %v1330, 4294901760
    %v1332 = vsub.f32 %v1330, %v1331
    %v1333 = vand.u32 %v1332, 4294901760
    %1334 = vmatpush1.msra.mxu0 %v1333
    %1335 = vmatprep.subr.mxu0 0.0
    %1336 = vmatpush1.msra.mxu0 0.0
    %1337 = vmatprep.subr.mxu0 0.0
    %1338 = vmatpush1.msra.mxu0 0.0
    %1339 = vmatprep.subr.mxu0 0.0
    %1340 = vmatpush1.msra.mxu0 0.0
    %1341 = vmatprep.subr.mxu0 0.0
    %1342 = vmatpush1.msra.mxu0 0.0
    %1343 = vmatprep.subr.mxu0 0.0
    %1344 = vmatpush1.msra.mxu0 0.0
    %1345 = vmatprep.subr.mxu0 0.0
    %1346 = vmatpush1.msra.mxu0 0.0
    %1347 = vmatprep.subr.mxu0 0.0
    %1348 = vmatpush1.msra.mxu0 0.0
    %1349 = vmatprep.subr.mxu0 0.0
    %1350 = vmatpush1.msra.mxu0 0.0
    %1351 = vmatprep.subr.mxu0 0.0
    %1352 = vmatpush1.msra.mxu0 0.0
    %1353 = vmatprep.subr.mxu0 0.0
    %1354 = vmatpush1.msra.mxu0 0.0
    %1355 = vmatprep.subr.mxu0 0.0
    %1356 = vmatpush1.msra.mxu0 0.0
    %1357 = vmatprep.subr.mxu0 0.0
    %1358 = vmatpush1.msra.mxu0 0.0
    %1359 = vmatprep.subr.mxu0 0.0
    %1360 = vmatpush1.msra.mxu0 0.0
    %1361 = vmatprep.subr.mxu0 0.0
    %1362 = vmatpush1.msra.mxu0 0.0
    %1363 = vmatprep.subr.mxu0 0.0
    %1364 = vmatpush1.msra.mxu0 0.0
    %1365 = vmatprep.subr.mxu0 0.0
    %1366 = vmatpush1.msra.mxu0 0.0
    %1367 = vmatprep.subr.mxu0 0.0
    %1368 = vmatpush1.msra.mxu0 0.0
    %1369 = vmatprep.subr.mxu0 0.0
    %1370 = vmatpush1.msra.mxu0 0.0
    %1371 = vmatprep.subr.mxu0 0.0
    %1372 = vmatpush1.msra.mxu0 0.0
    %1373 = vmatprep.subr.mxu0 0.0
    %1374 = vmatpush1.msra.mxu0 0.0
    %1375 = vmatprep.subr.mxu0 0.0
    %1376 = vmatpush1.msra.mxu0 0.0
    %1377 = vmatprep.subr.mxu0 0.0
    %1378 = vmatpush1.msra.mxu0 0.0
    %1379 = vmatprep.subr.mxu0 0.0
    %1380 = vmatpush1.msra.mxu0 0.0
    %1381 = vmatprep.subr.mxu0 0.0
    %1382 = vmatpush1.msra.mxu0 0.0
    %1383 = vmatprep.subr.mxu0 0.0
    %1384 = vmatpush1.msra.mxu0 0.0
    %1385 = vmatprep.subr.mxu0 0.0
    %1386 = vmatpush1.msra.mxu0 0.0
    %1387 = vmatprep.subr.mxu0 0.0
    %1388 = vmatpush1.msra.mxu0 0.0
    %1389 = vmatprep.subr.mxu0 0.0
    %1390 = vmatpush1.msra.mxu0 0.0
    %1391 = vmatprep.mubr.f32.mxu0 0.0
    %v1392 = vand.u32 %v115, 4294901760
    %1393 = vmatmul.mubr.f32.gmra.mrb[0].mxu0 %v1392
    %v1394 = vpop.f32.mrb[0].mxu0
    %v1395 = vadd.f32 %v1283, %v1394
    %v1396 = vpop.f32.mrb[0].mxu0
    %v1397 = vadd.f32 %v1285, %v1396
    %1398 = vdwg.mxu0
    %v1399 = vand.u32 %v77, 4294901760
    %v1400 = vsub.f32 %v77, %v1399
    %1401 = vmatprep.subr.mxu0 %v1400
    %v1402 = vand.u32 %v76, 4294901760
    %v1403 = vsub.f32 %v76, %v1402
    %1404 = vmatpush1.msra.mxu0 %v1403
    %v1405 = vand.u32 %v85, 4294901760
    %v1406 = vsub.f32 %v85, %v1405
    %1407 = vmatprep.subr.mxu0 %v1406
    %v1408 = vand.u32 %v84, 4294901760
    %v1409 = vsub.f32 %v84, %v1408
    %1410 = vmatpush1.msra.mxu0 %v1409
    %v1411 = vand.u32 %v93, 4294901760
    %v1412 = vsub.f32 %v93, %v1411
    %1413 = vmatprep.subr.mxu0 %v1412
    %v1414 = vand.u32 %v92, 4294901760
    %v1415 = vsub.f32 %v92, %v1414
    %1416 = vmatpush1.msra.mxu0 %v1415
    %v1417 = vand.u32 %v101, 4294901760
    %v1418 = vsub.f32 %v101, %v1417
    %1419 = vmatprep.subr.mxu0 %v1418
    %v1420 = vand.u32 %v100, 4294901760
    %v1421 = vsub.f32 %v100, %v1420
    %1422 = vmatpush1.msra.mxu0 %v1421
    %1423 = vmatprep.subr.mxu0 0.0
    %1424 = vmatpush1.msra.mxu0 0.0
    %1425 = vmatprep.subr.mxu0 0.0
    %1426 = vmatpush1.msra.mxu0 0.0
    %1427 = vmatprep.subr.mxu0 0.0
    %1428 = vmatpush1.msra.mxu0 0.0
    %1429 = vmatprep.subr.mxu0 0.0
    %1430 = vmatpush1.msra.mxu0 0.0
    %1431 = vmatprep.subr.mxu0 0.0
    %1432 = vmatpush1.msra.mxu0 0.0
    %1433 = vmatprep.subr.mxu0 0.0
    %1434 = vmatpush1.msra.mxu0 0.0
    %1435 = vmatprep.subr.mxu0 0.0
    %1436 = vmatpush1.msra.mxu0 0.0
    %1437 = vmatprep.subr.mxu0 0.0
    %1438 = vmatpush1.msra.mxu0 0.0
    %1439 = vmatprep.subr.mxu0 0.0
    %1440 = vmatpush1.msra.mxu0 0.0
    %1441 = vmatprep.subr.mxu0 0.0
    %1442 = vmatpush1.msra.mxu0 0.0
    %1443 = vmatprep.subr.mxu0 0.0
    %1444 = vmatpush1.msra.mxu0 0.0
    %1445 = vmatprep.subr.mxu0 0.0
    %1446 = vmatpush1.msra.mxu0 0.0
    %1447 = vmatprep.subr.mxu0 0.0
    %1448 = vmatpush1.msra.mxu0 0.0
    %1449 = vmatprep.subr.mxu0 0.0
    %1450 = vmatpush1.msra.mxu0 0.0
    %1451 = vmatprep.subr.mxu0 0.0
    %1452 = vmatpush1.msra.mxu0 0.0
    %1453 = vmatprep.subr.mxu0 0.0
    %1454 = vmatpush1.msra.mxu0 0.0
    %1455 = vmatprep.subr.mxu0 0.0
    %1456 = vmatpush1.msra.mxu0 0.0
    %1457 = vmatprep.subr.mxu0 0.0
    %1458 = vmatpush1.msra.mxu0 0.0
    %1459 = vmatprep.subr.mxu0 0.0
    %1460 = vmatpush1.msra.mxu0 0.0
    %1461 = vmatprep.subr.mxu0 0.0
    %1462 = vmatpush1.msra.mxu0 0.0
    %1463 = vmatprep.subr.mxu0 0.0
    %1464 = vmatpush1.msra.mxu0 0.0
    %1465 = vmatprep.subr.mxu0 0.0
    %1466 = vmatpush1.msra.mxu0 0.0
    %1467 = vmatprep.subr.mxu0 0.0
    %1468 = vmatpush1.msra.mxu0 0.0
    %1469 = vmatprep.subr.mxu0 0.0
    %1470 = vmatpush1.msra.mxu0 0.0
    %1471 = vmatprep.subr.mxu0 0.0
    %1472 = vmatpush1.msra.mxu0 0.0
    %1473 = vmatprep.subr.mxu0 0.0
    %1474 = vmatpush1.msra.mxu0 0.0
    %1475 = vmatprep.subr.mxu0 0.0
    %1476 = vmatpush1.msra.mxu0 0.0
    %1477 = vmatprep.subr.mxu0 0.0
    %1478 = vmatpush1.msra.mxu0 0.0
    %1479 = vmatprep.mubr.f32.mxu0 0.0
    %v1480 = vand.u32 %v115, 4294901760
    %v1481 = vsub.f32 %v115, %v1480
    %1482 = vmatmul.mubr.f32.gmra.mrb[0].mxu0 %v1481
    %v1483 = vpop.f32.mrb[0].mxu0
    %v1484 = vadd.f32 %v1395, %v1483
    %v1485 = vpop.f32.mrb[0].mxu0
    %v1486 = vadd.f32 %v1397, %v1485
    %1487 = vdwg.mxu0
    %v1488 = vand.u32 %v77, 4294901760
    %1489 = vmatprep.subr.mxu0 %v1488
    %v1490 = vand.u32 %v76, 4294901760
    %1491 = vmatpush1.msra.mxu0 %v1490
    %v1492 = vand.u32 %v85, 4294901760
    %1493 = vmatprep.subr.mxu0 %v1492
    %v1494 = vand.u32 %v84, 4294901760
    %1495 = vmatpush1.msra.mxu0 %v1494
    %v1496 = vand.u32 %v93, 4294901760
    %1497 = vmatprep.subr.mxu0 %v1496
    %v1498 = vand.u32 %v92, 4294901760
    %1499 = vmatpush1.msra.mxu0 %v1498
    %v1500 = vand.u32 %v101, 4294901760
    %1501 = vmatprep.subr.mxu0 %v1500
    %v1502 = vand.u32 %v100, 4294901760
    %1503 = vmatpush1.msra.mxu0 %v1502
    %1504 = vmatprep.subr.mxu0 0.0
    %1505 = vmatpush1.msra.mxu0 0.0
    %1506 = vmatprep.subr.mxu0 0.0
    %1507 = vmatpush1.msra.mxu0 0.0
    %1508 = vmatprep.subr.mxu0 0.0
    %1509 = vmatpush1.msra.mxu0 0.0
    %1510 = vmatprep.subr.mxu0 0.0
    %1511 = vmatpush1.msra.mxu0 0.0
    %1512 = vmatprep.subr.mxu0 0.0
    %1513 = vmatpush1.msra.mxu0 0.0
    %1514 = vmatprep.subr.mxu0 0.0
    %1515 = vmatpush1.msra.mxu0 0.0
    %1516 = vmatprep.subr.mxu0 0.0
    %1517 = vmatpush1.msra.mxu0 0.0
    %1518 = vmatprep.subr.mxu0 0.0
    %1519 = vmatpush1.msra.mxu0 0.0
    %1520 = vmatprep.subr.mxu0 0.0
    %1521 = vmatpush1.msra.mxu0 0.0
    %1522 = vmatprep.subr.mxu0 0.0
    %1523 = vmatpush1.msra.mxu0 0.0
    %1524 = vmatprep.subr.mxu0 0.0
    %1525 = vmatpush1.msra.mxu0 0.0
    %1526 = vmatprep.subr.mxu0 0.0
    %1527 = vmatpush1.msra.mxu0 0.0
    %1528 = vmatprep.subr.mxu0 0.0
    %1529 = vmatpush1.msra.mxu0 0.0
    %1530 = vmatprep.subr.mxu0 0.0
    %1531 = vmatpush1.msra.mxu0 0.0
    %1532 = vmatprep.subr.mxu0 0.0
    %1533 = vmatpush1.msra.mxu0 0.0
    %1534 = vmatprep.subr.mxu0 0.0
    %1535 = vmatpush1.msra.mxu0 0.0
    %1536 = vmatprep.subr.mxu0 0.0
    %1537 = vmatpush1.msra.mxu0 0.0
    %1538 = vmatprep.subr.mxu0 0.0
    %1539 = vmatpush1.msra.mxu0 0.0
    %1540 = vmatprep.subr.mxu0 0.0
    %1541 = vmatpush1.msra.mxu0 0.0
    %1542 = vmatprep.subr.mxu0 0.0
    %1543 = vmatpush1.msra.mxu0 0.0
    %1544 = vmatprep.subr.mxu0 0.0
    %1545 = vmatpush1.msra.mxu0 0.0
    %1546 = vmatprep.subr.mxu0 0.0
    %1547 = vmatpush1.msra.mxu0 0.0
    %1548 = vmatprep.subr.mxu0 0.0
    %1549 = vmatpush1.msra.mxu0 0.0
    %1550 = vmatprep.subr.mxu0 0.0
    %1551 = vmatpush1.msra.mxu0 0.0
    %1552 = vmatprep.subr.mxu0 0.0
    %1553 = vmatpush1.msra.mxu0 0.0
    %1554 = vmatprep.subr.mxu0 0.0
    %1555 = vmatpush1.msra.mxu0 0.0
    %1556 = vmatprep.subr.mxu0 0.0
    %1557 = vmatpush1.msra.mxu0 0.0
    %1558 = vmatprep.subr.mxu0 0.0
    %1559 = vmatpush1.msra.mxu0 0.0
    %1560 = vmatprep.mubr.f32.mxu0 0.0
    %v1561 = vand.u32 %v115, 4294901760
    %v1562 = vsub.f32 %v115, %v1561
    %v1563 = vand.u32 %v1562, 4294901760
    %1564 = vmatmul.mubr.f32.gmra.mrb[0].mxu0 %v1563
    %v1565 = vpop.f32.mrb[0].mxu0
    %v1566 = vadd.f32 %v1484, %v1565
    %v1567 = vpop.f32.mrb[0].mxu0
    %v1568 = vadd.f32 %v1486, %v1567
    %1569 = vdwg.mxu0
    %v1570 = vand.u32 %v77, 4294901760
    %v1571 = vsub.f32 %v77, %v1570
    %v1572 = vand.u32 %v1571, 4294901760
    %1573 = vmatprep.subr.mxu0 %v1572
    %v1574 = vand.u32 %v76, 4294901760
    %v1575 = vsub.f32 %v76, %v1574
    %v1576 = vand.u32 %v1575, 4294901760
    %1577 = vmatpush1.msra.mxu0 %v1576
    %v1578 = vand.u32 %v85, 4294901760
    %v1579 = vsub.f32 %v85, %v1578
    %v1580 = vand.u32 %v1579, 4294901760
    %1581 = vmatprep.subr.mxu0 %v1580
    %v1582 = vand.u32 %v84, 4294901760
    %v1583 = vsub.f32 %v84, %v1582
    %v1584 = vand.u32 %v1583, 4294901760
    %1585 = vmatpush1.msra.mxu0 %v1584
    %v1586 = vand.u32 %v93, 4294901760
    %v1587 = vsub.f32 %v93, %v1586
    %v1588 = vand.u32 %v1587, 4294901760
    %1589 = vmatprep.subr.mxu0 %v1588
    %v1590 = vand.u32 %v92, 4294901760
    %v1591 = vsub.f32 %v92, %v1590
    %v1592 = vand.u32 %v1591, 4294901760
    %1593 = vmatpush1.msra.mxu0 %v1592
    %v1594 = vand.u32 %v101, 4294901760
    %v1595 = vsub.f32 %v101, %v1594
    %v1596 = vand.u32 %v1595, 4294901760
    %1597 = vmatprep.subr.mxu0 %v1596
    %v1598 = vand.u32 %v100, 4294901760
    %v1599 = vsub.f32 %v100, %v1598
    %v1600 = vand.u32 %v1599, 4294901760
    %1601 = vmatpush1.msra.mxu0 %v1600
    %1602 = vmatprep.subr.mxu0 0.0
    %1603 = vmatpush1.msra.mxu0 0.0
    %1604 = vmatprep.subr.mxu0 0.0
    %1605 = vmatpush1.msra.mxu0 0.0
    %1606 = vmatprep.subr.mxu0 0.0
    %1607 = vmatpush1.msra.mxu0 0.0
    %1608 = vmatprep.subr.mxu0 0.0
    %1609 = vmatpush1.msra.mxu0 0.0
    %1610 = vmatprep.subr.mxu0 0.0
    %1611 = vmatpush1.msra.mxu0 0.0
    %1612 = vmatprep.subr.mxu0 0.0
    %1613 = vmatpush1.msra.mxu0 0.0
    %1614 = vmatprep.subr.mxu0 0.0
    %1615 = vmatpush1.msra.mxu0 0.0
    %1616 = vmatprep.subr.mxu0 0.0
    %1617 = vmatpush1.msra.mxu0 0.0
    %1618 = vmatprep.subr.mxu0 0.0
    %1619 = vmatpush1.msra.mxu0 0.0
    %1620 = vmatprep.subr.mxu0 0.0
    %1621 = vmatpush1.msra.mxu0 0.0
    %1622 = vmatprep.subr.mxu0 0.0
    %1623 = vmatpush1.msra.mxu0 0.0
    %1624 = vmatprep.subr.mxu0 0.0
    %1625 = vmatpush1.msra.mxu0 0.0
    %1626 = vmatprep.subr.mxu0 0.0
    %1627 = vmatpush1.msra.mxu0 0.0
    %1628 = vmatprep.subr.mxu0 0.0
    %1629 = vmatpush1.msra.mxu0 0.0
    %1630 = vmatprep.subr.mxu0 0.0
    %1631 = vmatpush1.msra.mxu0 0.0
    %1632 = vmatprep.subr.mxu0 0.0
    %1633 = vmatpush1.msra.mxu0 0.0
    %1634 = vmatprep.subr.mxu0 0.0
    %1635 = vmatpush1.msra.mxu0 0.0
    %1636 = vmatprep.subr.mxu0 0.0
    %1637 = vmatpush1.msra.mxu0 0.0
    %1638 = vmatprep.subr.mxu0 0.0
    %1639 = vmatpush1.msra.mxu0 0.0
    %1640 = vmatprep.subr.mxu0 0.0
    %1641 = vmatpush1.msra.mxu0 0.0
    %1642 = vmatprep.subr.mxu0 0.0
    %1643 = vmatpush1.msra.mxu0 0.0
    %1644 = vmatprep.subr.mxu0 0.0
    %1645 = vmatpush1.msra.mxu0 0.0
    %1646 = vmatprep.subr.mxu0 0.0
    %1647 = vmatpush1.msra.mxu0 0.0
    %1648 = vmatprep.subr.mxu0 0.0
    %1649 = vmatpush1.msra.mxu0 0.0
    %1650 = vmatprep.subr.mxu0 0.0
    %1651 = vmatpush1.msra.mxu0 0.0
    %1652 = vmatprep.subr.mxu0 0.0
    %1653 = vmatpush1.msra.mxu0 0.0
    %1654 = vmatprep.subr.mxu0 0.0
    %1655 = vmatpush1.msra.mxu0 0.0
    %1656 = vmatprep.subr.mxu0 0.0
    %1657 = vmatpush1.msra.mxu0 0.0
    %1658 = vmatprep.mubr.f32.mxu0 0.0
    %v1659 = vand.u32 %v115, 4294901760
    %1660 = vmatmul.mubr.f32.gmra.mrb[0].mxu0 %v1659
    %v1661 = vpop.f32.mrb[0].mxu0
    %v1662 = vadd.f32 %v1566, %v1661
    %v1663 = vpop.f32.mrb[0].mxu0
    %v1664 = vadd.f32 %v1568, %v1663
    %1665 = vdwg.mxu0
    %v1666 = vand.u32 %v77, 4294901760
    %1667 = vmatprep.subr.mxu0 %v1666
    %v1668 = vand.u32 %v76, 4294901760
    %1669 = vmatpush1.msra.mxu0 %v1668
    %v1670 = vand.u32 %v85, 4294901760
    %1671 = vmatprep.subr.mxu0 %v1670
    %v1672 = vand.u32 %v84, 4294901760
    %1673 = vmatpush1.msra.mxu0 %v1672
    %v1674 = vand.u32 %v93, 4294901760
    %1675 = vmatprep.subr.mxu0 %v1674
    %v1676 = vand.u32 %v92, 4294901760
    %1677 = vmatpush1.msra.mxu0 %v1676
    %v1678 = vand.u32 %v101, 4294901760
    %1679 = vmatprep.subr.mxu0 %v1678
    %v1680 = vand.u32 %v100, 4294901760
    %1681 = vmatpush1.msra.mxu0 %v1680
    %1682 = vmatprep.subr.mxu0 0.0
    %1683 = vmatpush1.msra.mxu0 0.0
    %1684 = vmatprep.subr.mxu0 0.0
    %1685 = vmatpush1.msra.mxu0 0.0
    %1686 = vmatprep.subr.mxu0 0.0
    %1687 = vmatpush1.msra.mxu0 0.0
    %1688 = vmatprep.subr.mxu0 0.0
    %1689 = vmatpush1.msra.mxu0 0.0
    %1690 = vmatprep.subr.mxu0 0.0
    %1691 = vmatpush1.msra.mxu0 0.0
    %1692 = vmatprep.subr.mxu0 0.0
    %1693 = vmatpush1.msra.mxu0 0.0
    %1694 = vmatprep.subr.mxu0 0.0
    %1695 = vmatpush1.msra.mxu0 0.0
    %1696 = vmatprep.subr.mxu0 0.0
    %1697 = vmatpush1.msra.mxu0 0.0
    %1698 = vmatprep.subr.mxu0 0.0
    %1699 = vmatpush1.msra.mxu0 0.0
    %1700 = vmatprep.subr.mxu0 0.0
    %1701 = vmatpush1.msra.mxu0 0.0
    %1702 = vmatprep.subr.mxu0 0.0
    %1703 = vmatpush1.msra.mxu0 0.0
    %1704 = vmatprep.subr.mxu0 0.0
    %1705 = vmatpush1.msra.mxu0 0.0
    %1706 = vmatprep.subr.mxu0 0.0
    %1707 = vmatpush1.msra.mxu0 0.0
    %1708 = vmatprep.subr.mxu0 0.0
    %1709 = vmatpush1.msra.mxu0 0.0
    %1710 = vmatprep.subr.mxu0 0.0
    %1711 = vmatpush1.msra.mxu0 0.0
    %1712 = vmatprep.subr.mxu0 0.0
    %1713 = vmatpush1.msra.mxu0 0.0
    %1714 = vmatprep.subr.mxu0 0.0
    %1715 = vmatpush1.msra.mxu0 0.0
    %1716 = vmatprep.subr.mxu0 0.0
    %1717 = vmatpush1.msra.mxu0 0.0
    %1718 = vmatprep.subr.mxu0 0.0
    %1719 = vmatpush1.msra.mxu0 0.0
    %1720 = vmatprep.subr.mxu0 0.0
    %1721 = vmatpush1.msra.mxu0 0.0
    %1722 = vmatprep.subr.mxu0 0.0
    %1723 = vmatpush1.msra.mxu0 0.0
    %1724 = vmatprep.subr.mxu0 0.0
    %1725 = vmatpush1.msra.mxu0 0.0
    %1726 = vmatprep.subr.mxu0 0.0
    %1727 = vmatpush1.msra.mxu0 0.0
    %1728 = vmatprep.subr.mxu0 0.0
    %1729 = vmatpush1.msra.mxu0 0.0
    %1730 = vmatprep.subr.mxu0 0.0
    %1731 = vmatpush1.msra.mxu0 0.0
    %1732 = vmatprep.subr.mxu0 0.0
    %1733 = vmatpush1.msra.mxu0 0.0
    %1734 = vmatprep.subr.mxu0 0.0
    %1735 = vmatpush1.msra.mxu0 0.0
    %1736 = vmatprep.subr.mxu0 0.0
    %1737 = vmatpush1.msra.mxu0 0.0
    %1738 = vmatprep.mubr.f32.mxu0 0.0
    %v1739 = vand.u32 %v115, 4294901760
    %1740 = vmatmul.mubr.f32.gmra.mrb[0].mxu0 %v1739
    %v1741 = vpop.f32.mrb[0].mxu0
    %v1742 = vadd.f32 %v1662, %v1741
    %v1743 = vpop.f32.mrb[0].mxu0
    %v1744 = vadd.f32 %v1664, %v1743
    %1745 = vdwg.mxu0
    %v1746 = vand.u32 %v79, 4294901760
    %1747 = vmatprep.subr.mxu0 %v1746
    %v1748 = vand.u32 %v78, 4294901760
    %1749 = vmatpush1.msra.mxu0 %v1748
    %v1750 = vand.u32 %v87, 4294901760
    %1751 = vmatprep.subr.mxu0 %v1750
    %v1752 = vand.u32 %v86, 4294901760
    %1753 = vmatpush1.msra.mxu0 %v1752
    %v1754 = vand.u32 %v95, 4294901760
    %1755 = vmatprep.subr.mxu0 %v1754
    %v1756 = vand.u32 %v94, 4294901760
    %1757 = vmatpush1.msra.mxu0 %v1756
    %v1758 = vand.u32 %v103, 4294901760
    %1759 = vmatprep.subr.mxu0 %v1758
    %v1760 = vand.u32 %v102, 4294901760
    %1761 = vmatpush1.msra.mxu0 %v1760
    %1762 = vmatprep.subr.mxu0 0.0
    %1763 = vmatpush1.msra.mxu0 0.0
    %1764 = vmatprep.subr.mxu0 0.0
    %1765 = vmatpush1.msra.mxu0 0.0
    %1766 = vmatprep.subr.mxu0 0.0
    %1767 = vmatpush1.msra.mxu0 0.0
    %1768 = vmatprep.subr.mxu0 0.0
    %1769 = vmatpush1.msra.mxu0 0.0
    %1770 = vmatprep.subr.mxu0 0.0
    %1771 = vmatpush1.msra.mxu0 0.0
    %1772 = vmatprep.subr.mxu0 0.0
    %1773 = vmatpush1.msra.mxu0 0.0
    %1774 = vmatprep.subr.mxu0 0.0
    %1775 = vmatpush1.msra.mxu0 0.0
    %1776 = vmatprep.subr.mxu0 0.0
    %1777 = vmatpush1.msra.mxu0 0.0
    %1778 = vmatprep.subr.mxu0 0.0
    %1779 = vmatpush1.msra.mxu0 0.0
    %1780 = vmatprep.subr.mxu0 0.0
    %1781 = vmatpush1.msra.mxu0 0.0
    %1782 = vmatprep.subr.mxu0 0.0
    %1783 = vmatpush1.msra.mxu0 0.0
    %1784 = vmatprep.subr.mxu0 0.0
    %1785 = vmatpush1.msra.mxu0 0.0
    %1786 = vmatprep.subr.mxu0 0.0
    %1787 = vmatpush1.msra.mxu0 0.0
    %1788 = vmatprep.subr.mxu0 0.0
    %1789 = vmatpush1.msra.mxu0 0.0
    %1790 = vmatprep.subr.mxu0 0.0
    %1791 = vmatpush1.msra.mxu0 0.0
    %1792 = vmatprep.subr.mxu0 0.0
    %1793 = vmatpush1.msra.mxu0 0.0
    %1794 = vmatprep.subr.mxu0 0.0
    %1795 = vmatpush1.msra.mxu0 0.0
    %1796 = vmatprep.subr.mxu0 0.0
    %1797 = vmatpush1.msra.mxu0 0.0
    %1798 = vmatprep.subr.mxu0 0.0
    %1799 = vmatpush1.msra.mxu0 0.0
    %1800 = vmatprep.subr.mxu0 0.0
    %1801 = vmatpush1.msra.mxu0 0.0
    %1802 = vmatprep.subr.mxu0 0.0
    %1803 = vmatpush1.msra.mxu0 0.0
    %1804 = vmatprep.subr.mxu0 0.0
    %1805 = vmatpush1.msra.mxu0 0.0
    %1806 = vmatprep.subr.mxu0 0.0
    %1807 = vmatpush1.msra.mxu0 0.0
    %1808 = vmatprep.subr.mxu0 0.0
    %1809 = vmatpush1.msra.mxu0 0.0
    %1810 = vmatprep.subr.mxu0 0.0
    %1811 = vmatpush1.msra.mxu0 0.0
    %1812 = vmatprep.subr.mxu0 0.0
    %1813 = vmatpush1.msra.mxu0 0.0
    %1814 = vmatprep.subr.mxu0 0.0
    %1815 = vmatpush1.msra.mxu0 0.0
    %1816 = vmatprep.subr.mxu0 0.0
    %1817 = vmatpush1.msra.mxu0 0.0
    %1818 = vmatprep.mubr.f32.mxu0 0.0
    %v1819 = vand.u32 %v115, 4294901760
    %v1820 = vsub.f32 %v115, %v1819
    %v1821 = vand.u32 %v1820, 4294901760
    %v1822 = vsub.f32 %v1820, %v1821
    %v1823 = vand.u32 %v1822, 4294901760
    %1824 = vmatmul.mubr.f32.gmra.mrb[0].mxu0 %v1823
    %v1825 = vpop.f32.mrb[0].mxu0
    %v1826 = vadd.f32 0.0, %v1825
    %v1827 = vpop.f32.mrb[0].mxu0
    %v1828 = vadd.f32 0.0, %v1827
    %1829 = vdwg.mxu0
    %v1830 = vand.u32 %v79, 4294901760
    %v1831 = vsub.f32 %v79, %v1830
    %v1832 = vand.u32 %v1831, 4294901760
    %v1833 = vsub.f32 %v1831, %v1832
    %v1834 = vand.u32 %v1833, 4294901760
    %1835 = vmatprep.subr.mxu0 %v1834
    %v1836 = vand.u32 %v78, 4294901760
    %v1837 = vsub.f32 %v78, %v1836
    %v1838 = vand.u32 %v1837, 4294901760
    %v1839 = vsub.f32 %v1837, %v1838
    %v1840 = vand.u32 %v1839, 4294901760
    %1841 = vmatpush1.msra.mxu0 %v1840
    %v1842 = vand.u32 %v87, 4294901760
    %v1843 = vsub.f32 %v87, %v1842
    %v1844 = vand.u32 %v1843, 4294901760
    %v1845 = vsub.f32 %v1843, %v1844
    %v1846 = vand.u32 %v1845, 4294901760
    %1847 = vmatprep.subr.mxu0 %v1846
    %v1848 = vand.u32 %v86, 4294901760
    %v1849 = vsub.f32 %v86, %v1848
    %v1850 = vand.u32 %v1849, 4294901760
    %v1851 = vsub.f32 %v1849, %v1850
    %v1852 = vand.u32 %v1851, 4294901760
    %1853 = vmatpush1.msra.mxu0 %v1852
    %v1854 = vand.u32 %v95, 4294901760
    %v1855 = vsub.f32 %v95, %v1854
    %v1856 = vand.u32 %v1855, 4294901760
    %v1857 = vsub.f32 %v1855, %v1856
    %v1858 = vand.u32 %v1857, 4294901760
    %1859 = vmatprep.subr.mxu0 %v1858
    %v1860 = vand.u32 %v94, 4294901760
    %v1861 = vsub.f32 %v94, %v1860
    %v1862 = vand.u32 %v1861, 4294901760
    %v1863 = vsub.f32 %v1861, %v1862
    %v1864 = vand.u32 %v1863, 4294901760
    %1865 = vmatpush1.msra.mxu0 %v1864
    %v1866 = vand.u32 %v103, 4294901760
    %v1867 = vsub.f32 %v103, %v1866
    %v1868 = vand.u32 %v1867, 4294901760
    %v1869 = vsub.f32 %v1867, %v1868
    %v1870 = vand.u32 %v1869, 4294901760
    %1871 = vmatprep.subr.mxu0 %v1870
    %v1872 = vand.u32 %v102, 4294901760
    %v1873 = vsub.f32 %v102, %v1872
    %v1874 = vand.u32 %v1873, 4294901760
    %v1875 = vsub.f32 %v1873, %v1874
    %v1876 = vand.u32 %v1875, 4294901760
    %1877 = vmatpush1.msra.mxu0 %v1876
    %1878 = vmatprep.subr.mxu0 0.0
    %1879 = vmatpush1.msra.mxu0 0.0
    %1880 = vmatprep.subr.mxu0 0.0
    %1881 = vmatpush1.msra.mxu0 0.0
    %1882 = vmatprep.subr.mxu0 0.0
    %1883 = vmatpush1.msra.mxu0 0.0
    %1884 = vmatprep.subr.mxu0 0.0
    %1885 = vmatpush1.msra.mxu0 0.0
    %1886 = vmatprep.subr.mxu0 0.0
    %1887 = vmatpush1.msra.mxu0 0.0
    %1888 = vmatprep.subr.mxu0 0.0
    %1889 = vmatpush1.msra.mxu0 0.0
    %1890 = vmatprep.subr.mxu0 0.0
    %1891 = vmatpush1.msra.mxu0 0.0
    %1892 = vmatprep.subr.mxu0 0.0
    %1893 = vmatpush1.msra.mxu0 0.0
    %1894 = vmatprep.subr.mxu0 0.0
    %1895 = vmatpush1.msra.mxu0 0.0
    %1896 = vmatprep.subr.mxu0 0.0
    %1897 = vmatpush1.msra.mxu0 0.0
    %1898 = vmatprep.subr.mxu0 0.0
    %1899 = vmatpush1.msra.mxu0 0.0
    %1900 = vmatprep.subr.mxu0 0.0
    %1901 = vmatpush1.msra.mxu0 0.0
    %1902 = vmatprep.subr.mxu0 0.0
    %1903 = vmatpush1.msra.mxu0 0.0
    %1904 = vmatprep.subr.mxu0 0.0
    %1905 = vmatpush1.msra.mxu0 0.0
    %1906 = vmatprep.subr.mxu0 0.0
    %1907 = vmatpush1.msra.mxu0 0.0
    %1908 = vmatprep.subr.mxu0 0.0
    %1909 = vmatpush1.msra.mxu0 0.0
    %1910 = vmatprep.subr.mxu0 0.0
    %1911 = vmatpush1.msra.mxu0 0.0
    %1912 = vmatprep.subr.mxu0 0.0
    %1913 = vmatpush1.msra.mxu0 0.0
    %1914 = vmatprep.subr.mxu0 0.0
    %1915 = vmatpush1.msra.mxu0 0.0
    %1916 = vmatprep.subr.mxu0 0.0
    %1917 = vmatpush1.msra.mxu0 0.0
    %1918 = vmatprep.subr.mxu0 0.0
    %1919 = vmatpush1.msra.mxu0 0.0
    %1920 = vmatprep.subr.mxu0 0.0
    %1921 = vmatpush1.msra.mxu0 0.0
    %1922 = vmatprep.subr.mxu0 0.0
    %1923 = vmatpush1.msra.mxu0 0.0
    %1924 = vmatprep.subr.mxu0 0.0
    %1925 = vmatpush1.msra.mxu0 0.0
    %1926 = vmatprep.subr.mxu0 0.0
    %1927 = vmatpush1.msra.mxu0 0.0
    %1928 = vmatprep.subr.mxu0 0.0
    %1929 = vmatpush1.msra.mxu0 0.0
    %1930 = vmatprep.subr.mxu0 0.0
    %1931 = vmatpush1.msra.mxu0 0.0
    %1932 = vmatprep.subr.mxu0 0.0
    %1933 = vmatpush1.msra.mxu0 0.0
    %1934 = vmatprep.mubr.f32.mxu0 0.0
    %v1935 = vand.u32 %v115, 4294901760
    %1936 = vmatmul.mubr.f32.gmra.mrb[0].mxu0 %v1935
    %v1937 = vpop.f32.mrb[0].mxu0
    %v1938 = vadd.f32 %v1826, %v1937
    %v1939 = vpop.f32.mrb[0].mxu0
    %v1940 = vadd.f32 %v1828, %v1939
    %1941 = vdwg.mxu0
    %v1942 = vand.u32 %v79, 4294901760
    %v1943 = vsub.f32 %v79, %v1942
    %1944 = vmatprep.subr.mxu0 %v1943
    %v1945 = vand.u32 %v78, 4294901760
    %v1946 = vsub.f32 %v78, %v1945
    %1947 = vmatpush1.msra.mxu0 %v1946
    %v1948 = vand.u32 %v87, 4294901760
    %v1949 = vsub.f32 %v87, %v1948
    %1950 = vmatprep.subr.mxu0 %v1949
    %v1951 = vand.u32 %v86, 4294901760
    %v1952 = vsub.f32 %v86, %v1951
    %1953 = vmatpush1.msra.mxu0 %v1952
    %v1954 = vand.u32 %v95, 4294901760
    %v1955 = vsub.f32 %v95, %v1954
    %1956 = vmatprep.subr.mxu0 %v1955
    %v1957 = vand.u32 %v94, 4294901760
    %v1958 = vsub.f32 %v94, %v1957
    %1959 = vmatpush1.msra.mxu0 %v1958
    %v1960 = vand.u32 %v103, 4294901760
    %v1961 = vsub.f32 %v103, %v1960
    %1962 = vmatprep.subr.mxu0 %v1961
    %v1963 = vand.u32 %v102, 4294901760
    %v1964 = vsub.f32 %v102, %v1963
    %1965 = vmatpush1.msra.mxu0 %v1964
    %1966 = vmatprep.subr.mxu0 0.0
    %1967 = vmatpush1.msra.mxu0 0.0
    %1968 = vmatprep.subr.mxu0 0.0
    %1969 = vmatpush1.msra.mxu0 0.0
    %1970 = vmatprep.subr.mxu0 0.0
    %1971 = vmatpush1.msra.mxu0 0.0
    %1972 = vmatprep.subr.mxu0 0.0
    %1973 = vmatpush1.msra.mxu0 0.0
    %1974 = vmatprep.subr.mxu0 0.0
    %1975 = vmatpush1.msra.mxu0 0.0
    %1976 = vmatprep.subr.mxu0 0.0
    %1977 = vmatpush1.msra.mxu0 0.0
    %1978 = vmatprep.subr.mxu0 0.0
    %1979 = vmatpush1.msra.mxu0 0.0
    %1980 = vmatprep.subr.mxu0 0.0
    %1981 = vmatpush1.msra.mxu0 0.0
    %1982 = vmatprep.subr.mxu0 0.0
    %1983 = vmatpush1.msra.mxu0 0.0
    %1984 = vmatprep.subr.mxu0 0.0
    %1985 = vmatpush1.msra.mxu0 0.0
    %1986 = vmatprep.subr.mxu0 0.0
    %1987 = vmatpush1.msra.mxu0 0.0
    %1988 = vmatprep.subr.mxu0 0.0
    %1989 = vmatpush1.msra.mxu0 0.0
    %1990 = vmatprep.subr.mxu0 0.0
    %1991 = vmatpush1.msra.mxu0 0.0
    %1992 = vmatprep.subr.mxu0 0.0
    %1993 = vmatpush1.msra.mxu0 0.0
    %1994 = vmatprep.subr.mxu0 0.0
    %1995 = vmatpush1.msra.mxu0 0.0
    %1996 = vmatprep.subr.mxu0 0.0
    %1997 = vmatpush1.msra.mxu0 0.0
    %1998 = vmatprep.subr.mxu0 0.0
    %1999 = vmatpush1.msra.mxu0 0.0
    %2000 = vmatprep.subr.mxu0 0.0
    %2001 = vmatpush1.msra.mxu0 0.0
    %2002 = vmatprep.subr.mxu0 0.0
    %2003 = vmatpush1.msra.mxu0 0.0
    %2004 = vmatprep.subr.mxu0 0.0
    %2005 = vmatpush1.msra.mxu0 0.0
    %2006 = vmatprep.subr.mxu0 0.0
    %2007 = vmatpush1.msra.mxu0 0.0
    %2008 = vmatprep.subr.mxu0 0.0
    %2009 = vmatpush1.msra.mxu0 0.0
    %2010 = vmatprep.subr.mxu0 0.0
    %2011 = vmatpush1.msra.mxu0 0.0
    %2012 = vmatprep.subr.mxu0 0.0
    %2013 = vmatpush1.msra.mxu0 0.0
    %2014 = vmatprep.subr.mxu0 0.0
    %2015 = vmatpush1.msra.mxu0 0.0
    %2016 = vmatprep.subr.mxu0 0.0
    %2017 = vmatpush1.msra.mxu0 0.0
    %2018 = vmatprep.subr.mxu0 0.0
    %2019 = vmatpush1.msra.mxu0 0.0
    %2020 = vmatprep.subr.mxu0 0.0
    %2021 = vmatpush1.msra.mxu0 0.0
    %2022 = vmatprep.mubr.f32.mxu0 0.0
    %v2023 = vand.u32 %v115, 4294901760
    %v2024 = vsub.f32 %v115, %v2023
    %2025 = vmatmul.mubr.f32.gmra.mrb[0].mxu0 %v2024
    %v2026 = vpop.f32.mrb[0].mxu0
    %v2027 = vadd.f32 %v1938, %v2026
    %v2028 = vpop.f32.mrb[0].mxu0
    %v2029 = vadd.f32 %v1940, %v2028
    %2030 = vdwg.mxu0
    %v2031 = vand.u32 %v79, 4294901760
    %2032 = vmatprep.subr.mxu0 %v2031
    %v2033 = vand.u32 %v78, 4294901760
    %2034 = vmatpush1.msra.mxu0 %v2033
    %v2035 = vand.u32 %v87, 4294901760
    %2036 = vmatprep.subr.mxu0 %v2035
    %v2037 = vand.u32 %v86, 4294901760
    %2038 = vmatpush1.msra.mxu0 %v2037
    %v2039 = vand.u32 %v95, 4294901760
    %2040 = vmatprep.subr.mxu0 %v2039
    %v2041 = vand.u32 %v94, 4294901760
    %2042 = vmatpush1.msra.mxu0 %v2041
    %v2043 = vand.u32 %v103, 4294901760
    %2044 = vmatprep.subr.mxu0 %v2043
    %v2045 = vand.u32 %v102, 4294901760
    %2046 = vmatpush1.msra.mxu0 %v2045
    %2047 = vmatprep.subr.mxu0 0.0
    %2048 = vmatpush1.msra.mxu0 0.0
    %2049 = vmatprep.subr.mxu0 0.0
    %2050 = vmatpush1.msra.mxu0 0.0
    %2051 = vmatprep.subr.mxu0 0.0
    %2052 = vmatpush1.msra.mxu0 0.0
    %2053 = vmatprep.subr.mxu0 0.0
    %2054 = vmatpush1.msra.mxu0 0.0
    %2055 = vmatprep.subr.mxu0 0.0
    %2056 = vmatpush1.msra.mxu0 0.0
    %2057 = vmatprep.subr.mxu0 0.0
    %2058 = vmatpush1.msra.mxu0 0.0
    %2059 = vmatprep.subr.mxu0 0.0
    %2060 = vmatpush1.msra.mxu0 0.0
    %2061 = vmatprep.subr.mxu0 0.0
    %2062 = vmatpush1.msra.mxu0 0.0
    %2063 = vmatprep.subr.mxu0 0.0
    %2064 = vmatpush1.msra.mxu0 0.0
    %2065 = vmatprep.subr.mxu0 0.0
    %2066 = vmatpush1.msra.mxu0 0.0
    %2067 = vmatprep.subr.mxu0 0.0
    %2068 = vmatpush1.msra.mxu0 0.0
    %2069 = vmatprep.subr.mxu0 0.0
    %2070 = vmatpush1.msra.mxu0 0.0
    %2071 = vmatprep.subr.mxu0 0.0
    %2072 = vmatpush1.msra.mxu0 0.0
    %2073 = vmatprep.subr.mxu0 0.0
    %2074 = vmatpush1.msra.mxu0 0.0
    %2075 = vmatprep.subr.mxu0 0.0
    %2076 = vmatpush1.msra.mxu0 0.0
    %2077 = vmatprep.subr.mxu0 0.0
    %2078 = vmatpush1.msra.mxu0 0.0
    %2079 = vmatprep.subr.mxu0 0.0
    %2080 = vmatpush1.msra.mxu0 0.0
    %2081 = vmatprep.subr.mxu0 0.0
    %2082 = vmatpush1.msra.mxu0 0.0
    %2083 = vmatprep.subr.mxu0 0.0
    %2084 = vmatpush1.msra.mxu0 0.0
    %2085 = vmatprep.subr.mxu0 0.0
    %2086 = vmatpush1.msra.mxu0 0.0
    %2087 = vmatprep.subr.mxu0 0.0
    %2088 = vmatpush1.msra.mxu0 0.0
    %2089 = vmatprep.subr.mxu0 0.0
    %2090 = vmatpush1.msra.mxu0 0.0
    %2091 = vmatprep.subr.mxu0 0.0
    %2092 = vmatpush1.msra.mxu0 0.0
    %2093 = vmatprep.subr.mxu0 0.0
    %2094 = vmatpush1.msra.mxu0 0.0
    %2095 = vmatprep.subr.mxu0 0.0
    %2096 = vmatpush1.msra.mxu0 0.0
    %2097 = vmatprep.subr.mxu0 0.0
    %2098 = vmatpush1.msra.mxu0 0.0
    %2099 = vmatprep.subr.mxu0 0.0
    %2100 = vmatpush1.msra.mxu0 0.0
    %2101 = vmatprep.subr.mxu0 0.0
    %2102 = vmatpush1.msra.mxu0 0.0
    %2103 = vmatprep.mubr.f32.mxu0 0.0
    %v2104 = vand.u32 %v115, 4294901760
    %v2105 = vsub.f32 %v115, %v2104
    %v2106 = vand.u32 %v2105, 4294901760
    %2107 = vmatmul.mubr.f32.gmra.mrb[0].mxu0 %v2106
    %v2108 = vpop.f32.mrb[0].mxu0
    %v2109 = vadd.f32 %v2027, %v2108
    %v2110 = vpop.f32.mrb[0].mxu0
    %v2111 = vadd.f32 %v2029, %v2110
    %2112 = vdwg.mxu0
    %v2113 = vand.u32 %v79, 4294901760
    %v2114 = vsub.f32 %v79, %v2113
    %v2115 = vand.u32 %v2114, 4294901760
    %2116 = vmatprep.subr.mxu0 %v2115
    %v2117 = vand.u32 %v78, 4294901760
    %v2118 = vsub.f32 %v78, %v2117
    %v2119 = vand.u32 %v2118, 4294901760
    %2120 = vmatpush1.msra.mxu0 %v2119
    %v2121 = vand.u32 %v87, 4294901760
    %v2122 = vsub.f32 %v87, %v2121
    %v2123 = vand.u32 %v2122, 4294901760
    %2124 = vmatprep.subr.mxu0 %v2123
    %v2125 = vand.u32 %v86, 4294901760
    %v2126 = vsub.f32 %v86, %v2125
    %v2127 = vand.u32 %v2126, 4294901760
    %2128 = vmatpush1.msra.mxu0 %v2127
    %v2129 = vand.u32 %v95, 4294901760
    %v2130 = vsub.f32 %v95, %v2129
    %v2131 = vand.u32 %v2130, 4294901760
    %2132 = vmatprep.subr.mxu0 %v2131
    %v2133 = vand.u32 %v94, 4294901760
    %v2134 = vsub.f32 %v94, %v2133
    %v2135 = vand.u32 %v2134, 4294901760
    %2136 = vmatpush1.msra.mxu0 %v2135
    %v2137 = vand.u32 %v103, 4294901760
    %v2138 = vsub.f32 %v103, %v2137
    %v2139 = vand.u32 %v2138, 4294901760
    %2140 = vmatprep.subr.mxu0 %v2139
    %v2141 = vand.u32 %v102, 4294901760
    %v2142 = vsub.f32 %v102, %v2141
    %v2143 = vand.u32 %v2142, 4294901760
    %2144 = vmatpush1.msra.mxu0 %v2143
    %2145 = vmatprep.subr.mxu0 0.0
    %2146 = vmatpush1.msra.mxu0 0.0
    %2147 = vmatprep.subr.mxu0 0.0
    %2148 = vmatpush1.msra.mxu0 0.0
    %2149 = vmatprep.subr.mxu0 0.0
    %2150 = vmatpush1.msra.mxu0 0.0
    %2151 = vmatprep.subr.mxu0 0.0
    %2152 = vmatpush1.msra.mxu0 0.0
    %2153 = vmatprep.subr.mxu0 0.0
    %2154 = vmatpush1.msra.mxu0 0.0
    %2155 = vmatprep.subr.mxu0 0.0
    %2156 = vmatpush1.msra.mxu0 0.0
    %2157 = vmatprep.subr.mxu0 0.0
    %2158 = vmatpush1.msra.mxu0 0.0
    %2159 = vmatprep.subr.mxu0 0.0
    %2160 = vmatpush1.msra.mxu0 0.0
    %2161 = vmatprep.subr.mxu0 0.0
    %2162 = vmatpush1.msra.mxu0 0.0
    %2163 = vmatprep.subr.mxu0 0.0
    %2164 = vmatpush1.msra.mxu0 0.0
    %2165 = vmatprep.subr.mxu0 0.0
    %2166 = vmatpush1.msra.mxu0 0.0
    %2167 = vmatprep.subr.mxu0 0.0
    %2168 = vmatpush1.msra.mxu0 0.0
    %2169 = vmatprep.subr.mxu0 0.0
    %2170 = vmatpush1.msra.mxu0 0.0
    %2171 = vmatprep.subr.mxu0 0.0
    %2172 = vmatpush1.msra.mxu0 0.0
    %2173 = vmatprep.subr.mxu0 0.0
    %2174 = vmatpush1.msra.mxu0 0.0
    %2175 = vmatprep.subr.mxu0 0.0
    %2176 = vmatpush1.msra.mxu0 0.0
    %2177 = vmatprep.subr.mxu0 0.0
    %2178 = vmatpush1.msra.mxu0 0.0
    %2179 = vmatprep.subr.mxu0 0.0
    %2180 = vmatpush1.msra.mxu0 0.0
    %2181 = vmatprep.subr.mxu0 0.0
    %2182 = vmatpush1.msra.mxu0 0.0
    %2183 = vmatprep.subr.mxu0 0.0
    %2184 = vmatpush1.msra.mxu0 0.0
    %2185 = vmatprep.subr.mxu0 0.0
    %2186 = vmatpush1.msra.mxu0 0.0
    %2187 = vmatprep.subr.mxu0 0.0
    %2188 = vmatpush1.msra.mxu0 0.0
    %2189 = vmatprep.subr.mxu0 0.0
    %2190 = vmatpush1.msra.mxu0 0.0
    %2191 = vmatprep.subr.mxu0 0.0
    %2192 = vmatpush1.msra.mxu0 0.0
    %2193 = vmatprep.subr.mxu0 0.0
    %2194 = vmatpush1.msra.mxu0 0.0
    %2195 = vmatprep.subr.mxu0 0.0
    %2196 = vmatpush1.msra.mxu0 0.0
    %2197 = vmatprep.subr.mxu0 0.0
    %2198 = vmatpush1.msra.mxu0 0.0
    %2199 = vmatprep.subr.mxu0 0.0
    %2200 = vmatpush1.msra.mxu0 0.0
    %2201 = vmatprep.mubr.f32.mxu0 0.0
    %v2202 = vand.u32 %v115, 4294901760
    %2203 = vmatmul.mubr.f32.gmra.mrb[0].mxu0 %v2202
    %v2204 = vpop.f32.mrb[0].mxu0
    %v2205 = vadd.f32 %v2109, %v2204
    %v2206 = vpop.f32.mrb[0].mxu0
    %v2207 = vadd.f32 %v2111, %v2206
    %2208 = vdwg.mxu0
    %v2209 = vand.u32 %v79, 4294901760
    %2210 = vmatprep.subr.mxu0 %v2209
    %v2211 = vand.u32 %v78, 4294901760
    %2212 = vmatpush1.msra.mxu0 %v2211
    %v2213 = vand.u32 %v87, 4294901760
    %2214 = vmatprep.subr.mxu0 %v2213
    %v2215 = vand.u32 %v86, 4294901760
    %2216 = vmatpush1.msra.mxu0 %v2215
    %v2217 = vand.u32 %v95, 4294901760
    %2218 = vmatprep.subr.mxu0 %v2217
    %v2219 = vand.u32 %v94, 4294901760
    %2220 = vmatpush1.msra.mxu0 %v2219
    %v2221 = vand.u32 %v103, 4294901760
    %2222 = vmatprep.subr.mxu0 %v2221
    %v2223 = vand.u32 %v102, 4294901760
    %2224 = vmatpush1.msra.mxu0 %v2223
    %2225 = vmatprep.subr.mxu0 0.0
    %2226 = vmatpush1.msra.mxu0 0.0
    %2227 = vmatprep.subr.mxu0 0.0
    %2228 = vmatpush1.msra.mxu0 0.0
    %2229 = vmatprep.subr.mxu0 0.0
    %2230 = vmatpush1.msra.mxu0 0.0
    %2231 = vmatprep.subr.mxu0 0.0
    %2232 = vmatpush1.msra.mxu0 0.0
    %2233 = vmatprep.subr.mxu0 0.0
    %2234 = vmatpush1.msra.mxu0 0.0
    %2235 = vmatprep.subr.mxu0 0.0
    %2236 = vmatpush1.msra.mxu0 0.0
    %2237 = vmatprep.subr.mxu0 0.0
    %2238 = vmatpush1.msra.mxu0 0.0
    %2239 = vmatprep.subr.mxu0 0.0
    %2240 = vmatpush1.msra.mxu0 0.0
    %2241 = vmatprep.subr.mxu0 0.0
    %2242 = vmatpush1.msra.mxu0 0.0
    %2243 = vmatprep.subr.mxu0 0.0
    %2244 = vmatpush1.msra.mxu0 0.0
    %2245 = vmatprep.subr.mxu0 0.0
    %2246 = vmatpush1.msra.mxu0 0.0
    %2247 = vmatprep.subr.mxu0 0.0
    %2248 = vmatpush1.msra.mxu0 0.0
    %2249 = vmatprep.subr.mxu0 0.0
    %2250 = vmatpush1.msra.mxu0 0.0
    %2251 = vmatprep.subr.mxu0 0.0
    %2252 = vmatpush1.msra.mxu0 0.0
    %2253 = vmatprep.subr.mxu0 0.0
    %2254 = vmatpush1.msra.mxu0 0.0
    %2255 = vmatprep.subr.mxu0 0.0
    %2256 = vmatpush1.msra.mxu0 0.0
    %2257 = vmatprep.subr.mxu0 0.0
    %2258 = vmatpush1.msra.mxu0 0.0
    %2259 = vmatprep.subr.mxu0 0.0
    %2260 = vmatpush1.msra.mxu0 0.0
    %2261 = vmatprep.subr.mxu0 0.0
    %2262 = vmatpush1.msra.mxu0 0.0
    %2263 = vmatprep.subr.mxu0 0.0
    %2264 = vmatpush1.msra.mxu0 0.0
    %2265 = vmatprep.subr.mxu0 0.0
    %2266 = vmatpush1.msra.mxu0 0.0
    %2267 = vmatprep.subr.mxu0 0.0
    %2268 = vmatpush1.msra.mxu0 0.0
    %2269 = vmatprep.subr.mxu0 0.0
    %2270 = vmatpush1.msra.mxu0 0.0
    %2271 = vmatprep.subr.mxu0 0.0
    %2272 = vmatpush1.msra.mxu0 0.0
    %2273 = vmatprep.subr.mxu0 0.0
    %2274 = vmatpush1.msra.mxu0 0.0
    %2275 = vmatprep.subr.mxu0 0.0
    %2276 = vmatpush1.msra.mxu0 0.0
    %2277 = vmatprep.subr.mxu0 0.0
    %2278 = vmatpush1.msra.mxu0 0.0
    %2279 = vmatprep.subr.mxu0 0.0
    %2280 = vmatpush1.msra.mxu0 0.0
    %2281 = vmatprep.mubr.f32.mxu0 0.0
    %v2282 = vand.u32 %v115, 4294901760
    %2283 = vmatmul.mubr.f32.gmra.mrb[0].mxu0 %v2282
    %v2284 = vpop.f32.mrb[0].mxu0
    %v2285 = vadd.f32 %v2205, %v2284
    %v2286 = vpop.f32.mrb[0].mxu0
    %v2287 = vadd.f32 %v2207, %v2286
    %2288 = vdwg.mxu0
    %v2289 = vlaneseq
    %v2290 = vshrl.u32 %v2289, 7
    %v2291 = vsub.s32 0, %v2290
    %v2292 = vrot.slane %v28, %v2291
    %v2293 = vadd.f32 %v656, %v2292
    %v2294 = vadd.f32 %v658, %v2292
    %v2295 = vadd.f32 %v1199, %v2292
    %v2296 = vadd.f32 %v1201, %v2292
    %v2297 = vadd.f32 %v1742, %v2292
    %v2298 = vadd.f32 %v1744, %v2292
    %v2299 = vadd.f32 %v2285, %v2292
    %v2300 = vadd.f32 %v2287, %v2292
    %v2301 = vadd.f32 %v2293, 0.0
    %v2302 = vlaneseq
    %v2303 = vshrl.u32 %v2302, 7
    %v2304 = vsub.s32 0, %v2303
    %v2305 = vrot.slane %v35, %v2304
    %v2306 = vmul.f32 %v2305, 0.0
    %v2307 = vlaneseq
    %v2308 = vshrl.u32 %v2307, 7
    %v2309 = vsub.s32 0, %v2308
    %v2310 = vrot.slane %v36, %v2309
    %v2311 = vmul.f32 %v2310, %v2301
    %v2312 = vadd.f32 %v2306, %v2311
    %2314 = vrot.lane.b32.xlu0 %v2312, 96
    %v2315 = vpop.permute.xlu0 %2314
    %v2317 = vadd.f32 %v2312, %v2315
    %2318 = vrot.lane.b32.xlu0 %v2312, 64
    %v2319 = vpop.permute.xlu0 %2318
    %v2321 = vadd.f32 %v2317, %v2319
    %2322 = vrot.lane.b32.xlu0 %v2312, 32
    %v2323 = vpop.permute.xlu0 %2322
    %v2325 = vadd.f32 %v2321, %v2323
    %v2326 = vlaneseq
    %v2327 = vshrl.u32 %v2326, 7
    %v2328 = vsub.s32 0, %v2327
    %v2329 = vrot.slane %v43, %v2328
    %v2330 = vmul.f32 %v2329, %v54
    %v2331 = vlaneseq
    %v2332 = vshrl.u32 %v2331, 7
    %v2333 = vsub.s32 0, %v2332
    %v2334 = vrot.slane %v44, %v2333
    %v2335 = vmul.f32 %v2334, %v2325
    %v2336 = vadd.f32 %v2330, %v2335
    %v2337 = vsel %vm57, 1, 0
    %v2338 = vlaneseq
    %v2339 = vshrl.u32 %v2338, 7
    %v2340 = vsub.s32 0, %v2339
    %v2341 = vrot.slane %v2337, %v2340
    %vm2342 = vcmp.eq.s32.totalorder %v2341, 1
    %v2343 = vsel %vm2342, %v2336, %v54
    %vm2344 = vcmp.gt.f32.partialorder %v2343, 0.5
    %vm2345 = vmand %vm2344, %vm2342
    %v2346 = vsel %vm2345, 1, 0
    %v2347 = vcvt.s32.f32 %v2346
    %v2349 = vsel %vm113, %v2347, 0
    %v2351 = vand.u32 %v105, 4294901760
    %2352 = vmatprep.subr.mxu0 %v2351
    %v2353 = vand.u32 %v104, 4294901760
    %2354 = vmatpush1.msra.mxu0 %v2353
    %v2355 = vand.u32 %v107, 4294901760
    %2356 = vmatprep.subr.mxu0 %v2355
    %v2357 = vand.u32 %v106, 4294901760
    %2358 = vmatpush1.msra.mxu0 %v2357
    %v2359 = vand.u32 %v109, 4294901760
    %2360 = vmatprep.subr.mxu0 %v2359
    %v2361 = vand.u32 %v108, 4294901760
    %2362 = vmatpush1.msra.mxu0 %v2361
    %v2363 = vand.u32 %v111, 4294901760
    %2364 = vmatprep.subr.mxu0 %v2363
    %v2365 = vand.u32 %v110, 4294901760
    %2366 = vmatpush1.msra.mxu0 %v2365
    %2367 = vmatprep.subr.mxu0 0.0
    %2368 = vmatpush1.msra.mxu0 0.0
    %2369 = vmatprep.subr.mxu0 0.0
    %2370 = vmatpush1.msra.mxu0 0.0
    %2371 = vmatprep.subr.mxu0 0.0
    %2372 = vmatpush1.msra.mxu0 0.0
    %2373 = vmatprep.subr.mxu0 0.0
    %2374 = vmatpush1.msra.mxu0 0.0
    %2375 = vmatprep.subr.mxu0 0.0
    %2376 = vmatpush1.msra.mxu0 0.0
    %2377 = vmatprep.subr.mxu0 0.0
    %2378 = vmatpush1.msra.mxu0 0.0
    %2379 = vmatprep.subr.mxu0 0.0
    %2380 = vmatpush1.msra.mxu0 0.0
    %2381 = vmatprep.subr.mxu0 0.0
    %2382 = vmatpush1.msra.mxu0 0.0
    %2383 = vmatprep.subr.mxu0 0.0
    %2384 = vmatpush1.msra.mxu0 0.0
    %2385 = vmatprep.subr.mxu0 0.0
    %2386 = vmatpush1.msra.mxu0 0.0
    %2387 = vmatprep.subr.mxu0 0.0
    %2388 = vmatpush1.msra.mxu0 0.0
    %2389 = vmatprep.subr.mxu0 0.0
    %2390 = vmatpush1.msra.mxu0 0.0
    %2391 = vmatprep.subr.mxu0 0.0
    %2392 = vmatpush1.msra.mxu0 0.0
    %2393 = vmatprep.subr.mxu0 0.0
    %2394 = vmatpush1.msra.mxu0 0.0
    %2395 = vmatprep.subr.mxu0 0.0
    %2396 = vmatpush1.msra.mxu0 0.0
    %2397 = vmatprep.subr.mxu0 0.0
    %2398 = vmatpush1.msra.mxu0 0.0
    %2399 = vmatprep.subr.mxu0 0.0
    %2400 = vmatpush1.msra.mxu0 0.0
    %2401 = vmatprep.subr.mxu0 0.0
    %2402 = vmatpush1.msra.mxu0 0.0
    %2403 = vmatprep.subr.mxu0 0.0
    %2404 = vmatpush1.msra.mxu0 0.0
    %2405 = vmatprep.subr.mxu0 0.0
    %2406 = vmatpush1.msra.mxu0 0.0
    %2407 = vmatprep.subr.mxu0 0.0
    %2408 = vmatpush1.msra.mxu0 0.0
    %2409 = vmatprep.subr.mxu0 0.0
    %2410 = vmatpush1.msra.mxu0 0.0
    %2411 = vmatprep.subr.mxu0 0.0
    %2412 = vmatpush1.msra.mxu0 0.0
    %2413 = vmatprep.subr.mxu0 0.0
    %2414 = vmatpush1.msra.mxu0 0.0
    %2415 = vmatprep.subr.mxu0 0.0
    %2416 = vmatpush1.msra.mxu0 0.0
    %2417 = vmatprep.subr.mxu0 0.0
    %2418 = vmatpush1.msra.mxu0 0.0
    %2419 = vmatprep.subr.mxu0 0.0
    %2420 = vmatpush1.msra.mxu0 0.0
    %2421 = vmatprep.subr.mxu0 0.0
    %2422 = vmatpush1.msra.mxu0 0.0
    %2423 = vmatprep.mubr.f32.mxu0 0.0
    %v2424 = vand.u32 %v2349, 4294901760
    %v2425 = vsub.f32 %v2349, %v2424
    %v2426 = vand.u32 %v2425, 4294901760
    %v2427 = vsub.f32 %v2425, %v2426
    %v2428 = vand.u32 %v2427, 4294901760
    %2429 = vmatmul.mubr.f32.gmra.mrb[0].mxu0 %v2428
    %v2430 = vpop.f32.mrb[0].mxu0
    %v2431 = vadd.f32 0.0, %v2430
    %v2432 = vpop.f32.mrb[0].mxu0
    %v2433 = vadd.f32 0.0, %v2432
    %2434 = vdwg.mxu0
    %v2435 = vand.u32 %v105, 4294901760
    %v2436 = vsub.f32 %v105, %v2435
    %v2437 = vand.u32 %v2436, 4294901760
    %v2438 = vsub.f32 %v2436, %v2437
    %v2439 = vand.u32 %v2438, 4294901760
    %2440 = vmatprep.subr.mxu0 %v2439
    %v2441 = vand.u32 %v104, 4294901760
    %v2442 = vsub.f32 %v104, %v2441
    %v2443 = vand.u32 %v2442, 4294901760
    %v2444 = vsub.f32 %v2442, %v2443
    %v2445 = vand.u32 %v2444, 4294901760
    %2446 = vmatpush1.msra.mxu0 %v2445
    %v2447 = vand.u32 %v107, 4294901760
    %v2448 = vsub.f32 %v107, %v2447
    %v2449 = vand.u32 %v2448, 4294901760
    %v2450 = vsub.f32 %v2448, %v2449
    %v2451 = vand.u32 %v2450, 4294901760
    %2452 = vmatprep.subr.mxu0 %v2451
    %v2453 = vand.u32 %v106, 4294901760
    %v2454 = vsub.f32 %v106, %v2453
    %v2455 = vand.u32 %v2454, 4294901760
    %v2456 = vsub.f32 %v2454, %v2455
    %v2457 = vand.u32 %v2456, 4294901760
    %2458 = vmatpush1.msra.mxu0 %v2457
    %v2459 = vand.u32 %v109, 4294901760
    %v2460 = vsub.f32 %v109, %v2459
    %v2461 = vand.u32 %v2460, 4294901760
    %v2462 = vsub.f32 %v2460, %v2461
    %v2463 = vand.u32 %v2462, 4294901760
    %2464 = vmatprep.subr.mxu0 %v2463
    %v2465 = vand.u32 %v108, 4294901760
    %v2466 = vsub.f32 %v108, %v2465
    %v2467 = vand.u32 %v2466, 4294901760
    %v2468 = vsub.f32 %v2466, %v2467
    %v2469 = vand.u32 %v2468, 4294901760
    %2470 = vmatpush1.msra.mxu0 %v2469
    %v2471 = vand.u32 %v111, 4294901760
    %v2472 = vsub.f32 %v111, %v2471
    %v2473 = vand.u32 %v2472, 4294901760
    %v2474 = vsub.f32 %v2472, %v2473
    %v2475 = vand.u32 %v2474, 4294901760
    %2476 = vmatprep.subr.mxu0 %v2475
    %v2477 = vand.u32 %v110, 4294901760
    %v2478 = vsub.f32 %v110, %v2477
    %v2479 = vand.u32 %v2478, 4294901760
    %v2480 = vsub.f32 %v2478, %v2479
    %v2481 = vand.u32 %v2480, 4294901760
    %2482 = vmatpush1.msra.mxu0 %v2481
    %2483 = vmatprep.subr.mxu0 0.0
    %2484 = vmatpush1.msra.mxu0 0.0
    %2485 = vmatprep.subr.mxu0 0.0
    %2486 = vmatpush1.msra.mxu0 0.0
    %2487 = vmatprep.subr.mxu0 0.0
    %2488 = vmatpush1.msra.mxu0 0.0
    %2489 = vmatprep.subr.mxu0 0.0
    %2490 = vmatpush1.msra.mxu0 0.0
    %2491 = vmatprep.subr.mxu0 0.0
    %2492 = vmatpush1.msra.mxu0 0.0
    %2493 = vmatprep.subr.mxu0 0.0
    %2494 = vmatpush1.msra.mxu0 0.0
    %2495 = vmatprep.subr.mxu0 0.0
    %2496 = vmatpush1.msra.mxu0 0.0
    %2497 = vmatprep.subr.mxu0 0.0
    %2498 = vmatpush1.msra.mxu0 0.0
    %2499 = vmatprep.subr.mxu0 0.0
    %2500 = vmatpush1.msra.mxu0 0.0
    %2501 = vmatprep.subr.mxu0 0.0
    %2502 = vmatpush1.msra.mxu0 0.0
    %2503 = vmatprep.subr.mxu0 0.0
    %2504 = vmatpush1.msra.mxu0 0.0
    %2505 = vmatprep.subr.mxu0 0.0
    %2506 = vmatpush1.msra.mxu0 0.0
    %2507 = vmatprep.subr.mxu0 0.0
    %2508 = vmatpush1.msra.mxu0 0.0
    %2509 = vmatprep.subr.mxu0 0.0
    %2510 = vmatpush1.msra.mxu0 0.0
    %2511 = vmatprep.subr.mxu0 0.0
    %2512 = vmatpush1.msra.mxu0 0.0
    %2513 = vmatprep.subr.mxu0 0.0
    %2514 = vmatpush1.msra.mxu0 0.0
    %2515 = vmatprep.subr.mxu0 0.0
    %2516 = vmatpush1.msra.mxu0 0.0
    %2517 = vmatprep.subr.mxu0 0.0
    %2518 = vmatpush1.msra.mxu0 0.0
    %2519 = vmatprep.subr.mxu0 0.0
    %2520 = vmatpush1.msra.mxu0 0.0
    %2521 = vmatprep.subr.mxu0 0.0
    %2522 = vmatpush1.msra.mxu0 0.0
    %2523 = vmatprep.subr.mxu0 0.0
    %2524 = vmatpush1.msra.mxu0 0.0
    %2525 = vmatprep.subr.mxu0 0.0
    %2526 = vmatpush1.msra.mxu0 0.0
    %2527 = vmatprep.subr.mxu0 0.0
    %2528 = vmatpush1.msra.mxu0 0.0
    %2529 = vmatprep.subr.mxu0 0.0
    %2530 = vmatpush1.msra.mxu0 0.0
    %2531 = vmatprep.subr.mxu0 0.0
    %2532 = vmatpush1.msra.mxu0 0.0
    %2533 = vmatprep.subr.mxu0 0.0
    %2534 = vmatpush1.msra.mxu0 0.0
    %2535 = vmatprep.subr.mxu0 0.0
    %2536 = vmatpush1.msra.mxu0 0.0
    %2537 = vmatprep.subr.mxu0 0.0
    %2538 = vmatpush1.msra.mxu0 0.0
    %2539 = vmatprep.mubr.f32.mxu0 0.0
    %v2540 = vand.u32 %v2349, 4294901760
    %2541 = vmatmul.mubr.f32.gmra.mrb[0].mxu0 %v2540
    %v2542 = vpop.f32.mrb[0].mxu0
    %v2543 = vadd.f32 %v2431, %v2542
    %v2544 = vpop.f32.mrb[0].mxu0
    %v2545 = vadd.f32 %v2433, %v2544
    %2546 = vdwg.mxu0
    %v2547 = vand.u32 %v105, 4294901760
    %v2548 = vsub.f32 %v105, %v2547
    %2549 = vmatprep.subr.mxu0 %v2548
    %v2550 = vand.u32 %v104, 4294901760
    %v2551 = vsub.f32 %v104, %v2550
    %2552 = vmatpush1.msra.mxu0 %v2551
    %v2553 = vand.u32 %v107, 4294901760
    %v2554 = vsub.f32 %v107, %v2553
    %2555 = vmatprep.subr.mxu0 %v2554
    %v2556 = vand.u32 %v106, 4294901760
    %v2557 = vsub.f32 %v106, %v2556
    %2558 = vmatpush1.msra.mxu0 %v2557
    %v2559 = vand.u32 %v109, 4294901760
    %v2560 = vsub.f32 %v109, %v2559
    %2561 = vmatprep.subr.mxu0 %v2560
    %v2562 = vand.u32 %v108, 4294901760
    %v2563 = vsub.f32 %v108, %v2562
    %2564 = vmatpush1.msra.mxu0 %v2563
    %v2565 = vand.u32 %v111, 4294901760
    %v2566 = vsub.f32 %v111, %v2565
    %2567 = vmatprep.subr.mxu0 %v2566
    %v2568 = vand.u32 %v110, 4294901760
    %v2569 = vsub.f32 %v110, %v2568
    %2570 = vmatpush1.msra.mxu0 %v2569
    %2571 = vmatprep.subr.mxu0 0.0
    %2572 = vmatpush1.msra.mxu0 0.0
    %2573 = vmatprep.subr.mxu0 0.0
    %2574 = vmatpush1.msra.mxu0 0.0
    %2575 = vmatprep.subr.mxu0 0.0
    %2576 = vmatpush1.msra.mxu0 0.0
    %2577 = vmatprep.subr.mxu0 0.0
    %2578 = vmatpush1.msra.mxu0 0.0
    %2579 = vmatprep.subr.mxu0 0.0
    %2580 = vmatpush1.msra.mxu0 0.0
    %2581 = vmatprep.subr.mxu0 0.0
    %2582 = vmatpush1.msra.mxu0 0.0
    %2583 = vmatprep.subr.mxu0 0.0
    %2584 = vmatpush1.msra.mxu0 0.0
    %2585 = vmatprep.subr.mxu0 0.0
    %2586 = vmatpush1.msra.mxu0 0.0
    %2587 = vmatprep.subr.mxu0 0.0
    %2588 = vmatpush1.msra.mxu0 0.0
    %2589 = vmatprep.subr.mxu0 0.0
    %2590 = vmatpush1.msra.mxu0 0.0
    %2591 = vmatprep.subr.mxu0 0.0
    %2592 = vmatpush1.msra.mxu0 0.0
    %2593 = vmatprep.subr.mxu0 0.0
    %2594 = vmatpush1.msra.mxu0 0.0
    %2595 = vmatprep.subr.mxu0 0.0
    %2596 = vmatpush1.msra.mxu0 0.0
    %2597 = vmatprep.subr.mxu0 0.0
    %2598 = vmatpush1.msra.mxu0 0.0
    %2599 = vmatprep.subr.mxu0 0.0
    %2600 = vmatpush1.msra.mxu0 0.0
    %2601 = vmatprep.subr.mxu0 0.0
    %2602 = vmatpush1.msra.mxu0 0.0
    %2603 = vmatprep.subr.mxu0 0.0
    %2604 = vmatpush1.msra.mxu0 0.0
    %2605 = vmatprep.subr.mxu0 0.0
    %2606 = vmatpush1.msra.mxu0 0.0
    %2607 = vmatprep.subr.mxu0 0.0
    %2608 = vmatpush1.msra.mxu0 0.0
    %2609 = vmatprep.subr.mxu0 0.0
    %2610 = vmatpush1.msra.mxu0 0.0
    %2611 = vmatprep.subr.mxu0 0.0
    %2612 = vmatpush1.msra.mxu0 0.0
    %2613 = vmatprep.subr.mxu0 0.0
    %2614 = vmatpush1.msra.mxu0 0.0
    %2615 = vmatprep.subr.mxu0 0.0
    %2616 = vmatpush1.msra.mxu0 0.0
    %2617 = vmatprep.subr.mxu0 0.0
    %2618 = vmatpush1.msra.mxu0 0.0
    %2619 = vmatprep.subr.mxu0 0.0
    %2620 = vmatpush1.msra.mxu0 0.0
    %2621 = vmatprep.subr.mxu0 0.0
    %2622 = vmatpush1.msra.mxu0 0.0
    %2623 = vmatprep.subr.mxu0 0.0
    %2624 = vmatpush1.msra.mxu0 0.0
    %2625 = vmatprep.subr.mxu0 0.0
    %2626 = vmatpush1.msra.mxu0 0.0
    %2627 = vmatprep.mubr.f32.mxu0 0.0
    %v2628 = vand.u32 %v2349, 4294901760
    %v2629 = vsub.f32 %v2349, %v2628
    %2630 = vmatmul.mubr.f32.gmra.mrb[0].mxu0 %v2629
    %v2631 = vpop.f32.mrb[0].mxu0
    %v2632 = vadd.f32 %v2543, %v2631
    %v2633 = vpop.f32.mrb[0].mxu0
    %v2634 = vadd.f32 %v2545, %v2633
    %2635 = vdwg.mxu0
    %v2636 = vand.u32 %v105, 4294901760
    %2637 = vmatprep.subr.mxu0 %v2636
    %v2638 = vand.u32 %v104, 4294901760
    %2639 = vmatpush1.msra.mxu0 %v2638
    %v2640 = vand.u32 %v107, 4294901760
    %2641 = vmatprep.subr.mxu0 %v2640
    %v2642 = vand.u32 %v106, 4294901760
    %2643 = vmatpush1.msra.mxu0 %v2642
    %v2644 = vand.u32 %v109, 4294901760
    %2645 = vmatprep.subr.mxu0 %v2644
    %v2646 = vand.u32 %v108, 4294901760
    %2647 = vmatpush1.msra.mxu0 %v2646
    %v2648 = vand.u32 %v111, 4294901760
    %2649 = vmatprep.subr.mxu0 %v2648
    %v2650 = vand.u32 %v110, 4294901760
    %2651 = vmatpush1.msra.mxu0 %v2650
    %2652 = vmatprep.subr.mxu0 0.0
    %2653 = vmatpush1.msra.mxu0 0.0
    %2654 = vmatprep.subr.mxu0 0.0
    %2655 = vmatpush1.msra.mxu0 0.0
    %2656 = vmatprep.subr.mxu0 0.0
    %2657 = vmatpush1.msra.mxu0 0.0
    %2658 = vmatprep.subr.mxu0 0.0
    %2659 = vmatpush1.msra.mxu0 0.0
    %2660 = vmatprep.subr.mxu0 0.0
    %2661 = vmatpush1.msra.mxu0 0.0
    %2662 = vmatprep.subr.mxu0 0.0
    %2663 = vmatpush1.msra.mxu0 0.0
    %2664 = vmatprep.subr.mxu0 0.0
    %2665 = vmatpush1.msra.mxu0 0.0
    %2666 = vmatprep.subr.mxu0 0.0
    %2667 = vmatpush1.msra.mxu0 0.0
    %2668 = vmatprep.subr.mxu0 0.0
    %2669 = vmatpush1.msra.mxu0 0.0
    %2670 = vmatprep.subr.mxu0 0.0
    %2671 = vmatpush1.msra.mxu0 0.0
    %2672 = vmatprep.subr.mxu0 0.0
    %2673 = vmatpush1.msra.mxu0 0.0
    %2674 = vmatprep.subr.mxu0 0.0
    %2675 = vmatpush1.msra.mxu0 0.0
    %2676 = vmatprep.subr.mxu0 0.0
    %2677 = vmatpush1.msra.mxu0 0.0
    %2678 = vmatprep.subr.mxu0 0.0
    %2679 = vmatpush1.msra.mxu0 0.0
    %2680 = vmatprep.subr.mxu0 0.0
    %2681 = vmatpush1.msra.mxu0 0.0
    %2682 = vmatprep.subr.mxu0 0.0
    %2683 = vmatpush1.msra.mxu0 0.0
    %2684 = vmatprep.subr.mxu0 0.0
    %2685 = vmatpush1.msra.mxu0 0.0
    %2686 = vmatprep.subr.mxu0 0.0
    %2687 = vmatpush1.msra.mxu0 0.0
    %2688 = vmatprep.subr.mxu0 0.0
    %2689 = vmatpush1.msra.mxu0 0.0
    %2690 = vmatprep.subr.mxu0 0.0
    %2691 = vmatpush1.msra.mxu0 0.0
    %2692 = vmatprep.subr.mxu0 0.0
    %2693 = vmatpush1.msra.mxu0 0.0
    %2694 = vmatprep.subr.mxu0 0.0
    %2695 = vmatpush1.msra.mxu0 0.0
    %2696 = vmatprep.subr.mxu0 0.0
    %2697 = vmatpush1.msra.mxu0 0.0
    %2698 = vmatprep.subr.mxu0 0.0
    %2699 = vmatpush1.msra.mxu0 0.0
    %2700 = vmatprep.subr.mxu0 0.0
    %2701 = vmatpush1.msra.mxu0 0.0
    %2702 = vmatprep.subr.mxu0 0.0
    %2703 = vmatpush1.msra.mxu0 0.0
    %2704 = vmatprep.subr.mxu0 0.0
    %2705 = vmatpush1.msra.mxu0 0.0
    %2706 = vmatprep.subr.mxu0 0.0
    %2707 = vmatpush1.msra.mxu0 0.0
    %2708 = vmatprep.mubr.f32.mxu0 0.0
    %v2709 = vand.u32 %v2349, 4294901760
    %v2710 = vsub.f32 %v2349, %v2709
    %v2711 = vand.u32 %v2710, 4294901760
    %2712 = vmatmul.mubr.f32.gmra.mrb[0].mxu0 %v2711
    %v2713 = vpop.f32.mrb[0].mxu0
    %v2714 = vadd.f32 %v2632, %v2713
    %v2715 = vpop.f32.mrb[0].mxu0
    %v2716 = vadd.f32 %v2634, %v2715
    %2717 = vdwg.mxu0
    %v2718 = vand.u32 %v105, 4294901760
    %v2719 = vsub.f32 %v105, %v2718
    %v2720 = vand.u32 %v2719, 4294901760
    %2721 = vmatprep.subr.mxu0 %v2720
    %v2722 = vand.u32 %v104, 4294901760
    %v2723 = vsub.f32 %v104, %v2722
    %v2724 = vand.u32 %v2723, 4294901760
    %2725 = vmatpush1.msra.mxu0 %v2724
    %v2726 = vand.u32 %v107, 4294901760
    %v2727 = vsub.f32 %v107, %v2726
    %v2728 = vand.u32 %v2727, 4294901760
    %2729 = vmatprep.subr.mxu0 %v2728
    %v2730 = vand.u32 %v106, 4294901760
    %v2731 = vsub.f32 %v106, %v2730
    %v2732 = vand.u32 %v2731, 4294901760
    %2733 = vmatpush1.msra.mxu0 %v2732
    %v2734 = vand.u32 %v109, 4294901760
    %v2735 = vsub.f32 %v109, %v2734
    %v2736 = vand.u32 %v2735, 4294901760
    %2737 = vmatprep.subr.mxu0 %v2736
    %v2738 = vand.u32 %v108, 4294901760
    %v2739 = vsub.f32 %v108, %v2738
    %v2740 = vand.u32 %v2739, 4294901760
    %2741 = vmatpush1.msra.mxu0 %v2740
    %v2742 = vand.u32 %v111, 4294901760
    %v2743 = vsub.f32 %v111, %v2742
    %v2744 = vand.u32 %v2743, 4294901760
    %2745 = vmatprep.subr.mxu0 %v2744
    %v2746 = vand.u32 %v110, 4294901760
    %v2747 = vsub.f32 %v110, %v2746
    %v2748 = vand.u32 %v2747, 4294901760
    %2749 = vmatpush1.msra.mxu0 %v2748
    %2750 = vmatprep.subr.mxu0 0.0
    %2751 = vmatpush1.msra.mxu0 0.0
    %2752 = vmatprep.subr.mxu0 0.0
    %2753 = vmatpush1.msra.mxu0 0.0
    %2754 = vmatprep.subr.mxu0 0.0
    %2755 = vmatpush1.msra.mxu0 0.0
    %2756 = vmatprep.subr.mxu0 0.0
    %2757 = vmatpush1.msra.mxu0 0.0
    %2758 = vmatprep.subr.mxu0 0.0
    %2759 = vmatpush1.msra.mxu0 0.0
    %2760 = vmatprep.subr.mxu0 0.0
    %2761 = vmatpush1.msra.mxu0 0.0
    %2762 = vmatprep.subr.mxu0 0.0
    %2763 = vmatpush1.msra.mxu0 0.0
    %2764 = vmatprep.subr.mxu0 0.0
    %2765 = vmatpush1.msra.mxu0 0.0
    %2766 = vmatprep.subr.mxu0 0.0
    %2767 = vmatpush1.msra.mxu0 0.0
    %2768 = vmatprep.subr.mxu0 0.0
    %2769 = vmatpush1.msra.mxu0 0.0
    %2770 = vmatprep.subr.mxu0 0.0
    %2771 = vmatpush1.msra.mxu0 0.0
    %2772 = vmatprep.subr.mxu0 0.0
    %2773 = vmatpush1.msra.mxu0 0.0
    %2774 = vmatprep.subr.mxu0 0.0
    %2775 = vmatpush1.msra.mxu0 0.0
    %2776 = vmatprep.subr.mxu0 0.0
    %2777 = vmatpush1.msra.mxu0 0.0
    %2778 = vmatprep.subr.mxu0 0.0
    %2779 = vmatpush1.msra.mxu0 0.0
    %2780 = vmatprep.subr.mxu0 0.0
    %2781 = vmatpush1.msra.mxu0 0.0
    %2782 = vmatprep.subr.mxu0 0.0
    %2783 = vmatpush1.msra.mxu0 0.0
    %2784 = vmatprep.subr.mxu0 0.0
    %2785 = vmatpush1.msra.mxu0 0.0
    %2786 = vmatprep.subr.mxu0 0.0
    %2787 = vmatpush1.msra.mxu0 0.0
    %2788 = vmatprep.subr.mxu0 0.0
    %2789 = vmatpush1.msra.mxu0 0.0
    %2790 = vmatprep.subr.mxu0 0.0
    %2791 = vmatpush1.msra.mxu0 0.0
    %2792 = vmatprep.subr.mxu0 0.0
    %2793 = vmatpush1.msra.mxu0 0.0
    %2794 = vmatprep.subr.mxu0 0.0
    %2795 = vmatpush1.msra.mxu0 0.0
    %2796 = vmatprep.subr.mxu0 0.0
    %2797 = vmatpush1.msra.mxu0 0.0
    %2798 = vmatprep.subr.mxu0 0.0
    %2799 = vmatpush1.msra.mxu0 0.0
    %2800 = vmatprep.subr.mxu0 0.0
    %2801 = vmatpush1.msra.mxu0 0.0
    %2802 = vmatprep.subr.mxu0 0.0
    %2803 = vmatpush1.msra.mxu0 0.0
    %2804 = vmatprep.subr.mxu0 0.0
    %2805 = vmatpush1.msra.mxu0 0.0
    %2806 = vmatprep.mubr.f32.mxu0 0.0
    %v2807 = vand.u32 %v2349, 4294901760
    %2808 = vmatmul.mubr.f32.gmra.mrb[0].mxu0 %v2807
    %v2809 = vpop.f32.mrb[0].mxu0
    %v2810 = vadd.f32 %v2714, %v2809
    %v2811 = vpop.f32.mrb[0].mxu0
    %v2812 = vadd.f32 %v2716, %v2811
    %2813 = vdwg.mxu0
    %v2814 = vand.u32 %v105, 4294901760
    %2815 = vmatprep.subr.mxu0 %v2814
    %v2816 = vand.u32 %v104, 4294901760
    %2817 = vmatpush1.msra.mxu0 %v2816
    %v2818 = vand.u32 %v107, 4294901760
    %2819 = vmatprep.subr.mxu0 %v2818
    %v2820 = vand.u32 %v106, 4294901760
    %2821 = vmatpush1.msra.mxu0 %v2820
    %v2822 = vand.u32 %v109, 4294901760
    %2823 = vmatprep.subr.mxu0 %v2822
    %v2824 = vand.u32 %v108, 4294901760
    %2825 = vmatpush1.msra.mxu0 %v2824
    %v2826 = vand.u32 %v111, 4294901760
    %2827 = vmatprep.subr.mxu0 %v2826
    %v2828 = vand.u32 %v110, 4294901760
    %2829 = vmatpush1.msra.mxu0 %v2828
    %2830 = vmatprep.subr.mxu0 0.0
    %2831 = vmatpush1.msra.mxu0 0.0
    %2832 = vmatprep.subr.mxu0 0.0
    %2833 = vmatpush1.msra.mxu0 0.0
    %2834 = vmatprep.subr.mxu0 0.0
    %2835 = vmatpush1.msra.mxu0 0.0
    %2836 = vmatprep.subr.mxu0 0.0
    %2837 = vmatpush1.msra.mxu0 0.0
    %2838 = vmatprep.subr.mxu0 0.0
    %2839 = vmatpush1.msra.mxu0 0.0
    %2840 = vmatprep.subr.mxu0 0.0
    %2841 = vmatpush1.msra.mxu0 0.0
    %2842 = vmatprep.subr.mxu0 0.0
    %2843 = vmatpush1.msra.mxu0 0.0
    %2844 = vmatprep.subr.mxu0 0.0
    %2845 = vmatpush1.msra.mxu0 0.0
    %2846 = vmatprep.subr.mxu0 0.0
    %2847 = vmatpush1.msra.mxu0 0.0
    %2848 = vmatprep.subr.mxu0 0.0
    %2849 = vmatpush1.msra.mxu0 0.0
    %2850 = vmatprep.subr.mxu0 0.0
    %2851 = vmatpush1.msra.mxu0 0.0
    %2852 = vmatprep.subr.mxu0 0.0
    %2853 = vmatpush1.msra.mxu0 0.0
    %2854 = vmatprep.subr.mxu0 0.0
    %2855 = vmatpush1.msra.mxu0 0.0
    %2856 = vmatprep.subr.mxu0 0.0
    %2857 = vmatpush1.msra.mxu0 0.0
    %2858 = vmatprep.subr.mxu0 0.0
    %2859 = vmatpush1.msra.mxu0 0.0
    %2860 = vmatprep.subr.mxu0 0.0
    %2861 = vmatpush1.msra.mxu0 0.0
    %2862 = vmatprep.subr.mxu0 0.0
    %2863 = vmatpush1.msra.mxu0 0.0
    %2864 = vmatprep.subr.mxu0 0.0
    %2865 = vmatpush1.msra.mxu0 0.0
    %2866 = vmatprep.subr.mxu0 0.0
    %2867 = vmatpush1.msra.mxu0 0.0
    %2868 = vmatprep.subr.mxu0 0.0
    %2869 = vmatpush1.msra.mxu0 0.0
    %2870 = vmatprep.subr.mxu0 0.0
    %2871 = vmatpush1.msra.mxu0 0.0
    %2872 = vmatprep.subr.mxu0 0.0
    %2873 = vmatpush1.msra.mxu0 0.0
    %2874 = vmatprep.subr.mxu0 0.0
    %2875 = vmatpush1.msra.mxu0 0.0
    %2876 = vmatprep.subr.mxu0 0.0
    %2877 = vmatpush1.msra.mxu0 0.0
    %2878 = vmatprep.subr.mxu0 0.0
    %2879 = vmatpush1.msra.mxu0 0.0
    %2880 = vmatprep.subr.mxu0 0.0
    %2881 = vmatpush1.msra.mxu0 0.0
    %2882 = vmatprep.subr.mxu0 0.0
    %2883 = vmatpush1.msra.mxu0 0.0
    %2884 = vmatprep.subr.mxu0 0.0
    %2885 = vmatpush1.msra.mxu0 0.0
    %2886 = vmatprep.mubr.f32.mxu0 0.0
    %v2887 = vand.u32 %v2349, 4294901760
    %2888 = vmatmul.mubr.f32.gmra.mrb[0].mxu0 %v2887
    %v2889 = vpop.f32.mrb[0].mxu0
    %v2890 = vadd.f32 %v2810, %v2889
    %v2891 = vpop.f32.mrb[0].mxu0
    %v2892 = vadd.f32 %v2812, %v2891
    %2893 = vdwg.mxu0
    %v2894 = vlaneseq
    %v2895 = vshrl.u32 %v2894, 7
    %v2896 = vsub.s32 0, %v2895
    %v2897 = vrot.slane %v45, %v2896
    %v2898 = vadd.f32 %v2892, %v2897
    %v2899 = vlaneseq
    %v2900 = vshrl.u32 %v2899, 7
    %v2901 = vsub.s32 0, %v2900
    %v2902 = vrot.slane %v52, %v2901
    %v2903 = vmul.f32 %v2902, %v55
    %v2904 = vlaneseq
    %v2905 = vshrl.u32 %v2904, 7
    %v2906 = vsub.s32 0, %v2905
    %v2907 = vrot.slane %v53, %v2906
    %v2908 = vmul.f32 %v2907, %v2898
    %v2909 = vadd.f32 %v2903, %v2908
    %v2910 = vadd.f32 %v2294, %v2890
    %v2911 = vmul.f32 %v2305, %v2312
    %v2912 = vmul.f32 %v2310, %v2910
    %v2913 = vadd.f32 %v2911, %v2912
    %2915 = vrot.lane.b32.xlu0 %v2913, 96
    %v2916 = vpop.permute.xlu0 %2915
    %v2918 = vadd.f32 %v2913, %v2916
    %2919 = vrot.lane.b32.xlu0 %v2913, 64
    %v2920 = vpop.permute.xlu0 %2919
    %v2922 = vadd.f32 %v2918, %v2920
    %2923 = vrot.lane.b32.xlu0 %v2913, 32
    %v2924 = vpop.permute.xlu0 %2923
    %v2926 = vadd.f32 %v2922, %v2924
    %v2927 = vmul.f32 %v2329, %v2343
    %v2928 = vmul.f32 %v2334, %v2926
    %v2929 = vadd.f32 %v2927, %v2928
    %v2930 = vmul.f32 %v2347, 0.5
    %v2931 = vsub.f32 %v2929, %v2930
    %v2932 = vsel %vm59, 1, 0
    %v2933 = vlaneseq
    %v2934 = vshrl.u32 %v2933, 7
    %v2935 = vsub.s32 0, %v2934
    %v2936 = vrot.slane %v2932, %v2935
    %vm2937 = vcmp.eq.s32.totalorder %v2936, 1
    %v2938 = vsel %vm2937, %v2931, %v2343
    %vm2939 = vcmp.gt.f32.partialorder %v2938, 0.5
    %vm2940 = vmand %vm2939, %vm2937
    %v2941 = vsel %vm2940, 1, 0
    %v2942 = vcvt.s32.f32 %v2941
    %v2944 = vsel %vm113, %v2942, 0
    %v2946 = vand.u32 %v105, 4294901760
    %2947 = vmatprep.subr.mxu0 %v2946
    %v2948 = vand.u32 %v104, 4294901760
    %2949 = vmatpush1.msra.mxu0 %v2948
    %v2950 = vand.u32 %v107, 4294901760
    %2951 = vmatprep.subr.mxu0 %v2950
    %v2952 = vand.u32 %v106, 4294901760
    %2953 = vmatpush1.msra.mxu0 %v2952
    %v2954 = vand.u32 %v109, 4294901760
    %2955 = vmatprep.subr.mxu0 %v2954
    %v2956 = vand.u32 %v108, 4294901760
    %2957 = vmatpush1.msra.mxu0 %v2956
    %v2958 = vand.u32 %v111, 4294901760
    %2959 = vmatprep.subr.mxu0 %v2958
    %v2960 = vand.u32 %v110, 4294901760
    %2961 = vmatpush1.msra.mxu0 %v2960
    %2962 = vmatprep.subr.mxu0 0.0
    %2963 = vmatpush1.msra.mxu0 0.0
    %2964 = vmatprep.subr.mxu0 0.0
    %2965 = vmatpush1.msra.mxu0 0.0
    %2966 = vmatprep.subr.mxu0 0.0
    %2967 = vmatpush1.msra.mxu0 0.0
    %2968 = vmatprep.subr.mxu0 0.0
    %2969 = vmatpush1.msra.mxu0 0.0
    %2970 = vmatprep.subr.mxu0 0.0
    %2971 = vmatpush1.msra.mxu0 0.0
    %2972 = vmatprep.subr.mxu0 0.0
    %2973 = vmatpush1.msra.mxu0 0.0
    %2974 = vmatprep.subr.mxu0 0.0
    %2975 = vmatpush1.msra.mxu0 0.0
    %2976 = vmatprep.subr.mxu0 0.0
    %2977 = vmatpush1.msra.mxu0 0.0
    %2978 = vmatprep.subr.mxu0 0.0
    %2979 = vmatpush1.msra.mxu0 0.0
    %2980 = vmatprep.subr.mxu0 0.0
    %2981 = vmatpush1.msra.mxu0 0.0
    %2982 = vmatprep.subr.mxu0 0.0
    %2983 = vmatpush1.msra.mxu0 0.0
    %2984 = vmatprep.subr.mxu0 0.0
    %2985 = vmatpush1.msra.mxu0 0.0
    %2986 = vmatprep.subr.mxu0 0.0
    %2987 = vmatpush1.msra.mxu0 0.0
    %2988 = vmatprep.subr.mxu0 0.0
    %2989 = vmatpush1.msra.mxu0 0.0
    %2990 = vmatprep.subr.mxu0 0.0
    %2991 = vmatpush1.msra.mxu0 0.0
    %2992 = vmatprep.subr.mxu0 0.0
    %2993 = vmatpush1.msra.mxu0 0.0
    %2994 = vmatprep.subr.mxu0 0.0
    %2995 = vmatpush1.msra.mxu0 0.0
    %2996 = vmatprep.subr.mxu0 0.0
    %2997 = vmatpush1.msra.mxu0 0.0
    %2998 = vmatprep.subr.mxu0 0.0
    %2999 = vmatpush1.msra.mxu0 0.0
    %3000 = vmatprep.subr.mxu0 0.0
    %3001 = vmatpush1.msra.mxu0 0.0
    %3002 = vmatprep.subr.mxu0 0.0
    %3003 = vmatpush1.msra.mxu0 0.0
    %3004 = vmatprep.subr.mxu0 0.0
    %3005 = vmatpush1.msra.mxu0 0.0
    %3006 = vmatprep.subr.mxu0 0.0
    %3007 = vmatpush1.msra.mxu0 0.0
    %3008 = vmatprep.subr.mxu0 0.0
    %3009 = vmatpush1.msra.mxu0 0.0
    %3010 = vmatprep.subr.mxu0 0.0
    %3011 = vmatpush1.msra.mxu0 0.0
    %3012 = vmatprep.subr.mxu0 0.0
    %3013 = vmatpush1.msra.mxu0 0.0
    %3014 = vmatprep.subr.mxu0 0.0
    %3015 = vmatpush1.msra.mxu0 0.0
    %3016 = vmatprep.subr.mxu0 0.0
    %3017 = vmatpush1.msra.mxu0 0.0
    %3018 = vmatprep.mubr.f32.mxu0 0.0
    %v3019 = vand.u32 %v2944, 4294901760
    %v3020 = vsub.f32 %v2944, %v3019
    %v3021 = vand.u32 %v3020, 4294901760
    %v3022 = vsub.f32 %v3020, %v3021
    %v3023 = vand.u32 %v3022, 4294901760
    %3024 = vmatmul.mubr.f32.gmra.mrb[0].mxu0 %v3023
    %v3025 = vpop.f32.mrb[0].mxu0
    %v3026 = vadd.f32 0.0, %v3025
    %v3027 = vpop.f32.mrb[0].mxu0
    %v3028 = vadd.f32 0.0, %v3027
    %3029 = vdwg.mxu0
    %v3030 = vand.u32 %v105, 4294901760
    %v3031 = vsub.f32 %v105, %v3030
    %v3032 = vand.u32 %v3031, 4294901760
    %v3033 = vsub.f32 %v3031, %v3032
    %v3034 = vand.u32 %v3033, 4294901760
    %3035 = vmatprep.subr.mxu0 %v3034
    %v3036 = vand.u32 %v104, 4294901760
    %v3037 = vsub.f32 %v104, %v3036
    %v3038 = vand.u32 %v3037, 4294901760
    %v3039 = vsub.f32 %v3037, %v3038
    %v3040 = vand.u32 %v3039, 4294901760
    %3041 = vmatpush1.msra.mxu0 %v3040
    %v3042 = vand.u32 %v107, 4294901760
    %v3043 = vsub.f32 %v107, %v3042
    %v3044 = vand.u32 %v3043, 4294901760
    %v3045 = vsub.f32 %v3043, %v3044
    %v3046 = vand.u32 %v3045, 4294901760
    %3047 = vmatprep.subr.mxu0 %v3046
    %v3048 = vand.u32 %v106, 4294901760
    %v3049 = vsub.f32 %v106, %v3048
    %v3050 = vand.u32 %v3049, 4294901760
    %v3051 = vsub.f32 %v3049, %v3050
    %v3052 = vand.u32 %v3051, 4294901760
    %3053 = vmatpush1.msra.mxu0 %v3052
    %v3054 = vand.u32 %v109, 4294901760
    %v3055 = vsub.f32 %v109, %v3054
    %v3056 = vand.u32 %v3055, 4294901760
    %v3057 = vsub.f32 %v3055, %v3056
    %v3058 = vand.u32 %v3057, 4294901760
    %3059 = vmatprep.subr.mxu0 %v3058
    %v3060 = vand.u32 %v108, 4294901760
    %v3061 = vsub.f32 %v108, %v3060
    %v3062 = vand.u32 %v3061, 4294901760
    %v3063 = vsub.f32 %v3061, %v3062
    %v3064 = vand.u32 %v3063, 4294901760
    %3065 = vmatpush1.msra.mxu0 %v3064
    %v3066 = vand.u32 %v111, 4294901760
    %v3067 = vsub.f32 %v111, %v3066
    %v3068 = vand.u32 %v3067, 4294901760
    %v3069 = vsub.f32 %v3067, %v3068
    %v3070 = vand.u32 %v3069, 4294901760
    %3071 = vmatprep.subr.mxu0 %v3070
    %v3072 = vand.u32 %v110, 4294901760
    %v3073 = vsub.f32 %v110, %v3072
    %v3074 = vand.u32 %v3073, 4294901760
    %v3075 = vsub.f32 %v3073, %v3074
    %v3076 = vand.u32 %v3075, 4294901760
    %3077 = vmatpush1.msra.mxu0 %v3076
    %3078 = vmatprep.subr.mxu0 0.0
    %3079 = vmatpush1.msra.mxu0 0.0
    %3080 = vmatprep.subr.mxu0 0.0
    %3081 = vmatpush1.msra.mxu0 0.0
    %3082 = vmatprep.subr.mxu0 0.0
    %3083 = vmatpush1.msra.mxu0 0.0
    %3084 = vmatprep.subr.mxu0 0.0
    %3085 = vmatpush1.msra.mxu0 0.0
    %3086 = vmatprep.subr.mxu0 0.0
    %3087 = vmatpush1.msra.mxu0 0.0
    %3088 = vmatprep.subr.mxu0 0.0
    %3089 = vmatpush1.msra.mxu0 0.0
    %3090 = vmatprep.subr.mxu0 0.0
    %3091 = vmatpush1.msra.mxu0 0.0
    %3092 = vmatprep.subr.mxu0 0.0
    %3093 = vmatpush1.msra.mxu0 0.0
    %3094 = vmatprep.subr.mxu0 0.0
    %3095 = vmatpush1.msra.mxu0 0.0
    %3096 = vmatprep.subr.mxu0 0.0
    %3097 = vmatpush1.msra.mxu0 0.0
    %3098 = vmatprep.subr.mxu0 0.0
    %3099 = vmatpush1.msra.mxu0 0.0
    %3100 = vmatprep.subr.mxu0 0.0
    %3101 = vmatpush1.msra.mxu0 0.0
    %3102 = vmatprep.subr.mxu0 0.0
    %3103 = vmatpush1.msra.mxu0 0.0
    %3104 = vmatprep.subr.mxu0 0.0
    %3105 = vmatpush1.msra.mxu0 0.0
    %3106 = vmatprep.subr.mxu0 0.0
    %3107 = vmatpush1.msra.mxu0 0.0
    %3108 = vmatprep.subr.mxu0 0.0
    %3109 = vmatpush1.msra.mxu0 0.0
    %3110 = vmatprep.subr.mxu0 0.0
    %3111 = vmatpush1.msra.mxu0 0.0
    %3112 = vmatprep.subr.mxu0 0.0
    %3113 = vmatpush1.msra.mxu0 0.0
    %3114 = vmatprep.subr.mxu0 0.0
    %3115 = vmatpush1.msra.mxu0 0.0
    %3116 = vmatprep.subr.mxu0 0.0
    %3117 = vmatpush1.msra.mxu0 0.0
    %3118 = vmatprep.subr.mxu0 0.0
    %3119 = vmatpush1.msra.mxu0 0.0
    %3120 = vmatprep.subr.mxu0 0.0
    %3121 = vmatpush1.msra.mxu0 0.0
    %3122 = vmatprep.subr.mxu0 0.0
    %3123 = vmatpush1.msra.mxu0 0.0
    %3124 = vmatprep.subr.mxu0 0.0
    %3125 = vmatpush1.msra.mxu0 0.0
    %3126 = vmatprep.subr.mxu0 0.0
    %3127 = vmatpush1.msra.mxu0 0.0
    %3128 = vmatprep.subr.mxu0 0.0
    %3129 = vmatpush1.msra.mxu0 0.0
    %3130 = vmatprep.subr.mxu0 0.0
    %3131 = vmatpush1.msra.mxu0 0.0
    %3132 = vmatprep.subr.mxu0 0.0
    %3133 = vmatpush1.msra.mxu0 0.0
    %3134 = vmatprep.mubr.f32.mxu0 0.0
    %v3135 = vand.u32 %v2944, 4294901760
    %3136 = vmatmul.mubr.f32.gmra.mrb[0].mxu0 %v3135
    %v3137 = vpop.f32.mrb[0].mxu0
    %v3138 = vadd.f32 %v3026, %v3137
    %v3139 = vpop.f32.mrb[0].mxu0
    %v3140 = vadd.f32 %v3028, %v3139
    %3141 = vdwg.mxu0
    %v3142 = vand.u32 %v105, 4294901760
    %v3143 = vsub.f32 %v105, %v3142
    %3144 = vmatprep.subr.mxu0 %v3143
    %v3145 = vand.u32 %v104, 4294901760
    %v3146 = vsub.f32 %v104, %v3145
    %3147 = vmatpush1.msra.mxu0 %v3146
    %v3148 = vand.u32 %v107, 4294901760
    %v3149 = vsub.f32 %v107, %v3148
    %3150 = vmatprep.subr.mxu0 %v3149
    %v3151 = vand.u32 %v106, 4294901760
    %v3152 = vsub.f32 %v106, %v3151
    %3153 = vmatpush1.msra.mxu0 %v3152
    %v3154 = vand.u32 %v109, 4294901760
    %v3155 = vsub.f32 %v109, %v3154
    %3156 = vmatprep.subr.mxu0 %v3155
    %v3157 = vand.u32 %v108, 4294901760
    %v3158 = vsub.f32 %v108, %v3157
    %3159 = vmatpush1.msra.mxu0 %v3158
    %v3160 = vand.u32 %v111, 4294901760
    %v3161 = vsub.f32 %v111, %v3160
    %3162 = vmatprep.subr.mxu0 %v3161
    %v3163 = vand.u32 %v110, 4294901760
    %v3164 = vsub.f32 %v110, %v3163
    %3165 = vmatpush1.msra.mxu0 %v3164
    %3166 = vmatprep.subr.mxu0 0.0
    %3167 = vmatpush1.msra.mxu0 0.0
    %3168 = vmatprep.subr.mxu0 0.0
    %3169 = vmatpush1.msra.mxu0 0.0
    %3170 = vmatprep.subr.mxu0 0.0
    %3171 = vmatpush1.msra.mxu0 0.0
    %3172 = vmatprep.subr.mxu0 0.0
    %3173 = vmatpush1.msra.mxu0 0.0
    %3174 = vmatprep.subr.mxu0 0.0
    %3175 = vmatpush1.msra.mxu0 0.0
    %3176 = vmatprep.subr.mxu0 0.0
    %3177 = vmatpush1.msra.mxu0 0.0
    %3178 = vmatprep.subr.mxu0 0.0
    %3179 = vmatpush1.msra.mxu0 0.0
    %3180 = vmatprep.subr.mxu0 0.0
    %3181 = vmatpush1.msra.mxu0 0.0
    %3182 = vmatprep.subr.mxu0 0.0
    %3183 = vmatpush1.msra.mxu0 0.0
    %3184 = vmatprep.subr.mxu0 0.0
    %3185 = vmatpush1.msra.mxu0 0.0
    %3186 = vmatprep.subr.mxu0 0.0
    %3187 = vmatpush1.msra.mxu0 0.0
    %3188 = vmatprep.subr.mxu0 0.0
    %3189 = vmatpush1.msra.mxu0 0.0
    %3190 = vmatprep.subr.mxu0 0.0
    %3191 = vmatpush1.msra.mxu0 0.0
    %3192 = vmatprep.subr.mxu0 0.0
    %3193 = vmatpush1.msra.mxu0 0.0
    %3194 = vmatprep.subr.mxu0 0.0
    %3195 = vmatpush1.msra.mxu0 0.0
    %3196 = vmatprep.subr.mxu0 0.0
    %3197 = vmatpush1.msra.mxu0 0.0
    %3198 = vmatprep.subr.mxu0 0.0
    %3199 = vmatpush1.msra.mxu0 0.0
    %3200 = vmatprep.subr.mxu0 0.0
    %3201 = vmatpush1.msra.mxu0 0.0
    %3202 = vmatprep.subr.mxu0 0.0
    %3203 = vmatpush1.msra.mxu0 0.0
    %3204 = vmatprep.subr.mxu0 0.0
    %3205 = vmatpush1.msra.mxu0 0.0
    %3206 = vmatprep.subr.mxu0 0.0
    %3207 = vmatpush1.msra.mxu0 0.0
    %3208 = vmatprep.subr.mxu0 0.0
    %3209 = vmatpush1.msra.mxu0 0.0
    %3210 = vmatprep.subr.mxu0 0.0
    %3211 = vmatpush1.msra.mxu0 0.0
    %3212 = vmatprep.subr.mxu0 0.0
    %3213 = vmatpush1.msra.mxu0 0.0
    %3214 = vmatprep.subr.mxu0 0.0
    %3215 = vmatpush1.msra.mxu0 0.0
    %3216 = vmatprep.subr.mxu0 0.0
    %3217 = vmatpush1.msra.mxu0 0.0
    %3218 = vmatprep.subr.mxu0 0.0
    %3219 = vmatpush1.msra.mxu0 0.0
    %3220 = vmatprep.subr.mxu0 0.0
    %3221 = vmatpush1.msra.mxu0 0.0
    %3222 = vmatprep.mubr.f32.mxu0 0.0
    %v3223 = vand.u32 %v2944, 4294901760
    %v3224 = vsub.f32 %v2944, %v3223
    %3225 = vmatmul.mubr.f32.gmra.mrb[0].mxu0 %v3224
    %v3226 = vpop.f32.mrb[0].mxu0
    %v3227 = vadd.f32 %v3138, %v3226
    %v3228 = vpop.f32.mrb[0].mxu0
    %v3229 = vadd.f32 %v3140, %v3228
    %3230 = vdwg.mxu0
    %v3231 = vand.u32 %v105, 4294901760
    %3232 = vmatprep.subr.mxu0 %v3231
    %v3233 = vand.u32 %v104, 4294901760
    %3234 = vmatpush1.msra.mxu0 %v3233
    %v3235 = vand.u32 %v107, 4294901760
    %3236 = vmatprep.subr.mxu0 %v3235
    %v3237 = vand.u32 %v106, 4294901760
    %3238 = vmatpush1.msra.mxu0 %v3237
    %v3239 = vand.u32 %v109, 4294901760
    %3240 = vmatprep.subr.mxu0 %v3239
    %v3241 = vand.u32 %v108, 4294901760
    %3242 = vmatpush1.msra.mxu0 %v3241
    %v3243 = vand.u32 %v111, 4294901760
    %3244 = vmatprep.subr.mxu0 %v3243
    %v3245 = vand.u32 %v110, 4294901760
    %3246 = vmatpush1.msra.mxu0 %v3245
    %3247 = vmatprep.subr.mxu0 0.0
    %3248 = vmatpush1.msra.mxu0 0.0
    %3249 = vmatprep.subr.mxu0 0.0
    %3250 = vmatpush1.msra.mxu0 0.0
    %3251 = vmatprep.subr.mxu0 0.0
    %3252 = vmatpush1.msra.mxu0 0.0
    %3253 = vmatprep.subr.mxu0 0.0
    %3254 = vmatpush1.msra.mxu0 0.0
    %3255 = vmatprep.subr.mxu0 0.0
    %3256 = vmatpush1.msra.mxu0 0.0
    %3257 = vmatprep.subr.mxu0 0.0
    %3258 = vmatpush1.msra.mxu0 0.0
    %3259 = vmatprep.subr.mxu0 0.0
    %3260 = vmatpush1.msra.mxu0 0.0
    %3261 = vmatprep.subr.mxu0 0.0
    %3262 = vmatpush1.msra.mxu0 0.0
    %3263 = vmatprep.subr.mxu0 0.0
    %3264 = vmatpush1.msra.mxu0 0.0
    %3265 = vmatprep.subr.mxu0 0.0
    %3266 = vmatpush1.msra.mxu0 0.0
    %3267 = vmatprep.subr.mxu0 0.0
    %3268 = vmatpush1.msra.mxu0 0.0
    %3269 = vmatprep.subr.mxu0 0.0
    %3270 = vmatpush1.msra.mxu0 0.0
    %3271 = vmatprep.subr.mxu0 0.0
    %3272 = vmatpush1.msra.mxu0 0.0
    %3273 = vmatprep.subr.mxu0 0.0
    %3274 = vmatpush1.msra.mxu0 0.0
    %3275 = vmatprep.subr.mxu0 0.0
    %3276 = vmatpush1.msra.mxu0 0.0
    %3277 = vmatprep.subr.mxu0 0.0
    %3278 = vmatpush1.msra.mxu0 0.0
    %3279 = vmatprep.subr.mxu0 0.0
    %3280 = vmatpush1.msra.mxu0 0.0
    %3281 = vmatprep.subr.mxu0 0.0
    %3282 = vmatpush1.msra.mxu0 0.0
    %3283 = vmatprep.subr.mxu0 0.0
    %3284 = vmatpush1.msra.mxu0 0.0
    %3285 = vmatprep.subr.mxu0 0.0
    %3286 = vmatpush1.msra.mxu0 0.0
    %3287 = vmatprep.subr.mxu0 0.0
    %3288 = vmatpush1.msra.mxu0 0.0
    %3289 = vmatprep.subr.mxu0 0.0
    %3290 = vmatpush1.msra.mxu0 0.0
    %3291 = vmatprep.subr.mxu0 0.0
    %3292 = vmatpush1.msra.mxu0 0.0
    %3293 = vmatprep.subr.mxu0 0.0
    %3294 = vmatpush1.msra.mxu0 0.0
    %3295 = vmatprep.subr.mxu0 0.0
    %3296 = vmatpush1.msra.mxu0 0.0
    %3297 = vmatprep.subr.mxu0 0.0
    %3298 = vmatpush1.msra.mxu0 0.0
    %3299 = vmatprep.subr.mxu0 0.0
    %3300 = vmatpush1.msra.mxu0 0.0
    %3301 = vmatprep.subr.mxu0 0.0
    %3302 = vmatpush1.msra.mxu0 0.0
    %3303 = vmatprep.mubr.f32.mxu0 0.0
    %v3304 = vand.u32 %v2944, 4294901760
    %v3305 = vsub.f32 %v2944, %v3304
    %v3306 = vand.u32 %v3305, 4294901760
    %3307 = vmatmul.mubr.f32.gmra.mrb[0].mxu0 %v3306
    %v3308 = vpop.f32.mrb[0].mxu0
    %v3309 = vadd.f32 %v3227, %v3308
    %v3310 = vpop.f32.mrb[0].mxu0
    %v3311 = vadd.f32 %v3229, %v3310
    %3312 = vdwg.mxu0
    %v3313 = vand.u32 %v105, 4294901760
    %v3314 = vsub.f32 %v105, %v3313
    %v3315 = vand.u32 %v3314, 4294901760
    %3316 = vmatprep.subr.mxu0 %v3315
    %v3317 = vand.u32 %v104, 4294901760
    %v3318 = vsub.f32 %v104, %v3317
    %v3319 = vand.u32 %v3318, 4294901760
    %3320 = vmatpush1.msra.mxu0 %v3319
    %v3321 = vand.u32 %v107, 4294901760
    %v3322 = vsub.f32 %v107, %v3321
    %v3323 = vand.u32 %v3322, 4294901760
    %3324 = vmatprep.subr.mxu0 %v3323
    %v3325 = vand.u32 %v106, 4294901760
    %v3326 = vsub.f32 %v106, %v3325
    %v3327 = vand.u32 %v3326, 4294901760
    %3328 = vmatpush1.msra.mxu0 %v3327
    %v3329 = vand.u32 %v109, 4294901760
    %v3330 = vsub.f32 %v109, %v3329
    %v3331 = vand.u32 %v3330, 4294901760
    %3332 = vmatprep.subr.mxu0 %v3331
    %v3333 = vand.u32 %v108, 4294901760
    %v3334 = vsub.f32 %v108, %v3333
    %v3335 = vand.u32 %v3334, 4294901760
    %3336 = vmatpush1.msra.mxu0 %v3335
    %v3337 = vand.u32 %v111, 4294901760
    %v3338 = vsub.f32 %v111, %v3337
    %v3339 = vand.u32 %v3338, 4294901760
    %3340 = vmatprep.subr.mxu0 %v3339
    %v3341 = vand.u32 %v110, 4294901760
    %v3342 = vsub.f32 %v110, %v3341
    %v3343 = vand.u32 %v3342, 4294901760
    %3344 = vmatpush1.msra.mxu0 %v3343
    %3345 = vmatprep.subr.mxu0 0.0
    %3346 = vmatpush1.msra.mxu0 0.0
    %3347 = vmatprep.subr.mxu0 0.0
    %3348 = vmatpush1.msra.mxu0 0.0
    %3349 = vmatprep.subr.mxu0 0.0
    %3350 = vmatpush1.msra.mxu0 0.0
    %3351 = vmatprep.subr.mxu0 0.0
    %3352 = vmatpush1.msra.mxu0 0.0
    %3353 = vmatprep.subr.mxu0 0.0
    %3354 = vmatpush1.msra.mxu0 0.0
    %3355 = vmatprep.subr.mxu0 0.0
    %3356 = vmatpush1.msra.mxu0 0.0
    %3357 = vmatprep.subr.mxu0 0.0
    %3358 = vmatpush1.msra.mxu0 0.0
    %3359 = vmatprep.subr.mxu0 0.0
    %3360 = vmatpush1.msra.mxu0 0.0
    %3361 = vmatprep.subr.mxu0 0.0
    %3362 = vmatpush1.msra.mxu0 0.0
    %3363 = vmatprep.subr.mxu0 0.0
    %3364 = vmatpush1.msra.mxu0 0.0
    %3365 = vmatprep.subr.mxu0 0.0
    %3366 = vmatpush1.msra.mxu0 0.0
    %3367 = vmatprep.subr.mxu0 0.0
    %3368 = vmatpush1.msra.mxu0 0.0
    %3369 = vmatprep.subr.mxu0 0.0
    %3370 = vmatpush1.msra.mxu0 0.0
    %3371 = vmatprep.subr.mxu0 0.0
    %3372 = vmatpush1.msra.mxu0 0.0
    %3373 = vmatprep.subr.mxu0 0.0
    %3374 = vmatpush1.msra.mxu0 0.0
    %3375 = vmatprep.subr.mxu0 0.0
    %3376 = vmatpush1.msra.mxu0 0.0
    %3377 = vmatprep.subr.mxu0 0.0
    %3378 = vmatpush1.msra.mxu0 0.0
    %3379 = vmatprep.subr.mxu0 0.0
    %3380 = vmatpush1.msra.mxu0 0.0
    %3381 = vmatprep.subr.mxu0 0.0
    %3382 = vmatpush1.msra.mxu0 0.0
    %3383 = vmatprep.subr.mxu0 0.0
    %3384 = vmatpush1.msra.mxu0 0.0
    %3385 = vmatprep.subr.mxu0 0.0
    %3386 = vmatpush1.msra.mxu0 0.0
    %3387 = vmatprep.subr.mxu0 0.0
    %3388 = vmatpush1.msra.mxu0 0.0
    %3389 = vmatprep.subr.mxu0 0.0
    %3390 = vmatpush1.msra.mxu0 0.0
    %3391 = vmatprep.subr.mxu0 0.0
    %3392 = vmatpush1.msra.mxu0 0.0
    %3393 = vmatprep.subr.mxu0 0.0
    %3394 = vmatpush1.msra.mxu0 0.0
    %3395 = vmatprep.subr.mxu0 0.0
    %3396 = vmatpush1.msra.mxu0 0.0
    %3397 = vmatprep.subr.mxu0 0.0
    %3398 = vmatpush1.msra.mxu0 0.0
    %3399 = vmatprep.subr.mxu0 0.0
    %3400 = vmatpush1.msra.mxu0 0.0
    %3401 = vmatprep.mubr.f32.mxu0 0.0
    %v3402 = vand.u32 %v2944, 4294901760
    %3403 = vmatmul.mubr.f32.gmra.mrb[0].mxu0 %v3402
    %v3404 = vpop.f32.mrb[0].mxu0
    %v3405 = vadd.f32 %v3309, %v3404
    %v3406 = vpop.f32.mrb[0].mxu0
    %v3407 = vadd.f32 %v3311, %v3406
    %3408 = vdwg.mxu0
    %v3409 = vand.u32 %v105, 4294901760
    %3410 = vmatprep.subr.mxu0 %v3409
    %v3411 = vand.u32 %v104, 4294901760
    %3412 = vmatpush1.msra.mxu0 %v3411
    %v3413 = vand.u32 %v107, 4294901760
    %3414 = vmatprep.subr.mxu0 %v3413
    %v3415 = vand.u32 %v106, 4294901760
    %3416 = vmatpush1.msra.mxu0 %v3415
    %v3417 = vand.u32 %v109, 4294901760
    %3418 = vmatprep.subr.mxu0 %v3417
    %v3419 = vand.u32 %v108, 4294901760
    %3420 = vmatpush1.msra.mxu0 %v3419
    %v3421 = vand.u32 %v111, 4294901760
    %3422 = vmatprep.subr.mxu0 %v3421
    %v3423 = vand.u32 %v110, 4294901760
    %3424 = vmatpush1.msra.mxu0 %v3423
    %3425 = vmatprep.subr.mxu0 0.0
    %3426 = vmatpush1.msra.mxu0 0.0
    %3427 = vmatprep.subr.mxu0 0.0
    %3428 = vmatpush1.msra.mxu0 0.0
    %3429 = vmatprep.subr.mxu0 0.0
    %3430 = vmatpush1.msra.mxu0 0.0
    %3431 = vmatprep.subr.mxu0 0.0
    %3432 = vmatpush1.msra.mxu0 0.0
    %3433 = vmatprep.subr.mxu0 0.0
    %3434 = vmatpush1.msra.mxu0 0.0
    %3435 = vmatprep.subr.mxu0 0.0
    %3436 = vmatpush1.msra.mxu0 0.0
    %3437 = vmatprep.subr.mxu0 0.0
    %3438 = vmatpush1.msra.mxu0 0.0
    %3439 = vmatprep.subr.mxu0 0.0
    %3440 = vmatpush1.msra.mxu0 0.0
    %3441 = vmatprep.subr.mxu0 0.0
    %3442 = vmatpush1.msra.mxu0 0.0
    %3443 = vmatprep.subr.mxu0 0.0
    %3444 = vmatpush1.msra.mxu0 0.0
    %3445 = vmatprep.subr.mxu0 0.0
    %3446 = vmatpush1.msra.mxu0 0.0
    %3447 = vmatprep.subr.mxu0 0.0
    %3448 = vmatpush1.msra.mxu0 0.0
    %3449 = vmatprep.subr.mxu0 0.0
    %3450 = vmatpush1.msra.mxu0 0.0
    %3451 = vmatprep.subr.mxu0 0.0
    %3452 = vmatpush1.msra.mxu0 0.0
    %3453 = vmatprep.subr.mxu0 0.0
    %3454 = vmatpush1.msra.mxu0 0.0
    %3455 = vmatprep.subr.mxu0 0.0
    %3456 = vmatpush1.msra.mxu0 0.0
    %3457 = vmatprep.subr.mxu0 0.0
    %3458 = vmatpush1.msra.mxu0 0.0
    %3459 = vmatprep.subr.mxu0 0.0
    %3460 = vmatpush1.msra.mxu0 0.0
    %3461 = vmatprep.subr.mxu0 0.0
    %3462 = vmatpush1.msra.mxu0 0.0
    %3463 = vmatprep.subr.mxu0 0.0
    %3464 = vmatpush1.msra.mxu0 0.0
    %3465 = vmatprep.subr.mxu0 0.0
    %3466 = vmatpush1.msra.mxu0 0.0
    %3467 = vmatprep.subr.mxu0 0.0
    %3468 = vmatpush1.msra.mxu0 0.0
    %3469 = vmatprep.subr.mxu0 0.0
    %3470 = vmatpush1.msra.mxu0 0.0
    %3471 = vmatprep.subr.mxu0 0.0
    %3472 = vmatpush1.msra.mxu0 0.0
    %3473 = vmatprep.subr.mxu0 0.0
    %3474 = vmatpush1.msra.mxu0 0.0
    %3475 = vmatprep.subr.mxu0 0.0
    %3476 = vmatpush1.msra.mxu0 0.0
    %3477 = vmatprep.subr.mxu0 0.0
    %3478 = vmatpush1.msra.mxu0 0.0
    %3479 = vmatprep.subr.mxu0 0.0
    %3480 = vmatpush1.msra.mxu0 0.0
    %3481 = vmatprep.mubr.f32.mxu0 0.0
    %v3482 = vand.u32 %v2944, 4294901760
    %3483 = vmatmul.mubr.f32.gmra.mrb[0].mxu0 %v3482
    %v3484 = vpop.f32.mrb[0].mxu0
    %v3485 = vadd.f32 %v3405, %v3484
    %v3486 = vpop.f32.mrb[0].mxu0
    %v3487 = vadd.f32 %v3407, %v3486
    %3488 = vdwg.mxu0
    %v3489 = vadd.f32 %v3487, %v2897
    %v3490 = vmul.f32 %v2902, %v2909
    %v3491 = vmul.f32 %v2907, %v3489
    %v3492 = vadd.f32 %v3490, %v3491
    %v3493 = vadd.f32 %v2295, %v3485
    %v3494 = vmul.f32 %v2305, %v2913
    %v3495 = vmul.f32 %v2310, %v3493
    %v3496 = vadd.f32 %v3494, %v3495
    %3498 = vrot.lane.b32.xlu0 %v3496, 96
    %v3499 = vpop.permute.xlu0 %3498
    %v3501 = vadd.f32 %v3496, %v3499
    %3502 = vrot.lane.b32.xlu0 %v3496, 64
    %v3503 = vpop.permute.xlu0 %3502
    %v3505 = vadd.f32 %v3501, %v3503
    %3506 = vrot.lane.b32.xlu0 %v3496, 32
    %v3507 = vpop.permute.xlu0 %3506
    %v3509 = vadd.f32 %v3505, %v3507
    %v3510 = vmul.f32 %v2329, %v2938
    %v3511 = vmul.f32 %v2334, %v3509
    %v3512 = vadd.f32 %v3510, %v3511
    %v3513 = vmul.f32 %v2942, 0.5
    %v3514 = vsub.f32 %v3512, %v3513
    %v3515 = vsel %vm61, 1, 0
    %v3516 = vlaneseq
    %v3517 = vshrl.u32 %v3516, 7
    %v3518 = vsub.s32 0, %v3517
    %v3519 = vrot.slane %v3515, %v3518
    %vm3520 = vcmp.eq.s32.totalorder %v3519, 1
    %v3521 = vsel %vm3520, %v3514, %v2938
    %vm3522 = vcmp.gt.f32.partialorder %v3521, 0.5
    %vm3523 = vmand %vm3522, %vm3520
    %v3524 = vsel %vm3523, 1, 0
    %v3525 = vcvt.s32.f32 %v3524
    %v3527 = vsel %vm113, %v3525, 0
    %v3529 = vand.u32 %v105, 4294901760
    %3530 = vmatprep.subr.mxu0 %v3529
    %v3531 = vand.u32 %v104, 4294901760
    %3532 = vmatpush1.msra.mxu0 %v3531
    %v3533 = vand.u32 %v107, 4294901760
    %3534 = vmatprep.subr.mxu0 %v3533
    %v3535 = vand.u32 %v106, 4294901760
    %3536 = vmatpush1.msra.mxu0 %v3535
    %v3537 = vand.u32 %v109, 4294901760
    %3538 = vmatprep.subr.mxu0 %v3537
    %v3539 = vand.u32 %v108, 4294901760
    %3540 = vmatpush1.msra.mxu0 %v3539
    %v3541 = vand.u32 %v111, 4294901760
    %3542 = vmatprep.subr.mxu0 %v3541
    %v3543 = vand.u32 %v110, 4294901760
    %3544 = vmatpush1.msra.mxu0 %v3543
    %3545 = vmatprep.subr.mxu0 0.0
    %3546 = vmatpush1.msra.mxu0 0.0
    %3547 = vmatprep.subr.mxu0 0.0
    %3548 = vmatpush1.msra.mxu0 0.0
    %3549 = vmatprep.subr.mxu0 0.0
    %3550 = vmatpush1.msra.mxu0 0.0
    %3551 = vmatprep.subr.mxu0 0.0
    %3552 = vmatpush1.msra.mxu0 0.0
    %3553 = vmatprep.subr.mxu0 0.0
    %3554 = vmatpush1.msra.mxu0 0.0
    %3555 = vmatprep.subr.mxu0 0.0
    %3556 = vmatpush1.msra.mxu0 0.0
    %3557 = vmatprep.subr.mxu0 0.0
    %3558 = vmatpush1.msra.mxu0 0.0
    %3559 = vmatprep.subr.mxu0 0.0
    %3560 = vmatpush1.msra.mxu0 0.0
    %3561 = vmatprep.subr.mxu0 0.0
    %3562 = vmatpush1.msra.mxu0 0.0
    %3563 = vmatprep.subr.mxu0 0.0
    %3564 = vmatpush1.msra.mxu0 0.0
    %3565 = vmatprep.subr.mxu0 0.0
    %3566 = vmatpush1.msra.mxu0 0.0
    %3567 = vmatprep.subr.mxu0 0.0
    %3568 = vmatpush1.msra.mxu0 0.0
    %3569 = vmatprep.subr.mxu0 0.0
    %3570 = vmatpush1.msra.mxu0 0.0
    %3571 = vmatprep.subr.mxu0 0.0
    %3572 = vmatpush1.msra.mxu0 0.0
    %3573 = vmatprep.subr.mxu0 0.0
    %3574 = vmatpush1.msra.mxu0 0.0
    %3575 = vmatprep.subr.mxu0 0.0
    %3576 = vmatpush1.msra.mxu0 0.0
    %3577 = vmatprep.subr.mxu0 0.0
    %3578 = vmatpush1.msra.mxu0 0.0
    %3579 = vmatprep.subr.mxu0 0.0
    %3580 = vmatpush1.msra.mxu0 0.0
    %3581 = vmatprep.subr.mxu0 0.0
    %3582 = vmatpush1.msra.mxu0 0.0
    %3583 = vmatprep.subr.mxu0 0.0
    %3584 = vmatpush1.msra.mxu0 0.0
    %3585 = vmatprep.subr.mxu0 0.0
    %3586 = vmatpush1.msra.mxu0 0.0
    %3587 = vmatprep.subr.mxu0 0.0
    %3588 = vmatpush1.msra.mxu0 0.0
    %3589 = vmatprep.subr.mxu0 0.0
    %3590 = vmatpush1.msra.mxu0 0.0
    %3591 = vmatprep.subr.mxu0 0.0
    %3592 = vmatpush1.msra.mxu0 0.0
    %3593 = vmatprep.subr.mxu0 0.0
    %3594 = vmatpush1.msra.mxu0 0.0
    %3595 = vmatprep.subr.mxu0 0.0
    %3596 = vmatpush1.msra.mxu0 0.0
    %3597 = vmatprep.subr.mxu0 0.0
    %3598 = vmatpush1.msra.mxu0 0.0
    %3599 = vmatprep.subr.mxu0 0.0
    %3600 = vmatpush1.msra.mxu0 0.0
    %3601 = vmatprep.mubr.f32.mxu0 0.0
    %v3602 = vand.u32 %v3527, 4294901760
    %v3603 = vsub.f32 %v3527, %v3602
    %v3604 = vand.u32 %v3603, 4294901760
    %v3605 = vsub.f32 %v3603, %v3604
    %v3606 = vand.u32 %v3605, 4294901760
    %3607 = vmatmul.mubr.f32.gmra.mrb[0].mxu0 %v3606
    %v3608 = vpop.f32.mrb[0].mxu0
    %v3609 = vadd.f32 0.0, %v3608
    %v3610 = vpop.f32.mrb[0].mxu0
    %v3611 = vadd.f32 0.0, %v3610
    %3612 = vdwg.mxu0
    %v3613 = vand.u32 %v105, 4294901760
    %v3614 = vsub.f32 %v105, %v3613
    %v3615 = vand.u32 %v3614, 4294901760
    %v3616 = vsub.f32 %v3614, %v3615
    %v3617 = vand.u32 %v3616, 4294901760
    %3618 = vmatprep.subr.mxu0 %v3617
    %v3619 = vand.u32 %v104, 4294901760
    %v3620 = vsub.f32 %v104, %v3619
    %v3621 = vand.u32 %v3620, 4294901760
    %v3622 = vsub.f32 %v3620, %v3621
    %v3623 = vand.u32 %v3622, 4294901760
    %3624 = vmatpush1.msra.mxu0 %v3623
    %v3625 = vand.u32 %v107, 4294901760
    %v3626 = vsub.f32 %v107, %v3625
    %v3627 = vand.u32 %v3626, 4294901760
    %v3628 = vsub.f32 %v3626, %v3627
    %v3629 = vand.u32 %v3628, 4294901760
    %3630 = vmatprep.subr.mxu0 %v3629
    %v3631 = vand.u32 %v106, 4294901760
    %v3632 = vsub.f32 %v106, %v3631
    %v3633 = vand.u32 %v3632, 4294901760
    %v3634 = vsub.f32 %v3632, %v3633
    %v3635 = vand.u32 %v3634, 4294901760
    %3636 = vmatpush1.msra.mxu0 %v3635
    %v3637 = vand.u32 %v109, 4294901760
    %v3638 = vsub.f32 %v109, %v3637
    %v3639 = vand.u32 %v3638, 4294901760
    %v3640 = vsub.f32 %v3638, %v3639
    %v3641 = vand.u32 %v3640, 4294901760
    %3642 = vmatprep.subr.mxu0 %v3641
    %v3643 = vand.u32 %v108, 4294901760
    %v3644 = vsub.f32 %v108, %v3643
    %v3645 = vand.u32 %v3644, 4294901760
    %v3646 = vsub.f32 %v3644, %v3645
    %v3647 = vand.u32 %v3646, 4294901760
    %3648 = vmatpush1.msra.mxu0 %v3647
    %v3649 = vand.u32 %v111, 4294901760
    %v3650 = vsub.f32 %v111, %v3649
    %v3651 = vand.u32 %v3650, 4294901760
    %v3652 = vsub.f32 %v3650, %v3651
    %v3653 = vand.u32 %v3652, 4294901760
    %3654 = vmatprep.subr.mxu0 %v3653
    %v3655 = vand.u32 %v110, 4294901760
    %v3656 = vsub.f32 %v110, %v3655
    %v3657 = vand.u32 %v3656, 4294901760
    %v3658 = vsub.f32 %v3656, %v3657
    %v3659 = vand.u32 %v3658, 4294901760
    %3660 = vmatpush1.msra.mxu0 %v3659
    %3661 = vmatprep.subr.mxu0 0.0
    %3662 = vmatpush1.msra.mxu0 0.0
    %3663 = vmatprep.subr.mxu0 0.0
    %3664 = vmatpush1.msra.mxu0 0.0
    %3665 = vmatprep.subr.mxu0 0.0
    %3666 = vmatpush1.msra.mxu0 0.0
    %3667 = vmatprep.subr.mxu0 0.0
    %3668 = vmatpush1.msra.mxu0 0.0
    %3669 = vmatprep.subr.mxu0 0.0
    %3670 = vmatpush1.msra.mxu0 0.0
    %3671 = vmatprep.subr.mxu0 0.0
    %3672 = vmatpush1.msra.mxu0 0.0
    %3673 = vmatprep.subr.mxu0 0.0
    %3674 = vmatpush1.msra.mxu0 0.0
    %3675 = vmatprep.subr.mxu0 0.0
    %3676 = vmatpush1.msra.mxu0 0.0
    %3677 = vmatprep.subr.mxu0 0.0
    %3678 = vmatpush1.msra.mxu0 0.0
    %3679 = vmatprep.subr.mxu0 0.0
    %3680 = vmatpush1.msra.mxu0 0.0
    %3681 = vmatprep.subr.mxu0 0.0
    %3682 = vmatpush1.msra.mxu0 0.0
    %3683 = vmatprep.subr.mxu0 0.0
    %3684 = vmatpush1.msra.mxu0 0.0
    %3685 = vmatprep.subr.mxu0 0.0
    %3686 = vmatpush1.msra.mxu0 0.0
    %3687 = vmatprep.subr.mxu0 0.0
    %3688 = vmatpush1.msra.mxu0 0.0
    %3689 = vmatprep.subr.mxu0 0.0
    %3690 = vmatpush1.msra.mxu0 0.0
    %3691 = vmatprep.subr.mxu0 0.0
    %3692 = vmatpush1.msra.mxu0 0.0
    %3693 = vmatprep.subr.mxu0 0.0
    %3694 = vmatpush1.msra.mxu0 0.0
    %3695 = vmatprep.subr.mxu0 0.0
    %3696 = vmatpush1.msra.mxu0 0.0
    %3697 = vmatprep.subr.mxu0 0.0
    %3698 = vmatpush1.msra.mxu0 0.0
    %3699 = vmatprep.subr.mxu0 0.0
    %3700 = vmatpush1.msra.mxu0 0.0
    %3701 = vmatprep.subr.mxu0 0.0
    %3702 = vmatpush1.msra.mxu0 0.0
    %3703 = vmatprep.subr.mxu0 0.0
    %3704 = vmatpush1.msra.mxu0 0.0
    %3705 = vmatprep.subr.mxu0 0.0
    %3706 = vmatpush1.msra.mxu0 0.0
    %3707 = vmatprep.subr.mxu0 0.0
    %3708 = vmatpush1.msra.mxu0 0.0
    %3709 = vmatprep.subr.mxu0 0.0
    %3710 = vmatpush1.msra.mxu0 0.0
    %3711 = vmatprep.subr.mxu0 0.0
    %3712 = vmatpush1.msra.mxu0 0.0
    %3713 = vmatprep.subr.mxu0 0.0
    %3714 = vmatpush1.msra.mxu0 0.0
    %3715 = vmatprep.subr.mxu0 0.0
    %3716 = vmatpush1.msra.mxu0 0.0
    %3717 = vmatprep.mubr.f32.mxu0 0.0
    %v3718 = vand.u32 %v3527, 4294901760
    %3719 = vmatmul.mubr.f32.gmra.mrb[0].mxu0 %v3718
    %v3720 = vpop.f32.mrb[0].mxu0
    %v3721 = vadd.f32 %v3609, %v3720
    %v3722 = vpop.f32.mrb[0].mxu0
    %v3723 = vadd.f32 %v3611, %v3722
    %3724 = vdwg.mxu0
    %v3725 = vand.u32 %v105, 4294901760
    %v3726 = vsub.f32 %v105, %v3725
    %3727 = vmatprep.subr.mxu0 %v3726
    %v3728 = vand.u32 %v104, 4294901760
    %v3729 = vsub.f32 %v104, %v3728
    %3730 = vmatpush1.msra.mxu0 %v3729
    %v3731 = vand.u32 %v107, 4294901760
    %v3732 = vsub.f32 %v107, %v3731
    %3733 = vmatprep.subr.mxu0 %v3732
    %v3734 = vand.u32 %v106, 4294901760
    %v3735 = vsub.f32 %v106, %v3734
    %3736 = vmatpush1.msra.mxu0 %v3735
    %v3737 = vand.u32 %v109, 4294901760
    %v3738 = vsub.f32 %v109, %v3737
    %3739 = vmatprep.subr.mxu0 %v3738
    %v3740 = vand.u32 %v108, 4294901760
    %v3741 = vsub.f32 %v108, %v3740
    %3742 = vmatpush1.msra.mxu0 %v3741
    %v3743 = vand.u32 %v111, 4294901760
    %v3744 = vsub.f32 %v111, %v3743
    %3745 = vmatprep.subr.mxu0 %v3744
    %v3746 = vand.u32 %v110, 4294901760
    %v3747 = vsub.f32 %v110, %v3746
    %3748 = vmatpush1.msra.mxu0 %v3747
    %3749 = vmatprep.subr.mxu0 0.0
    %3750 = vmatpush1.msra.mxu0 0.0
    %3751 = vmatprep.subr.mxu0 0.0
    %3752 = vmatpush1.msra.mxu0 0.0
    %3753 = vmatprep.subr.mxu0 0.0
    %3754 = vmatpush1.msra.mxu0 0.0
    %3755 = vmatprep.subr.mxu0 0.0
    %3756 = vmatpush1.msra.mxu0 0.0
    %3757 = vmatprep.subr.mxu0 0.0
    %3758 = vmatpush1.msra.mxu0 0.0
    %3759 = vmatprep.subr.mxu0 0.0
    %3760 = vmatpush1.msra.mxu0 0.0
    %3761 = vmatprep.subr.mxu0 0.0
    %3762 = vmatpush1.msra.mxu0 0.0
    %3763 = vmatprep.subr.mxu0 0.0
    %3764 = vmatpush1.msra.mxu0 0.0
    %3765 = vmatprep.subr.mxu0 0.0
    %3766 = vmatpush1.msra.mxu0 0.0
    %3767 = vmatprep.subr.mxu0 0.0
    %3768 = vmatpush1.msra.mxu0 0.0
    %3769 = vmatprep.subr.mxu0 0.0
    %3770 = vmatpush1.msra.mxu0 0.0
    %3771 = vmatprep.subr.mxu0 0.0
    %3772 = vmatpush1.msra.mxu0 0.0
    %3773 = vmatprep.subr.mxu0 0.0
    %3774 = vmatpush1.msra.mxu0 0.0
    %3775 = vmatprep.subr.mxu0 0.0
    %3776 = vmatpush1.msra.mxu0 0.0
    %3777 = vmatprep.subr.mxu0 0.0
    %3778 = vmatpush1.msra.mxu0 0.0
    %3779 = vmatprep.subr.mxu0 0.0
    %3780 = vmatpush1.msra.mxu0 0.0
    %3781 = vmatprep.subr.mxu0 0.0
    %3782 = vmatpush1.msra.mxu0 0.0
    %3783 = vmatprep.subr.mxu0 0.0
    %3784 = vmatpush1.msra.mxu0 0.0
    %3785 = vmatprep.subr.mxu0 0.0
    %3786 = vmatpush1.msra.mxu0 0.0
    %3787 = vmatprep.subr.mxu0 0.0
    %3788 = vmatpush1.msra.mxu0 0.0
    %3789 = vmatprep.subr.mxu0 0.0
    %3790 = vmatpush1.msra.mxu0 0.0
    %3791 = vmatprep.subr.mxu0 0.0
    %3792 = vmatpush1.msra.mxu0 0.0
    %3793 = vmatprep.subr.mxu0 0.0
    %3794 = vmatpush1.msra.mxu0 0.0
    %3795 = vmatprep.subr.mxu0 0.0
    %3796 = vmatpush1.msra.mxu0 0.0
    %3797 = vmatprep.subr.mxu0 0.0
    %3798 = vmatpush1.msra.mxu0 0.0
    %3799 = vmatprep.subr.mxu0 0.0
    %3800 = vmatpush1.msra.mxu0 0.0
    %3801 = vmatprep.subr.mxu0 0.0
    %3802 = vmatpush1.msra.mxu0 0.0
    %3803 = vmatprep.subr.mxu0 0.0
    %3804 = vmatpush1.msra.mxu0 0.0
    %3805 = vmatprep.mubr.f32.mxu0 0.0
    %v3806 = vand.u32 %v3527, 4294901760
    %v3807 = vsub.f32 %v3527, %v3806
    %3808 = vmatmul.mubr.f32.gmra.mrb[0].mxu0 %v3807
    %v3809 = vpop.f32.mrb[0].mxu0
    %v3810 = vadd.f32 %v3721, %v3809
    %v3811 = vpop.f32.mrb[0].mxu0
    %v3812 = vadd.f32 %v3723, %v3811
    %3813 = vdwg.mxu0
    %v3814 = vand.u32 %v105, 4294901760
    %3815 = vmatprep.subr.mxu0 %v3814
    %v3816 = vand.u32 %v104, 4294901760
    %3817 = vmatpush1.msra.mxu0 %v3816
    %v3818 = vand.u32 %v107, 4294901760
    %3819 = vmatprep.subr.mxu0 %v3818
    %v3820 = vand.u32 %v106, 4294901760
    %3821 = vmatpush1.msra.mxu0 %v3820
    %v3822 = vand.u32 %v109, 4294901760
    %3823 = vmatprep.subr.mxu0 %v3822
    %v3824 = vand.u32 %v108, 4294901760
    %3825 = vmatpush1.msra.mxu0 %v3824
    %v3826 = vand.u32 %v111, 4294901760
    %3827 = vmatprep.subr.mxu0 %v3826
    %v3828 = vand.u32 %v110, 4294901760
    %3829 = vmatpush1.msra.mxu0 %v3828
    %3830 = vmatprep.subr.mxu0 0.0
    %3831 = vmatpush1.msra.mxu0 0.0
    %3832 = vmatprep.subr.mxu0 0.0
    %3833 = vmatpush1.msra.mxu0 0.0
    %3834 = vmatprep.subr.mxu0 0.0
    %3835 = vmatpush1.msra.mxu0 0.0
    %3836 = vmatprep.subr.mxu0 0.0
    %3837 = vmatpush1.msra.mxu0 0.0
    %3838 = vmatprep.subr.mxu0 0.0
    %3839 = vmatpush1.msra.mxu0 0.0
    %3840 = vmatprep.subr.mxu0 0.0
    %3841 = vmatpush1.msra.mxu0 0.0
    %3842 = vmatprep.subr.mxu0 0.0
    %3843 = vmatpush1.msra.mxu0 0.0
    %3844 = vmatprep.subr.mxu0 0.0
    %3845 = vmatpush1.msra.mxu0 0.0
    %3846 = vmatprep.subr.mxu0 0.0
    %3847 = vmatpush1.msra.mxu0 0.0
    %3848 = vmatprep.subr.mxu0 0.0
    %3849 = vmatpush1.msra.mxu0 0.0
    %3850 = vmatprep.subr.mxu0 0.0
    %3851 = vmatpush1.msra.mxu0 0.0
    %3852 = vmatprep.subr.mxu0 0.0
    %3853 = vmatpush1.msra.mxu0 0.0
    %3854 = vmatprep.subr.mxu0 0.0
    %3855 = vmatpush1.msra.mxu0 0.0
    %3856 = vmatprep.subr.mxu0 0.0
    %3857 = vmatpush1.msra.mxu0 0.0
    %3858 = vmatprep.subr.mxu0 0.0
    %3859 = vmatpush1.msra.mxu0 0.0
    %3860 = vmatprep.subr.mxu0 0.0
    %3861 = vmatpush1.msra.mxu0 0.0
    %3862 = vmatprep.subr.mxu0 0.0
    %3863 = vmatpush1.msra.mxu0 0.0
    %3864 = vmatprep.subr.mxu0 0.0
    %3865 = vmatpush1.msra.mxu0 0.0
    %3866 = vmatprep.subr.mxu0 0.0
    %3867 = vmatpush1.msra.mxu0 0.0
    %3868 = vmatprep.subr.mxu0 0.0
    %3869 = vmatpush1.msra.mxu0 0.0
    %3870 = vmatprep.subr.mxu0 0.0
    %3871 = vmatpush1.msra.mxu0 0.0
    %3872 = vmatprep.subr.mxu0 0.0
    %3873 = vmatpush1.msra.mxu0 0.0
    %3874 = vmatprep.subr.mxu0 0.0
    %3875 = vmatpush1.msra.mxu0 0.0
    %3876 = vmatprep.subr.mxu0 0.0
    %3877 = vmatpush1.msra.mxu0 0.0
    %3878 = vmatprep.subr.mxu0 0.0
    %3879 = vmatpush1.msra.mxu0 0.0
    %3880 = vmatprep.subr.mxu0 0.0
    %3881 = vmatpush1.msra.mxu0 0.0
    %3882 = vmatprep.subr.mxu0 0.0
    %3883 = vmatpush1.msra.mxu0 0.0
    %3884 = vmatprep.subr.mxu0 0.0
    %3885 = vmatpush1.msra.mxu0 0.0
    %3886 = vmatprep.mubr.f32.mxu0 0.0
    %v3887 = vand.u32 %v3527, 4294901760
    %v3888 = vsub.f32 %v3527, %v3887
    %v3889 = vand.u32 %v3888, 4294901760
    %3890 = vmatmul.mubr.f32.gmra.mrb[0].mxu0 %v3889
    %v3891 = vpop.f32.mrb[0].mxu0
    %v3892 = vadd.f32 %v3810, %v3891
    %v3893 = vpop.f32.mrb[0].mxu0
    %v3894 = vadd.f32 %v3812, %v3893
    %3895 = vdwg.mxu0
    %v3896 = vand.u32 %v105, 4294901760
    %v3897 = vsub.f32 %v105, %v3896
    %v3898 = vand.u32 %v3897, 4294901760
    %3899 = vmatprep.subr.mxu0 %v3898
    %v3900 = vand.u32 %v104, 4294901760
    %v3901 = vsub.f32 %v104, %v3900
    %v3902 = vand.u32 %v3901, 4294901760
    %3903 = vmatpush1.msra.mxu0 %v3902
    %v3904 = vand.u32 %v107, 4294901760
    %v3905 = vsub.f32 %v107, %v3904
    %v3906 = vand.u32 %v3905, 4294901760
    %3907 = vmatprep.subr.mxu0 %v3906
    %v3908 = vand.u32 %v106, 4294901760
    %v3909 = vsub.f32 %v106, %v3908
    %v3910 = vand.u32 %v3909, 4294901760
    %3911 = vmatpush1.msra.mxu0 %v3910
    %v3912 = vand.u32 %v109, 4294901760
    %v3913 = vsub.f32 %v109, %v3912
    %v3914 = vand.u32 %v3913, 4294901760
    %3915 = vmatprep.subr.mxu0 %v3914
    %v3916 = vand.u32 %v108, 4294901760
    %v3917 = vsub.f32 %v108, %v3916
    %v3918 = vand.u32 %v3917, 4294901760
    %3919 = vmatpush1.msra.mxu0 %v3918
    %v3920 = vand.u32 %v111, 4294901760
    %v3921 = vsub.f32 %v111, %v3920
    %v3922 = vand.u32 %v3921, 4294901760
    %3923 = vmatprep.subr.mxu0 %v3922
    %v3924 = vand.u32 %v110, 4294901760
    %v3925 = vsub.f32 %v110, %v3924
    %v3926 = vand.u32 %v3925, 4294901760
    %3927 = vmatpush1.msra.mxu0 %v3926
    %3928 = vmatprep.subr.mxu0 0.0
    %3929 = vmatpush1.msra.mxu0 0.0
    %3930 = vmatprep.subr.mxu0 0.0
    %3931 = vmatpush1.msra.mxu0 0.0
    %3932 = vmatprep.subr.mxu0 0.0
    %3933 = vmatpush1.msra.mxu0 0.0
    %3934 = vmatprep.subr.mxu0 0.0
    %3935 = vmatpush1.msra.mxu0 0.0
    %3936 = vmatprep.subr.mxu0 0.0
    %3937 = vmatpush1.msra.mxu0 0.0
    %3938 = vmatprep.subr.mxu0 0.0
    %3939 = vmatpush1.msra.mxu0 0.0
    %3940 = vmatprep.subr.mxu0 0.0
    %3941 = vmatpush1.msra.mxu0 0.0
    %3942 = vmatprep.subr.mxu0 0.0
    %3943 = vmatpush1.msra.mxu0 0.0
    %3944 = vmatprep.subr.mxu0 0.0
    %3945 = vmatpush1.msra.mxu0 0.0
    %3946 = vmatprep.subr.mxu0 0.0
    %3947 = vmatpush1.msra.mxu0 0.0
    %3948 = vmatprep.subr.mxu0 0.0
    %3949 = vmatpush1.msra.mxu0 0.0
    %3950 = vmatprep.subr.mxu0 0.0
    %3951 = vmatpush1.msra.mxu0 0.0
    %3952 = vmatprep.subr.mxu0 0.0
    %3953 = vmatpush1.msra.mxu0 0.0
    %3954 = vmatprep.subr.mxu0 0.0
    %3955 = vmatpush1.msra.mxu0 0.0
    %3956 = vmatprep.subr.mxu0 0.0
    %3957 = vmatpush1.msra.mxu0 0.0
    %3958 = vmatprep.subr.mxu0 0.0
    %3959 = vmatpush1.msra.mxu0 0.0
    %3960 = vmatprep.subr.mxu0 0.0
    %3961 = vmatpush1.msra.mxu0 0.0
    %3962 = vmatprep.subr.mxu0 0.0
    %3963 = vmatpush1.msra.mxu0 0.0
    %3964 = vmatprep.subr.mxu0 0.0
    %3965 = vmatpush1.msra.mxu0 0.0
    %3966 = vmatprep.subr.mxu0 0.0
    %3967 = vmatpush1.msra.mxu0 0.0
    %3968 = vmatprep.subr.mxu0 0.0
    %3969 = vmatpush1.msra.mxu0 0.0
    %3970 = vmatprep.subr.mxu0 0.0
    %3971 = vmatpush1.msra.mxu0 0.0
    %3972 = vmatprep.subr.mxu0 0.0
    %3973 = vmatpush1.msra.mxu0 0.0
    %3974 = vmatprep.subr.mxu0 0.0
    %3975 = vmatpush1.msra.mxu0 0.0
    %3976 = vmatprep.subr.mxu0 0.0
    %3977 = vmatpush1.msra.mxu0 0.0
    %3978 = vmatprep.subr.mxu0 0.0
    %3979 = vmatpush1.msra.mxu0 0.0
    %3980 = vmatprep.subr.mxu0 0.0
    %3981 = vmatpush1.msra.mxu0 0.0
    %3982 = vmatprep.subr.mxu0 0.0
    %3983 = vmatpush1.msra.mxu0 0.0
    %3984 = vmatprep.mubr.f32.mxu0 0.0
    %v3985 = vand.u32 %v3527, 4294901760
    %3986 = vmatmul.mubr.f32.gmra.mrb[0].mxu0 %v3985
    %v3987 = vpop.f32.mrb[0].mxu0
    %v3988 = vadd.f32 %v3892, %v3987
    %v3989 = vpop.f32.mrb[0].mxu0
    %v3990 = vadd.f32 %v3894, %v3989
    %3991 = vdwg.mxu0
    %v3992 = vand.u32 %v105, 4294901760
    %3993 = vmatprep.subr.mxu0 %v3992
    %v3994 = vand.u32 %v104, 4294901760
    %3995 = vmatpush1.msra.mxu0 %v3994
    %v3996 = vand.u32 %v107, 4294901760
    %3997 = vmatprep.subr.mxu0 %v3996
    %v3998 = vand.u32 %v106, 4294901760
    %3999 = vmatpush1.msra.mxu0 %v3998
    %v4000 = vand.u32 %v109, 4294901760
    %4001 = vmatprep.subr.mxu0 %v4000
    %v4002 = vand.u32 %v108, 4294901760
    %4003 = vmatpush1.msra.mxu0 %v4002
    %v4004 = vand.u32 %v111, 4294901760
    %4005 = vmatprep.subr.mxu0 %v4004
    %v4006 = vand.u32 %v110, 4294901760
    %4007 = vmatpush1.msra.mxu0 %v4006
    %4008 = vmatprep.subr.mxu0 0.0
    %4009 = vmatpush1.msra.mxu0 0.0
    %4010 = vmatprep.subr.mxu0 0.0
    %4011 = vmatpush1.msra.mxu0 0.0
    %4012 = vmatprep.subr.mxu0 0.0
    %4013 = vmatpush1.msra.mxu0 0.0
    %4014 = vmatprep.subr.mxu0 0.0
    %4015 = vmatpush1.msra.mxu0 0.0
    %4016 = vmatprep.subr.mxu0 0.0
    %4017 = vmatpush1.msra.mxu0 0.0
    %4018 = vmatprep.subr.mxu0 0.0
    %4019 = vmatpush1.msra.mxu0 0.0
    %4020 = vmatprep.subr.mxu0 0.0
    %4021 = vmatpush1.msra.mxu0 0.0
    %4022 = vmatprep.subr.mxu0 0.0
    %4023 = vmatpush1.msra.mxu0 0.0
    %4024 = vmatprep.subr.mxu0 0.0
    %4025 = vmatpush1.msra.mxu0 0.0
    %4026 = vmatprep.subr.mxu0 0.0
    %4027 = vmatpush1.msra.mxu0 0.0
    %4028 = vmatprep.subr.mxu0 0.0
    %4029 = vmatpush1.msra.mxu0 0.0
    %4030 = vmatprep.subr.mxu0 0.0
    %4031 = vmatpush1.msra.mxu0 0.0
    %4032 = vmatprep.subr.mxu0 0.0
    %4033 = vmatpush1.msra.mxu0 0.0
    %4034 = vmatprep.subr.mxu0 0.0
    %4035 = vmatpush1.msra.mxu0 0.0
    %4036 = vmatprep.subr.mxu0 0.0
    %4037 = vmatpush1.msra.mxu0 0.0
    %4038 = vmatprep.subr.mxu0 0.0
    %4039 = vmatpush1.msra.mxu0 0.0
    %4040 = vmatprep.subr.mxu0 0.0
    %4041 = vmatpush1.msra.mxu0 0.0
    %4042 = vmatprep.subr.mxu0 0.0
    %4043 = vmatpush1.msra.mxu0 0.0
    %4044 = vmatprep.subr.mxu0 0.0
    %4045 = vmatpush1.msra.mxu0 0.0
    %4046 = vmatprep.subr.mxu0 0.0
    %4047 = vmatpush1.msra.mxu0 0.0
    %4048 = vmatprep.subr.mxu0 0.0
    %4049 = vmatpush1.msra.mxu0 0.0
    %4050 = vmatprep.subr.mxu0 0.0
    %4051 = vmatpush1.msra.mxu0 0.0
    %4052 = vmatprep.subr.mxu0 0.0
    %4053 = vmatpush1.msra.mxu0 0.0
    %4054 = vmatprep.subr.mxu0 0.0
    %4055 = vmatpush1.msra.mxu0 0.0
    %4056 = vmatprep.subr.mxu0 0.0
    %4057 = vmatpush1.msra.mxu0 0.0
    %4058 = vmatprep.subr.mxu0 0.0
    %4059 = vmatpush1.msra.mxu0 0.0
    %4060 = vmatprep.subr.mxu0 0.0
    %4061 = vmatpush1.msra.mxu0 0.0
    %4062 = vmatprep.subr.mxu0 0.0
    %4063 = vmatpush1.msra.mxu0 0.0
    %4064 = vmatprep.mubr.f32.mxu0 0.0
    %v4065 = vand.u32 %v3527, 4294901760
    %4066 = vmatmul.mubr.f32.gmra.mrb[0].mxu0 %v4065
    %v4067 = vpop.f32.mrb[0].mxu0
    %v4068 = vadd.f32 %v3988, %v4067
    %v4069 = vpop.f32.mrb[0].mxu0
    %v4070 = vadd.f32 %v3990, %v4069
    %4071 = vdwg.mxu0
    %v4072 = vadd.f32 %v4070, %v2897
    %v4073 = vmul.f32 %v2902, %v3492
    %v4074 = vmul.f32 %v2907, %v4072
    %v4075 = vadd.f32 %v4073, %v4074
    %v4076 = vadd.f32 %v2296, %v4068
    %v4077 = vmul.f32 %v2305, %v3496
    %v4078 = vmul.f32 %v2310, %v4076
    %v4079 = vadd.f32 %v4077, %v4078
    %4081 = vrot.lane.b32.xlu0 %v4079, 96
    %v4082 = vpop.permute.xlu0 %4081
    %v4084 = vadd.f32 %v4079, %v4082
    %4085 = vrot.lane.b32.xlu0 %v4079, 64
    %v4086 = vpop.permute.xlu0 %4085
    %v4088 = vadd.f32 %v4084, %v4086
    %4089 = vrot.lane.b32.xlu0 %v4079, 32
    %v4090 = vpop.permute.xlu0 %4089
    %v4092 = vadd.f32 %v4088, %v4090
    %v4093 = vmul.f32 %v2329, %v3521
    %v4094 = vmul.f32 %v2334, %v4092
    %v4095 = vadd.f32 %v4093, %v4094
    %v4096 = vmul.f32 %v3525, 0.5
    %v4097 = vsub.f32 %v4095, %v4096
    %v4098 = vsel %vm63, 1, 0
    %v4099 = vlaneseq
    %v4100 = vshrl.u32 %v4099, 7
    %v4101 = vsub.s32 0, %v4100
    %v4102 = vrot.slane %v4098, %v4101
    %vm4103 = vcmp.eq.s32.totalorder %v4102, 1
    %v4104 = vsel %vm4103, %v4097, %v3521
    %vm4105 = vcmp.gt.f32.partialorder %v4104, 0.5
    %vm4106 = vmand %vm4105, %vm4103
    %v4107 = vsel %vm4106, 1, 0
    %v4108 = vcvt.s32.f32 %v4107
    %v4110 = vsel %vm113, %v4108, 0
    %v4112 = vand.u32 %v105, 4294901760
    %4113 = vmatprep.subr.mxu0 %v4112
    %v4114 = vand.u32 %v104, 4294901760
    %4115 = vmatpush1.msra.mxu0 %v4114
    %v4116 = vand.u32 %v107, 4294901760
    %4117 = vmatprep.subr.mxu0 %v4116
    %v4118 = vand.u32 %v106, 4294901760
    %4119 = vmatpush1.msra.mxu0 %v4118
    %v4120 = vand.u32 %v109, 4294901760
    %4121 = vmatprep.subr.mxu0 %v4120
    %v4122 = vand.u32 %v108, 4294901760
    %4123 = vmatpush1.msra.mxu0 %v4122
    %v4124 = vand.u32 %v111, 4294901760
    %4125 = vmatprep.subr.mxu0 %v4124
    %v4126 = vand.u32 %v110, 4294901760
    %4127 = vmatpush1.msra.mxu0 %v4126
    %4128 = vmatprep.subr.mxu0 0.0
    %4129 = vmatpush1.msra.mxu0 0.0
    %4130 = vmatprep.subr.mxu0 0.0
    %4131 = vmatpush1.msra.mxu0 0.0
    %4132 = vmatprep.subr.mxu0 0.0
    %4133 = vmatpush1.msra.mxu0 0.0
    %4134 = vmatprep.subr.mxu0 0.0
    %4135 = vmatpush1.msra.mxu0 0.0
    %4136 = vmatprep.subr.mxu0 0.0
    %4137 = vmatpush1.msra.mxu0 0.0
    %4138 = vmatprep.subr.mxu0 0.0
    %4139 = vmatpush1.msra.mxu0 0.0
    %4140 = vmatprep.subr.mxu0 0.0
    %4141 = vmatpush1.msra.mxu0 0.0
    %4142 = vmatprep.subr.mxu0 0.0
    %4143 = vmatpush1.msra.mxu0 0.0
    %4144 = vmatprep.subr.mxu0 0.0
    %4145 = vmatpush1.msra.mxu0 0.0
    %4146 = vmatprep.subr.mxu0 0.0
    %4147 = vmatpush1.msra.mxu0 0.0
    %4148 = vmatprep.subr.mxu0 0.0
    %4149 = vmatpush1.msra.mxu0 0.0
    %4150 = vmatprep.subr.mxu0 0.0
    %4151 = vmatpush1.msra.mxu0 0.0
    %4152 = vmatprep.subr.mxu0 0.0
    %4153 = vmatpush1.msra.mxu0 0.0
    %4154 = vmatprep.subr.mxu0 0.0
    %4155 = vmatpush1.msra.mxu0 0.0
    %4156 = vmatprep.subr.mxu0 0.0
    %4157 = vmatpush1.msra.mxu0 0.0
    %4158 = vmatprep.subr.mxu0 0.0
    %4159 = vmatpush1.msra.mxu0 0.0
    %4160 = vmatprep.subr.mxu0 0.0
    %4161 = vmatpush1.msra.mxu0 0.0
    %4162 = vmatprep.subr.mxu0 0.0
    %4163 = vmatpush1.msra.mxu0 0.0
    %4164 = vmatprep.subr.mxu0 0.0
    %4165 = vmatpush1.msra.mxu0 0.0
    %4166 = vmatprep.subr.mxu0 0.0
    %4167 = vmatpush1.msra.mxu0 0.0
    %4168 = vmatprep.subr.mxu0 0.0
    %4169 = vmatpush1.msra.mxu0 0.0
    %4170 = vmatprep.subr.mxu0 0.0
    %4171 = vmatpush1.msra.mxu0 0.0
    %4172 = vmatprep.subr.mxu0 0.0
    %4173 = vmatpush1.msra.mxu0 0.0
    %4174 = vmatprep.subr.mxu0 0.0
    %4175 = vmatpush1.msra.mxu0 0.0
    %4176 = vmatprep.subr.mxu0 0.0
    %4177 = vmatpush1.msra.mxu0 0.0
    %4178 = vmatprep.subr.mxu0 0.0
    %4179 = vmatpush1.msra.mxu0 0.0
    %4180 = vmatprep.subr.mxu0 0.0
    %4181 = vmatpush1.msra.mxu0 0.0
    %4182 = vmatprep.subr.mxu0 0.0
    %4183 = vmatpush1.msra.mxu0 0.0
    %4184 = vmatprep.mubr.f32.mxu0 0.0
    %v4185 = vand.u32 %v4110, 4294901760
    %v4186 = vsub.f32 %v4110, %v4185
    %v4187 = vand.u32 %v4186, 4294901760
    %v4188 = vsub.f32 %v4186, %v4187
    %v4189 = vand.u32 %v4188, 4294901760
    %4190 = vmatmul.mubr.f32.gmra.mrb[0].mxu0 %v4189
    %v4191 = vpop.f32.mrb[0].mxu0
    %v4192 = vadd.f32 0.0, %v4191
    %v4193 = vpop.f32.mrb[0].mxu0
    %v4194 = vadd.f32 0.0, %v4193
    %4195 = vdwg.mxu0
    %v4196 = vand.u32 %v105, 4294901760
    %v4197 = vsub.f32 %v105, %v4196
    %v4198 = vand.u32 %v4197, 4294901760
    %v4199 = vsub.f32 %v4197, %v4198
    %v4200 = vand.u32 %v4199, 4294901760
    %4201 = vmatprep.subr.mxu0 %v4200
    %v4202 = vand.u32 %v104, 4294901760
    %v4203 = vsub.f32 %v104, %v4202
    %v4204 = vand.u32 %v4203, 4294901760
    %v4205 = vsub.f32 %v4203, %v4204
    %v4206 = vand.u32 %v4205, 4294901760
    %4207 = vmatpush1.msra.mxu0 %v4206
    %v4208 = vand.u32 %v107, 4294901760
    %v4209 = vsub.f32 %v107, %v4208
    %v4210 = vand.u32 %v4209, 4294901760
    %v4211 = vsub.f32 %v4209, %v4210
    %v4212 = vand.u32 %v4211, 4294901760
    %4213 = vmatprep.subr.mxu0 %v4212
    %v4214 = vand.u32 %v106, 4294901760
    %v4215 = vsub.f32 %v106, %v4214
    %v4216 = vand.u32 %v4215, 4294901760
    %v4217 = vsub.f32 %v4215, %v4216
    %v4218 = vand.u32 %v4217, 4294901760
    %4219 = vmatpush1.msra.mxu0 %v4218
    %v4220 = vand.u32 %v109, 4294901760
    %v4221 = vsub.f32 %v109, %v4220
    %v4222 = vand.u32 %v4221, 4294901760
    %v4223 = vsub.f32 %v4221, %v4222
    %v4224 = vand.u32 %v4223, 4294901760
    %4225 = vmatprep.subr.mxu0 %v4224
    %v4226 = vand.u32 %v108, 4294901760
    %v4227 = vsub.f32 %v108, %v4226
    %v4228 = vand.u32 %v4227, 4294901760
    %v4229 = vsub.f32 %v4227, %v4228
    %v4230 = vand.u32 %v4229, 4294901760
    %4231 = vmatpush1.msra.mxu0 %v4230
    %v4232 = vand.u32 %v111, 4294901760
    %v4233 = vsub.f32 %v111, %v4232
    %v4234 = vand.u32 %v4233, 4294901760
    %v4235 = vsub.f32 %v4233, %v4234
    %v4236 = vand.u32 %v4235, 4294901760
    %4237 = vmatprep.subr.mxu0 %v4236
    %v4238 = vand.u32 %v110, 4294901760
    %v4239 = vsub.f32 %v110, %v4238
    %v4240 = vand.u32 %v4239, 4294901760
    %v4241 = vsub.f32 %v4239, %v4240
    %v4242 = vand.u32 %v4241, 4294901760
    %4243 = vmatpush1.msra.mxu0 %v4242
    %4244 = vmatprep.subr.mxu0 0.0
    %4245 = vmatpush1.msra.mxu0 0.0
    %4246 = vmatprep.subr.mxu0 0.0
    %4247 = vmatpush1.msra.mxu0 0.0
    %4248 = vmatprep.subr.mxu0 0.0
    %4249 = vmatpush1.msra.mxu0 0.0
    %4250 = vmatprep.subr.mxu0 0.0
    %4251 = vmatpush1.msra.mxu0 0.0
    %4252 = vmatprep.subr.mxu0 0.0
    %4253 = vmatpush1.msra.mxu0 0.0
    %4254 = vmatprep.subr.mxu0 0.0
    %4255 = vmatpush1.msra.mxu0 0.0
    %4256 = vmatprep.subr.mxu0 0.0
    %4257 = vmatpush1.msra.mxu0 0.0
    %4258 = vmatprep.subr.mxu0 0.0
    %4259 = vmatpush1.msra.mxu0 0.0
    %4260 = vmatprep.subr.mxu0 0.0
    %4261 = vmatpush1.msra.mxu0 0.0
    %4262 = vmatprep.subr.mxu0 0.0
    %4263 = vmatpush1.msra.mxu0 0.0
    %4264 = vmatprep.subr.mxu0 0.0
    %4265 = vmatpush1.msra.mxu0 0.0
    %4266 = vmatprep.subr.mxu0 0.0
    %4267 = vmatpush1.msra.mxu0 0.0
    %4268 = vmatprep.subr.mxu0 0.0
    %4269 = vmatpush1.msra.mxu0 0.0
    %4270 = vmatprep.subr.mxu0 0.0
    %4271 = vmatpush1.msra.mxu0 0.0
    %4272 = vmatprep.subr.mxu0 0.0
    %4273 = vmatpush1.msra.mxu0 0.0
    %4274 = vmatprep.subr.mxu0 0.0
    %4275 = vmatpush1.msra.mxu0 0.0
    %4276 = vmatprep.subr.mxu0 0.0
    %4277 = vmatpush1.msra.mxu0 0.0
    %4278 = vmatprep.subr.mxu0 0.0
    %4279 = vmatpush1.msra.mxu0 0.0
    %4280 = vmatprep.subr.mxu0 0.0
    %4281 = vmatpush1.msra.mxu0 0.0
    %4282 = vmatprep.subr.mxu0 0.0
    %4283 = vmatpush1.msra.mxu0 0.0
    %4284 = vmatprep.subr.mxu0 0.0
    %4285 = vmatpush1.msra.mxu0 0.0
    %4286 = vmatprep.subr.mxu0 0.0
    %4287 = vmatpush1.msra.mxu0 0.0
    %4288 = vmatprep.subr.mxu0 0.0
    %4289 = vmatpush1.msra.mxu0 0.0
    %4290 = vmatprep.subr.mxu0 0.0
    %4291 = vmatpush1.msra.mxu0 0.0
    %4292 = vmatprep.subr.mxu0 0.0
    %4293 = vmatpush1.msra.mxu0 0.0
    %4294 = vmatprep.subr.mxu0 0.0
    %4295 = vmatpush1.msra.mxu0 0.0
    %4296 = vmatprep.subr.mxu0 0.0
    %4297 = vmatpush1.msra.mxu0 0.0
    %4298 = vmatprep.subr.mxu0 0.0
    %4299 = vmatpush1.msra.mxu0 0.0
    %4300 = vmatprep.mubr.f32.mxu0 0.0
    %v4301 = vand.u32 %v4110, 4294901760
    %4302 = vmatmul.mubr.f32.gmra.mrb[0].mxu0 %v4301
    %v4303 = vpop.f32.mrb[0].mxu0
    %v4304 = vadd.f32 %v4192, %v4303
    %v4305 = vpop.f32.mrb[0].mxu0
    %v4306 = vadd.f32 %v4194, %v4305
    %4307 = vdwg.mxu0
    %v4308 = vand.u32 %v105, 4294901760
    %v4309 = vsub.f32 %v105, %v4308
    %4310 = vmatprep.subr.mxu0 %v4309
    %v4311 = vand.u32 %v104, 4294901760
    %v4312 = vsub.f32 %v104, %v4311
    %4313 = vmatpush1.msra.mxu0 %v4312
    %v4314 = vand.u32 %v107, 4294901760
    %v4315 = vsub.f32 %v107, %v4314
    %4316 = vmatprep.subr.mxu0 %v4315
    %v4317 = vand.u32 %v106, 4294901760
    %v4318 = vsub.f32 %v106, %v4317
    %4319 = vmatpush1.msra.mxu0 %v4318
    %v4320 = vand.u32 %v109, 4294901760
    %v4321 = vsub.f32 %v109, %v4320
    %4322 = vmatprep.subr.mxu0 %v4321
    %v4323 = vand.u32 %v108, 4294901760
    %v4324 = vsub.f32 %v108, %v4323
    %4325 = vmatpush1.msra.mxu0 %v4324
    %v4326 = vand.u32 %v111, 4294901760
    %v4327 = vsub.f32 %v111, %v4326
    %4328 = vmatprep.subr.mxu0 %v4327
    %v4329 = vand.u32 %v110, 4294901760
    %v4330 = vsub.f32 %v110, %v4329
    %4331 = vmatpush1.msra.mxu0 %v4330
    %4332 = vmatprep.subr.mxu0 0.0
    %4333 = vmatpush1.msra.mxu0 0.0
    %4334 = vmatprep.subr.mxu0 0.0
    %4335 = vmatpush1.msra.mxu0 0.0
    %4336 = vmatprep.subr.mxu0 0.0
    %4337 = vmatpush1.msra.mxu0 0.0
    %4338 = vmatprep.subr.mxu0 0.0
    %4339 = vmatpush1.msra.mxu0 0.0
    %4340 = vmatprep.subr.mxu0 0.0
    %4341 = vmatpush1.msra.mxu0 0.0
    %4342 = vmatprep.subr.mxu0 0.0
    %4343 = vmatpush1.msra.mxu0 0.0
    %4344 = vmatprep.subr.mxu0 0.0
    %4345 = vmatpush1.msra.mxu0 0.0
    %4346 = vmatprep.subr.mxu0 0.0
    %4347 = vmatpush1.msra.mxu0 0.0
    %4348 = vmatprep.subr.mxu0 0.0
    %4349 = vmatpush1.msra.mxu0 0.0
    %4350 = vmatprep.subr.mxu0 0.0
    %4351 = vmatpush1.msra.mxu0 0.0
    %4352 = vmatprep.subr.mxu0 0.0
    %4353 = vmatpush1.msra.mxu0 0.0
    %4354 = vmatprep.subr.mxu0 0.0
    %4355 = vmatpush1.msra.mxu0 0.0
    %4356 = vmatprep.subr.mxu0 0.0
    %4357 = vmatpush1.msra.mxu0 0.0
    %4358 = vmatprep.subr.mxu0 0.0
    %4359 = vmatpush1.msra.mxu0 0.0
    %4360 = vmatprep.subr.mxu0 0.0
    %4361 = vmatpush1.msra.mxu0 0.0
    %4362 = vmatprep.subr.mxu0 0.0
    %4363 = vmatpush1.msra.mxu0 0.0
    %4364 = vmatprep.subr.mxu0 0.0
    %4365 = vmatpush1.msra.mxu0 0.0
    %4366 = vmatprep.subr.mxu0 0.0
    %4367 = vmatpush1.msra.mxu0 0.0
    %4368 = vmatprep.subr.mxu0 0.0
    %4369 = vmatpush1.msra.mxu0 0.0
    %4370 = vmatprep.subr.mxu0 0.0
    %4371 = vmatpush1.msra.mxu0 0.0
    %4372 = vmatprep.subr.mxu0 0.0
    %4373 = vmatpush1.msra.mxu0 0.0
    %4374 = vmatprep.subr.mxu0 0.0
    %4375 = vmatpush1.msra.mxu0 0.0
    %4376 = vmatprep.subr.mxu0 0.0
    %4377 = vmatpush1.msra.mxu0 0.0
    %4378 = vmatprep.subr.mxu0 0.0
    %4379 = vmatpush1.msra.mxu0 0.0
    %4380 = vmatprep.subr.mxu0 0.0
    %4381 = vmatpush1.msra.mxu0 0.0
    %4382 = vmatprep.subr.mxu0 0.0
    %4383 = vmatpush1.msra.mxu0 0.0
    %4384 = vmatprep.subr.mxu0 0.0
    %4385 = vmatpush1.msra.mxu0 0.0
    %4386 = vmatprep.subr.mxu0 0.0
    %4387 = vmatpush1.msra.mxu0 0.0
    %4388 = vmatprep.mubr.f32.mxu0 0.0
    %v4389 = vand.u32 %v4110, 4294901760
    %v4390 = vsub.f32 %v4110, %v4389
    %4391 = vmatmul.mubr.f32.gmra.mrb[0].mxu0 %v4390
    %v4392 = vpop.f32.mrb[0].mxu0
    %v4393 = vadd.f32 %v4304, %v4392
    %v4394 = vpop.f32.mrb[0].mxu0
    %v4395 = vadd.f32 %v4306, %v4394
    %4396 = vdwg.mxu0
    %v4397 = vand.u32 %v105, 4294901760
    %4398 = vmatprep.subr.mxu0 %v4397
    %v4399 = vand.u32 %v104, 4294901760
    %4400 = vmatpush1.msra.mxu0 %v4399
    %v4401 = vand.u32 %v107, 4294901760
    %4402 = vmatprep.subr.mxu0 %v4401
    %v4403 = vand.u32 %v106, 4294901760
    %4404 = vmatpush1.msra.mxu0 %v4403
    %v4405 = vand.u32 %v109, 4294901760
    %4406 = vmatprep.subr.mxu0 %v4405
    %v4407 = vand.u32 %v108, 4294901760
    %4408 = vmatpush1.msra.mxu0 %v4407
    %v4409 = vand.u32 %v111, 4294901760
    %4410 = vmatprep.subr.mxu0 %v4409
    %v4411 = vand.u32 %v110, 4294901760
    %4412 = vmatpush1.msra.mxu0 %v4411
    %4413 = vmatprep.subr.mxu0 0.0
    %4414 = vmatpush1.msra.mxu0 0.0
    %4415 = vmatprep.subr.mxu0 0.0
    %4416 = vmatpush1.msra.mxu0 0.0
    %4417 = vmatprep.subr.mxu0 0.0
    %4418 = vmatpush1.msra.mxu0 0.0
    %4419 = vmatprep.subr.mxu0 0.0
    %4420 = vmatpush1.msra.mxu0 0.0
    %4421 = vmatprep.subr.mxu0 0.0
    %4422 = vmatpush1.msra.mxu0 0.0
    %4423 = vmatprep.subr.mxu0 0.0
    %4424 = vmatpush1.msra.mxu0 0.0
    %4425 = vmatprep.subr.mxu0 0.0
    %4426 = vmatpush1.msra.mxu0 0.0
    %4427 = vmatprep.subr.mxu0 0.0
    %4428 = vmatpush1.msra.mxu0 0.0
    %4429 = vmatprep.subr.mxu0 0.0
    %4430 = vmatpush1.msra.mxu0 0.0
    %4431 = vmatprep.subr.mxu0 0.0
    %4432 = vmatpush1.msra.mxu0 0.0
    %4433 = vmatprep.subr.mxu0 0.0
    %4434 = vmatpush1.msra.mxu0 0.0
    %4435 = vmatprep.subr.mxu0 0.0
    %4436 = vmatpush1.msra.mxu0 0.0
    %4437 = vmatprep.subr.mxu0 0.0
    %4438 = vmatpush1.msra.mxu0 0.0
    %4439 = vmatprep.subr.mxu0 0.0
    %4440 = vmatpush1.msra.mxu0 0.0
    %4441 = vmatprep.subr.mxu0 0.0
    %4442 = vmatpush1.msra.mxu0 0.0
    %4443 = vmatprep.subr.mxu0 0.0
    %4444 = vmatpush1.msra.mxu0 0.0
    %4445 = vmatprep.subr.mxu0 0.0
    %4446 = vmatpush1.msra.mxu0 0.0
    %4447 = vmatprep.subr.mxu0 0.0
    %4448 = vmatpush1.msra.mxu0 0.0
    %4449 = vmatprep.subr.mxu0 0.0
    %4450 = vmatpush1.msra.mxu0 0.0
    %4451 = vmatprep.subr.mxu0 0.0
    %4452 = vmatpush1.msra.mxu0 0.0
    %4453 = vmatprep.subr.mxu0 0.0
    %4454 = vmatpush1.msra.mxu0 0.0
    %4455 = vmatprep.subr.mxu0 0.0
    %4456 = vmatpush1.msra.mxu0 0.0
    %4457 = vmatprep.subr.mxu0 0.0
    %4458 = vmatpush1.msra.mxu0 0.0
    %4459 = vmatprep.subr.mxu0 0.0
    %4460 = vmatpush1.msra.mxu0 0.0
    %4461 = vmatprep.subr.mxu0 0.0
    %4462 = vmatpush1.msra.mxu0 0.0
    %4463 = vmatprep.subr.mxu0 0.0
    %4464 = vmatpush1.msra.mxu0 0.0
    %4465 = vmatprep.subr.mxu0 0.0
    %4466 = vmatpush1.msra.mxu0 0.0
    %4467 = vmatprep.subr.mxu0 0.0
    %4468 = vmatpush1.msra.mxu0 0.0
    %4469 = vmatprep.mubr.f32.mxu0 0.0
    %v4470 = vand.u32 %v4110, 4294901760
    %v4471 = vsub.f32 %v4110, %v4470
    %v4472 = vand.u32 %v4471, 4294901760
    %4473 = vmatmul.mubr.f32.gmra.mrb[0].mxu0 %v4472
    %v4474 = vpop.f32.mrb[0].mxu0
    %v4475 = vadd.f32 %v4393, %v4474
    %v4476 = vpop.f32.mrb[0].mxu0
    %v4477 = vadd.f32 %v4395, %v4476
    %4478 = vdwg.mxu0
    %v4479 = vand.u32 %v105, 4294901760
    %v4480 = vsub.f32 %v105, %v4479
    %v4481 = vand.u32 %v4480, 4294901760
    %4482 = vmatprep.subr.mxu0 %v4481
    %v4483 = vand.u32 %v104, 4294901760
    %v4484 = vsub.f32 %v104, %v4483
    %v4485 = vand.u32 %v4484, 4294901760
    %4486 = vmatpush1.msra.mxu0 %v4485
    %v4487 = vand.u32 %v107, 4294901760
    %v4488 = vsub.f32 %v107, %v4487
    %v4489 = vand.u32 %v4488, 4294901760
    %4490 = vmatprep.subr.mxu0 %v4489
    %v4491 = vand.u32 %v106, 4294901760
    %v4492 = vsub.f32 %v106, %v4491
    %v4493 = vand.u32 %v4492, 4294901760
    %4494 = vmatpush1.msra.mxu0 %v4493
    %v4495 = vand.u32 %v109, 4294901760
    %v4496 = vsub.f32 %v109, %v4495
    %v4497 = vand.u32 %v4496, 4294901760
    %4498 = vmatprep.subr.mxu0 %v4497
    %v4499 = vand.u32 %v108, 4294901760
    %v4500 = vsub.f32 %v108, %v4499
    %v4501 = vand.u32 %v4500, 4294901760
    %4502 = vmatpush1.msra.mxu0 %v4501
    %v4503 = vand.u32 %v111, 4294901760
    %v4504 = vsub.f32 %v111, %v4503
    %v4505 = vand.u32 %v4504, 4294901760
    %4506 = vmatprep.subr.mxu0 %v4505
    %v4507 = vand.u32 %v110, 4294901760
    %v4508 = vsub.f32 %v110, %v4507
    %v4509 = vand.u32 %v4508, 4294901760
    %4510 = vmatpush1.msra.mxu0 %v4509
    %4511 = vmatprep.subr.mxu0 0.0
    %4512 = vmatpush1.msra.mxu0 0.0
    %4513 = vmatprep.subr.mxu0 0.0
    %4514 = vmatpush1.msra.mxu0 0.0
    %4515 = vmatprep.subr.mxu0 0.0
    %4516 = vmatpush1.msra.mxu0 0.0
    %4517 = vmatprep.subr.mxu0 0.0
    %4518 = vmatpush1.msra.mxu0 0.0
    %4519 = vmatprep.subr.mxu0 0.0
    %4520 = vmatpush1.msra.mxu0 0.0
    %4521 = vmatprep.subr.mxu0 0.0
    %4522 = vmatpush1.msra.mxu0 0.0
    %4523 = vmatprep.subr.mxu0 0.0
    %4524 = vmatpush1.msra.mxu0 0.0
    %4525 = vmatprep.subr.mxu0 0.0
    %4526 = vmatpush1.msra.mxu0 0.0
    %4527 = vmatprep.subr.mxu0 0.0
    %4528 = vmatpush1.msra.mxu0 0.0
    %4529 = vmatprep.subr.mxu0 0.0
    %4530 = vmatpush1.msra.mxu0 0.0
    %4531 = vmatprep.subr.mxu0 0.0
    %4532 = vmatpush1.msra.mxu0 0.0
    %4533 = vmatprep.subr.mxu0 0.0
    %4534 = vmatpush1.msra.mxu0 0.0
    %4535 = vmatprep.subr.mxu0 0.0
    %4536 = vmatpush1.msra.mxu0 0.0
    %4537 = vmatprep.subr.mxu0 0.0
    %4538 = vmatpush1.msra.mxu0 0.0
    %4539 = vmatprep.subr.mxu0 0.0
    %4540 = vmatpush1.msra.mxu0 0.0
    %4541 = vmatprep.subr.mxu0 0.0
    %4542 = vmatpush1.msra.mxu0 0.0
    %4543 = vmatprep.subr.mxu0 0.0
    %4544 = vmatpush1.msra.mxu0 0.0
    %4545 = vmatprep.subr.mxu0 0.0
    %4546 = vmatpush1.msra.mxu0 0.0
    %4547 = vmatprep.subr.mxu0 0.0
    %4548 = vmatpush1.msra.mxu0 0.0
    %4549 = vmatprep.subr.mxu0 0.0
    %4550 = vmatpush1.msra.mxu0 0.0
    %4551 = vmatprep.subr.mxu0 0.0
    %4552 = vmatpush1.msra.mxu0 0.0
    %4553 = vmatprep.subr.mxu0 0.0
    %4554 = vmatpush1.msra.mxu0 0.0
    %4555 = vmatprep.subr.mxu0 0.0
    %4556 = vmatpush1.msra.mxu0 0.0
    %4557 = vmatprep.subr.mxu0 0.0
    %4558 = vmatpush1.msra.mxu0 0.0
    %4559 = vmatprep.subr.mxu0 0.0
    %4560 = vmatpush1.msra.mxu0 0.0
    %4561 = vmatprep.subr.mxu0 0.0
    %4562 = vmatpush1.msra.mxu0 0.0
    %4563 = vmatprep.subr.mxu0 0.0
    %4564 = vmatpush1.msra.mxu0 0.0
    %4565 = vmatprep.subr.mxu0 0.0
    %4566 = vmatpush1.msra.mxu0 0.0
    %4567 = vmatprep.mubr.f32.mxu0 0.0
    %v4568 = vand.u32 %v4110, 4294901760
    %4569 = vmatmul.mubr.f32.gmra.mrb[0].mxu0 %v4568
    %v4570 = vpop.f32.mrb[0].mxu0
    %v4571 = vadd.f32 %v4475, %v4570
    %v4572 = vpop.f32.mrb[0].mxu0
    %v4573 = vadd.f32 %v4477, %v4572
    %4574 = vdwg.mxu0
    %v4575 = vand.u32 %v105, 4294901760
    %4576 = vmatprep.subr.mxu0 %v4575
    %v4577 = vand.u32 %v104, 4294901760
    %4578 = vmatpush1.msra.mxu0 %v4577
    %v4579 = vand.u32 %v107, 4294901760
    %4580 = vmatprep.subr.mxu0 %v4579
    %v4581 = vand.u32 %v106, 4294901760
    %4582 = vmatpush1.msra.mxu0 %v4581
    %v4583 = vand.u32 %v109, 4294901760
    %4584 = vmatprep.subr.mxu0 %v4583
    %v4585 = vand.u32 %v108, 4294901760
    %4586 = vmatpush1.msra.mxu0 %v4585
    %v4587 = vand.u32 %v111, 4294901760
    %4588 = vmatprep.subr.mxu0 %v4587
    %v4589 = vand.u32 %v110, 4294901760
    %4590 = vmatpush1.msra.mxu0 %v4589
    %4591 = vmatprep.subr.mxu0 0.0
    %4592 = vmatpush1.msra.mxu0 0.0
    %4593 = vmatprep.subr.mxu0 0.0
    %4594 = vmatpush1.msra.mxu0 0.0
    %4595 = vmatprep.subr.mxu0 0.0
    %4596 = vmatpush1.msra.mxu0 0.0
    %4597 = vmatprep.subr.mxu0 0.0
    %4598 = vmatpush1.msra.mxu0 0.0
    %4599 = vmatprep.subr.mxu0 0.0
    %4600 = vmatpush1.msra.mxu0 0.0
    %4601 = vmatprep.subr.mxu0 0.0
    %4602 = vmatpush1.msra.mxu0 0.0
    %4603 = vmatprep.subr.mxu0 0.0
    %4604 = vmatpush1.msra.mxu0 0.0
    %4605 = vmatprep.subr.mxu0 0.0
    %4606 = vmatpush1.msra.mxu0 0.0
    %4607 = vmatprep.subr.mxu0 0.0
    %4608 = vmatpush1.msra.mxu0 0.0
    %4609 = vmatprep.subr.mxu0 0.0
    %4610 = vmatpush1.msra.mxu0 0.0
    %4611 = vmatprep.subr.mxu0 0.0
    %4612 = vmatpush1.msra.mxu0 0.0
    %4613 = vmatprep.subr.mxu0 0.0
    %4614 = vmatpush1.msra.mxu0 0.0
    %4615 = vmatprep.subr.mxu0 0.0
    %4616 = vmatpush1.msra.mxu0 0.0
    %4617 = vmatprep.subr.mxu0 0.0
    %4618 = vmatpush1.msra.mxu0 0.0
    %4619 = vmatprep.subr.mxu0 0.0
    %4620 = vmatpush1.msra.mxu0 0.0
    %4621 = vmatprep.subr.mxu0 0.0
    %4622 = vmatpush1.msra.mxu0 0.0
    %4623 = vmatprep.subr.mxu0 0.0
    %4624 = vmatpush1.msra.mxu0 0.0
    %4625 = vmatprep.subr.mxu0 0.0
    %4626 = vmatpush1.msra.mxu0 0.0
    %4627 = vmatprep.subr.mxu0 0.0
    %4628 = vmatpush1.msra.mxu0 0.0
    %4629 = vmatprep.subr.mxu0 0.0
    %4630 = vmatpush1.msra.mxu0 0.0
    %4631 = vmatprep.subr.mxu0 0.0
    %4632 = vmatpush1.msra.mxu0 0.0
    %4633 = vmatprep.subr.mxu0 0.0
    %4634 = vmatpush1.msra.mxu0 0.0
    %4635 = vmatprep.subr.mxu0 0.0
    %4636 = vmatpush1.msra.mxu0 0.0
    %4637 = vmatprep.subr.mxu0 0.0
    %4638 = vmatpush1.msra.mxu0 0.0
    %4639 = vmatprep.subr.mxu0 0.0
    %4640 = vmatpush1.msra.mxu0 0.0
    %4641 = vmatprep.subr.mxu0 0.0
    %4642 = vmatpush1.msra.mxu0 0.0
    %4643 = vmatprep.subr.mxu0 0.0
    %4644 = vmatpush1.msra.mxu0 0.0
    %4645 = vmatprep.subr.mxu0 0.0
    %4646 = vmatpush1.msra.mxu0 0.0
    %4647 = vmatprep.mubr.f32.mxu0 0.0
    %v4648 = vand.u32 %v4110, 4294901760
    %4649 = vmatmul.mubr.f32.gmra.mrb[0].mxu0 %v4648
    %v4650 = vpop.f32.mrb[0].mxu0
    %v4651 = vadd.f32 %v4571, %v4650
    %v4652 = vpop.f32.mrb[0].mxu0
    %v4653 = vadd.f32 %v4573, %v4652
    %4654 = vdwg.mxu0
    %v4655 = vadd.f32 %v4653, %v2897
    %v4656 = vmul.f32 %v2902, %v4075
    %v4657 = vmul.f32 %v2907, %v4655
    %v4658 = vadd.f32 %v4656, %v4657
    %v4659 = vadd.f32 %v2297, %v4651
    %v4660 = vmul.f32 %v2305, %v4079
    %v4661 = vmul.f32 %v2310, %v4659
    %v4662 = vadd.f32 %v4660, %v4661
    %4664 = vrot.lane.b32.xlu0 %v4662, 96
    %v4665 = vpop.permute.xlu0 %4664
    %v4667 = vadd.f32 %v4662, %v4665
    %4668 = vrot.lane.b32.xlu0 %v4662, 64
    %v4669 = vpop.permute.xlu0 %4668
    %v4671 = vadd.f32 %v4667, %v4669
    %4672 = vrot.lane.b32.xlu0 %v4662, 32
    %v4673 = vpop.permute.xlu0 %4672
    %v4675 = vadd.f32 %v4671, %v4673
    %v4676 = vmul.f32 %v2329, %v4104
    %v4677 = vmul.f32 %v2334, %v4675
    %v4678 = vadd.f32 %v4676, %v4677
    %v4679 = vmul.f32 %v4108, 0.5
    %v4680 = vsub.f32 %v4678, %v4679
    %v4681 = vsel %vm65, 1, 0
    %v4682 = vlaneseq
    %v4683 = vshrl.u32 %v4682, 7
    %v4684 = vsub.s32 0, %v4683
    %v4685 = vrot.slane %v4681, %v4684
    %vm4686 = vcmp.eq.s32.totalorder %v4685, 1
    %v4687 = vsel %vm4686, %v4680, %v4104
    %vm4688 = vcmp.gt.f32.partialorder %v4687, 0.5
    %vm4689 = vmand %vm4688, %vm4686
    %v4690 = vsel %vm4689, 1, 0
    %v4691 = vcvt.s32.f32 %v4690
    %v4693 = vsel %vm113, %v4691, 0
    %v4695 = vand.u32 %v105, 4294901760
    %4696 = vmatprep.subr.mxu0 %v4695
    %v4697 = vand.u32 %v104, 4294901760
    %4698 = vmatpush1.msra.mxu0 %v4697
    %v4699 = vand.u32 %v107, 4294901760
    %4700 = vmatprep.subr.mxu0 %v4699
    %v4701 = vand.u32 %v106, 4294901760
    %4702 = vmatpush1.msra.mxu0 %v4701
    %v4703 = vand.u32 %v109, 4294901760
    %4704 = vmatprep.subr.mxu0 %v4703
    %v4705 = vand.u32 %v108, 4294901760
    %4706 = vmatpush1.msra.mxu0 %v4705
    %v4707 = vand.u32 %v111, 4294901760
    %4708 = vmatprep.subr.mxu0 %v4707
    %v4709 = vand.u32 %v110, 4294901760
    %4710 = vmatpush1.msra.mxu0 %v4709
    %4711 = vmatprep.subr.mxu0 0.0
    %4712 = vmatpush1.msra.mxu0 0.0
    %4713 = vmatprep.subr.mxu0 0.0
    %4714 = vmatpush1.msra.mxu0 0.0
    %4715 = vmatprep.subr.mxu0 0.0
    %4716 = vmatpush1.msra.mxu0 0.0
    %4717 = vmatprep.subr.mxu0 0.0
    %4718 = vmatpush1.msra.mxu0 0.0
    %4719 = vmatprep.subr.mxu0 0.0
    %4720 = vmatpush1.msra.mxu0 0.0
    %4721 = vmatprep.subr.mxu0 0.0
    %4722 = vmatpush1.msra.mxu0 0.0
    %4723 = vmatprep.subr.mxu0 0.0
    %4724 = vmatpush1.msra.mxu0 0.0
    %4725 = vmatprep.subr.mxu0 0.0
    %4726 = vmatpush1.msra.mxu0 0.0
    %4727 = vmatprep.subr.mxu0 0.0
    %4728 = vmatpush1.msra.mxu0 0.0
    %4729 = vmatprep.subr.mxu0 0.0
    %4730 = vmatpush1.msra.mxu0 0.0
    %4731 = vmatprep.subr.mxu0 0.0
    %4732 = vmatpush1.msra.mxu0 0.0
    %4733 = vmatprep.subr.mxu0 0.0
    %4734 = vmatpush1.msra.mxu0 0.0
    %4735 = vmatprep.subr.mxu0 0.0
    %4736 = vmatpush1.msra.mxu0 0.0
    %4737 = vmatprep.subr.mxu0 0.0
    %4738 = vmatpush1.msra.mxu0 0.0
    %4739 = vmatprep.subr.mxu0 0.0
    %4740 = vmatpush1.msra.mxu0 0.0
    %4741 = vmatprep.subr.mxu0 0.0
    %4742 = vmatpush1.msra.mxu0 0.0
    %4743 = vmatprep.subr.mxu0 0.0
    %4744 = vmatpush1.msra.mxu0 0.0
    %4745 = vmatprep.subr.mxu0 0.0
    %4746 = vmatpush1.msra.mxu0 0.0
    %4747 = vmatprep.subr.mxu0 0.0
    %4748 = vmatpush1.msra.mxu0 0.0
    %4749 = vmatprep.subr.mxu0 0.0
    %4750 = vmatpush1.msra.mxu0 0.0
    %4751 = vmatprep.subr.mxu0 0.0
    %4752 = vmatpush1.msra.mxu0 0.0
    %4753 = vmatprep.subr.mxu0 0.0
    %4754 = vmatpush1.msra.mxu0 0.0
    %4755 = vmatprep.subr.mxu0 0.0
    %4756 = vmatpush1.msra.mxu0 0.0
    %4757 = vmatprep.subr.mxu0 0.0
    %4758 = vmatpush1.msra.mxu0 0.0
    %4759 = vmatprep.subr.mxu0 0.0
    %4760 = vmatpush1.msra.mxu0 0.0
    %4761 = vmatprep.subr.mxu0 0.0
    %4762 = vmatpush1.msra.mxu0 0.0
    %4763 = vmatprep.subr.mxu0 0.0
    %4764 = vmatpush1.msra.mxu0 0.0
    %4765 = vmatprep.subr.mxu0 0.0
    %4766 = vmatpush1.msra.mxu0 0.0
    %4767 = vmatprep.mubr.f32.mxu0 0.0
    %v4768 = vand.u32 %v4693, 4294901760
    %v4769 = vsub.f32 %v4693, %v4768
    %v4770 = vand.u32 %v4769, 4294901760
    %v4771 = vsub.f32 %v4769, %v4770
    %v4772 = vand.u32 %v4771, 4294901760
    %4773 = vmatmul.mubr.f32.gmra.mrb[0].mxu0 %v4772
    %v4774 = vpop.f32.mrb[0].mxu0
    %v4775 = vadd.f32 0.0, %v4774
    %v4776 = vpop.f32.mrb[0].mxu0
    %v4777 = vadd.f32 0.0, %v4776
    %4778 = vdwg.mxu0
    %v4779 = vand.u32 %v105, 4294901760
    %v4780 = vsub.f32 %v105, %v4779
    %v4781 = vand.u32 %v4780, 4294901760
    %v4782 = vsub.f32 %v4780, %v4781
    %v4783 = vand.u32 %v4782, 4294901760
    %4784 = vmatprep.subr.mxu0 %v4783
    %v4785 = vand.u32 %v104, 4294901760
    %v4786 = vsub.f32 %v104, %v4785
    %v4787 = vand.u32 %v4786, 4294901760
    %v4788 = vsub.f32 %v4786, %v4787
    %v4789 = vand.u32 %v4788, 4294901760
    %4790 = vmatpush1.msra.mxu0 %v4789
    %v4791 = vand.u32 %v107, 4294901760
    %v4792 = vsub.f32 %v107, %v4791
    %v4793 = vand.u32 %v4792, 4294901760
    %v4794 = vsub.f32 %v4792, %v4793
    %v4795 = vand.u32 %v4794, 4294901760
    %4796 = vmatprep.subr.mxu0 %v4795
    %v4797 = vand.u32 %v106, 4294901760
    %v4798 = vsub.f32 %v106, %v4797
    %v4799 = vand.u32 %v4798, 4294901760
    %v4800 = vsub.f32 %v4798, %v4799
    %v4801 = vand.u32 %v4800, 4294901760
    %4802 = vmatpush1.msra.mxu0 %v4801
    %v4803 = vand.u32 %v109, 4294901760
    %v4804 = vsub.f32 %v109, %v4803
    %v4805 = vand.u32 %v4804, 4294901760
    %v4806 = vsub.f32 %v4804, %v4805
    %v4807 = vand.u32 %v4806, 4294901760
    %4808 = vmatprep.subr.mxu0 %v4807
    %v4809 = vand.u32 %v108, 4294901760
    %v4810 = vsub.f32 %v108, %v4809
    %v4811 = vand.u32 %v4810, 4294901760
    %v4812 = vsub.f32 %v4810, %v4811
    %v4813 = vand.u32 %v4812, 4294901760
    %4814 = vmatpush1.msra.mxu0 %v4813
    %v4815 = vand.u32 %v111, 4294901760
    %v4816 = vsub.f32 %v111, %v4815
    %v4817 = vand.u32 %v4816, 4294901760
    %v4818 = vsub.f32 %v4816, %v4817
    %v4819 = vand.u32 %v4818, 4294901760
    %4820 = vmatprep.subr.mxu0 %v4819
    %v4821 = vand.u32 %v110, 4294901760
    %v4822 = vsub.f32 %v110, %v4821
    %v4823 = vand.u32 %v4822, 4294901760
    %v4824 = vsub.f32 %v4822, %v4823
    %v4825 = vand.u32 %v4824, 4294901760
    %4826 = vmatpush1.msra.mxu0 %v4825
    %4827 = vmatprep.subr.mxu0 0.0
    %4828 = vmatpush1.msra.mxu0 0.0
    %4829 = vmatprep.subr.mxu0 0.0
    %4830 = vmatpush1.msra.mxu0 0.0
    %4831 = vmatprep.subr.mxu0 0.0
    %4832 = vmatpush1.msra.mxu0 0.0
    %4833 = vmatprep.subr.mxu0 0.0
    %4834 = vmatpush1.msra.mxu0 0.0
    %4835 = vmatprep.subr.mxu0 0.0
    %4836 = vmatpush1.msra.mxu0 0.0
    %4837 = vmatprep.subr.mxu0 0.0
    %4838 = vmatpush1.msra.mxu0 0.0
    %4839 = vmatprep.subr.mxu0 0.0
    %4840 = vmatpush1.msra.mxu0 0.0
    %4841 = vmatprep.subr.mxu0 0.0
    %4842 = vmatpush1.msra.mxu0 0.0
    %4843 = vmatprep.subr.mxu0 0.0
    %4844 = vmatpush1.msra.mxu0 0.0
    %4845 = vmatprep.subr.mxu0 0.0
    %4846 = vmatpush1.msra.mxu0 0.0
    %4847 = vmatprep.subr.mxu0 0.0
    %4848 = vmatpush1.msra.mxu0 0.0
    %4849 = vmatprep.subr.mxu0 0.0
    %4850 = vmatpush1.msra.mxu0 0.0
    %4851 = vmatprep.subr.mxu0 0.0
    %4852 = vmatpush1.msra.mxu0 0.0
    %4853 = vmatprep.subr.mxu0 0.0
    %4854 = vmatpush1.msra.mxu0 0.0
    %4855 = vmatprep.subr.mxu0 0.0
    %4856 = vmatpush1.msra.mxu0 0.0
    %4857 = vmatprep.subr.mxu0 0.0
    %4858 = vmatpush1.msra.mxu0 0.0
    %4859 = vmatprep.subr.mxu0 0.0
    %4860 = vmatpush1.msra.mxu0 0.0
    %4861 = vmatprep.subr.mxu0 0.0
    %4862 = vmatpush1.msra.mxu0 0.0
    %4863 = vmatprep.subr.mxu0 0.0
    %4864 = vmatpush1.msra.mxu0 0.0
    %4865 = vmatprep.subr.mxu0 0.0
    %4866 = vmatpush1.msra.mxu0 0.0
    %4867 = vmatprep.subr.mxu0 0.0
    %4868 = vmatpush1.msra.mxu0 0.0
    %4869 = vmatprep.subr.mxu0 0.0
    %4870 = vmatpush1.msra.mxu0 0.0
    %4871 = vmatprep.subr.mxu0 0.0
    %4872 = vmatpush1.msra.mxu0 0.0
    %4873 = vmatprep.subr.mxu0 0.0
    %4874 = vmatpush1.msra.mxu0 0.0
    %4875 = vmatprep.subr.mxu0 0.0
    %4876 = vmatpush1.msra.mxu0 0.0
    %4877 = vmatprep.subr.mxu0 0.0
    %4878 = vmatpush1.msra.mxu0 0.0
    %4879 = vmatprep.subr.mxu0 0.0
    %4880 = vmatpush1.msra.mxu0 0.0
    %4881 = vmatprep.subr.mxu0 0.0
    %4882 = vmatpush1.msra.mxu0 0.0
    %4883 = vmatprep.mubr.f32.mxu0 0.0
    %v4884 = vand.u32 %v4693, 4294901760
    %4885 = vmatmul.mubr.f32.gmra.mrb[0].mxu0 %v4884
    %v4886 = vpop.f32.mrb[0].mxu0
    %v4887 = vadd.f32 %v4775, %v4886
    %v4888 = vpop.f32.mrb[0].mxu0
    %v4889 = vadd.f32 %v4777, %v4888
    %4890 = vdwg.mxu0
    %v4891 = vand.u32 %v105, 4294901760
    %v4892 = vsub.f32 %v105, %v4891
    %4893 = vmatprep.subr.mxu0 %v4892
    %v4894 = vand.u32 %v104, 4294901760
    %v4895 = vsub.f32 %v104, %v4894
    %4896 = vmatpush1.msra.mxu0 %v4895
    %v4897 = vand.u32 %v107, 4294901760
    %v4898 = vsub.f32 %v107, %v4897
    %4899 = vmatprep.subr.mxu0 %v4898
    %v4900 = vand.u32 %v106, 4294901760
    %v4901 = vsub.f32 %v106, %v4900
    %4902 = vmatpush1.msra.mxu0 %v4901
    %v4903 = vand.u32 %v109, 4294901760
    %v4904 = vsub.f32 %v109, %v4903
    %4905 = vmatprep.subr.mxu0 %v4904
    %v4906 = vand.u32 %v108, 4294901760
    %v4907 = vsub.f32 %v108, %v4906
    %4908 = vmatpush1.msra.mxu0 %v4907
    %v4909 = vand.u32 %v111, 4294901760
    %v4910 = vsub.f32 %v111, %v4909
    %4911 = vmatprep.subr.mxu0 %v4910
    %v4912 = vand.u32 %v110, 4294901760
    %v4913 = vsub.f32 %v110, %v4912
    %4914 = vmatpush1.msra.mxu0 %v4913
    %4915 = vmatprep.subr.mxu0 0.0
    %4916 = vmatpush1.msra.mxu0 0.0
    %4917 = vmatprep.subr.mxu0 0.0
    %4918 = vmatpush1.msra.mxu0 0.0
    %4919 = vmatprep.subr.mxu0 0.0
    %4920 = vmatpush1.msra.mxu0 0.0
    %4921 = vmatprep.subr.mxu0 0.0
    %4922 = vmatpush1.msra.mxu0 0.0
    %4923 = vmatprep.subr.mxu0 0.0
    %4924 = vmatpush1.msra.mxu0 0.0
    %4925 = vmatprep.subr.mxu0 0.0
    %4926 = vmatpush1.msra.mxu0 0.0
    %4927 = vmatprep.subr.mxu0 0.0
    %4928 = vmatpush1.msra.mxu0 0.0
    %4929 = vmatprep.subr.mxu0 0.0
    %4930 = vmatpush1.msra.mxu0 0.0
    %4931 = vmatprep.subr.mxu0 0.0
    %4932 = vmatpush1.msra.mxu0 0.0
    %4933 = vmatprep.subr.mxu0 0.0
    %4934 = vmatpush1.msra.mxu0 0.0
    %4935 = vmatprep.subr.mxu0 0.0
    %4936 = vmatpush1.msra.mxu0 0.0
    %4937 = vmatprep.subr.mxu0 0.0
    %4938 = vmatpush1.msra.mxu0 0.0
    %4939 = vmatprep.subr.mxu0 0.0
    %4940 = vmatpush1.msra.mxu0 0.0
    %4941 = vmatprep.subr.mxu0 0.0
    %4942 = vmatpush1.msra.mxu0 0.0
    %4943 = vmatprep.subr.mxu0 0.0
    %4944 = vmatpush1.msra.mxu0 0.0
    %4945 = vmatprep.subr.mxu0 0.0
    %4946 = vmatpush1.msra.mxu0 0.0
    %4947 = vmatprep.subr.mxu0 0.0
    %4948 = vmatpush1.msra.mxu0 0.0
    %4949 = vmatprep.subr.mxu0 0.0
    %4950 = vmatpush1.msra.mxu0 0.0
    %4951 = vmatprep.subr.mxu0 0.0
    %4952 = vmatpush1.msra.mxu0 0.0
    %4953 = vmatprep.subr.mxu0 0.0
    %4954 = vmatpush1.msra.mxu0 0.0
    %4955 = vmatprep.subr.mxu0 0.0
    %4956 = vmatpush1.msra.mxu0 0.0
    %4957 = vmatprep.subr.mxu0 0.0
    %4958 = vmatpush1.msra.mxu0 0.0
    %4959 = vmatprep.subr.mxu0 0.0
    %4960 = vmatpush1.msra.mxu0 0.0
    %4961 = vmatprep.subr.mxu0 0.0
    %4962 = vmatpush1.msra.mxu0 0.0
    %4963 = vmatprep.subr.mxu0 0.0
    %4964 = vmatpush1.msra.mxu0 0.0
    %4965 = vmatprep.subr.mxu0 0.0
    %4966 = vmatpush1.msra.mxu0 0.0
    %4967 = vmatprep.subr.mxu0 0.0
    %4968 = vmatpush1.msra.mxu0 0.0
    %4969 = vmatprep.subr.mxu0 0.0
    %4970 = vmatpush1.msra.mxu0 0.0
    %4971 = vmatprep.mubr.f32.mxu0 0.0
    %v4972 = vand.u32 %v4693, 4294901760
    %v4973 = vsub.f32 %v4693, %v4972
    %4974 = vmatmul.mubr.f32.gmra.mrb[0].mxu0 %v4973
    %v4975 = vpop.f32.mrb[0].mxu0
    %v4976 = vadd.f32 %v4887, %v4975
    %v4977 = vpop.f32.mrb[0].mxu0
    %v4978 = vadd.f32 %v4889, %v4977
    %4979 = vdwg.mxu0
    %v4980 = vand.u32 %v105, 4294901760
    %4981 = vmatprep.subr.mxu0 %v4980
    %v4982 = vand.u32 %v104, 4294901760
    %4983 = vmatpush1.msra.mxu0 %v4982
    %v4984 = vand.u32 %v107, 4294901760
    %4985 = vmatprep.subr.mxu0 %v4984
    %v4986 = vand.u32 %v106, 4294901760
    %4987 = vmatpush1.msra.mxu0 %v4986
    %v4988 = vand.u32 %v109, 4294901760
    %4989 = vmatprep.subr.mxu0 %v4988
    %v4990 = vand.u32 %v108, 4294901760
    %4991 = vmatpush1.msra.mxu0 %v4990
    %v4992 = vand.u32 %v111, 4294901760
    %4993 = vmatprep.subr.mxu0 %v4992
    %v4994 = vand.u32 %v110, 4294901760
    %4995 = vmatpush1.msra.mxu0 %v4994
    %4996 = vmatprep.subr.mxu0 0.0
    %4997 = vmatpush1.msra.mxu0 0.0
    %4998 = vmatprep.subr.mxu0 0.0
    %4999 = vmatpush1.msra.mxu0 0.0
    %5000 = vmatprep.subr.mxu0 0.0
    %5001 = vmatpush1.msra.mxu0 0.0
    %5002 = vmatprep.subr.mxu0 0.0
    %5003 = vmatpush1.msra.mxu0 0.0
    %5004 = vmatprep.subr.mxu0 0.0
    %5005 = vmatpush1.msra.mxu0 0.0
    %5006 = vmatprep.subr.mxu0 0.0
    %5007 = vmatpush1.msra.mxu0 0.0
    %5008 = vmatprep.subr.mxu0 0.0
    %5009 = vmatpush1.msra.mxu0 0.0
    %5010 = vmatprep.subr.mxu0 0.0
    %5011 = vmatpush1.msra.mxu0 0.0
    %5012 = vmatprep.subr.mxu0 0.0
    %5013 = vmatpush1.msra.mxu0 0.0
    %5014 = vmatprep.subr.mxu0 0.0
    %5015 = vmatpush1.msra.mxu0 0.0
    %5016 = vmatprep.subr.mxu0 0.0
    %5017 = vmatpush1.msra.mxu0 0.0
    %5018 = vmatprep.subr.mxu0 0.0
    %5019 = vmatpush1.msra.mxu0 0.0
    %5020 = vmatprep.subr.mxu0 0.0
    %5021 = vmatpush1.msra.mxu0 0.0
    %5022 = vmatprep.subr.mxu0 0.0
    %5023 = vmatpush1.msra.mxu0 0.0
    %5024 = vmatprep.subr.mxu0 0.0
    %5025 = vmatpush1.msra.mxu0 0.0
    %5026 = vmatprep.subr.mxu0 0.0
    %5027 = vmatpush1.msra.mxu0 0.0
    %5028 = vmatprep.subr.mxu0 0.0
    %5029 = vmatpush1.msra.mxu0 0.0
    %5030 = vmatprep.subr.mxu0 0.0
    %5031 = vmatpush1.msra.mxu0 0.0
    %5032 = vmatprep.subr.mxu0 0.0
    %5033 = vmatpush1.msra.mxu0 0.0
    %5034 = vmatprep.subr.mxu0 0.0
    %5035 = vmatpush1.msra.mxu0 0.0
    %5036 = vmatprep.subr.mxu0 0.0
    %5037 = vmatpush1.msra.mxu0 0.0
    %5038 = vmatprep.subr.mxu0 0.0
    %5039 = vmatpush1.msra.mxu0 0.0
    %5040 = vmatprep.subr.mxu0 0.0
    %5041 = vmatpush1.msra.mxu0 0.0
    %5042 = vmatprep.subr.mxu0 0.0
    %5043 = vmatpush1.msra.mxu0 0.0
    %5044 = vmatprep.subr.mxu0 0.0
    %5045 = vmatpush1.msra.mxu0 0.0
    %5046 = vmatprep.subr.mxu0 0.0
    %5047 = vmatpush1.msra.mxu0 0.0
    %5048 = vmatprep.subr.mxu0 0.0
    %5049 = vmatpush1.msra.mxu0 0.0
    %5050 = vmatprep.subr.mxu0 0.0
    %5051 = vmatpush1.msra.mxu0 0.0
    %5052 = vmatprep.mubr.f32.mxu0 0.0
    %v5053 = vand.u32 %v4693, 4294901760
    %v5054 = vsub.f32 %v4693, %v5053
    %v5055 = vand.u32 %v5054, 4294901760
    %5056 = vmatmul.mubr.f32.gmra.mrb[0].mxu0 %v5055
    %v5057 = vpop.f32.mrb[0].mxu0
    %v5058 = vadd.f32 %v4976, %v5057
    %v5059 = vpop.f32.mrb[0].mxu0
    %v5060 = vadd.f32 %v4978, %v5059
    %5061 = vdwg.mxu0
    %v5062 = vand.u32 %v105, 4294901760
    %v5063 = vsub.f32 %v105, %v5062
    %v5064 = vand.u32 %v5063, 4294901760
    %5065 = vmatprep.subr.mxu0 %v5064
    %v5066 = vand.u32 %v104, 4294901760
    %v5067 = vsub.f32 %v104, %v5066
    %v5068 = vand.u32 %v5067, 4294901760
    %5069 = vmatpush1.msra.mxu0 %v5068
    %v5070 = vand.u32 %v107, 4294901760
    %v5071 = vsub.f32 %v107, %v5070
    %v5072 = vand.u32 %v5071, 4294901760
    %5073 = vmatprep.subr.mxu0 %v5072
    %v5074 = vand.u32 %v106, 4294901760
    %v5075 = vsub.f32 %v106, %v5074
    %v5076 = vand.u32 %v5075, 4294901760
    %5077 = vmatpush1.msra.mxu0 %v5076
    %v5078 = vand.u32 %v109, 4294901760
    %v5079 = vsub.f32 %v109, %v5078
    %v5080 = vand.u32 %v5079, 4294901760
    %5081 = vmatprep.subr.mxu0 %v5080
    %v5082 = vand.u32 %v108, 4294901760
    %v5083 = vsub.f32 %v108, %v5082
    %v5084 = vand.u32 %v5083, 4294901760
    %5085 = vmatpush1.msra.mxu0 %v5084
    %v5086 = vand.u32 %v111, 4294901760
    %v5087 = vsub.f32 %v111, %v5086
    %v5088 = vand.u32 %v5087, 4294901760
    %5089 = vmatprep.subr.mxu0 %v5088
    %v5090 = vand.u32 %v110, 4294901760
    %v5091 = vsub.f32 %v110, %v5090
    %v5092 = vand.u32 %v5091, 4294901760
    %5093 = vmatpush1.msra.mxu0 %v5092
    %5094 = vmatprep.subr.mxu0 0.0
    %5095 = vmatpush1.msra.mxu0 0.0
    %5096 = vmatprep.subr.mxu0 0.0
    %5097 = vmatpush1.msra.mxu0 0.0
    %5098 = vmatprep.subr.mxu0 0.0
    %5099 = vmatpush1.msra.mxu0 0.0
    %5100 = vmatprep.subr.mxu0 0.0
    %5101 = vmatpush1.msra.mxu0 0.0
    %5102 = vmatprep.subr.mxu0 0.0
    %5103 = vmatpush1.msra.mxu0 0.0
    %5104 = vmatprep.subr.mxu0 0.0
    %5105 = vmatpush1.msra.mxu0 0.0
    %5106 = vmatprep.subr.mxu0 0.0
    %5107 = vmatpush1.msra.mxu0 0.0
    %5108 = vmatprep.subr.mxu0 0.0
    %5109 = vmatpush1.msra.mxu0 0.0
    %5110 = vmatprep.subr.mxu0 0.0
    %5111 = vmatpush1.msra.mxu0 0.0
    %5112 = vmatprep.subr.mxu0 0.0
    %5113 = vmatpush1.msra.mxu0 0.0
    %5114 = vmatprep.subr.mxu0 0.0
    %5115 = vmatpush1.msra.mxu0 0.0
    %5116 = vmatprep.subr.mxu0 0.0
    %5117 = vmatpush1.msra.mxu0 0.0
    %5118 = vmatprep.subr.mxu0 0.0
    %5119 = vmatpush1.msra.mxu0 0.0
    %5120 = vmatprep.subr.mxu0 0.0
    %5121 = vmatpush1.msra.mxu0 0.0
    %5122 = vmatprep.subr.mxu0 0.0
    %5123 = vmatpush1.msra.mxu0 0.0
    %5124 = vmatprep.subr.mxu0 0.0
    %5125 = vmatpush1.msra.mxu0 0.0
    %5126 = vmatprep.subr.mxu0 0.0
    %5127 = vmatpush1.msra.mxu0 0.0
    %5128 = vmatprep.subr.mxu0 0.0
    %5129 = vmatpush1.msra.mxu0 0.0
    %5130 = vmatprep.subr.mxu0 0.0
    %5131 = vmatpush1.msra.mxu0 0.0
    %5132 = vmatprep.subr.mxu0 0.0
    %5133 = vmatpush1.msra.mxu0 0.0
    %5134 = vmatprep.subr.mxu0 0.0
    %5135 = vmatpush1.msra.mxu0 0.0
    %5136 = vmatprep.subr.mxu0 0.0
    %5137 = vmatpush1.msra.mxu0 0.0
    %5138 = vmatprep.subr.mxu0 0.0
    %5139 = vmatpush1.msra.mxu0 0.0
    %5140 = vmatprep.subr.mxu0 0.0
    %5141 = vmatpush1.msra.mxu0 0.0
    %5142 = vmatprep.subr.mxu0 0.0
    %5143 = vmatpush1.msra.mxu0 0.0
    %5144 = vmatprep.subr.mxu0 0.0
    %5145 = vmatpush1.msra.mxu0 0.0
    %5146 = vmatprep.subr.mxu0 0.0
    %5147 = vmatpush1.msra.mxu0 0.0
    %5148 = vmatprep.subr.mxu0 0.0
    %5149 = vmatpush1.msra.mxu0 0.0
    %5150 = vmatprep.mubr.f32.mxu0 0.0
    %v5151 = vand.u32 %v4693, 4294901760
    %5152 = vmatmul.mubr.f32.gmra.mrb[0].mxu0 %v5151
    %v5153 = vpop.f32.mrb[0].mxu0
    %v5154 = vadd.f32 %v5058, %v5153
    %v5155 = vpop.f32.mrb[0].mxu0
    %v5156 = vadd.f32 %v5060, %v5155
    %5157 = vdwg.mxu0
    %v5158 = vand.u32 %v105, 4294901760
    %5159 = vmatprep.subr.mxu0 %v5158
    %v5160 = vand.u32 %v104, 4294901760
    %5161 = vmatpush1.msra.mxu0 %v5160
    %v5162 = vand.u32 %v107, 4294901760
    %5163 = vmatprep.subr.mxu0 %v5162
    %v5164 = vand.u32 %v106, 4294901760
    %5165 = vmatpush1.msra.mxu0 %v5164
    %v5166 = vand.u32 %v109, 4294901760
    %5167 = vmatprep.subr.mxu0 %v5166
    %v5168 = vand.u32 %v108, 4294901760
    %5169 = vmatpush1.msra.mxu0 %v5168
    %v5170 = vand.u32 %v111, 4294901760
    %5171 = vmatprep.subr.mxu0 %v5170
    %v5172 = vand.u32 %v110, 4294901760
    %5173 = vmatpush1.msra.mxu0 %v5172
    %5174 = vmatprep.subr.mxu0 0.0
    %5175 = vmatpush1.msra.mxu0 0.0
    %5176 = vmatprep.subr.mxu0 0.0
    %5177 = vmatpush1.msra.mxu0 0.0
    %5178 = vmatprep.subr.mxu0 0.0
    %5179 = vmatpush1.msra.mxu0 0.0
    %5180 = vmatprep.subr.mxu0 0.0
    %5181 = vmatpush1.msra.mxu0 0.0
    %5182 = vmatprep.subr.mxu0 0.0
    %5183 = vmatpush1.msra.mxu0 0.0
    %5184 = vmatprep.subr.mxu0 0.0
    %5185 = vmatpush1.msra.mxu0 0.0
    %5186 = vmatprep.subr.mxu0 0.0
    %5187 = vmatpush1.msra.mxu0 0.0
    %5188 = vmatprep.subr.mxu0 0.0
    %5189 = vmatpush1.msra.mxu0 0.0
    %5190 = vmatprep.subr.mxu0 0.0
    %5191 = vmatpush1.msra.mxu0 0.0
    %5192 = vmatprep.subr.mxu0 0.0
    %5193 = vmatpush1.msra.mxu0 0.0
    %5194 = vmatprep.subr.mxu0 0.0
    %5195 = vmatpush1.msra.mxu0 0.0
    %5196 = vmatprep.subr.mxu0 0.0
    %5197 = vmatpush1.msra.mxu0 0.0
    %5198 = vmatprep.subr.mxu0 0.0
    %5199 = vmatpush1.msra.mxu0 0.0
    %5200 = vmatprep.subr.mxu0 0.0
    %5201 = vmatpush1.msra.mxu0 0.0
    %5202 = vmatprep.subr.mxu0 0.0
    %5203 = vmatpush1.msra.mxu0 0.0
    %5204 = vmatprep.subr.mxu0 0.0
    %5205 = vmatpush1.msra.mxu0 0.0
    %5206 = vmatprep.subr.mxu0 0.0
    %5207 = vmatpush1.msra.mxu0 0.0
    %5208 = vmatprep.subr.mxu0 0.0
    %5209 = vmatpush1.msra.mxu0 0.0
    %5210 = vmatprep.subr.mxu0 0.0
    %5211 = vmatpush1.msra.mxu0 0.0
    %5212 = vmatprep.subr.mxu0 0.0
    %5213 = vmatpush1.msra.mxu0 0.0
    %5214 = vmatprep.subr.mxu0 0.0
    %5215 = vmatpush1.msra.mxu0 0.0
    %5216 = vmatprep.subr.mxu0 0.0
    %5217 = vmatpush1.msra.mxu0 0.0
    %5218 = vmatprep.subr.mxu0 0.0
    %5219 = vmatpush1.msra.mxu0 0.0
    %5220 = vmatprep.subr.mxu0 0.0
    %5221 = vmatpush1.msra.mxu0 0.0
    %5222 = vmatprep.subr.mxu0 0.0
    %5223 = vmatpush1.msra.mxu0 0.0
    %5224 = vmatprep.subr.mxu0 0.0
    %5225 = vmatpush1.msra.mxu0 0.0
    %5226 = vmatprep.subr.mxu0 0.0
    %5227 = vmatpush1.msra.mxu0 0.0
    %5228 = vmatprep.subr.mxu0 0.0
    %5229 = vmatpush1.msra.mxu0 0.0
    %5230 = vmatprep.mubr.f32.mxu0 0.0
    %v5231 = vand.u32 %v4693, 4294901760
    %5232 = vmatmul.mubr.f32.gmra.mrb[0].mxu0 %v5231
    %v5233 = vpop.f32.mrb[0].mxu0
    %v5234 = vadd.f32 %v5154, %v5233
    %v5235 = vpop.f32.mrb[0].mxu0
    %v5236 = vadd.f32 %v5156, %v5235
    %5237 = vdwg.mxu0
    %v5238 = vadd.f32 %v5236, %v2897
    %v5239 = vmul.f32 %v2902, %v4658
    %v5240 = vmul.f32 %v2907, %v5238
    %v5241 = vadd.f32 %v5239, %v5240
    %v5242 = vadd.f32 %v2298, %v5234
    %v5243 = vmul.f32 %v2305, %v4662
    %v5244 = vmul.f32 %v2310, %v5242
    %v5245 = vadd.f32 %v5243, %v5244
    %5247 = vrot.lane.b32.xlu0 %v5245, 96
    %v5248 = vpop.permute.xlu0 %5247
    %v5250 = vadd.f32 %v5245, %v5248
    %5251 = vrot.lane.b32.xlu0 %v5245, 64
    %v5252 = vpop.permute.xlu0 %5251
    %v5254 = vadd.f32 %v5250, %v5252
    %5255 = vrot.lane.b32.xlu0 %v5245, 32
    %v5256 = vpop.permute.xlu0 %5255
    %v5258 = vadd.f32 %v5254, %v5256
    %v5259 = vmul.f32 %v2329, %v4687
    %v5260 = vmul.f32 %v2334, %v5258
    %v5261 = vadd.f32 %v5259, %v5260
    %v5262 = vmul.f32 %v4691, 0.5
    %v5263 = vsub.f32 %v5261, %v5262
    %v5264 = vsel %vm67, 1, 0
    %v5265 = vlaneseq
    %v5266 = vshrl.u32 %v5265, 7
    %v5267 = vsub.s32 0, %v5266
    %v5268 = vrot.slane %v5264, %v5267
    %vm5269 = vcmp.eq.s32.totalorder %v5268, 1
    %v5270 = vsel %vm5269, %v5263, %v4687
    %vm5271 = vcmp.gt.f32.partialorder %v5270, 0.5
    %vm5272 = vmand %vm5271, %vm5269
    %v5273 = vsel %vm5272, 1, 0
    %v5274 = vcvt.s32.f32 %v5273
    %v5276 = vsel %vm113, %v5274, 0
    %v5278 = vand.u32 %v105, 4294901760
    %5279 = vmatprep.subr.mxu0 %v5278
    %v5280 = vand.u32 %v104, 4294901760
    %5281 = vmatpush1.msra.mxu0 %v5280
    %v5282 = vand.u32 %v107, 4294901760
    %5283 = vmatprep.subr.mxu0 %v5282
    %v5284 = vand.u32 %v106, 4294901760
    %5285 = vmatpush1.msra.mxu0 %v5284
    %v5286 = vand.u32 %v109, 4294901760
    %5287 = vmatprep.subr.mxu0 %v5286
    %v5288 = vand.u32 %v108, 4294901760
    %5289 = vmatpush1.msra.mxu0 %v5288
    %v5290 = vand.u32 %v111, 4294901760
    %5291 = vmatprep.subr.mxu0 %v5290
    %v5292 = vand.u32 %v110, 4294901760
    %5293 = vmatpush1.msra.mxu0 %v5292
    %5294 = vmatprep.subr.mxu0 0.0
    %5295 = vmatpush1.msra.mxu0 0.0
    %5296 = vmatprep.subr.mxu0 0.0
    %5297 = vmatpush1.msra.mxu0 0.0
    %5298 = vmatprep.subr.mxu0 0.0
    %5299 = vmatpush1.msra.mxu0 0.0
    %5300 = vmatprep.subr.mxu0 0.0
    %5301 = vmatpush1.msra.mxu0 0.0
    %5302 = vmatprep.subr.mxu0 0.0
    %5303 = vmatpush1.msra.mxu0 0.0
    %5304 = vmatprep.subr.mxu0 0.0
    %5305 = vmatpush1.msra.mxu0 0.0
    %5306 = vmatprep.subr.mxu0 0.0
    %5307 = vmatpush1.msra.mxu0 0.0
    %5308 = vmatprep.subr.mxu0 0.0
    %5309 = vmatpush1.msra.mxu0 0.0
    %5310 = vmatprep.subr.mxu0 0.0
    %5311 = vmatpush1.msra.mxu0 0.0
    %5312 = vmatprep.subr.mxu0 0.0
    %5313 = vmatpush1.msra.mxu0 0.0
    %5314 = vmatprep.subr.mxu0 0.0
    %5315 = vmatpush1.msra.mxu0 0.0
    %5316 = vmatprep.subr.mxu0 0.0
    %5317 = vmatpush1.msra.mxu0 0.0
    %5318 = vmatprep.subr.mxu0 0.0
    %5319 = vmatpush1.msra.mxu0 0.0
    %5320 = vmatprep.subr.mxu0 0.0
    %5321 = vmatpush1.msra.mxu0 0.0
    %5322 = vmatprep.subr.mxu0 0.0
    %5323 = vmatpush1.msra.mxu0 0.0
    %5324 = vmatprep.subr.mxu0 0.0
    %5325 = vmatpush1.msra.mxu0 0.0
    %5326 = vmatprep.subr.mxu0 0.0
    %5327 = vmatpush1.msra.mxu0 0.0
    %5328 = vmatprep.subr.mxu0 0.0
    %5329 = vmatpush1.msra.mxu0 0.0
    %5330 = vmatprep.subr.mxu0 0.0
    %5331 = vmatpush1.msra.mxu0 0.0
    %5332 = vmatprep.subr.mxu0 0.0
    %5333 = vmatpush1.msra.mxu0 0.0
    %5334 = vmatprep.subr.mxu0 0.0
    %5335 = vmatpush1.msra.mxu0 0.0
    %5336 = vmatprep.subr.mxu0 0.0
    %5337 = vmatpush1.msra.mxu0 0.0
    %5338 = vmatprep.subr.mxu0 0.0
    %5339 = vmatpush1.msra.mxu0 0.0
    %5340 = vmatprep.subr.mxu0 0.0
    %5341 = vmatpush1.msra.mxu0 0.0
    %5342 = vmatprep.subr.mxu0 0.0
    %5343 = vmatpush1.msra.mxu0 0.0
    %5344 = vmatprep.subr.mxu0 0.0
    %5345 = vmatpush1.msra.mxu0 0.0
    %5346 = vmatprep.subr.mxu0 0.0
    %5347 = vmatpush1.msra.mxu0 0.0
    %5348 = vmatprep.subr.mxu0 0.0
    %5349 = vmatpush1.msra.mxu0 0.0
    %5350 = vmatprep.mubr.f32.mxu0 0.0
    %v5351 = vand.u32 %v5276, 4294901760
    %v5352 = vsub.f32 %v5276, %v5351
    %v5353 = vand.u32 %v5352, 4294901760
    %v5354 = vsub.f32 %v5352, %v5353
    %v5355 = vand.u32 %v5354, 4294901760
    %5356 = vmatmul.mubr.f32.gmra.mrb[0].mxu0 %v5355
    %v5357 = vpop.f32.mrb[0].mxu0
    %v5358 = vadd.f32 0.0, %v5357
    %v5359 = vpop.f32.mrb[0].mxu0
    %v5360 = vadd.f32 0.0, %v5359
    %5361 = vdwg.mxu0
    %v5362 = vand.u32 %v105, 4294901760
    %v5363 = vsub.f32 %v105, %v5362
    %v5364 = vand.u32 %v5363, 4294901760
    %v5365 = vsub.f32 %v5363, %v5364
    %v5366 = vand.u32 %v5365, 4294901760
    %5367 = vmatprep.subr.mxu0 %v5366
    %v5368 = vand.u32 %v104, 4294901760
    %v5369 = vsub.f32 %v104, %v5368
    %v5370 = vand.u32 %v5369, 4294901760
    %v5371 = vsub.f32 %v5369, %v5370
    %v5372 = vand.u32 %v5371, 4294901760
    %5373 = vmatpush1.msra.mxu0 %v5372
    %v5374 = vand.u32 %v107, 4294901760
    %v5375 = vsub.f32 %v107, %v5374
    %v5376 = vand.u32 %v5375, 4294901760
    %v5377 = vsub.f32 %v5375, %v5376
    %v5378 = vand.u32 %v5377, 4294901760
    %5379 = vmatprep.subr.mxu0 %v5378
    %v5380 = vand.u32 %v106, 4294901760
    %v5381 = vsub.f32 %v106, %v5380
    %v5382 = vand.u32 %v5381, 4294901760
    %v5383 = vsub.f32 %v5381, %v5382
    %v5384 = vand.u32 %v5383, 4294901760
    %5385 = vmatpush1.msra.mxu0 %v5384
    %v5386 = vand.u32 %v109, 4294901760
    %v5387 = vsub.f32 %v109, %v5386
    %v5388 = vand.u32 %v5387, 4294901760
    %v5389 = vsub.f32 %v5387, %v5388
    %v5390 = vand.u32 %v5389, 4294901760
    %5391 = vmatprep.subr.mxu0 %v5390
    %v5392 = vand.u32 %v108, 4294901760
    %v5393 = vsub.f32 %v108, %v5392
    %v5394 = vand.u32 %v5393, 4294901760
    %v5395 = vsub.f32 %v5393, %v5394
    %v5396 = vand.u32 %v5395, 4294901760
    %5397 = vmatpush1.msra.mxu0 %v5396
    %v5398 = vand.u32 %v111, 4294901760
    %v5399 = vsub.f32 %v111, %v5398
    %v5400 = vand.u32 %v5399, 4294901760
    %v5401 = vsub.f32 %v5399, %v5400
    %v5402 = vand.u32 %v5401, 4294901760
    %5403 = vmatprep.subr.mxu0 %v5402
    %v5404 = vand.u32 %v110, 4294901760
    %v5405 = vsub.f32 %v110, %v5404
    %v5406 = vand.u32 %v5405, 4294901760
    %v5407 = vsub.f32 %v5405, %v5406
    %v5408 = vand.u32 %v5407, 4294901760
    %5409 = vmatpush1.msra.mxu0 %v5408
    %5410 = vmatprep.subr.mxu0 0.0
    %5411 = vmatpush1.msra.mxu0 0.0
    %5412 = vmatprep.subr.mxu0 0.0
    %5413 = vmatpush1.msra.mxu0 0.0
    %5414 = vmatprep.subr.mxu0 0.0
    %5415 = vmatpush1.msra.mxu0 0.0
    %5416 = vmatprep.subr.mxu0 0.0
    %5417 = vmatpush1.msra.mxu0 0.0
    %5418 = vmatprep.subr.mxu0 0.0
    %5419 = vmatpush1.msra.mxu0 0.0
    %5420 = vmatprep.subr.mxu0 0.0
    %5421 = vmatpush1.msra.mxu0 0.0
    %5422 = vmatprep.subr.mxu0 0.0
    %5423 = vmatpush1.msra.mxu0 0.0
    %5424 = vmatprep.subr.mxu0 0.0
    %5425 = vmatpush1.msra.mxu0 0.0
    %5426 = vmatprep.subr.mxu0 0.0
    %5427 = vmatpush1.msra.mxu0 0.0
    %5428 = vmatprep.subr.mxu0 0.0
    %5429 = vmatpush1.msra.mxu0 0.0
    %5430 = vmatprep.subr.mxu0 0.0
    %5431 = vmatpush1.msra.mxu0 0.0
    %5432 = vmatprep.subr.mxu0 0.0
    %5433 = vmatpush1.msra.mxu0 0.0
    %5434 = vmatprep.subr.mxu0 0.0
    %5435 = vmatpush1.msra.mxu0 0.0
    %5436 = vmatprep.subr.mxu0 0.0
    %5437 = vmatpush1.msra.mxu0 0.0
    %5438 = vmatprep.subr.mxu0 0.0
    %5439 = vmatpush1.msra.mxu0 0.0
    %5440 = vmatprep.subr.mxu0 0.0
    %5441 = vmatpush1.msra.mxu0 0.0
    %5442 = vmatprep.subr.mxu0 0.0
    %5443 = vmatpush1.msra.mxu0 0.0
    %5444 = vmatprep.subr.mxu0 0.0
    %5445 = vmatpush1.msra.mxu0 0.0
    %5446 = vmatprep.subr.mxu0 0.0
    %5447 = vmatpush1.msra.mxu0 0.0
    %5448 = vmatprep.subr.mxu0 0.0
    %5449 = vmatpush1.msra.mxu0 0.0
    %5450 = vmatprep.subr.mxu0 0.0
    %5451 = vmatpush1.msra.mxu0 0.0
    %5452 = vmatprep.subr.mxu0 0.0
    %5453 = vmatpush1.msra.mxu0 0.0
    %5454 = vmatprep.subr.mxu0 0.0
    %5455 = vmatpush1.msra.mxu0 0.0
    %5456 = vmatprep.subr.mxu0 0.0
    %5457 = vmatpush1.msra.mxu0 0.0
    %5458 = vmatprep.subr.mxu0 0.0
    %5459 = vmatpush1.msra.mxu0 0.0
    %5460 = vmatprep.subr.mxu0 0.0
    %5461 = vmatpush1.msra.mxu0 0.0
    %5462 = vmatprep.subr.mxu0 0.0
    %5463 = vmatpush1.msra.mxu0 0.0
    %5464 = vmatprep.subr.mxu0 0.0
    %5465 = vmatpush1.msra.mxu0 0.0
    %5466 = vmatprep.mubr.f32.mxu0 0.0
    %v5467 = vand.u32 %v5276, 4294901760
    %5468 = vmatmul.mubr.f32.gmra.mrb[0].mxu0 %v5467
    %v5469 = vpop.f32.mrb[0].mxu0
    %v5470 = vadd.f32 %v5358, %v5469
    %v5471 = vpop.f32.mrb[0].mxu0
    %v5472 = vadd.f32 %v5360, %v5471
    %5473 = vdwg.mxu0
    %v5474 = vand.u32 %v105, 4294901760
    %v5475 = vsub.f32 %v105, %v5474
    %5476 = vmatprep.subr.mxu0 %v5475
    %v5477 = vand.u32 %v104, 4294901760
    %v5478 = vsub.f32 %v104, %v5477
    %5479 = vmatpush1.msra.mxu0 %v5478
    %v5480 = vand.u32 %v107, 4294901760
    %v5481 = vsub.f32 %v107, %v5480
    %5482 = vmatprep.subr.mxu0 %v5481
    %v5483 = vand.u32 %v106, 4294901760
    %v5484 = vsub.f32 %v106, %v5483
    %5485 = vmatpush1.msra.mxu0 %v5484
    %v5486 = vand.u32 %v109, 4294901760
    %v5487 = vsub.f32 %v109, %v5486
    %5488 = vmatprep.subr.mxu0 %v5487
    %v5489 = vand.u32 %v108, 4294901760
    %v5490 = vsub.f32 %v108, %v5489
    %5491 = vmatpush1.msra.mxu0 %v5490
    %v5492 = vand.u32 %v111, 4294901760
    %v5493 = vsub.f32 %v111, %v5492
    %5494 = vmatprep.subr.mxu0 %v5493
    %v5495 = vand.u32 %v110, 4294901760
    %v5496 = vsub.f32 %v110, %v5495
    %5497 = vmatpush1.msra.mxu0 %v5496
    %5498 = vmatprep.subr.mxu0 0.0
    %5499 = vmatpush1.msra.mxu0 0.0
    %5500 = vmatprep.subr.mxu0 0.0
    %5501 = vmatpush1.msra.mxu0 0.0
    %5502 = vmatprep.subr.mxu0 0.0
    %5503 = vmatpush1.msra.mxu0 0.0
    %5504 = vmatprep.subr.mxu0 0.0
    %5505 = vmatpush1.msra.mxu0 0.0
    %5506 = vmatprep.subr.mxu0 0.0
    %5507 = vmatpush1.msra.mxu0 0.0
    %5508 = vmatprep.subr.mxu0 0.0
    %5509 = vmatpush1.msra.mxu0 0.0
    %5510 = vmatprep.subr.mxu0 0.0
    %5511 = vmatpush1.msra.mxu0 0.0
    %5512 = vmatprep.subr.mxu0 0.0
    %5513 = vmatpush1.msra.mxu0 0.0
    %5514 = vmatprep.subr.mxu0 0.0
    %5515 = vmatpush1.msra.mxu0 0.0
    %5516 = vmatprep.subr.mxu0 0.0
    %5517 = vmatpush1.msra.mxu0 0.0
    %5518 = vmatprep.subr.mxu0 0.0
    %5519 = vmatpush1.msra.mxu0 0.0
    %5520 = vmatprep.subr.mxu0 0.0
    %5521 = vmatpush1.msra.mxu0 0.0
    %5522 = vmatprep.subr.mxu0 0.0
    %5523 = vmatpush1.msra.mxu0 0.0
    %5524 = vmatprep.subr.mxu0 0.0
    %5525 = vmatpush1.msra.mxu0 0.0
    %5526 = vmatprep.subr.mxu0 0.0
    %5527 = vmatpush1.msra.mxu0 0.0
    %5528 = vmatprep.subr.mxu0 0.0
    %5529 = vmatpush1.msra.mxu0 0.0
    %5530 = vmatprep.subr.mxu0 0.0
    %5531 = vmatpush1.msra.mxu0 0.0
    %5532 = vmatprep.subr.mxu0 0.0
    %5533 = vmatpush1.msra.mxu0 0.0
    %5534 = vmatprep.subr.mxu0 0.0
    %5535 = vmatpush1.msra.mxu0 0.0
    %5536 = vmatprep.subr.mxu0 0.0
    %5537 = vmatpush1.msra.mxu0 0.0
    %5538 = vmatprep.subr.mxu0 0.0
    %5539 = vmatpush1.msra.mxu0 0.0
    %5540 = vmatprep.subr.mxu0 0.0
    %5541 = vmatpush1.msra.mxu0 0.0
    %5542 = vmatprep.subr.mxu0 0.0
    %5543 = vmatpush1.msra.mxu0 0.0
    %5544 = vmatprep.subr.mxu0 0.0
    %5545 = vmatpush1.msra.mxu0 0.0
    %5546 = vmatprep.subr.mxu0 0.0
    %5547 = vmatpush1.msra.mxu0 0.0
    %5548 = vmatprep.subr.mxu0 0.0
    %5549 = vmatpush1.msra.mxu0 0.0
    %5550 = vmatprep.subr.mxu0 0.0
    %5551 = vmatpush1.msra.mxu0 0.0
    %5552 = vmatprep.subr.mxu0 0.0
    %5553 = vmatpush1.msra.mxu0 0.0
    %5554 = vmatprep.mubr.f32.mxu0 0.0
    %v5555 = vand.u32 %v5276, 4294901760
    %v5556 = vsub.f32 %v5276, %v5555
    %5557 = vmatmul.mubr.f32.gmra.mrb[0].mxu0 %v5556
    %v5558 = vpop.f32.mrb[0].mxu0
    %v5559 = vadd.f32 %v5470, %v5558
    %v5560 = vpop.f32.mrb[0].mxu0
    %v5561 = vadd.f32 %v5472, %v5560
    %5562 = vdwg.mxu0
    %v5563 = vand.u32 %v105, 4294901760
    %5564 = vmatprep.subr.mxu0 %v5563
    %v5565 = vand.u32 %v104, 4294901760
    %5566 = vmatpush1.msra.mxu0 %v5565
    %v5567 = vand.u32 %v107, 4294901760
    %5568 = vmatprep.subr.mxu0 %v5567
    %v5569 = vand.u32 %v106, 4294901760
    %5570 = vmatpush1.msra.mxu0 %v5569
    %v5571 = vand.u32 %v109, 4294901760
    %5572 = vmatprep.subr.mxu0 %v5571
    %v5573 = vand.u32 %v108, 4294901760
    %5574 = vmatpush1.msra.mxu0 %v5573
    %v5575 = vand.u32 %v111, 4294901760
    %5576 = vmatprep.subr.mxu0 %v5575
    %v5577 = vand.u32 %v110, 4294901760
    %5578 = vmatpush1.msra.mxu0 %v5577
    %5579 = vmatprep.subr.mxu0 0.0
    %5580 = vmatpush1.msra.mxu0 0.0
    %5581 = vmatprep.subr.mxu0 0.0
    %5582 = vmatpush1.msra.mxu0 0.0
    %5583 = vmatprep.subr.mxu0 0.0
    %5584 = vmatpush1.msra.mxu0 0.0
    %5585 = vmatprep.subr.mxu0 0.0
    %5586 = vmatpush1.msra.mxu0 0.0
    %5587 = vmatprep.subr.mxu0 0.0
    %5588 = vmatpush1.msra.mxu0 0.0
    %5589 = vmatprep.subr.mxu0 0.0
    %5590 = vmatpush1.msra.mxu0 0.0
    %5591 = vmatprep.subr.mxu0 0.0
    %5592 = vmatpush1.msra.mxu0 0.0
    %5593 = vmatprep.subr.mxu0 0.0
    %5594 = vmatpush1.msra.mxu0 0.0
    %5595 = vmatprep.subr.mxu0 0.0
    %5596 = vmatpush1.msra.mxu0 0.0
    %5597 = vmatprep.subr.mxu0 0.0
    %5598 = vmatpush1.msra.mxu0 0.0
    %5599 = vmatprep.subr.mxu0 0.0
    %5600 = vmatpush1.msra.mxu0 0.0
    %5601 = vmatprep.subr.mxu0 0.0
    %5602 = vmatpush1.msra.mxu0 0.0
    %5603 = vmatprep.subr.mxu0 0.0
    %5604 = vmatpush1.msra.mxu0 0.0
    %5605 = vmatprep.subr.mxu0 0.0
    %5606 = vmatpush1.msra.mxu0 0.0
    %5607 = vmatprep.subr.mxu0 0.0
    %5608 = vmatpush1.msra.mxu0 0.0
    %5609 = vmatprep.subr.mxu0 0.0
    %5610 = vmatpush1.msra.mxu0 0.0
    %5611 = vmatprep.subr.mxu0 0.0
    %5612 = vmatpush1.msra.mxu0 0.0
    %5613 = vmatprep.subr.mxu0 0.0
    %5614 = vmatpush1.msra.mxu0 0.0
    %5615 = vmatprep.subr.mxu0 0.0
    %5616 = vmatpush1.msra.mxu0 0.0
    %5617 = vmatprep.subr.mxu0 0.0
    %5618 = vmatpush1.msra.mxu0 0.0
    %5619 = vmatprep.subr.mxu0 0.0
    %5620 = vmatpush1.msra.mxu0 0.0
    %5621 = vmatprep.subr.mxu0 0.0
    %5622 = vmatpush1.msra.mxu0 0.0
    %5623 = vmatprep.subr.mxu0 0.0
    %5624 = vmatpush1.msra.mxu0 0.0
    %5625 = vmatprep.subr.mxu0 0.0
    %5626 = vmatpush1.msra.mxu0 0.0
    %5627 = vmatprep.subr.mxu0 0.0
    %5628 = vmatpush1.msra.mxu0 0.0
    %5629 = vmatprep.subr.mxu0 0.0
    %5630 = vmatpush1.msra.mxu0 0.0
    %5631 = vmatprep.subr.mxu0 0.0
    %5632 = vmatpush1.msra.mxu0 0.0
    %5633 = vmatprep.subr.mxu0 0.0
    %5634 = vmatpush1.msra.mxu0 0.0
    %5635 = vmatprep.mubr.f32.mxu0 0.0
    %v5636 = vand.u32 %v5276, 4294901760
    %v5637 = vsub.f32 %v5276, %v5636
    %v5638 = vand.u32 %v5637, 4294901760
    %5639 = vmatmul.mubr.f32.gmra.mrb[0].mxu0 %v5638
    %v5640 = vpop.f32.mrb[0].mxu0
    %v5641 = vadd.f32 %v5559, %v5640
    %v5642 = vpop.f32.mrb[0].mxu0
    %v5643 = vadd.f32 %v5561, %v5642
    %5644 = vdwg.mxu0
    %v5645 = vand.u32 %v105, 4294901760
    %v5646 = vsub.f32 %v105, %v5645
    %v5647 = vand.u32 %v5646, 4294901760
    %5648 = vmatprep.subr.mxu0 %v5647
    %v5649 = vand.u32 %v104, 4294901760
    %v5650 = vsub.f32 %v104, %v5649
    %v5651 = vand.u32 %v5650, 4294901760
    %5652 = vmatpush1.msra.mxu0 %v5651
    %v5653 = vand.u32 %v107, 4294901760
    %v5654 = vsub.f32 %v107, %v5653
    %v5655 = vand.u32 %v5654, 4294901760
    %5656 = vmatprep.subr.mxu0 %v5655
    %v5657 = vand.u32 %v106, 4294901760
    %v5658 = vsub.f32 %v106, %v5657
    %v5659 = vand.u32 %v5658, 4294901760
    %5660 = vmatpush1.msra.mxu0 %v5659
    %v5661 = vand.u32 %v109, 4294901760
    %v5662 = vsub.f32 %v109, %v5661
    %v5663 = vand.u32 %v5662, 4294901760
    %5664 = vmatprep.subr.mxu0 %v5663
    %v5665 = vand.u32 %v108, 4294901760
    %v5666 = vsub.f32 %v108, %v5665
    %v5667 = vand.u32 %v5666, 4294901760
    %5668 = vmatpush1.msra.mxu0 %v5667
    %v5669 = vand.u32 %v111, 4294901760
    %v5670 = vsub.f32 %v111, %v5669
    %v5671 = vand.u32 %v5670, 4294901760
    %5672 = vmatprep.subr.mxu0 %v5671
    %v5673 = vand.u32 %v110, 4294901760
    %v5674 = vsub.f32 %v110, %v5673
    %v5675 = vand.u32 %v5674, 4294901760
    %5676 = vmatpush1.msra.mxu0 %v5675
    %5677 = vmatprep.subr.mxu0 0.0
    %5678 = vmatpush1.msra.mxu0 0.0
    %5679 = vmatprep.subr.mxu0 0.0
    %5680 = vmatpush1.msra.mxu0 0.0
    %5681 = vmatprep.subr.mxu0 0.0
    %5682 = vmatpush1.msra.mxu0 0.0
    %5683 = vmatprep.subr.mxu0 0.0
    %5684 = vmatpush1.msra.mxu0 0.0
    %5685 = vmatprep.subr.mxu0 0.0
    %5686 = vmatpush1.msra.mxu0 0.0
    %5687 = vmatprep.subr.mxu0 0.0
    %5688 = vmatpush1.msra.mxu0 0.0
    %5689 = vmatprep.subr.mxu0 0.0
    %5690 = vmatpush1.msra.mxu0 0.0
    %5691 = vmatprep.subr.mxu0 0.0
    %5692 = vmatpush1.msra.mxu0 0.0
    %5693 = vmatprep.subr.mxu0 0.0
    %5694 = vmatpush1.msra.mxu0 0.0
    %5695 = vmatprep.subr.mxu0 0.0
    %5696 = vmatpush1.msra.mxu0 0.0
    %5697 = vmatprep.subr.mxu0 0.0
    %5698 = vmatpush1.msra.mxu0 0.0
    %5699 = vmatprep.subr.mxu0 0.0
    %5700 = vmatpush1.msra.mxu0 0.0
    %5701 = vmatprep.subr.mxu0 0.0
    %5702 = vmatpush1.msra.mxu0 0.0
    %5703 = vmatprep.subr.mxu0 0.0
    %5704 = vmatpush1.msra.mxu0 0.0
    %5705 = vmatprep.subr.mxu0 0.0
    %5706 = vmatpush1.msra.mxu0 0.0
    %5707 = vmatprep.subr.mxu0 0.0
    %5708 = vmatpush1.msra.mxu0 0.0
    %5709 = vmatprep.subr.mxu0 0.0
    %5710 = vmatpush1.msra.mxu0 0.0
    %5711 = vmatprep.subr.mxu0 0.0
    %5712 = vmatpush1.msra.mxu0 0.0
    %5713 = vmatprep.subr.mxu0 0.0
    %5714 = vmatpush1.msra.mxu0 0.0
    %5715 = vmatprep.subr.mxu0 0.0
    %5716 = vmatpush1.msra.mxu0 0.0
    %5717 = vmatprep.subr.mxu0 0.0
    %5718 = vmatpush1.msra.mxu0 0.0
    %5719 = vmatprep.subr.mxu0 0.0
    %5720 = vmatpush1.msra.mxu0 0.0
    %5721 = vmatprep.subr.mxu0 0.0
    %5722 = vmatpush1.msra.mxu0 0.0
    %5723 = vmatprep.subr.mxu0 0.0
    %5724 = vmatpush1.msra.mxu0 0.0
    %5725 = vmatprep.subr.mxu0 0.0
    %5726 = vmatpush1.msra.mxu0 0.0
    %5727 = vmatprep.subr.mxu0 0.0
    %5728 = vmatpush1.msra.mxu0 0.0
    %5729 = vmatprep.subr.mxu0 0.0
    %5730 = vmatpush1.msra.mxu0 0.0
    %5731 = vmatprep.subr.mxu0 0.0
    %5732 = vmatpush1.msra.mxu0 0.0
    %5733 = vmatprep.mubr.f32.mxu0 0.0
    %v5734 = vand.u32 %v5276, 4294901760
    %5735 = vmatmul.mubr.f32.gmra.mrb[0].mxu0 %v5734
    %v5736 = vpop.f32.mrb[0].mxu0
    %v5737 = vadd.f32 %v5641, %v5736
    %v5738 = vpop.f32.mrb[0].mxu0
    %v5739 = vadd.f32 %v5643, %v5738
    %5740 = vdwg.mxu0
    %v5741 = vand.u32 %v105, 4294901760
    %5742 = vmatprep.subr.mxu0 %v5741
    %v5743 = vand.u32 %v104, 4294901760
    %5744 = vmatpush1.msra.mxu0 %v5743
    %v5745 = vand.u32 %v107, 4294901760
    %5746 = vmatprep.subr.mxu0 %v5745
    %v5747 = vand.u32 %v106, 4294901760
    %5748 = vmatpush1.msra.mxu0 %v5747
    %v5749 = vand.u32 %v109, 4294901760
    %5750 = vmatprep.subr.mxu0 %v5749
    %v5751 = vand.u32 %v108, 4294901760
    %5752 = vmatpush1.msra.mxu0 %v5751
    %v5753 = vand.u32 %v111, 4294901760
    %5754 = vmatprep.subr.mxu0 %v5753
    %v5755 = vand.u32 %v110, 4294901760
    %5756 = vmatpush1.msra.mxu0 %v5755
    %5757 = vmatprep.subr.mxu0 0.0
    %5758 = vmatpush1.msra.mxu0 0.0
    %5759 = vmatprep.subr.mxu0 0.0
    %5760 = vmatpush1.msra.mxu0 0.0
    %5761 = vmatprep.subr.mxu0 0.0
    %5762 = vmatpush1.msra.mxu0 0.0
    %5763 = vmatprep.subr.mxu0 0.0
    %5764 = vmatpush1.msra.mxu0 0.0
    %5765 = vmatprep.subr.mxu0 0.0
    %5766 = vmatpush1.msra.mxu0 0.0
    %5767 = vmatprep.subr.mxu0 0.0
    %5768 = vmatpush1.msra.mxu0 0.0
    %5769 = vmatprep.subr.mxu0 0.0
    %5770 = vmatpush1.msra.mxu0 0.0
    %5771 = vmatprep.subr.mxu0 0.0
    %5772 = vmatpush1.msra.mxu0 0.0
    %5773 = vmatprep.subr.mxu0 0.0
    %5774 = vmatpush1.msra.mxu0 0.0
    %5775 = vmatprep.subr.mxu0 0.0
    %5776 = vmatpush1.msra.mxu0 0.0
    %5777 = vmatprep.subr.mxu0 0.0
    %5778 = vmatpush1.msra.mxu0 0.0
    %5779 = vmatprep.subr.mxu0 0.0
    %5780 = vmatpush1.msra.mxu0 0.0
    %5781 = vmatprep.subr.mxu0 0.0
    %5782 = vmatpush1.msra.mxu0 0.0
    %5783 = vmatprep.subr.mxu0 0.0
    %5784 = vmatpush1.msra.mxu0 0.0
    %5785 = vmatprep.subr.mxu0 0.0
    %5786 = vmatpush1.msra.mxu0 0.0
    %5787 = vmatprep.subr.mxu0 0.0
    %5788 = vmatpush1.msra.mxu0 0.0
    %5789 = vmatprep.subr.mxu0 0.0
    %5790 = vmatpush1.msra.mxu0 0.0
    %5791 = vmatprep.subr.mxu0 0.0
    %5792 = vmatpush1.msra.mxu0 0.0
    %5793 = vmatprep.subr.mxu0 0.0
    %5794 = vmatpush1.msra.mxu0 0.0
    %5795 = vmatprep.subr.mxu0 0.0
    %5796 = vmatpush1.msra.mxu0 0.0
    %5797 = vmatprep.subr.mxu0 0.0
    %5798 = vmatpush1.msra.mxu0 0.0
    %5799 = vmatprep.subr.mxu0 0.0
    %5800 = vmatpush1.msra.mxu0 0.0
    %5801 = vmatprep.subr.mxu0 0.0
    %5802 = vmatpush1.msra.mxu0 0.0
    %5803 = vmatprep.subr.mxu0 0.0
    %5804 = vmatpush1.msra.mxu0 0.0
    %5805 = vmatprep.subr.mxu0 0.0
    %5806 = vmatpush1.msra.mxu0 0.0
    %5807 = vmatprep.subr.mxu0 0.0
    %5808 = vmatpush1.msra.mxu0 0.0
    %5809 = vmatprep.subr.mxu0 0.0
    %5810 = vmatpush1.msra.mxu0 0.0
    %5811 = vmatprep.subr.mxu0 0.0
    %5812 = vmatpush1.msra.mxu0 0.0
    %5813 = vmatprep.mubr.f32.mxu0 0.0
    %v5814 = vand.u32 %v5276, 4294901760
    %5815 = vmatmul.mubr.f32.gmra.mrb[0].mxu0 %v5814
    %v5816 = vpop.f32.mrb[0].mxu0
    %v5817 = vadd.f32 %v5737, %v5816
    %v5818 = vpop.f32.mrb[0].mxu0
    %v5819 = vadd.f32 %v5739, %v5818
    %5820 = vdwg.mxu0
    %v5821 = vadd.f32 %v5819, %v2897
    %v5822 = vmul.f32 %v2902, %v5241
    %v5823 = vmul.f32 %v2907, %v5821
    %v5824 = vadd.f32 %v5822, %v5823
    %v5825 = vadd.f32 %v2299, %v5817
    %v5826 = vmul.f32 %v2305, %v5245
    %v5827 = vmul.f32 %v2310, %v5825
    %v5828 = vadd.f32 %v5826, %v5827
    %5830 = vrot.lane.b32.xlu0 %v5828, 96
    %v5831 = vpop.permute.xlu0 %5830
    %v5833 = vadd.f32 %v5828, %v5831
    %5834 = vrot.lane.b32.xlu0 %v5828, 64
    %v5835 = vpop.permute.xlu0 %5834
    %v5837 = vadd.f32 %v5833, %v5835
    %5838 = vrot.lane.b32.xlu0 %v5828, 32
    %v5839 = vpop.permute.xlu0 %5838
    %v5841 = vadd.f32 %v5837, %v5839
    %v5842 = vmul.f32 %v2329, %v5270
    %v5843 = vmul.f32 %v2334, %v5841
    %v5844 = vadd.f32 %v5842, %v5843
    %v5845 = vmul.f32 %v5274, 0.5
    %v5846 = vsub.f32 %v5844, %v5845
    %v5847 = vsel %vm69, 1, 0
    %v5848 = vlaneseq
    %v5849 = vshrl.u32 %v5848, 7
    %v5850 = vsub.s32 0, %v5849
    %v5851 = vrot.slane %v5847, %v5850
    %vm5852 = vcmp.eq.s32.totalorder %v5851, 1
    %v5853 = vsel %vm5852, %v5846, %v5270
    %vm5854 = vcmp.gt.f32.partialorder %v5853, 0.5
    %vm5855 = vmand %vm5854, %vm5852
    %v5856 = vsel %vm5855, 1, 0
    %v5857 = vcvt.s32.f32 %v5856
    %v5859 = vsel %vm113, %v5857, 0
    %v5861 = vand.u32 %v105, 4294901760
    %5862 = vmatprep.subr.mxu0 %v5861
    %v5863 = vand.u32 %v104, 4294901760
    %5864 = vmatpush1.msra.mxu0 %v5863
    %v5865 = vand.u32 %v107, 4294901760
    %5866 = vmatprep.subr.mxu0 %v5865
    %v5867 = vand.u32 %v106, 4294901760
    %5868 = vmatpush1.msra.mxu0 %v5867
    %v5869 = vand.u32 %v109, 4294901760
    %5870 = vmatprep.subr.mxu0 %v5869
    %v5871 = vand.u32 %v108, 4294901760
    %5872 = vmatpush1.msra.mxu0 %v5871
    %v5873 = vand.u32 %v111, 4294901760
    %5874 = vmatprep.subr.mxu0 %v5873
    %v5875 = vand.u32 %v110, 4294901760
    %5876 = vmatpush1.msra.mxu0 %v5875
    %5877 = vmatprep.subr.mxu0 0.0
    %5878 = vmatpush1.msra.mxu0 0.0
    %5879 = vmatprep.subr.mxu0 0.0
    %5880 = vmatpush1.msra.mxu0 0.0
    %5881 = vmatprep.subr.mxu0 0.0
    %5882 = vmatpush1.msra.mxu0 0.0
    %5883 = vmatprep.subr.mxu0 0.0
    %5884 = vmatpush1.msra.mxu0 0.0
    %5885 = vmatprep.subr.mxu0 0.0
    %5886 = vmatpush1.msra.mxu0 0.0
    %5887 = vmatprep.subr.mxu0 0.0
    %5888 = vmatpush1.msra.mxu0 0.0
    %5889 = vmatprep.subr.mxu0 0.0
    %5890 = vmatpush1.msra.mxu0 0.0
    %5891 = vmatprep.subr.mxu0 0.0
    %5892 = vmatpush1.msra.mxu0 0.0
    %5893 = vmatprep.subr.mxu0 0.0
    %5894 = vmatpush1.msra.mxu0 0.0
    %5895 = vmatprep.subr.mxu0 0.0
    %5896 = vmatpush1.msra.mxu0 0.0
    %5897 = vmatprep.subr.mxu0 0.0
    %5898 = vmatpush1.msra.mxu0 0.0
    %5899 = vmatprep.subr.mxu0 0.0
    %5900 = vmatpush1.msra.mxu0 0.0
    %5901 = vmatprep.subr.mxu0 0.0
    %5902 = vmatpush1.msra.mxu0 0.0
    %5903 = vmatprep.subr.mxu0 0.0
    %5904 = vmatpush1.msra.mxu0 0.0
    %5905 = vmatprep.subr.mxu0 0.0
    %5906 = vmatpush1.msra.mxu0 0.0
    %5907 = vmatprep.subr.mxu0 0.0
    %5908 = vmatpush1.msra.mxu0 0.0
    %5909 = vmatprep.subr.mxu0 0.0
    %5910 = vmatpush1.msra.mxu0 0.0
    %5911 = vmatprep.subr.mxu0 0.0
    %5912 = vmatpush1.msra.mxu0 0.0
    %5913 = vmatprep.subr.mxu0 0.0
    %5914 = vmatpush1.msra.mxu0 0.0
    %5915 = vmatprep.subr.mxu0 0.0
    %5916 = vmatpush1.msra.mxu0 0.0
    %5917 = vmatprep.subr.mxu0 0.0
    %5918 = vmatpush1.msra.mxu0 0.0
    %5919 = vmatprep.subr.mxu0 0.0
    %5920 = vmatpush1.msra.mxu0 0.0
    %5921 = vmatprep.subr.mxu0 0.0
    %5922 = vmatpush1.msra.mxu0 0.0
    %5923 = vmatprep.subr.mxu0 0.0
    %5924 = vmatpush1.msra.mxu0 0.0
    %5925 = vmatprep.subr.mxu0 0.0
    %5926 = vmatpush1.msra.mxu0 0.0
    %5927 = vmatprep.subr.mxu0 0.0
    %5928 = vmatpush1.msra.mxu0 0.0
    %5929 = vmatprep.subr.mxu0 0.0
    %5930 = vmatpush1.msra.mxu0 0.0
    %5931 = vmatprep.subr.mxu0 0.0
    %5932 = vmatpush1.msra.mxu0 0.0
    %5933 = vmatprep.mubr.f32.mxu0 0.0
    %v5934 = vand.u32 %v5859, 4294901760
    %v5935 = vsub.f32 %v5859, %v5934
    %v5936 = vand.u32 %v5935, 4294901760
    %v5937 = vsub.f32 %v5935, %v5936
    %v5938 = vand.u32 %v5937, 4294901760
    %5939 = vmatmul.mubr.f32.gmra.mrb[0].mxu0 %v5938
    %v5940 = vpop.f32.mrb[0].mxu0
    %v5941 = vadd.f32 0.0, %v5940
    %v5942 = vpop.f32.mrb[0].mxu0
    %v5943 = vadd.f32 0.0, %v5942
    %5944 = vdwg.mxu0
    %v5945 = vand.u32 %v105, 4294901760
    %v5946 = vsub.f32 %v105, %v5945
    %v5947 = vand.u32 %v5946, 4294901760
    %v5948 = vsub.f32 %v5946, %v5947
    %v5949 = vand.u32 %v5948, 4294901760
    %5950 = vmatprep.subr.mxu0 %v5949
    %v5951 = vand.u32 %v104, 4294901760
    %v5952 = vsub.f32 %v104, %v5951
    %v5953 = vand.u32 %v5952, 4294901760
    %v5954 = vsub.f32 %v5952, %v5953
    %v5955 = vand.u32 %v5954, 4294901760
    %5956 = vmatpush1.msra.mxu0 %v5955
    %v5957 = vand.u32 %v107, 4294901760
    %v5958 = vsub.f32 %v107, %v5957
    %v5959 = vand.u32 %v5958, 4294901760
    %v5960 = vsub.f32 %v5958, %v5959
    %v5961 = vand.u32 %v5960, 4294901760
    %5962 = vmatprep.subr.mxu0 %v5961
    %v5963 = vand.u32 %v106, 4294901760
    %v5964 = vsub.f32 %v106, %v5963
    %v5965 = vand.u32 %v5964, 4294901760
    %v5966 = vsub.f32 %v5964, %v5965
    %v5967 = vand.u32 %v5966, 4294901760
    %5968 = vmatpush1.msra.mxu0 %v5967
    %v5969 = vand.u32 %v109, 4294901760
    %v5970 = vsub.f32 %v109, %v5969
    %v5971 = vand.u32 %v5970, 4294901760
    %v5972 = vsub.f32 %v5970, %v5971
    %v5973 = vand.u32 %v5972, 4294901760
    %5974 = vmatprep.subr.mxu0 %v5973
    %v5975 = vand.u32 %v108, 4294901760
    %v5976 = vsub.f32 %v108, %v5975
    %v5977 = vand.u32 %v5976, 4294901760
    %v5978 = vsub.f32 %v5976, %v5977
    %v5979 = vand.u32 %v5978, 4294901760
    %5980 = vmatpush1.msra.mxu0 %v5979
    %v5981 = vand.u32 %v111, 4294901760
    %v5982 = vsub.f32 %v111, %v5981
    %v5983 = vand.u32 %v5982, 4294901760
    %v5984 = vsub.f32 %v5982, %v5983
    %v5985 = vand.u32 %v5984, 4294901760
    %5986 = vmatprep.subr.mxu0 %v5985
    %v5987 = vand.u32 %v110, 4294901760
    %v5988 = vsub.f32 %v110, %v5987
    %v5989 = vand.u32 %v5988, 4294901760
    %v5990 = vsub.f32 %v5988, %v5989
    %v5991 = vand.u32 %v5990, 4294901760
    %5992 = vmatpush1.msra.mxu0 %v5991
    %5993 = vmatprep.subr.mxu0 0.0
    %5994 = vmatpush1.msra.mxu0 0.0
    %5995 = vmatprep.subr.mxu0 0.0
    %5996 = vmatpush1.msra.mxu0 0.0
    %5997 = vmatprep.subr.mxu0 0.0
    %5998 = vmatpush1.msra.mxu0 0.0
    %5999 = vmatprep.subr.mxu0 0.0
    %6000 = vmatpush1.msra.mxu0 0.0
    %6001 = vmatprep.subr.mxu0 0.0
    %6002 = vmatpush1.msra.mxu0 0.0
    %6003 = vmatprep.subr.mxu0 0.0
    %6004 = vmatpush1.msra.mxu0 0.0
    %6005 = vmatprep.subr.mxu0 0.0
    %6006 = vmatpush1.msra.mxu0 0.0
    %6007 = vmatprep.subr.mxu0 0.0
    %6008 = vmatpush1.msra.mxu0 0.0
    %6009 = vmatprep.subr.mxu0 0.0
    %6010 = vmatpush1.msra.mxu0 0.0
    %6011 = vmatprep.subr.mxu0 0.0
    %6012 = vmatpush1.msra.mxu0 0.0
    %6013 = vmatprep.subr.mxu0 0.0
    %6014 = vmatpush1.msra.mxu0 0.0
    %6015 = vmatprep.subr.mxu0 0.0
    %6016 = vmatpush1.msra.mxu0 0.0
    %6017 = vmatprep.subr.mxu0 0.0
    %6018 = vmatpush1.msra.mxu0 0.0
    %6019 = vmatprep.subr.mxu0 0.0
    %6020 = vmatpush1.msra.mxu0 0.0
    %6021 = vmatprep.subr.mxu0 0.0
    %6022 = vmatpush1.msra.mxu0 0.0
    %6023 = vmatprep.subr.mxu0 0.0
    %6024 = vmatpush1.msra.mxu0 0.0
    %6025 = vmatprep.subr.mxu0 0.0
    %6026 = vmatpush1.msra.mxu0 0.0
    %6027 = vmatprep.subr.mxu0 0.0
    %6028 = vmatpush1.msra.mxu0 0.0
    %6029 = vmatprep.subr.mxu0 0.0
    %6030 = vmatpush1.msra.mxu0 0.0
    %6031 = vmatprep.subr.mxu0 0.0
    %6032 = vmatpush1.msra.mxu0 0.0
    %6033 = vmatprep.subr.mxu0 0.0
    %6034 = vmatpush1.msra.mxu0 0.0
    %6035 = vmatprep.subr.mxu0 0.0
    %6036 = vmatpush1.msra.mxu0 0.0
    %6037 = vmatprep.subr.mxu0 0.0
    %6038 = vmatpush1.msra.mxu0 0.0
    %6039 = vmatprep.subr.mxu0 0.0
    %6040 = vmatpush1.msra.mxu0 0.0
    %6041 = vmatprep.subr.mxu0 0.0
    %6042 = vmatpush1.msra.mxu0 0.0
    %6043 = vmatprep.subr.mxu0 0.0
    %6044 = vmatpush1.msra.mxu0 0.0
    %6045 = vmatprep.subr.mxu0 0.0
    %6046 = vmatpush1.msra.mxu0 0.0
    %6047 = vmatprep.subr.mxu0 0.0
    %6048 = vmatpush1.msra.mxu0 0.0
    %6049 = vmatprep.mubr.f32.mxu0 0.0
    %v6050 = vand.u32 %v5859, 4294901760
    %6051 = vmatmul.mubr.f32.gmra.mrb[0].mxu0 %v6050
    %v6052 = vpop.f32.mrb[0].mxu0
    %v6053 = vadd.f32 %v5941, %v6052
    %v6054 = vpop.f32.mrb[0].mxu0
    %v6055 = vadd.f32 %v5943, %v6054
    %6056 = vdwg.mxu0
    %v6057 = vand.u32 %v105, 4294901760
    %v6058 = vsub.f32 %v105, %v6057
    %6059 = vmatprep.subr.mxu0 %v6058
    %v6060 = vand.u32 %v104, 4294901760
    %v6061 = vsub.f32 %v104, %v6060
    %6062 = vmatpush1.msra.mxu0 %v6061
    %v6063 = vand.u32 %v107, 4294901760
    %v6064 = vsub.f32 %v107, %v6063
    %6065 = vmatprep.subr.mxu0 %v6064
    %v6066 = vand.u32 %v106, 4294901760
    %v6067 = vsub.f32 %v106, %v6066
    %6068 = vmatpush1.msra.mxu0 %v6067
    %v6069 = vand.u32 %v109, 4294901760
    %v6070 = vsub.f32 %v109, %v6069
    %6071 = vmatprep.subr.mxu0 %v6070
    %v6072 = vand.u32 %v108, 4294901760
    %v6073 = vsub.f32 %v108, %v6072
    %6074 = vmatpush1.msra.mxu0 %v6073
    %v6075 = vand.u32 %v111, 4294901760
    %v6076 = vsub.f32 %v111, %v6075
    %6077 = vmatprep.subr.mxu0 %v6076
    %v6078 = vand.u32 %v110, 4294901760
    %v6079 = vsub.f32 %v110, %v6078
    %6080 = vmatpush1.msra.mxu0 %v6079
    %6081 = vmatprep.subr.mxu0 0.0
    %6082 = vmatpush1.msra.mxu0 0.0
    %6083 = vmatprep.subr.mxu0 0.0
    %6084 = vmatpush1.msra.mxu0 0.0
    %6085 = vmatprep.subr.mxu0 0.0
    %6086 = vmatpush1.msra.mxu0 0.0
    %6087 = vmatprep.subr.mxu0 0.0
    %6088 = vmatpush1.msra.mxu0 0.0
    %6089 = vmatprep.subr.mxu0 0.0
    %6090 = vmatpush1.msra.mxu0 0.0
    %6091 = vmatprep.subr.mxu0 0.0
    %6092 = vmatpush1.msra.mxu0 0.0
    %6093 = vmatprep.subr.mxu0 0.0
    %6094 = vmatpush1.msra.mxu0 0.0
    %6095 = vmatprep.subr.mxu0 0.0
    %6096 = vmatpush1.msra.mxu0 0.0
    %6097 = vmatprep.subr.mxu0 0.0
    %6098 = vmatpush1.msra.mxu0 0.0
    %6099 = vmatprep.subr.mxu0 0.0
    %6100 = vmatpush1.msra.mxu0 0.0
    %6101 = vmatprep.subr.mxu0 0.0
    %6102 = vmatpush1.msra.mxu0 0.0
    %6103 = vmatprep.subr.mxu0 0.0
    %6104 = vmatpush1.msra.mxu0 0.0
    %6105 = vmatprep.subr.mxu0 0.0
    %6106 = vmatpush1.msra.mxu0 0.0
    %6107 = vmatprep.subr.mxu0 0.0
    %6108 = vmatpush1.msra.mxu0 0.0
    %6109 = vmatprep.subr.mxu0 0.0
    %6110 = vmatpush1.msra.mxu0 0.0
    %6111 = vmatprep.subr.mxu0 0.0
    %6112 = vmatpush1.msra.mxu0 0.0
    %6113 = vmatprep.subr.mxu0 0.0
    %6114 = vmatpush1.msra.mxu0 0.0
    %6115 = vmatprep.subr.mxu0 0.0
    %6116 = vmatpush1.msra.mxu0 0.0
    %6117 = vmatprep.subr.mxu0 0.0
    %6118 = vmatpush1.msra.mxu0 0.0
    %6119 = vmatprep.subr.mxu0 0.0
    %6120 = vmatpush1.msra.mxu0 0.0
    %6121 = vmatprep.subr.mxu0 0.0
    %6122 = vmatpush1.msra.mxu0 0.0
    %6123 = vmatprep.subr.mxu0 0.0
    %6124 = vmatpush1.msra.mxu0 0.0
    %6125 = vmatprep.subr.mxu0 0.0
    %6126 = vmatpush1.msra.mxu0 0.0
    %6127 = vmatprep.subr.mxu0 0.0
    %6128 = vmatpush1.msra.mxu0 0.0
    %6129 = vmatprep.subr.mxu0 0.0
    %6130 = vmatpush1.msra.mxu0 0.0
    %6131 = vmatprep.subr.mxu0 0.0
    %6132 = vmatpush1.msra.mxu0 0.0
    %6133 = vmatprep.subr.mxu0 0.0
    %6134 = vmatpush1.msra.mxu0 0.0
    %6135 = vmatprep.subr.mxu0 0.0
    %6136 = vmatpush1.msra.mxu0 0.0
    %6137 = vmatprep.mubr.f32.mxu0 0.0
    %v6138 = vand.u32 %v5859, 4294901760
    %v6139 = vsub.f32 %v5859, %v6138
    %6140 = vmatmul.mubr.f32.gmra.mrb[0].mxu0 %v6139
    %v6141 = vpop.f32.mrb[0].mxu0
    %v6142 = vadd.f32 %v6053, %v6141
    %v6143 = vpop.f32.mrb[0].mxu0
    %v6144 = vadd.f32 %v6055, %v6143
    %6145 = vdwg.mxu0
    %v6146 = vand.u32 %v105, 4294901760
    %6147 = vmatprep.subr.mxu0 %v6146
    %v6148 = vand.u32 %v104, 4294901760
    %6149 = vmatpush1.msra.mxu0 %v6148
    %v6150 = vand.u32 %v107, 4294901760
    %6151 = vmatprep.subr.mxu0 %v6150
    %v6152 = vand.u32 %v106, 4294901760
    %6153 = vmatpush1.msra.mxu0 %v6152
    %v6154 = vand.u32 %v109, 4294901760
    %6155 = vmatprep.subr.mxu0 %v6154
    %v6156 = vand.u32 %v108, 4294901760
    %6157 = vmatpush1.msra.mxu0 %v6156
    %v6158 = vand.u32 %v111, 4294901760
    %6159 = vmatprep.subr.mxu0 %v6158
    %v6160 = vand.u32 %v110, 4294901760
    %6161 = vmatpush1.msra.mxu0 %v6160
    %6162 = vmatprep.subr.mxu0 0.0
    %6163 = vmatpush1.msra.mxu0 0.0
    %6164 = vmatprep.subr.mxu0 0.0
    %6165 = vmatpush1.msra.mxu0 0.0
    %6166 = vmatprep.subr.mxu0 0.0
    %6167 = vmatpush1.msra.mxu0 0.0
    %6168 = vmatprep.subr.mxu0 0.0
    %6169 = vmatpush1.msra.mxu0 0.0
    %6170 = vmatprep.subr.mxu0 0.0
    %6171 = vmatpush1.msra.mxu0 0.0
    %6172 = vmatprep.subr.mxu0 0.0
    %6173 = vmatpush1.msra.mxu0 0.0
    %6174 = vmatprep.subr.mxu0 0.0
    %6175 = vmatpush1.msra.mxu0 0.0
    %6176 = vmatprep.subr.mxu0 0.0
    %6177 = vmatpush1.msra.mxu0 0.0
    %6178 = vmatprep.subr.mxu0 0.0
    %6179 = vmatpush1.msra.mxu0 0.0
    %6180 = vmatprep.subr.mxu0 0.0
    %6181 = vmatpush1.msra.mxu0 0.0
    %6182 = vmatprep.subr.mxu0 0.0
    %6183 = vmatpush1.msra.mxu0 0.0
    %6184 = vmatprep.subr.mxu0 0.0
    %6185 = vmatpush1.msra.mxu0 0.0
    %6186 = vmatprep.subr.mxu0 0.0
    %6187 = vmatpush1.msra.mxu0 0.0
    %6188 = vmatprep.subr.mxu0 0.0
    %6189 = vmatpush1.msra.mxu0 0.0
    %6190 = vmatprep.subr.mxu0 0.0
    %6191 = vmatpush1.msra.mxu0 0.0
    %6192 = vmatprep.subr.mxu0 0.0
    %6193 = vmatpush1.msra.mxu0 0.0
    %6194 = vmatprep.subr.mxu0 0.0
    %6195 = vmatpush1.msra.mxu0 0.0
    %6196 = vmatprep.subr.mxu0 0.0
    %6197 = vmatpush1.msra.mxu0 0.0
    %6198 = vmatprep.subr.mxu0 0.0
    %6199 = vmatpush1.msra.mxu0 0.0
    %6200 = vmatprep.subr.mxu0 0.0
    %6201 = vmatpush1.msra.mxu0 0.0
    %6202 = vmatprep.subr.mxu0 0.0
    %6203 = vmatpush1.msra.mxu0 0.0
    %6204 = vmatprep.subr.mxu0 0.0
    %6205 = vmatpush1.msra.mxu0 0.0
    %6206 = vmatprep.subr.mxu0 0.0
    %6207 = vmatpush1.msra.mxu0 0.0
    %6208 = vmatprep.subr.mxu0 0.0
    %6209 = vmatpush1.msra.mxu0 0.0
    %6210 = vmatprep.subr.mxu0 0.0
    %6211 = vmatpush1.msra.mxu0 0.0
    %6212 = vmatprep.subr.mxu0 0.0
    %6213 = vmatpush1.msra.mxu0 0.0
    %6214 = vmatprep.subr.mxu0 0.0
    %6215 = vmatpush1.msra.mxu0 0.0
    %6216 = vmatprep.subr.mxu0 0.0
    %6217 = vmatpush1.msra.mxu0 0.0
    %6218 = vmatprep.mubr.f32.mxu0 0.0
    %v6219 = vand.u32 %v5859, 4294901760
    %v6220 = vsub.f32 %v5859, %v6219
    %v6221 = vand.u32 %v6220, 4294901760
    %6222 = vmatmul.mubr.f32.gmra.mrb[0].mxu0 %v6221
    %v6223 = vpop.f32.mrb[0].mxu0
    %v6224 = vadd.f32 %v6142, %v6223
    %v6225 = vpop.f32.mrb[0].mxu0
    %v6226 = vadd.f32 %v6144, %v6225
    %6227 = vdwg.mxu0
    %v6228 = vand.u32 %v105, 4294901760
    %v6229 = vsub.f32 %v105, %v6228
    %v6230 = vand.u32 %v6229, 4294901760
    %6231 = vmatprep.subr.mxu0 %v6230
    %v6232 = vand.u32 %v104, 4294901760
    %v6233 = vsub.f32 %v104, %v6232
    %v6234 = vand.u32 %v6233, 4294901760
    %6235 = vmatpush1.msra.mxu0 %v6234
    %v6236 = vand.u32 %v107, 4294901760
    %v6237 = vsub.f32 %v107, %v6236
    %v6238 = vand.u32 %v6237, 4294901760
    %6239 = vmatprep.subr.mxu0 %v6238
    %v6240 = vand.u32 %v106, 4294901760
    %v6241 = vsub.f32 %v106, %v6240
    %v6242 = vand.u32 %v6241, 4294901760
    %6243 = vmatpush1.msra.mxu0 %v6242
    %v6244 = vand.u32 %v109, 4294901760
    %v6245 = vsub.f32 %v109, %v6244
    %v6246 = vand.u32 %v6245, 4294901760
    %6247 = vmatprep.subr.mxu0 %v6246
    %v6248 = vand.u32 %v108, 4294901760
    %v6249 = vsub.f32 %v108, %v6248
    %v6250 = vand.u32 %v6249, 4294901760
    %6251 = vmatpush1.msra.mxu0 %v6250
    %v6252 = vand.u32 %v111, 4294901760
    %v6253 = vsub.f32 %v111, %v6252
    %v6254 = vand.u32 %v6253, 4294901760
    %6255 = vmatprep.subr.mxu0 %v6254
    %v6256 = vand.u32 %v110, 4294901760
    %v6257 = vsub.f32 %v110, %v6256
    %v6258 = vand.u32 %v6257, 4294901760
    %6259 = vmatpush1.msra.mxu0 %v6258
    %6260 = vmatprep.subr.mxu0 0.0
    %6261 = vmatpush1.msra.mxu0 0.0
    %6262 = vmatprep.subr.mxu0 0.0
    %6263 = vmatpush1.msra.mxu0 0.0
    %6264 = vmatprep.subr.mxu0 0.0
    %6265 = vmatpush1.msra.mxu0 0.0
    %6266 = vmatprep.subr.mxu0 0.0
    %6267 = vmatpush1.msra.mxu0 0.0
    %6268 = vmatprep.subr.mxu0 0.0
    %6269 = vmatpush1.msra.mxu0 0.0
    %6270 = vmatprep.subr.mxu0 0.0
    %6271 = vmatpush1.msra.mxu0 0.0
    %6272 = vmatprep.subr.mxu0 0.0
    %6273 = vmatpush1.msra.mxu0 0.0
    %6274 = vmatprep.subr.mxu0 0.0
    %6275 = vmatpush1.msra.mxu0 0.0
    %6276 = vmatprep.subr.mxu0 0.0
    %6277 = vmatpush1.msra.mxu0 0.0
    %6278 = vmatprep.subr.mxu0 0.0
    %6279 = vmatpush1.msra.mxu0 0.0
    %6280 = vmatprep.subr.mxu0 0.0
    %6281 = vmatpush1.msra.mxu0 0.0
    %6282 = vmatprep.subr.mxu0 0.0
    %6283 = vmatpush1.msra.mxu0 0.0
    %6284 = vmatprep.subr.mxu0 0.0
    %6285 = vmatpush1.msra.mxu0 0.0
    %6286 = vmatprep.subr.mxu0 0.0
    %6287 = vmatpush1.msra.mxu0 0.0
    %6288 = vmatprep.subr.mxu0 0.0
    %6289 = vmatpush1.msra.mxu0 0.0
    %6290 = vmatprep.subr.mxu0 0.0
    %6291 = vmatpush1.msra.mxu0 0.0
    %6292 = vmatprep.subr.mxu0 0.0
    %6293 = vmatpush1.msra.mxu0 0.0
    %6294 = vmatprep.subr.mxu0 0.0
    %6295 = vmatpush1.msra.mxu0 0.0
    %6296 = vmatprep.subr.mxu0 0.0
    %6297 = vmatpush1.msra.mxu0 0.0
    %6298 = vmatprep.subr.mxu0 0.0
    %6299 = vmatpush1.msra.mxu0 0.0
    %6300 = vmatprep.subr.mxu0 0.0
    %6301 = vmatpush1.msra.mxu0 0.0
    %6302 = vmatprep.subr.mxu0 0.0
    %6303 = vmatpush1.msra.mxu0 0.0
    %6304 = vmatprep.subr.mxu0 0.0
    %6305 = vmatpush1.msra.mxu0 0.0
    %6306 = vmatprep.subr.mxu0 0.0
    %6307 = vmatpush1.msra.mxu0 0.0
    %6308 = vmatprep.subr.mxu0 0.0
    %6309 = vmatpush1.msra.mxu0 0.0
    %6310 = vmatprep.subr.mxu0 0.0
    %6311 = vmatpush1.msra.mxu0 0.0
    %6312 = vmatprep.subr.mxu0 0.0
    %6313 = vmatpush1.msra.mxu0 0.0
    %6314 = vmatprep.subr.mxu0 0.0
    %6315 = vmatpush1.msra.mxu0 0.0
    %6316 = vmatprep.mubr.f32.mxu0 0.0
    %v6317 = vand.u32 %v5859, 4294901760
    %6318 = vmatmul.mubr.f32.gmra.mrb[0].mxu0 %v6317
    %v6319 = vpop.f32.mrb[0].mxu0
    %v6320 = vadd.f32 %v6224, %v6319
    %v6321 = vpop.f32.mrb[0].mxu0
    %v6322 = vadd.f32 %v6226, %v6321
    %6323 = vdwg.mxu0
    %v6324 = vand.u32 %v105, 4294901760
    %6325 = vmatprep.subr.mxu0 %v6324
    %v6326 = vand.u32 %v104, 4294901760
    %6327 = vmatpush1.msra.mxu0 %v6326
    %v6328 = vand.u32 %v107, 4294901760
    %6329 = vmatprep.subr.mxu0 %v6328
    %v6330 = vand.u32 %v106, 4294901760
    %6331 = vmatpush1.msra.mxu0 %v6330
    %v6332 = vand.u32 %v109, 4294901760
    %6333 = vmatprep.subr.mxu0 %v6332
    %v6334 = vand.u32 %v108, 4294901760
    %6335 = vmatpush1.msra.mxu0 %v6334
    %v6336 = vand.u32 %v111, 4294901760
    %6337 = vmatprep.subr.mxu0 %v6336
    %v6338 = vand.u32 %v110, 4294901760
    %6339 = vmatpush1.msra.mxu0 %v6338
    %6340 = vmatprep.subr.mxu0 0.0
    %6341 = vmatpush1.msra.mxu0 0.0
    %6342 = vmatprep.subr.mxu0 0.0
    %6343 = vmatpush1.msra.mxu0 0.0
    %6344 = vmatprep.subr.mxu0 0.0
    %6345 = vmatpush1.msra.mxu0 0.0
    %6346 = vmatprep.subr.mxu0 0.0
    %6347 = vmatpush1.msra.mxu0 0.0
    %6348 = vmatprep.subr.mxu0 0.0
    %6349 = vmatpush1.msra.mxu0 0.0
    %6350 = vmatprep.subr.mxu0 0.0
    %6351 = vmatpush1.msra.mxu0 0.0
    %6352 = vmatprep.subr.mxu0 0.0
    %6353 = vmatpush1.msra.mxu0 0.0
    %6354 = vmatprep.subr.mxu0 0.0
    %6355 = vmatpush1.msra.mxu0 0.0
    %6356 = vmatprep.subr.mxu0 0.0
    %6357 = vmatpush1.msra.mxu0 0.0
    %6358 = vmatprep.subr.mxu0 0.0
    %6359 = vmatpush1.msra.mxu0 0.0
    %6360 = vmatprep.subr.mxu0 0.0
    %6361 = vmatpush1.msra.mxu0 0.0
    %6362 = vmatprep.subr.mxu0 0.0
    %6363 = vmatpush1.msra.mxu0 0.0
    %6364 = vmatprep.subr.mxu0 0.0
    %6365 = vmatpush1.msra.mxu0 0.0
    %6366 = vmatprep.subr.mxu0 0.0
    %6367 = vmatpush1.msra.mxu0 0.0
    %6368 = vmatprep.subr.mxu0 0.0
    %6369 = vmatpush1.msra.mxu0 0.0
    %6370 = vmatprep.subr.mxu0 0.0
    %6371 = vmatpush1.msra.mxu0 0.0
    %6372 = vmatprep.subr.mxu0 0.0
    %6373 = vmatpush1.msra.mxu0 0.0
    %6374 = vmatprep.subr.mxu0 0.0
    %6375 = vmatpush1.msra.mxu0 0.0
    %6376 = vmatprep.subr.mxu0 0.0
    %6377 = vmatpush1.msra.mxu0 0.0
    %6378 = vmatprep.subr.mxu0 0.0
    %6379 = vmatpush1.msra.mxu0 0.0
    %6380 = vmatprep.subr.mxu0 0.0
    %6381 = vmatpush1.msra.mxu0 0.0
    %6382 = vmatprep.subr.mxu0 0.0
    %6383 = vmatpush1.msra.mxu0 0.0
    %6384 = vmatprep.subr.mxu0 0.0
    %6385 = vmatpush1.msra.mxu0 0.0
    %6386 = vmatprep.subr.mxu0 0.0
    %6387 = vmatpush1.msra.mxu0 0.0
    %6388 = vmatprep.subr.mxu0 0.0
    %6389 = vmatpush1.msra.mxu0 0.0
    %6390 = vmatprep.subr.mxu0 0.0
    %6391 = vmatpush1.msra.mxu0 0.0
    %6392 = vmatprep.subr.mxu0 0.0
    %6393 = vmatpush1.msra.mxu0 0.0
    %6394 = vmatprep.subr.mxu0 0.0
    %6395 = vmatpush1.msra.mxu0 0.0
    %6396 = vmatprep.mubr.f32.mxu0 0.0
    %v6397 = vand.u32 %v5859, 4294901760
    %6398 = vmatmul.mubr.f32.gmra.mrb[0].mxu0 %v6397
    %v6399 = vpop.f32.mrb[0].mxu0
    %v6400 = vadd.f32 %v6320, %v6399
    %v6401 = vpop.f32.mrb[0].mxu0
    %v6402 = vadd.f32 %v6322, %v6401
    %6403 = vdwg.mxu0
    %v6404 = vadd.f32 %v6402, %v2897
    %v6405 = vmul.f32 %v2902, %v5824
    %v6406 = vmul.f32 %v2907, %v6404
    %v6407 = vadd.f32 %v6405, %v6406
    %v6408 = vadd.f32 %v2300, %v6400
    %v6409 = vmul.f32 %v2305, %v5828
    %v6410 = vmul.f32 %v2310, %v6408
    %v6411 = vadd.f32 %v6409, %v6410
    %6413 = vrot.lane.b32.xlu0 %v6411, 96
    %v6414 = vpop.permute.xlu0 %6413
    %v6416 = vadd.f32 %v6411, %v6414
    %6417 = vrot.lane.b32.xlu0 %v6411, 64
    %v6418 = vpop.permute.xlu0 %6417
    %v6420 = vadd.f32 %v6416, %v6418
    %6421 = vrot.lane.b32.xlu0 %v6411, 32
    %v6422 = vpop.permute.xlu0 %6421
    %v6424 = vadd.f32 %v6420, %v6422
    %v6425 = vmul.f32 %v2329, %v5853
    %v6426 = vmul.f32 %v2334, %v6424
    %v6427 = vadd.f32 %v6425, %v6426
    %v6428 = vmul.f32 %v5857, 0.5
    %v6429 = vsub.f32 %v6427, %v6428
    %v6430 = vsel %vm71, 1, 0
    %v6431 = vlaneseq
    %v6432 = vshrl.u32 %v6431, 7
    %v6433 = vsub.s32 0, %v6432
    %v6434 = vrot.slane %v6430, %v6433
    %vm6435 = vcmp.eq.s32.totalorder %v6434, 1
    %v6436 = vsel %vm6435, %v6429, %v5853
    %vm6437 = vcmp.gt.f32.partialorder %v6436, 0.5
    %vm6438 = vmand %vm6437, %vm6435
    %v6439 = vsel %vm6438, 1, 0
    %v6440 = vcvt.s32.f32 %v6439
    %v6442 = vsel %vm113, %v6440, 0
    %v6444 = vand.u32 %v105, 4294901760
    %6445 = vmatprep.subr.mxu0 %v6444
    %v6446 = vand.u32 %v104, 4294901760
    %6447 = vmatpush1.msra.mxu0 %v6446
    %v6448 = vand.u32 %v107, 4294901760
    %6449 = vmatprep.subr.mxu0 %v6448
    %v6450 = vand.u32 %v106, 4294901760
    %6451 = vmatpush1.msra.mxu0 %v6450
    %v6452 = vand.u32 %v109, 4294901760
    %6453 = vmatprep.subr.mxu0 %v6452
    %v6454 = vand.u32 %v108, 4294901760
    %6455 = vmatpush1.msra.mxu0 %v6454
    %v6456 = vand.u32 %v111, 4294901760
    %6457 = vmatprep.subr.mxu0 %v6456
    %v6458 = vand.u32 %v110, 4294901760
    %6459 = vmatpush1.msra.mxu0 %v6458
    %6460 = vmatprep.subr.mxu0 0.0
    %6461 = vmatpush1.msra.mxu0 0.0
    %6462 = vmatprep.subr.mxu0 0.0
    %6463 = vmatpush1.msra.mxu0 0.0
    %6464 = vmatprep.subr.mxu0 0.0
    %6465 = vmatpush1.msra.mxu0 0.0
    %6466 = vmatprep.subr.mxu0 0.0
    %6467 = vmatpush1.msra.mxu0 0.0
    %6468 = vmatprep.subr.mxu0 0.0
    %6469 = vmatpush1.msra.mxu0 0.0
    %6470 = vmatprep.subr.mxu0 0.0
    %6471 = vmatpush1.msra.mxu0 0.0
    %6472 = vmatprep.subr.mxu0 0.0
    %6473 = vmatpush1.msra.mxu0 0.0
    %6474 = vmatprep.subr.mxu0 0.0
    %6475 = vmatpush1.msra.mxu0 0.0
    %6476 = vmatprep.subr.mxu0 0.0
    %6477 = vmatpush1.msra.mxu0 0.0
    %6478 = vmatprep.subr.mxu0 0.0
    %6479 = vmatpush1.msra.mxu0 0.0
    %6480 = vmatprep.subr.mxu0 0.0
    %6481 = vmatpush1.msra.mxu0 0.0
    %6482 = vmatprep.subr.mxu0 0.0
    %6483 = vmatpush1.msra.mxu0 0.0
    %6484 = vmatprep.subr.mxu0 0.0
    %6485 = vmatpush1.msra.mxu0 0.0
    %6486 = vmatprep.subr.mxu0 0.0
    %6487 = vmatpush1.msra.mxu0 0.0
    %6488 = vmatprep.subr.mxu0 0.0
    %6489 = vmatpush1.msra.mxu0 0.0
    %6490 = vmatprep.subr.mxu0 0.0
    %6491 = vmatpush1.msra.mxu0 0.0
    %6492 = vmatprep.subr.mxu0 0.0
    %6493 = vmatpush1.msra.mxu0 0.0
    %6494 = vmatprep.subr.mxu0 0.0
    %6495 = vmatpush1.msra.mxu0 0.0
    %6496 = vmatprep.subr.mxu0 0.0
    %6497 = vmatpush1.msra.mxu0 0.0
    %6498 = vmatprep.subr.mxu0 0.0
    %6499 = vmatpush1.msra.mxu0 0.0
    %6500 = vmatprep.subr.mxu0 0.0
    %6501 = vmatpush1.msra.mxu0 0.0
    %6502 = vmatprep.subr.mxu0 0.0
    %6503 = vmatpush1.msra.mxu0 0.0
    %6504 = vmatprep.subr.mxu0 0.0
    %6505 = vmatpush1.msra.mxu0 0.0
    %6506 = vmatprep.subr.mxu0 0.0
    %6507 = vmatpush1.msra.mxu0 0.0
    %6508 = vmatprep.subr.mxu0 0.0
    %6509 = vmatpush1.msra.mxu0 0.0
    %6510 = vmatprep.subr.mxu0 0.0
    %6511 = vmatpush1.msra.mxu0 0.0
    %6512 = vmatprep.subr.mxu0 0.0
    %6513 = vmatpush1.msra.mxu0 0.0
    %6514 = vmatprep.subr.mxu0 0.0
    %6515 = vmatpush1.msra.mxu0 0.0
    %6516 = vmatprep.mubr.f32.mxu0 0.0
    %v6517 = vand.u32 %v6442, 4294901760
    %v6518 = vsub.f32 %v6442, %v6517
    %v6519 = vand.u32 %v6518, 4294901760
    %v6520 = vsub.f32 %v6518, %v6519
    %v6521 = vand.u32 %v6520, 4294901760
    %6522 = vmatmul.mubr.f32.gmra.mrb[0].mxu0 %v6521
    %v6523 = vpop.f32.mrb[0].mxu0
    %v6524 = vpop.f32.mrb[0].mxu0
    %v6525 = vadd.f32 0.0, %v6524
    %6526 = vdwg.mxu0
    %v6527 = vand.u32 %v105, 4294901760
    %v6528 = vsub.f32 %v105, %v6527
    %v6529 = vand.u32 %v6528, 4294901760
    %v6530 = vsub.f32 %v6528, %v6529
    %v6531 = vand.u32 %v6530, 4294901760
    %6532 = vmatprep.subr.mxu0 %v6531
    %v6533 = vand.u32 %v104, 4294901760
    %v6534 = vsub.f32 %v104, %v6533
    %v6535 = vand.u32 %v6534, 4294901760
    %v6536 = vsub.f32 %v6534, %v6535
    %v6537 = vand.u32 %v6536, 4294901760
    %6538 = vmatpush1.msra.mxu0 %v6537
    %v6539 = vand.u32 %v107, 4294901760
    %v6540 = vsub.f32 %v107, %v6539
    %v6541 = vand.u32 %v6540, 4294901760
    %v6542 = vsub.f32 %v6540, %v6541
    %v6543 = vand.u32 %v6542, 4294901760
    %6544 = vmatprep.subr.mxu0 %v6543
    %v6545 = vand.u32 %v106, 4294901760
    %v6546 = vsub.f32 %v106, %v6545
    %v6547 = vand.u32 %v6546, 4294901760
    %v6548 = vsub.f32 %v6546, %v6547
    %v6549 = vand.u32 %v6548, 4294901760
    %6550 = vmatpush1.msra.mxu0 %v6549
    %v6551 = vand.u32 %v109, 4294901760
    %v6552 = vsub.f32 %v109, %v6551
    %v6553 = vand.u32 %v6552, 4294901760
    %v6554 = vsub.f32 %v6552, %v6553
    %v6555 = vand.u32 %v6554, 4294901760
    %6556 = vmatprep.subr.mxu0 %v6555
    %v6557 = vand.u32 %v108, 4294901760
    %v6558 = vsub.f32 %v108, %v6557
    %v6559 = vand.u32 %v6558, 4294901760
    %v6560 = vsub.f32 %v6558, %v6559
    %v6561 = vand.u32 %v6560, 4294901760
    %6562 = vmatpush1.msra.mxu0 %v6561
    %v6563 = vand.u32 %v111, 4294901760
    %v6564 = vsub.f32 %v111, %v6563
    %v6565 = vand.u32 %v6564, 4294901760
    %v6566 = vsub.f32 %v6564, %v6565
    %v6567 = vand.u32 %v6566, 4294901760
    %6568 = vmatprep.subr.mxu0 %v6567
    %v6569 = vand.u32 %v110, 4294901760
    %v6570 = vsub.f32 %v110, %v6569
    %v6571 = vand.u32 %v6570, 4294901760
    %v6572 = vsub.f32 %v6570, %v6571
    %v6573 = vand.u32 %v6572, 4294901760
    %6574 = vmatpush1.msra.mxu0 %v6573
    %6575 = vmatprep.subr.mxu0 0.0
    %6576 = vmatpush1.msra.mxu0 0.0
    %6577 = vmatprep.subr.mxu0 0.0
    %6578 = vmatpush1.msra.mxu0 0.0
    %6579 = vmatprep.subr.mxu0 0.0
    %6580 = vmatpush1.msra.mxu0 0.0
    %6581 = vmatprep.subr.mxu0 0.0
    %6582 = vmatpush1.msra.mxu0 0.0
    %6583 = vmatprep.subr.mxu0 0.0
    %6584 = vmatpush1.msra.mxu0 0.0
    %6585 = vmatprep.subr.mxu0 0.0
    %6586 = vmatpush1.msra.mxu0 0.0
    %6587 = vmatprep.subr.mxu0 0.0
    %6588 = vmatpush1.msra.mxu0 0.0
    %6589 = vmatprep.subr.mxu0 0.0
    %6590 = vmatpush1.msra.mxu0 0.0
    %6591 = vmatprep.subr.mxu0 0.0
    %6592 = vmatpush1.msra.mxu0 0.0
    %6593 = vmatprep.subr.mxu0 0.0
    %6594 = vmatpush1.msra.mxu0 0.0
    %6595 = vmatprep.subr.mxu0 0.0
    %6596 = vmatpush1.msra.mxu0 0.0
    %6597 = vmatprep.subr.mxu0 0.0
    %6598 = vmatpush1.msra.mxu0 0.0
    %6599 = vmatprep.subr.mxu0 0.0
    %6600 = vmatpush1.msra.mxu0 0.0
    %6601 = vmatprep.subr.mxu0 0.0
    %6602 = vmatpush1.msra.mxu0 0.0
    %6603 = vmatprep.subr.mxu0 0.0
    %6604 = vmatpush1.msra.mxu0 0.0
    %6605 = vmatprep.subr.mxu0 0.0
    %6606 = vmatpush1.msra.mxu0 0.0
    %6607 = vmatprep.subr.mxu0 0.0
    %6608 = vmatpush1.msra.mxu0 0.0
    %6609 = vmatprep.subr.mxu0 0.0
    %6610 = vmatpush1.msra.mxu0 0.0
    %6611 = vmatprep.subr.mxu0 0.0
    %6612 = vmatpush1.msra.mxu0 0.0
    %6613 = vmatprep.subr.mxu0 0.0
    %6614 = vmatpush1.msra.mxu0 0.0
    %6615 = vmatprep.subr.mxu0 0.0
    %6616 = vmatpush1.msra.mxu0 0.0
    %6617 = vmatprep.subr.mxu0 0.0
    %6618 = vmatpush1.msra.mxu0 0.0
    %6619 = vmatprep.subr.mxu0 0.0
    %6620 = vmatpush1.msra.mxu0 0.0
    %6621 = vmatprep.subr.mxu0 0.0
    %6622 = vmatpush1.msra.mxu0 0.0
    %6623 = vmatprep.subr.mxu0 0.0
    %6624 = vmatpush1.msra.mxu0 0.0
    %6625 = vmatprep.subr.mxu0 0.0
    %6626 = vmatpush1.msra.mxu0 0.0
    %6627 = vmatprep.subr.mxu0 0.0
    %6628 = vmatpush1.msra.mxu0 0.0
    %6629 = vmatprep.subr.mxu0 0.0
    %6630 = vmatpush1.msra.mxu0 0.0
    %6631 = vmatprep.mubr.f32.mxu0 0.0
    %v6632 = vand.u32 %v6442, 4294901760
    %6633 = vmatmul.mubr.f32.gmra.mrb[0].mxu0 %v6632
    %v6634 = vpop.f32.mrb[0].mxu0
    %v6635 = vpop.f32.mrb[0].mxu0
    %v6636 = vadd.f32 %v6525, %v6635
    %6637 = vdwg.mxu0
    %v6638 = vand.u32 %v105, 4294901760
    %v6639 = vsub.f32 %v105, %v6638
    %6640 = vmatprep.subr.mxu0 %v6639
    %v6641 = vand.u32 %v104, 4294901760
    %v6642 = vsub.f32 %v104, %v6641
    %6643 = vmatpush1.msra.mxu0 %v6642
    %v6644 = vand.u32 %v107, 4294901760
    %v6645 = vsub.f32 %v107, %v6644
    %6646 = vmatprep.subr.mxu0 %v6645
    %v6647 = vand.u32 %v106, 4294901760
    %v6648 = vsub.f32 %v106, %v6647
    %6649 = vmatpush1.msra.mxu0 %v6648
    %v6650 = vand.u32 %v109, 4294901760
    %v6651 = vsub.f32 %v109, %v6650
    %6652 = vmatprep.subr.mxu0 %v6651
    %v6653 = vand.u32 %v108, 4294901760
    %v6654 = vsub.f32 %v108, %v6653
    %6655 = vmatpush1.msra.mxu0 %v6654
    %v6656 = vand.u32 %v111, 4294901760
    %v6657 = vsub.f32 %v111, %v6656
    %6658 = vmatprep.subr.mxu0 %v6657
    %v6659 = vand.u32 %v110, 4294901760
    %v6660 = vsub.f32 %v110, %v6659
    %6661 = vmatpush1.msra.mxu0 %v6660
    %6662 = vmatprep.subr.mxu0 0.0
    %6663 = vmatpush1.msra.mxu0 0.0
    %6664 = vmatprep.subr.mxu0 0.0
    %6665 = vmatpush1.msra.mxu0 0.0
    %6666 = vmatprep.subr.mxu0 0.0
    %6667 = vmatpush1.msra.mxu0 0.0
    %6668 = vmatprep.subr.mxu0 0.0
    %6669 = vmatpush1.msra.mxu0 0.0
    %6670 = vmatprep.subr.mxu0 0.0
    %6671 = vmatpush1.msra.mxu0 0.0
    %6672 = vmatprep.subr.mxu0 0.0
    %6673 = vmatpush1.msra.mxu0 0.0
    %6674 = vmatprep.subr.mxu0 0.0
    %6675 = vmatpush1.msra.mxu0 0.0
    %6676 = vmatprep.subr.mxu0 0.0
    %6677 = vmatpush1.msra.mxu0 0.0
    %6678 = vmatprep.subr.mxu0 0.0
    %6679 = vmatpush1.msra.mxu0 0.0
    %6680 = vmatprep.subr.mxu0 0.0
    %6681 = vmatpush1.msra.mxu0 0.0
    %6682 = vmatprep.subr.mxu0 0.0
    %6683 = vmatpush1.msra.mxu0 0.0
    %6684 = vmatprep.subr.mxu0 0.0
    %6685 = vmatpush1.msra.mxu0 0.0
    %6686 = vmatprep.subr.mxu0 0.0
    %6687 = vmatpush1.msra.mxu0 0.0
    %6688 = vmatprep.subr.mxu0 0.0
    %6689 = vmatpush1.msra.mxu0 0.0
    %6690 = vmatprep.subr.mxu0 0.0
    %6691 = vmatpush1.msra.mxu0 0.0
    %6692 = vmatprep.subr.mxu0 0.0
    %6693 = vmatpush1.msra.mxu0 0.0
    %6694 = vmatprep.subr.mxu0 0.0
    %6695 = vmatpush1.msra.mxu0 0.0
    %6696 = vmatprep.subr.mxu0 0.0
    %6697 = vmatpush1.msra.mxu0 0.0
    %6698 = vmatprep.subr.mxu0 0.0
    %6699 = vmatpush1.msra.mxu0 0.0
    %6700 = vmatprep.subr.mxu0 0.0
    %6701 = vmatpush1.msra.mxu0 0.0
    %6702 = vmatprep.subr.mxu0 0.0
    %6703 = vmatpush1.msra.mxu0 0.0
    %6704 = vmatprep.subr.mxu0 0.0
    %6705 = vmatpush1.msra.mxu0 0.0
    %6706 = vmatprep.subr.mxu0 0.0
    %6707 = vmatpush1.msra.mxu0 0.0
    %6708 = vmatprep.subr.mxu0 0.0
    %6709 = vmatpush1.msra.mxu0 0.0
    %6710 = vmatprep.subr.mxu0 0.0
    %6711 = vmatpush1.msra.mxu0 0.0
    %6712 = vmatprep.subr.mxu0 0.0
    %6713 = vmatpush1.msra.mxu0 0.0
    %6714 = vmatprep.subr.mxu0 0.0
    %6715 = vmatpush1.msra.mxu0 0.0
    %6716 = vmatprep.subr.mxu0 0.0
    %6717 = vmatpush1.msra.mxu0 0.0
    %6718 = vmatprep.mubr.f32.mxu0 0.0
    %v6719 = vand.u32 %v6442, 4294901760
    %v6720 = vsub.f32 %v6442, %v6719
    %6721 = vmatmul.mubr.f32.gmra.mrb[0].mxu0 %v6720
    %v6722 = vpop.f32.mrb[0].mxu0
    %v6723 = vpop.f32.mrb[0].mxu0
    %v6724 = vadd.f32 %v6636, %v6723
    %6725 = vdwg.mxu0
    %v6726 = vand.u32 %v105, 4294901760
    %6727 = vmatprep.subr.mxu0 %v6726
    %v6728 = vand.u32 %v104, 4294901760
    %6729 = vmatpush1.msra.mxu0 %v6728
    %v6730 = vand.u32 %v107, 4294901760
    %6731 = vmatprep.subr.mxu0 %v6730
    %v6732 = vand.u32 %v106, 4294901760
    %6733 = vmatpush1.msra.mxu0 %v6732
    %v6734 = vand.u32 %v109, 4294901760
    %6735 = vmatprep.subr.mxu0 %v6734
    %v6736 = vand.u32 %v108, 4294901760
    %6737 = vmatpush1.msra.mxu0 %v6736
    %v6738 = vand.u32 %v111, 4294901760
    %6739 = vmatprep.subr.mxu0 %v6738
    %v6740 = vand.u32 %v110, 4294901760
    %6741 = vmatpush1.msra.mxu0 %v6740
    %6742 = vmatprep.subr.mxu0 0.0
    %6743 = vmatpush1.msra.mxu0 0.0
    %6744 = vmatprep.subr.mxu0 0.0
    %6745 = vmatpush1.msra.mxu0 0.0
    %6746 = vmatprep.subr.mxu0 0.0
    %6747 = vmatpush1.msra.mxu0 0.0
    %6748 = vmatprep.subr.mxu0 0.0
    %6749 = vmatpush1.msra.mxu0 0.0
    %6750 = vmatprep.subr.mxu0 0.0
    %6751 = vmatpush1.msra.mxu0 0.0
    %6752 = vmatprep.subr.mxu0 0.0
    %6753 = vmatpush1.msra.mxu0 0.0
    %6754 = vmatprep.subr.mxu0 0.0
    %6755 = vmatpush1.msra.mxu0 0.0
    %6756 = vmatprep.subr.mxu0 0.0
    %6757 = vmatpush1.msra.mxu0 0.0
    %6758 = vmatprep.subr.mxu0 0.0
    %6759 = vmatpush1.msra.mxu0 0.0
    %6760 = vmatprep.subr.mxu0 0.0
    %6761 = vmatpush1.msra.mxu0 0.0
    %6762 = vmatprep.subr.mxu0 0.0
    %6763 = vmatpush1.msra.mxu0 0.0
    %6764 = vmatprep.subr.mxu0 0.0
    %6765 = vmatpush1.msra.mxu0 0.0
    %6766 = vmatprep.subr.mxu0 0.0
    %6767 = vmatpush1.msra.mxu0 0.0
    %6768 = vmatprep.subr.mxu0 0.0
    %6769 = vmatpush1.msra.mxu0 0.0
    %6770 = vmatprep.subr.mxu0 0.0
    %6771 = vmatpush1.msra.mxu0 0.0
    %6772 = vmatprep.subr.mxu0 0.0
    %6773 = vmatpush1.msra.mxu0 0.0
    %6774 = vmatprep.subr.mxu0 0.0
    %6775 = vmatpush1.msra.mxu0 0.0
    %6776 = vmatprep.subr.mxu0 0.0
    %6777 = vmatpush1.msra.mxu0 0.0
    %6778 = vmatprep.subr.mxu0 0.0
    %6779 = vmatpush1.msra.mxu0 0.0
    %6780 = vmatprep.subr.mxu0 0.0
    %6781 = vmatpush1.msra.mxu0 0.0
    %6782 = vmatprep.subr.mxu0 0.0
    %6783 = vmatpush1.msra.mxu0 0.0
    %6784 = vmatprep.subr.mxu0 0.0
    %6785 = vmatpush1.msra.mxu0 0.0
    %6786 = vmatprep.subr.mxu0 0.0
    %6787 = vmatpush1.msra.mxu0 0.0
    %6788 = vmatprep.subr.mxu0 0.0
    %6789 = vmatpush1.msra.mxu0 0.0
    %6790 = vmatprep.subr.mxu0 0.0
    %6791 = vmatpush1.msra.mxu0 0.0
    %6792 = vmatprep.subr.mxu0 0.0
    %6793 = vmatpush1.msra.mxu0 0.0
    %6794 = vmatprep.subr.mxu0 0.0
    %6795 = vmatpush1.msra.mxu0 0.0
    %6796 = vmatprep.subr.mxu0 0.0
    %6797 = vmatpush1.msra.mxu0 0.0
    %6798 = vmatprep.mubr.f32.mxu0 0.0
    %v6799 = vand.u32 %v6442, 4294901760
    %v6800 = vsub.f32 %v6442, %v6799
    %v6801 = vand.u32 %v6800, 4294901760
    %6802 = vmatmul.mubr.f32.gmra.mrb[0].mxu0 %v6801
    %v6803 = vpop.f32.mrb[0].mxu0
    %v6804 = vpop.f32.mrb[0].mxu0
    %v6805 = vadd.f32 %v6724, %v6804
    %6806 = vdwg.mxu0
    %v6807 = vand.u32 %v105, 4294901760
    %v6808 = vsub.f32 %v105, %v6807
    %v6809 = vand.u32 %v6808, 4294901760
    %6810 = vmatprep.subr.mxu0 %v6809
    %v6811 = vand.u32 %v104, 4294901760
    %v6812 = vsub.f32 %v104, %v6811
    %v6813 = vand.u32 %v6812, 4294901760
    %6814 = vmatpush1.msra.mxu0 %v6813
    %v6815 = vand.u32 %v107, 4294901760
    %v6816 = vsub.f32 %v107, %v6815
    %v6817 = vand.u32 %v6816, 4294901760
    %6818 = vmatprep.subr.mxu0 %v6817
    %v6819 = vand.u32 %v106, 4294901760
    %v6820 = vsub.f32 %v106, %v6819
    %v6821 = vand.u32 %v6820, 4294901760
    %6822 = vmatpush1.msra.mxu0 %v6821
    %v6823 = vand.u32 %v109, 4294901760
    %v6824 = vsub.f32 %v109, %v6823
    %v6825 = vand.u32 %v6824, 4294901760
    %6826 = vmatprep.subr.mxu0 %v6825
    %v6827 = vand.u32 %v108, 4294901760
    %v6828 = vsub.f32 %v108, %v6827
    %v6829 = vand.u32 %v6828, 4294901760
    %6830 = vmatpush1.msra.mxu0 %v6829
    %v6831 = vand.u32 %v111, 4294901760
    %v6832 = vsub.f32 %v111, %v6831
    %v6833 = vand.u32 %v6832, 4294901760
    %6834 = vmatprep.subr.mxu0 %v6833
    %v6835 = vand.u32 %v110, 4294901760
    %v6836 = vsub.f32 %v110, %v6835
    %v6837 = vand.u32 %v6836, 4294901760
    %6838 = vmatpush1.msra.mxu0 %v6837
    %6839 = vmatprep.subr.mxu0 0.0
    %6840 = vmatpush1.msra.mxu0 0.0
    %6841 = vmatprep.subr.mxu0 0.0
    %6842 = vmatpush1.msra.mxu0 0.0
    %6843 = vmatprep.subr.mxu0 0.0
    %6844 = vmatpush1.msra.mxu0 0.0
    %6845 = vmatprep.subr.mxu0 0.0
    %6846 = vmatpush1.msra.mxu0 0.0
    %6847 = vmatprep.subr.mxu0 0.0
    %6848 = vmatpush1.msra.mxu0 0.0
    %6849 = vmatprep.subr.mxu0 0.0
    %6850 = vmatpush1.msra.mxu0 0.0
    %6851 = vmatprep.subr.mxu0 0.0
    %6852 = vmatpush1.msra.mxu0 0.0
    %6853 = vmatprep.subr.mxu0 0.0
    %6854 = vmatpush1.msra.mxu0 0.0
    %6855 = vmatprep.subr.mxu0 0.0
    %6856 = vmatpush1.msra.mxu0 0.0
    %6857 = vmatprep.subr.mxu0 0.0
    %6858 = vmatpush1.msra.mxu0 0.0
    %6859 = vmatprep.subr.mxu0 0.0
    %6860 = vmatpush1.msra.mxu0 0.0
    %6861 = vmatprep.subr.mxu0 0.0
    %6862 = vmatpush1.msra.mxu0 0.0
    %6863 = vmatprep.subr.mxu0 0.0
    %6864 = vmatpush1.msra.mxu0 0.0
    %6865 = vmatprep.subr.mxu0 0.0
    %6866 = vmatpush1.msra.mxu0 0.0
    %6867 = vmatprep.subr.mxu0 0.0
    %6868 = vmatpush1.msra.mxu0 0.0
    %6869 = vmatprep.subr.mxu0 0.0
    %6870 = vmatpush1.msra.mxu0 0.0
    %6871 = vmatprep.subr.mxu0 0.0
    %6872 = vmatpush1.msra.mxu0 0.0
    %6873 = vmatprep.subr.mxu0 0.0
    %6874 = vmatpush1.msra.mxu0 0.0
    %6875 = vmatprep.subr.mxu0 0.0
    %6876 = vmatpush1.msra.mxu0 0.0
    %6877 = vmatprep.subr.mxu0 0.0
    %6878 = vmatpush1.msra.mxu0 0.0
    %6879 = vmatprep.subr.mxu0 0.0
    %6880 = vmatpush1.msra.mxu0 0.0
    %6881 = vmatprep.subr.mxu0 0.0
    %6882 = vmatpush1.msra.mxu0 0.0
    %6883 = vmatprep.subr.mxu0 0.0
    %6884 = vmatpush1.msra.mxu0 0.0
    %6885 = vmatprep.subr.mxu0 0.0
    %6886 = vmatpush1.msra.mxu0 0.0
    %6887 = vmatprep.subr.mxu0 0.0
    %6888 = vmatpush1.msra.mxu0 0.0
    %6889 = vmatprep.subr.mxu0 0.0
    %6890 = vmatpush1.msra.mxu0 0.0
    %6891 = vmatprep.subr.mxu0 0.0
    %6892 = vmatpush1.msra.mxu0 0.0
    %6893 = vmatprep.subr.mxu0 0.0
    %6894 = vmatpush1.msra.mxu0 0.0
    %6895 = vmatprep.mubr.f32.mxu0 0.0
    %v6896 = vand.u32 %v6442, 4294901760
    %6897 = vmatmul.mubr.f32.gmra.mrb[0].mxu0 %v6896
    %v6898 = vpop.f32.mrb[0].mxu0
    %v6899 = vpop.f32.mrb[0].mxu0
    %v6900 = vadd.f32 %v6805, %v6899
    %6901 = vdwg.mxu0
    %v6902 = vand.u32 %v105, 4294901760
    %6903 = vmatprep.subr.mxu0 %v6902
    %v6904 = vand.u32 %v104, 4294901760
    %6905 = vmatpush1.msra.mxu0 %v6904
    %v6906 = vand.u32 %v107, 4294901760
    %6907 = vmatprep.subr.mxu0 %v6906
    %v6908 = vand.u32 %v106, 4294901760
    %6909 = vmatpush1.msra.mxu0 %v6908
    %v6910 = vand.u32 %v109, 4294901760
    %6911 = vmatprep.subr.mxu0 %v6910
    %v6912 = vand.u32 %v108, 4294901760
    %6913 = vmatpush1.msra.mxu0 %v6912
    %v6914 = vand.u32 %v111, 4294901760
    %6915 = vmatprep.subr.mxu0 %v6914
    %v6916 = vand.u32 %v110, 4294901760
    %6917 = vmatpush1.msra.mxu0 %v6916
    %6918 = vmatprep.subr.mxu0 0.0
    %6919 = vmatpush1.msra.mxu0 0.0
    %6920 = vmatprep.subr.mxu0 0.0
    %6921 = vmatpush1.msra.mxu0 0.0
    %6922 = vmatprep.subr.mxu0 0.0
    %6923 = vmatpush1.msra.mxu0 0.0
    %6924 = vmatprep.subr.mxu0 0.0
    %6925 = vmatpush1.msra.mxu0 0.0
    %6926 = vmatprep.subr.mxu0 0.0
    %6927 = vmatpush1.msra.mxu0 0.0
    %6928 = vmatprep.subr.mxu0 0.0
    %6929 = vmatpush1.msra.mxu0 0.0
    %6930 = vmatprep.subr.mxu0 0.0
    %6931 = vmatpush1.msra.mxu0 0.0
    %6932 = vmatprep.subr.mxu0 0.0
    %6933 = vmatpush1.msra.mxu0 0.0
    %6934 = vmatprep.subr.mxu0 0.0
    %6935 = vmatpush1.msra.mxu0 0.0
    %6936 = vmatprep.subr.mxu0 0.0
    %6937 = vmatpush1.msra.mxu0 0.0
    %6938 = vmatprep.subr.mxu0 0.0
    %6939 = vmatpush1.msra.mxu0 0.0
    %6940 = vmatprep.subr.mxu0 0.0
    %6941 = vmatpush1.msra.mxu0 0.0
    %6942 = vmatprep.subr.mxu0 0.0
    %6943 = vmatpush1.msra.mxu0 0.0
    %6944 = vmatprep.subr.mxu0 0.0
    %6945 = vmatpush1.msra.mxu0 0.0
    %6946 = vmatprep.subr.mxu0 0.0
    %6947 = vmatpush1.msra.mxu0 0.0
    %6948 = vmatprep.subr.mxu0 0.0
    %6949 = vmatpush1.msra.mxu0 0.0
    %6950 = vmatprep.subr.mxu0 0.0
    %6951 = vmatpush1.msra.mxu0 0.0
    %6952 = vmatprep.subr.mxu0 0.0
    %6953 = vmatpush1.msra.mxu0 0.0
    %6954 = vmatprep.subr.mxu0 0.0
    %6955 = vmatpush1.msra.mxu0 0.0
    %6956 = vmatprep.subr.mxu0 0.0
    %6957 = vmatpush1.msra.mxu0 0.0
    %6958 = vmatprep.subr.mxu0 0.0
    %6959 = vmatpush1.msra.mxu0 0.0
    %6960 = vmatprep.subr.mxu0 0.0
    %6961 = vmatpush1.msra.mxu0 0.0
    %6962 = vmatprep.subr.mxu0 0.0
    %6963 = vmatpush1.msra.mxu0 0.0
    %6964 = vmatprep.subr.mxu0 0.0
    %6965 = vmatpush1.msra.mxu0 0.0
    %6966 = vmatprep.subr.mxu0 0.0
    %6967 = vmatpush1.msra.mxu0 0.0
    %6968 = vmatprep.subr.mxu0 0.0
    %6969 = vmatpush1.msra.mxu0 0.0
    %6970 = vmatprep.subr.mxu0 0.0
    %6971 = vmatpush1.msra.mxu0 0.0
    %6972 = vmatprep.subr.mxu0 0.0
    %6973 = vmatpush1.msra.mxu0 0.0
    %6974 = vmatprep.mubr.f32.mxu0 0.0
    %v6975 = vand.u32 %v6442, 4294901760
    %6976 = vmatmul.mubr.f32.gmra.mrb[0].mxu0 %v6975
    %v6977 = vpop.f32.mrb[0].mxu0
    %v6978 = vpop.f32.mrb[0].mxu0
    %v6979 = vadd.f32 %v6900, %v6978
    %6980 = vdwg.mxu0
    %v6981 = vadd.f32 %v6979, %v2897
    %v6982 = vmul.f32 %v2902, %v6407
    %v6983 = vmul.f32 %v2907, %v6981
    %v6984 = vadd.f32 %v6982, %v6983
    %v6986 = vrot.slane %v3492, 6
    %v6989 = vrot.slane %v4075, 4
    %v6992 = vrot.slane %v4658, 2
    %v6995 = vrot.slane %v5824, 6
    %v6998 = vrot.slane %v6407, 4
    %v7001 = vrot.slane %v6984, 2
    %vm7003 = vcmask 1041408
    %v7004 = vsel %vm7003, %v2909, %v6986
    %vm7005 = vcmask 1043456
    %v7006 = vsel %vm7005, %v7004, %v6989
    %vm7007 = vcmask 1045504
    %v7008 = vsel %vm7007, %v7006, %v6992
    %v7009 = vsel %vm7003, %v5241, %v6995
    %v7010 = vsel %vm7005, %v7009, %v6998
    %v7011 = vsel %vm7007, %v7010, %v7001
    %vm7012 = vcmask 48128
    %v7013 = vsel %vm7012, %v7008, -inf
    %7014 = vmax.xlane.f32.xlu0 %v7013
    %v7015 = vpop.xlane.xlu0 %7014
    %v7016 = vsel %vm7012, %v7011, -inf
    %7017 = vmax.xlane.f32.xlu0 %v7016
    %v7018 = vpop.xlane.xlu0 %7017
    %v7019 = vsub.f32 %v7008, %v7015
    %v7020 = vsub.f32 %v7011, %v7018
    %v7021 = vmul.f32 %v7019, 1.442695
    %v7022 = vpow.pop %v7021
    %v7023 = vmul.f32 %v7020, 1.442695
    %v7024 = vpow.pop %v7023
    %v7025 = vsel %vm7012, %v7022, 0.0
    %7026 = vadd.xlane.f32.xlu0 %v7025
    %v7027 = vpop.xlane.xlu0 %7026
    %v7028 = vsel %vm7012, %v7024, 0.0
    %7029 = vadd.xlane.f32.xlu0 %v7028
    %v7030 = vpop.xlane.xlu0 %7029
    %v7031 = vlog2.pop %v7027
    %v7032 = vmul.f32 %v7031, 0.6931472
    %v7033 = vlog2.pop %v7030
    %v7034 = vmul.f32 %v7033, 0.6931472
    %v7035 = vsub.f32 %v7019, %v7032
    %v7036 = vsub.f32 %v7020, %v7034
    %7037 = vst.msk [vmem:[%s3] sm:$0xff] %vm7012, %v7035
    %7038 = vst.msk [vmem:[%s3 + $0x8] sm:$0xff] %vm7012, %v7036
    // Predicated region
    $region18: #{rnn_test_forward.1} parent=1 // pred_check
      _
    $region19: #{rnn_test_forward.1} parent=1 // pred_check_branch
      %7040 = sbr.rel (0) target = $region21
    $region20: #{rnn_test_forward.1} parent=1 // pred_region
      _
    $region21: #{rnn_test_forward.1} parent=1 // pred_fallthru
      _
    // Predicated region
    $region22: #{rnn_test_forward.1} parent=1 // pred_check
      _
    $region23: #{rnn_test_forward.1} parent=1 // pred_check_branch
      %7042 = sbr.rel (0) target = $region25
    $region24: #{rnn_test_forward.1} parent=1 // pred_region
      _
    $region25: #{rnn_test_forward.1} parent=1 // pred_fallthru
      _
    %7043 = vsyncpa [#allocation3], 1

</llo_original>
